<compile_context>
chip_gen: v7x
topology: tpu7x:2x2x1
jax: 0.10.0
libtpu: 0.0.40
codegen_flags: <defaults>
</compile_context>

<pallas_src>
import jax
import jax.numpy as jnp
from jax.experimental import pallas as pl
from jax.experimental.pallas import tpu as pltpu

NUM_LAYERS = 12          # wav2vec2-base transformer layers from extract_features
NUM_FRAMES = 49          # frames so that 12*49 == 588 (required by Linear(588,200))
HIDDEN = 768
H1 = 350                 # Linear(768, 350)
H1_PAD = 384             # 3 * 128  (lane aligned)
FLAT = NUM_LAYERS * NUM_FRAMES     # 588
FLAT_PAD = 640           # 5 * 128  (lane aligned)
H2 = 200
NUM_CLASSES = 8
FRAME_STRIDE = 320       # wav2vec2 feature-extractor total stride

# K-split of the HIDDEN=768 contraction (review item 1).  2 -> 384-wide blocks.
# Keep HIDDEN % NUM_K_BLOCKS == 0 and (HIDDEN // NUM_K_BLOCKS) % 128 == 0.
NUM_K_BLOCKS = 2

# Rows of the packed small-parameter buffer (review item 2).
ROW_B1, ROW_W2, ROW_B3, ROW_B4, ROW_B2 = 0, 1, 2, 3, 4
PARAM_ROWS = 8


def speechrec_heads_kernel(feat_ref, w1_ref, w3_ref, w4_ref, p_ref,
                           out_ref, acc_ref):
    k = pl.program_id(0)

    @pl.when(k == 0)
    def _init():
        acc_ref[...] = jnp.zeros_like(acc_ref)

    # ---- classifier_head_one: Linear(768,350), K-split over the grid -------
    # acc[t, c] += sum_k feat[t, k] * w1t[k, c]        [640, 384] f32
    acc_ref[...] += jnp.dot(feat_ref[...], w1_ref[...],
                            preferred_element_type=jnp.float32)

    @pl.when(k == pl.num_programs(0) - 1)
    def _epilogue():
        p = p_ref[...]                                   # [8, 384] f32 (3 vregs)
        b1 = p[ROW_B1:ROW_B1 + 1, :]                     # [1, 384]
        w2 = p[ROW_W2:ROW_W2 + 1, :]                     # [1, 384]
        b2 = p[ROW_B2:ROW_B2 + 1, 0:1]                   # [1, 1]
        b3 = p[ROW_B3:ROW_B3 + 1, 0:H2]                  # [1, 200]
        b4 = p[ROW_B4:ROW_B4 + 1, 0:NUM_CLASSES]         # [1, 8]

        # bias + Dropout(eval: identity) + ReLU
        h = jnp.maximum(acc_ref[...] + b1, 0.0)          # [640, 384] f32

        # Linear(350,1) + ReLU as a VPU/XLU matvec (lane-axis reduce).
        y1 = jnp.sum(h * w2, axis=1, keepdims=True)      # [640, 1] f32
        y1 = jnp.maximum(y1 + b2, 0.0)

        # ---- classifier_head_two ---------------------------------------
        # Linear(588,200) on the VPU/XLU: broadcast y1 over lanes, sublane
        # reduce (review item 5; avoids a width-1 MXU weight push).
        # Padded rows 588..639 of w3tp are zero -> no leak from padded y1.
        h2 = jnp.sum(y1 * w3_ref[...].astype(jnp.float32),
                     axis=0, keepdims=True)              # [1, 200] f32
        h2 = jnp.maximum(h2 + b3, 0.0)

        # Linear(200,8): tiny MXU matmul, bf16 operands, f32 accumulation.
        logits = jnp.dot(h2.astype(jnp.bfloat16), w4_ref[...],
                         preferred_element_type=jnp.float32) + b4   # [1, 8]

        # LogSoftmax over the 8 classes (lane axis), numerically stable, f32.
        m = jnp.max(logits, axis=-1, keepdims=True)
        lse = jnp.log(jnp.sum(jnp.exp(logits - m), axis=-1, keepdims=True)) + m
        out_ref[...] = logits - lse


def speechrec_heads(feat_pad, params, *, k_blocks=NUM_K_BLOCKS):
    """feat_pad: [640, 768] bf16 (rows 588..639 zero).  params: packed tuple."""
    w1t, w3tp, w4t, smallbuf = params
    assert HIDDEN % k_blocks == 0
    kb = HIDDEN // k_blocks
    assert kb % 128 == 0

    args = (feat_pad, w1t, w3tp, w4t, smallbuf)
    bytes_accessed = sum(int(a.size) * a.dtype.itemsize for a in args) + NUM_CLASSES * 4
    flops = (2 * FLAT_PAD * HIDDEN * H1_PAD     # big matmul
             + 2 * FLAT_PAD * H1_PAD            # y1 VPU matvec
             + 2 * FLAT_PAD * H2                # head-two VPU contraction
             + 2 * H2 * NUM_CLASSES)            # final matmul

    out = pl.pallas_call(
        speechrec_heads_kernel,
        out_shape=jax.ShapeDtypeStruct((1, NUM_CLASSES), jnp.float32),
        grid_spec=pltpu.PrefetchScalarGridSpec(
            num_scalar_prefetch=0,
            grid=(k_blocks,),
            in_specs=[
                pl.BlockSpec((FLAT_PAD, kb), lambda k: (0, k)),      # feat K-slice
                pl.BlockSpec((kb, H1_PAD), lambda k: (k, 0)),        # w1t K-slice
                pl.BlockSpec((FLAT_PAD, H2), lambda k: (0, 0)),      # w3tp resident
                pl.BlockSpec((H2, NUM_CLASSES), lambda k: (0, 0)),   # w4t resident
                pl.BlockSpec((PARAM_ROWS, H1_PAD), lambda k: (0, 0)),# packed biases
            ],
            out_specs=pl.BlockSpec((1, NUM_CLASSES), lambda k: (0, 0)),
            scratch_shapes=[pltpu.VMEM((FLAT_PAD, H1_PAD), jnp.float32)],
        ),
        compiler_params=pltpu.CompilerParams(
            dimension_semantics=("arbitrary",)),     # reduction axis
        cost_estimate=pl.CostEstimate(flops=flops,
                                      transcendentals=NUM_CLASSES + 1,
                                      bytes_accessed=bytes_accessed),
    )(*args)
    return out[0]                                   # [8]


def encoder_stub(waveform, proj, layer_scales):
    # TODO(synk): the frozen pretrained torchaudio WAV2VEC2_ASR_BASE_960H encoder
    # (conv feature extractor + 12 transformer layers) cannot be reproduced
    # without its checkpoint; this deterministic stand-in only mimics
    # extract_features' output structure: 12 layer maps of [frames=49, hidden=768]
    # (batch=1 squeezed away), flattened layer-major like torch.flatten.
    frames = waveform.reshape(NUM_FRAMES, FRAME_STRIDE)               # batch=1
    base = jnp.tanh(frames @ proj)                                    # [49, 768]
    feats = jnp.tanh(base[None, :, :] * layer_scales[:, None, None])  # [12, 49, 768]
    return feats.reshape(FLAT, HIDDEN)                                # [588, 768] f32


def pack_features(feat2d):
    # Pad FLAT 588->640 and cast to bf16.  No transpose.  Under jit this fuses
    # into the encoder epilogue (review item 3).  Padded rows are explicit zeros.
    pad = jnp.zeros((FLAT_PAD, HIDDEN), jnp.bfloat16)
    return pad.at[:FLAT, :].set(feat2d.astype(jnp.bfloat16))


def speechrec_forward(waveform, proj, layer_scales, params):
    feat2d = encoder_stub(waveform, proj, layer_scales)
    return speechrec_heads(pack_features(feat2d), params)


def _pad_to(x, shape):
    out = jnp.zeros(shape, x.dtype)
    return out.at[tuple(slice(0, s) for s in x.shape)].set(x)


def pack_heads_params(w1, b1, w2, b2, w3, b3, w4, b4):
    """PyTorch Linear params (W=[out,in], b=[out]) -> kernel-side packing.
    Static, done once at init (free relative to per-call cost)."""
    w1t = _pad_to(w1.T, (HIDDEN, H1_PAD)).astype(jnp.bfloat16)     # [768, 384]
    w3tp = _pad_to(w3.T, (FLAT_PAD, H2)).astype(jnp.bfloat16)      # [640, 200]
    w4t = w4.T.astype(jnp.bfloat16)                                # [200, 8]
    smallbuf = jnp.zeros((PARAM_ROWS, H1_PAD), jnp.float32)        # [8, 384]
    smallbuf = smallbuf.at[ROW_B1, :H1].set(b1)
    smallbuf = smallbuf.at[ROW_W2, :H1].set(w2.reshape(-1))
    smallbuf = smallbuf.at[ROW_B3, :H2].set(b3)
    smallbuf = smallbuf.at[ROW_B4, :NUM_CLASSES].set(b4)
    smallbuf = smallbuf.at[ROW_B2, 0].set(b2[0])
    return (w1t, w3tp, w4t, smallbuf)


def reference_heads(feat2d, w1, b1, w2, b2, w3, b3, w4, b4):
    # pure f32 JAX reference matching the PyTorch module (eval mode)
    h = jnp.maximum(feat2d @ w1.T + b1, 0.0)                 # [588, 350]
    y1 = jnp.maximum(h @ w2.T + b2, 0.0).reshape(-1)         # [588]
    h2 = jnp.maximum(w3 @ y1 + b3, 0.0)                      # [200]
    logits = w4 @ h2 + b4                                    # [8]
    return logits - jax.nn.logsumexp(logits)


if __name__ == "__main__":
    key = jax.random.PRNGKey(0)
    kx, kp, k1, k2, k3, k4 = jax.random.split(key, 6)

    # raw waveform, batch=1 (squeeze(dim=1) in the torch module requires batch==1)
    x = jax.random.normal(kx, (1, NUM_FRAMES * FRAME_STRIDE), jnp.float32)

    # deterministic stand-in encoder params
    proj = jax.random.normal(kp, (FRAME_STRIDE, HIDDEN), jnp.float32) / (FRAME_STRIDE ** 0.5)
    layer_scales = 1.0 + 0.05 * jnp.arange(NUM_LAYERS, dtype=jnp.float32)

    # deterministic classifier-head params (PyTorch Linear shapes: W=[out,in], b=[out])
    def lin(k, fan_in, fan_out):
        kw, kb = jax.random.split(k)
        w = jax.random.normal(kw, (fan_out, fan_in), jnp.float32) / (fan_in ** 0.5)
        b = 0.01 * jax.random.normal(kb, (fan_out,), jnp.float32)
        return w, b

    w1_pt, b1_pt = lin(k1, HIDDEN, H1)          # Linear(768, 350)
    w2_pt, b2_pt = lin(k2, H1, 1)               # Linear(350, 1)
    w3_pt, b3_pt = lin(k3, FLAT, H2)            # Linear(588, 200)
    w4_pt, b4_pt = lin(k4, H2, NUM_CLASSES)     # Linear(200, 8)

    params = pack_heads_params(w1_pt, b1_pt, w2_pt, b2_pt,
                               w3_pt, b3_pt, w4_pt, b4_pt)

    fwd = jax.jit(speechrec_forward)
    out = jax.block_until_ready(fwd(x, proj, layer_scales, params))

    assert out.shape == (NUM_CLASSES,)
    assert bool(jnp.isfinite(out).all())
    # log-softmax identity: exp(out) sums to ~1 (exact up to f32 rounding)
    assert abs(float(jnp.exp(out).sum()) - 1.0) < 1e-3

    # f32 reference check (tolerance loosened for bf16 matmul operands/weights)
    feat2d = encoder_stub(x, proj, layer_scales)
    ref = reference_heads(feat2d, w1_pt, b1_pt, w2_pt, b2_pt,
                          w3_pt, b3_pt, w4_pt, b4_pt)
    assert float(jnp.max(jnp.abs(out - ref))) < 0.1

    print("KERNEL_OK")
</pallas_src>

<mosaic_0001>
module attributes {stable_mosaic.version = 11 : i64} {
  func.func @speechrec_heads_kernel(%arg0: i32, %arg1: memref<640x384xbf16, #tpu.memory_space<vmem>>, %arg2: memref<384x384xbf16, #tpu.memory_space<vmem>>, %arg3: memref<640x200xbf16, #tpu.memory_space<vmem>>, %arg4: memref<200x8xbf16, #tpu.memory_space<vmem>>, %arg5: memref<8x384xf32, #tpu.memory_space<vmem>>, %arg6: memref<1x8xf32, #tpu.memory_space<vmem>>, %arg7: memref<640x384xf32, #tpu.memory_space<vmem>>) attributes {dimension_semantics = [#tpu.dimension_semantics<arbitrary>], iteration_bounds = array<i64: 2>, scalar_prefetch = 0 : i64, scratch_operands = 1 : i64, tpu.core_type = #tpu.core_type<tc>, window_params = [{transform_indices = @transform_0, window_bounds = array<i64: 640, 384>}, {transform_indices = @transform_1, window_bounds = array<i64: 384, 384>}, {pipeline_mode = #tpu.pipeline_mode<synchronous>, transform_indices = @transform_2, window_bounds = array<i64: 640, 200>}, {pipeline_mode = #tpu.pipeline_mode<synchronous>, transform_indices = @transform_3, window_bounds = array<i64: 200, 8>}, {pipeline_mode = #tpu.pipeline_mode<synchronous>, transform_indices = @transform_4, window_bounds = array<i64: 8, 384>}, {pipeline_mode = #tpu.pipeline_mode<synchronous>, transform_indices = @transform_5, window_bounds = array<i64: 1, 8>}]} {
    %c0_i32 = arith.constant 0 : i32
    %0 = arith.cmpi eq, %arg0, %c0_i32 : i32
    %1 = arith.extui %0 : i1 to i32
    %c0_i32_0 = arith.constant 0 : i32
    %2 = arith.cmpi ne, %1, %c0_i32_0 : i32
    scf.if %2 {
      %cst_9 = arith.constant 0.000000e+00 : f32
      %12 = vector.broadcast %cst_9 : f32 to vector<640x384xf32>
      %c0_10 = arith.constant 0 : index
      %c0_11 = arith.constant 0 : index
      %13 = vector.load %arg7[%c0_10, %c0_11] : memref<640x384xf32, #tpu.memory_space<vmem>>, vector<640x384xf32>
      tpu.vector_store %arg7[%c0_10, %c0_11], %12 {strides = array<i32>} : memref<640x384xf32, #tpu.memory_space<vmem>>, vector<640x384xf32>,
    } else {
    }
    %c0 = arith.constant 0 : index
    %c0_1 = arith.constant 0 : index
    %3 = vector.load %arg7[%c0, %c0_1] : memref<640x384xf32, #tpu.memory_space<vmem>>, vector<640x384xf32>
    %c0_2 = arith.constant 0 : index
    %c0_3 = arith.constant 0 : index
    %4 = vector.load %arg1[%c0_2, %c0_3] : memref<640x384xbf16, #tpu.memory_space<vmem>>, vector<640x384xbf16>
    %c0_4 = arith.constant 0 : index
    %c0_5 = arith.constant 0 : index
    %5 = vector.load %arg2[%c0_4, %c0_5] : memref<384x384xbf16, #tpu.memory_space<vmem>>, vector<384x384xbf16>
    %cst = arith.constant dense<0.000000e+00> : vector<640x384xf32>
    %6 = tpu.matmul %4, %5, %cst {dimension_numbers = #tpu.dot_dimension_numbers<[1], [0], [0], [1], [0, 0, 1, 1], [], []>} : vector<640x384xbf16>, vector<384x384xbf16>, vector<640x384xf32> -> vector<640x384xf32>
    %7 = arith.addf %3, %6 : vector<640x384xf32>
    %c0_6 = arith.constant 0 : index
    %c0_7 = arith.constant 0 : index
    %8 = vector.load %arg7[%c0_6, %c0_7] : memref<640x384xf32, #tpu.memory_space<vmem>>, vector<640x384xf32>
    tpu.vector_store %arg7[%c0_6, %c0_7], %7 {strides = array<i32>} : memref<640x384xf32, #tpu.memory_space<vmem>>, vector<640x384xf32>,
    %c1_i32 = arith.constant 1 : i32
    %9 = arith.cmpi eq, %arg0, %c1_i32 : i32
    %10 = arith.extui %9 : i1 to i32
    %c0_i32_8 = arith.constant 0 : i32
    %11 = arith.cmpi ne, %10, %c0_i32_8 : i32
    scf.if %11 {
      %c0_9 = arith.constant 0 : index
      %c0_10 = arith.constant 0 : index
      %12 = vector.load %arg5[%c0_9, %c0_10] : memref<8x384xf32, #tpu.memory_space<vmem>>, vector<8x384xf32>
      %13 = vector.extract_strided_slice %12 {offsets = [0, 0], sizes = [1, 384], strides = [1, 1]} : vector<8x384xf32> to vector<1x384xf32>
      %14 = vector.extract_strided_slice %12 {offsets = [1, 0], sizes = [1, 384], strides = [1, 1]} : vector<8x384xf32> to vector<1x384xf32>
      %15 = vector.extract_strided_slice %12 {offsets = [4, 0], sizes = [1, 1], strides = [1, 1]} : vector<8x384xf32> to vector<1x1xf32>
      %16 = vector.extract_strided_slice %12 {offsets = [2, 0], sizes = [1, 200], strides = [1, 1]} : vector<8x384xf32> to vector<1x200xf32>
      %17 = vector.extract_strided_slice %12 {offsets = [3, 0], sizes = [1, 8], strides = [1, 1]} : vector<8x384xf32> to vector<1x8xf32>
      %c0_11 = arith.constant 0 : index
      %c0_12 = arith.constant 0 : index
      %18 = vector.load %arg7[%c0_11, %c0_12] : memref<640x384xf32, #tpu.memory_space<vmem>>, vector<640x384xf32>
      %19 = vector.broadcast %13 : vector<1x384xf32> to vector<640x384xf32>
      %20 = arith.addf %18, %19 : vector<640x384xf32>
      %cst_13 = arith.constant 0.000000e+00 : f32
      %21 = vector.broadcast %cst_13 : f32 to vector<640x384xf32>
      %22 = arith.maximumf %20, %21 : vector<640x384xf32>
      %23 = vector.broadcast %14 : vector<1x384xf32> to vector<640x384xf32>
      %24 = arith.mulf %22, %23 : vector<640x384xf32>
      %cst_14 = arith.constant dense<0.000000e+00> : vector<640xf32>
      %25 = vector.multi_reduction <add>, %24, %cst_14 [1] : vector<640x384xf32> to vector<640xf32>
      %26 = vector.shape_cast %25 : vector<640xf32> to vector<640x1xf32>
      %27 = vector.broadcast %15 : vector<1x1xf32> to vector<640x1xf32>
      %28 = arith.addf %26, %27 : vector<640x1xf32>
      %cst_15 = arith.constant 0.000000e+00 : f32
      %29 = vector.broadcast %cst_15 : f32 to vector<640x1xf32>
      %30 = arith.maximumf %28, %29 : vector<640x1xf32>
      %c0_16 = arith.constant 0 : index
      %c0_17 = arith.constant 0 : index
      %31 = vector.load %arg3[%c0_16, %c0_17] : memref<640x200xbf16, #tpu.memory_space<vmem>>, vector<640x200xbf16>
      %32 = arith.extf %31 : vector<640x200xbf16> to vector<640x200xf32>
      %33 = vector.broadcast %30 : vector<640x1xf32> to vector<640x200xf32>
      %34 = arith.mulf %33, %32 : vector<640x200xf32>
      %cst_18 = arith.constant dense<0.000000e+00> : vector<200xf32>
      %35 = vector.multi_reduction <add>, %34, %cst_18 [0] : vector<640x200xf32> to vector<200xf32>
      %36 = vector.shape_cast %35 : vector<200xf32> to vector<1x200xf32>
      %37 = arith.addf %36, %16 : vector<1x200xf32>
      %cst_19 = arith.constant 0.000000e+00 : f32
      %38 = vector.broadcast %cst_19 : f32 to vector<1x200xf32>
      %39 = arith.maximumf %37, %38 : vector<1x200xf32>
      %40 = arith.truncf %39 : vector<1x200xf32> to vector<1x200xbf16>
      %c0_20 = arith.constant 0 : index
      %c0_21 = arith.constant 0 : index
      %41 = vector.load %arg4[%c0_20, %c0_21] : memref<200x8xbf16, #tpu.memory_space<vmem>>, vector<200x8xbf16>
      %cst_22 = arith.constant dense<0.000000e+00> : vector<1x8xf32>
      %42 = tpu.matmul %40, %41, %cst_22 {dimension_numbers = #tpu.dot_dimension_numbers<[1], [0], [0], [1], [0, 0, 1, 1], [], []>} : vector<1x200xbf16>, vector<200x8xbf16>, vector<1x8xf32> -> vector<1x8xf32>
      %43 = arith.addf %42, %17 : vector<1x8xf32>
      %cst_23 = arith.constant dense<0xFF800000> : vector<1xf32>
      %44 = vector.multi_reduction <maximumf>, %43, %cst_23 [1] : vector<1x8xf32> to vector<1xf32>
      %45 = vector.shape_cast %44 : vector<1xf32> to vector<1x1xf32>
      %46 = vector.broadcast %45 : vector<1x1xf32> to vector<1x8xf32>
      %47 = arith.subf %43, %46 : vector<1x8xf32>
      %48 = math.exp %47 : vector<1x8xf32>
      %cst_24 = arith.constant dense<0.000000e+00> : vector<1xf32>
      %49 = vector.multi_reduction <add>, %48, %cst_24 [1] : vector<1x8xf32> to vector<1xf32>
      %50 = vector.shape_cast %49 : vector<1xf32> to vector<1x1xf32>
      %51 = math.log %50 : vector<1x1xf32>
      %52 = arith.addf %51, %45 : vector<1x1xf32>
      %53 = vector.broadcast %52 : vector<1x1xf32> to vector<1x8xf32>
      %54 = arith.subf %43, %53 : vector<1x8xf32>
      %c0_25 = arith.constant 0 : index
      %c0_26 = arith.constant 0 : index
      %55 = vector.load %arg6[%c0_25, %c0_26] : memref<1x8xf32, #tpu.memory_space<vmem>>, vector<1x8xf32>
      tpu.vector_store %arg6[%c0_25, %c0_26], %54 {strides = array<i32>} : memref<1x8xf32, #tpu.memory_space<vmem>>, vector<1x8xf32>,
    } else {
    }
    return
  }
  func.func @transform_0(%arg0: i32) -> (i32, i32) {
    %c0_i32 = arith.constant 0 : i32
    %c0_i32_0 = arith.constant 0 : i32
    return %c0_i32, %arg0 : i32, i32
  }
  func.func @transform_1(%arg0: i32) -> (i32, i32) {
    %c0_i32 = arith.constant 0 : i32
    %c0_i32_0 = arith.constant 0 : i32
    return %arg0, %c0_i32 : i32, i32
  }
  func.func @transform_2(%arg0: i32) -> (i32, i32) {
    %c0_i32 = arith.constant 0 : i32
    %c0_i32_0 = arith.constant 0 : i32
    %c0_i32_1 = arith.constant 0 : i32
    return %c0_i32, %c0_i32_0 : i32, i32
  }
  func.func @transform_3(%arg0: i32) -> (i32, i32) {
    %c0_i32 = arith.constant 0 : i32
    %c0_i32_0 = arith.constant 0 : i32
    %c0_i32_1 = arith.constant 0 : i32
    return %c0_i32, %c0_i32_0 : i32, i32
  }
  func.func @transform_4(%arg0: i32) -> (i32, i32) {
    %c0_i32 = arith.constant 0 : i32
    %c0_i32_0 = arith.constant 0 : i32
    %c0_i32_1 = arith.constant 0 : i32
    return %c0_i32, %c0_i32_0 : i32, i32
  }
  func.func @transform_5(%arg0: i32) -> (i32, i32) {
    %c0_i32 = arith.constant 0 : i32
    %c0_i32_0 = arith.constant 0 : i32
    %c0_i32_1 = arith.constant 0 : i32
    return %c0_i32, %c0_i32_0 : i32, i32
  }
}

</mosaic_0001>

<llo_original>
// kernel: speechrec_forward.1
$region0: #{speechrec_forward.1}
  #allocation0 [shape = 'u32[]', space=smem, size = 0x4, offset = 0x4, fixed_abs, tag = 'smem constant byte address 0x4 - core index']
  #allocation1 [shape = 'u32[144,128]{1,0:T(1,128)}', space=vmem, size = 0x12000, scoped, tag = 'internal scratch']
  #allocation2 [shape = 'f32[640,384]{1,0:T(8,128)}', space=vmem, size = 0xf0000, scoped, tag = 'scratch operand']
  %s0 = inlined_call_operand.vmem [shape: bf16[640,768], index: 0, kind: input, shape index: {}]
  %s1 = inlined_call_operand.vmem [shape: bf16[768,384], index: 1, kind: input, shape index: {}]
  %s2 = inlined_call_operand.vmem [shape: bf16[640,200], index: 2, kind: input, shape index: {}]
  %s3 = inlined_call_operand.vmem [shape: bf16[200,8], index: 3, kind: input, shape index: {}]
  %s4 = inlined_call_operand.vmem [shape: f32[8,384], index: 4, kind: input, shape index: {}]
  %s5 = inlined_call_operand.hbm [shape: f32[1,8], index: 5, kind: output, shape index: {}]
  %s6 = sld [smem:[#allocation0]]
  $region87: #{speechrec_forward.1} parent=0
    _
  %s8 = ssub.s32 1, %s6
  %s9 = scalar_select 0, %s8, %s6
  $region1: #{speechrec_forward.1} parent=0
    #allocation3 [shape = 'u8[983040]{0}', space=vmem, size = 0xf0000, scoped, tag = 'input window, operand 0']
    #allocation4 [shape = 'u8[512]{0}', space=vmem, size = 0x400, scoped, tag = 'output window, operand 0, single buffered']
    #allocation5 [shape = 's32[2]{0}', space=sflag, size = 0x8, scoped, tag = 'scoped memory for speechrec_forward.1']
    %10 = vsyncpa [#allocation5], 0
    loop: start=0, step=1, limit=4
    $region2: #{speechrec_forward.1} parent=1 // loop_pre_header
      _
    $region3: #{speechrec_forward.1} parent=1 // loop_header
      %s12 = sphi 0, %s16
      %p13 = scmp.ge.s32.totalorder %s12, 4
      %s22 = sphi 0, %s24
      %s25 = sphi 0, %s22
      %s26 = sphi 0, %s25
      %s42 = sphi 0, %s26
      %s48 = sphi 0, %s50
      %s51 = sphi 0, %s48
      %s52 = sphi 0, %s51
      %s68 = sphi 0, %s52
      %s72 = sphi 0, %s72
      %s74 = sphi 0, %s72
      %s75 = sphi 0, %s74
      %s89 = sphi 0, %s75
      %s93 = sphi 0, %s93
      %s95 = sphi 0, %s93
      %s96 = sphi 0, %s95
      %s110 = sphi 0, %s96
      %s114 = sphi 0, %s114
      %s116 = sphi 0, %s114
      %s117 = sphi 0, %s116
      %s131 = sphi 0, %s117
      %s135 = sphi 0, %s135
      %s137 = sphi 0, %s135
      %s138 = sphi 0, %s137
      %s152 = sphi 0, %s138
    $region4: #{speechrec_forward.1} parent=1 // loop_header_branch
      %15 = sbr.rel (%p13) target = $region8
    $region5: #{speechrec_forward.1} parent=1 // loop_body
      %s17 = ssub.s32 %s12, 1
      %s18 = ssub.s32 %s12, 2
      %s19 = sadd.s32 %s12, 1
      %s20 = ssub.s32 %s12, %s19
      %p21 = scmp.eq.s32.totalorder %s20, 0
      %s23 = sadd.s32 %s22, 1
      %s24 = scalar_select %p21, %s22, %s23
      %p27 = pneg %p21
      %p28 = scmp.eq.s32.totalorder %s12, 1
      %p29 = por %p27, %p28
      %p30 = scmp.ne.s32.totalorder %s22, %s25
      %p31 = scmp.eq.s32.totalorder %s12, 0
      %p32 = por %p30, %p31
      %p33 = scmp.ne.s32.totalorder %s22, %s25
      %p34 = scmp.eq.s32.totalorder %s17, 1
      %p35 = por %p33, %p34
      %p36 = scmp.ne.s32.totalorder %s25, %s26
      %p37 = scmp.eq.s32.totalorder %s17, 0
      %p38 = por %p36, %p37
      %p39 = scmp.ne.s32.totalorder %s25, %s26
      %p40 = scmp.eq.s32.totalorder %s18, 1
      %p41 = por %p39, %p40
      %p43 = scmp.ne.s32.totalorder %s26, %s42
      %p44 = scmp.eq.s32.totalorder %s18, 0
      %p45 = por %p43, %p44
      %s46 = ssub.s32 %s12, %s19
      %p47 = scmp.eq.s32.totalorder %s46, 0
      %s49 = sadd.s32 %s48, 1
      %s50 = scalar_select %p47, %s48, %s49
      %p53 = pneg %p47
      %p54 = scmp.eq.s32.totalorder %s12, 1
      %p55 = por %p53, %p54
      %p56 = scmp.ne.s32.totalorder %s48, %s51
      %p57 = scmp.eq.s32.totalorder %s12, 0
      %p58 = por %p56, %p57
      %p59 = scmp.ne.s32.totalorder %s48, %s51
      %p60 = scmp.eq.s32.totalorder %s17, 1
      %p61 = por %p59, %p60
      %p62 = scmp.ne.s32.totalorder %s51, %s52
      %p63 = scmp.eq.s32.totalorder %s17, 0
      %p64 = por %p62, %p63
      %p65 = scmp.ne.s32.totalorder %s51, %s52
      %p66 = scmp.eq.s32.totalorder %s18, 1
      %p67 = por %p65, %p66
      %p69 = scmp.ne.s32.totalorder %s52, %s68
      %p70 = scmp.eq.s32.totalorder %s18, 0
      %p71 = por %p69, %p70
      %s73 = sadd.s32 %s72, 1
      %p76 = scmp.eq.s32.totalorder %s12, 1
      %p77 = scmp.ne.s32.totalorder %s72, %s74
      %p78 = scmp.eq.s32.totalorder %s12, 0
      %p79 = por %p77, %p78
      %p80 = scmp.ne.s32.totalorder %s72, %s74
      %p81 = scmp.eq.s32.totalorder %s17, 1
      %p82 = por %p80, %p81
      %p83 = scmp.ne.s32.totalorder %s74, %s75
      %p84 = scmp.eq.s32.totalorder %s17, 0
      %p85 = por %p83, %p84
      %p86 = scmp.ne.s32.totalorder %s74, %s75
      %p87 = scmp.eq.s32.totalorder %s18, 1
      %p88 = por %p86, %p87
      %p90 = scmp.ne.s32.totalorder %s75, %s89
      %p91 = scmp.eq.s32.totalorder %s18, 0
      %p92 = por %p90, %p91
      %s94 = sadd.s32 %s93, 1
      %p97 = scmp.eq.s32.totalorder %s12, 1
      %p98 = scmp.ne.s32.totalorder %s93, %s95
      %p99 = scmp.eq.s32.totalorder %s12, 0
      %p100 = por %p98, %p99
      %p101 = scmp.ne.s32.totalorder %s93, %s95
      %p102 = scmp.eq.s32.totalorder %s17, 1
      %p103 = por %p101, %p102
      %p104 = scmp.ne.s32.totalorder %s95, %s96
      %p105 = scmp.eq.s32.totalorder %s17, 0
      %p106 = por %p104, %p105
      %p107 = scmp.ne.s32.totalorder %s95, %s96
      %p108 = scmp.eq.s32.totalorder %s18, 1
      %p109 = por %p107, %p108
      %p111 = scmp.ne.s32.totalorder %s96, %s110
      %p112 = scmp.eq.s32.totalorder %s18, 0
      %p113 = por %p111, %p112
      %s115 = sadd.s32 %s114, 1
      %p118 = scmp.eq.s32.totalorder %s12, 1
      %p119 = scmp.ne.s32.totalorder %s114, %s116
      %p120 = scmp.eq.s32.totalorder %s12, 0
      %p121 = por %p119, %p120
      %p122 = scmp.ne.s32.totalorder %s114, %s116
      %p123 = scmp.eq.s32.totalorder %s17, 1
      %p124 = por %p122, %p123
      %p125 = scmp.ne.s32.totalorder %s116, %s117
      %p126 = scmp.eq.s32.totalorder %s17, 0
      %p127 = por %p125, %p126
      %p128 = scmp.ne.s32.totalorder %s116, %s117
      %p129 = scmp.eq.s32.totalorder %s18, 1
      %p130 = por %p128, %p129
      %p132 = scmp.ne.s32.totalorder %s117, %s131
      %p133 = scmp.eq.s32.totalorder %s18, 0
      %p134 = por %p132, %p133
      %s136 = sadd.s32 %s135, 1
      %p139 = scmp.eq.s32.totalorder %s12, 1
      %p140 = scmp.ne.s32.totalorder %s135, %s137
      %p141 = scmp.eq.s32.totalorder %s12, 0
      %p142 = por %p140, %p141
      %p143 = scmp.ne.s32.totalorder %s135, %s137
      %p144 = scmp.eq.s32.totalorder %s17, 1
      %p145 = por %p143, %p144
      %p146 = scmp.ne.s32.totalorder %s137, %s138
      %p147 = scmp.eq.s32.totalorder %s17, 0
      %p148 = por %p146, %p147
      %p149 = scmp.ne.s32.totalorder %s137, %s138
      %p150 = scmp.eq.s32.totalorder %s18, 1
      %p151 = por %p149, %p150
      %p153 = scmp.ne.s32.totalorder %s138, %s152
      %p154 = scmp.eq.s32.totalorder %s18, 0
      %p155 = por %p153, %p154
      %p156 = scmp.le.s32.totalorder 1, %s12
      %p157 = scmp.lt.s32.totalorder %s12, 3
      %p158 = pnand %p156, %p157
      %p159 = pneg %p158
      // Predicated region
      $region9: #{speechrec_forward.1} parent=5 // pred_check
        _
      $region10: #{speechrec_forward.1} parent=5 // pred_check_branch
        %161 = sbr.rel (%p158) target = $region12
      $region11: #{speechrec_forward.1} parent=5 // pred_region
        %s162 = ssub.s32 %s12, 1
        // Predicated region
        $region13: #{speechrec_forward.1} parent=11 // pred_check
          %p163 = pneg %p85
        $region14: #{speechrec_forward.1} parent=11 // pred_check_branch
          %165 = sbr.rel (%p163) target = $region16
        $region15: #{speechrec_forward.1} parent=11 // pred_region
          _
        $region16: #{speechrec_forward.1} parent=11 // pred_fallthru
          _
        // Predicated region
        $region17: #{speechrec_forward.1} parent=11 // pred_check
          %p166 = pneg %p106
        $region18: #{speechrec_forward.1} parent=11 // pred_check_branch
          %168 = sbr.rel (%p166) target = $region20
        $region19: #{speechrec_forward.1} parent=11 // pred_region
          _
        $region20: #{speechrec_forward.1} parent=11 // pred_fallthru
          _
        // Predicated region
        $region21: #{speechrec_forward.1} parent=11 // pred_check
          %p169 = pneg %p127
        $region22: #{speechrec_forward.1} parent=11 // pred_check_branch
          %171 = sbr.rel (%p169) target = $region24
        $region23: #{speechrec_forward.1} parent=11 // pred_region
          _
        $region24: #{speechrec_forward.1} parent=11 // pred_fallthru
          _
      $region12: #{speechrec_forward.1} parent=5 // pred_fallthru
        _
      %p172 = scmp.lt.s32.totalorder %s12, 2
      // Predicated region
      $region25: #{speechrec_forward.1} parent=5 // pred_check
        %p173 = pneg %p172
      $region26: #{speechrec_forward.1} parent=5 // pred_check_branch
        %175 = sbr.rel (%p173) target = $region28
      $region27: #{speechrec_forward.1} parent=5 // pred_region
        // Predicated region
        $region29: #{speechrec_forward.1} parent=27 // pred_check
          %p176 = pneg %p32
        $region30: #{speechrec_forward.1} parent=27 // pred_check_branch
          %178 = sbr.rel (%p176) target = $region32
        $region31: #{speechrec_forward.1} parent=27 // pred_region
          %s179 = sand.u32 %s22, 1
          %s180 = sand.u32 %s22, 1
          %s181 = smul.addr %s180, 960
          %s182 = scalar_lea.vmem [#allocation3], %s181
          %s183 = smul.u32 3, %s12
          %s184 = smul.addr %s183, 4
          %s185 = scalar_lea.vmem %s0, %s184
          // Predicated region
          $region33: #{speechrec_forward.1} parent=31 // pred_check
            _
          $region34: #{speechrec_forward.1} parent=31 // pred_check_branch
            %187 = sbr.rel (0) target = $region36
          $region35: #{speechrec_forward.1} parent=31 // pred_region
            // Predicated region
            $region37: #{speechrec_forward.1} parent=35 // pred_check
              _
            $region38: #{speechrec_forward.1} parent=35 // pred_check_branch
              %189 = sbr.rel (0) target = $region40
            $region39: #{speechrec_forward.1} parent=35 // pred_region
              %s190 = scalar_lea.vmem %s185, 8
              %s191 = scalar_lea.vmem %s182, 8 [#allocation3]
              loop: start=0, step=1, limit=1
              $region41: #{speechrec_forward.1} parent=39 // loop_pre_header
                _
              $region42: #{speechrec_forward.1} parent=39 // loop_header
                %s193 = sphi 0, %s197
                %p194 = scmp.ge.s32.totalorder %s193, 1
                %s198 = sphi %s185, %s185
                %s199 = sphi %s182, %s182
              $region43: #{speechrec_forward.1} parent=39 // loop_header_branch
                %196 = sbr.rel (%p194) target = $region47
              $region44: #{speechrec_forward.1} parent=39 // loop_body
                %v200 = vld [vmem:[%s198] sm:$0xff]
                %201 = vst [vmem:[%s199] sm:$0xff] %v200
                %v202 = vld [vmem:[%s198 + $0x18] sm:$0xff]
                %203 = vst [vmem:[%s199 + $0xc] sm:$0xff] %v202
                %v204 = vld [vmem:[%s198 + $0x30] sm:$0xff]
                %205 = vst [vmem:[%s199 + $0x18] sm:$0xff] %v204
                %v206 = vld [vmem:[%s198 + $0x48] sm:$0xff]
                %207 = vst [vmem:[%s199 + $0x24] sm:$0xff] %v206
                %v208 = vld [vmem:[%s198 + $0x60] sm:$0xff]
                %209 = vst [vmem:[%s199 + $0x30] sm:$0xff] %v208
                %v210 = vld [vmem:[%s198 + $0x78] sm:$0xff]
                %211 = vst [vmem:[%s199 + $0x3c] sm:$0xff] %v210
                %v212 = vld [vmem:[%s198 + $0x90] sm:$0xff]
                %213 = vst [vmem:[%s199 + $0x48] sm:$0xff] %v212
                %v214 = vld [vmem:[%s198 + $0xa8] sm:$0xff]
                %215 = vst [vmem:[%s199 + $0x54] sm:$0xff] %v214
                %v216 = vld [vmem:[%s198 + $0xc0] sm:$0xff]
                %217 = vst [vmem:[%s199 + $0x60] sm:$0xff] %v216
                %v218 = vld [vmem:[%s198 + $0xd8] sm:$0xff]
                %219 = vst [vmem:[%s199 + $0x6c] sm:$0xff] %v218
                %v220 = vld [vmem:[%s198 + $0xf0] sm:$0xff]
                %221 = vst [vmem:[%s199 + $0x78] sm:$0xff] %v220
                %v222 = vld [vmem:[%s198 + $0x108] sm:$0xff]
                %223 = vst [vmem:[%s199 + $0x84] sm:$0xff] %v222
                %v224 = vld [vmem:[%s198 + $0x120] sm:$0xff]
                %225 = vst [vmem:[%s199 + $0x90] sm:$0xff] %v224
                %v226 = vld [vmem:[%s198 + $0x138] sm:$0xff]
                %227 = vst [vmem:[%s199 + $0x9c] sm:$0xff] %v226
                %v228 = vld [vmem:[%s198 + $0x150] sm:$0xff]
                %229 = vst [vmem:[%s199 + $0xa8] sm:$0xff] %v228
                %v230 = vld [vmem:[%s198 + $0x168] sm:$0xff]
                %231 = vst [vmem:[%s199 + $0xb4] sm:$0xff] %v230
                %v232 = vld [vmem:[%s198 + $0x180] sm:$0xff]
                %233 = vst [vmem:[%s199 + $0xc0] sm:$0xff] %v232
                %v234 = vld [vmem:[%s198 + $0x198] sm:$0xff]
                %235 = vst [vmem:[%s199 + $0xcc] sm:$0xff] %v234
                %v236 = vld [vmem:[%s198 + $0x1b0] sm:$0xff]
                %237 = vst [vmem:[%s199 + $0xd8] sm:$0xff] %v236
                %v238 = vld [vmem:[%s198 + $0x1c8] sm:$0xff]
                %239 = vst [vmem:[%s199 + $0xe4] sm:$0xff] %v238
                %v240 = vld [vmem:[%s198 + $0x1e0] sm:$0xff]
                %241 = vst [vmem:[%s199 + $0xf0] sm:$0xff] %v240
                %v242 = vld [vmem:[%s198 + $0x1f8] sm:$0xff]
                %243 = vst [vmem:[%s199 + $0xfc] sm:$0xff] %v242
                %v244 = vld [vmem:[%s198 + $0x210] sm:$0xff]
                %245 = vst [vmem:[%s199 + $0x108] sm:$0xff] %v244
                %v246 = vld [vmem:[%s198 + $0x228] sm:$0xff]
                %247 = vst [vmem:[%s199 + $0x114] sm:$0xff] %v246
                %v248 = vld [vmem:[%s198 + $0x240] sm:$0xff]
                %249 = vst [vmem:[%s199 + $0x120] sm:$0xff] %v248
                %v250 = vld [vmem:[%s198 + $0x258] sm:$0xff]
                %251 = vst [vmem:[%s199 + $0x12c] sm:$0xff] %v250
                %v252 = vld [vmem:[%s198 + $0x270] sm:$0xff]
                %253 = vst [vmem:[%s199 + $0x138] sm:$0xff] %v252
                %v254 = vld [vmem:[%s198 + $0x288] sm:$0xff]
                %255 = vst [vmem:[%s199 + $0x144] sm:$0xff] %v254
                %v256 = vld [vmem:[%s198 + $0x2a0] sm:$0xff]
                %257 = vst [vmem:[%s199 + $0x150] sm:$0xff] %v256
                %v258 = vld [vmem:[%s198 + $0x2b8] sm:$0xff]
                %259 = vst [vmem:[%s199 + $0x15c] sm:$0xff] %v258
                %v260 = vld [vmem:[%s198 + $0x2d0] sm:$0xff]
                %261 = vst [vmem:[%s199 + $0x168] sm:$0xff] %v260
                %v262 = vld [vmem:[%s198 + $0x2e8] sm:$0xff]
                %263 = vst [vmem:[%s199 + $0x174] sm:$0xff] %v262
                %v264 = vld [vmem:[%s198 + $0x300] sm:$0xff]
                %265 = vst [vmem:[%s199 + $0x180] sm:$0xff] %v264
                %v266 = vld [vmem:[%s198 + $0x318] sm:$0xff]
                %267 = vst [vmem:[%s199 + $0x18c] sm:$0xff] %v266
                %v268 = vld [vmem:[%s198 + $0x330] sm:$0xff]
                %269 = vst [vmem:[%s199 + $0x198] sm:$0xff] %v268
                %v270 = vld [vmem:[%s198 + $0x348] sm:$0xff]
                %271 = vst [vmem:[%s199 + $0x1a4] sm:$0xff] %v270
                %v272 = vld [vmem:[%s198 + $0x360] sm:$0xff]
                %273 = vst [vmem:[%s199 + $0x1b0] sm:$0xff] %v272
                %v274 = vld [vmem:[%s198 + $0x378] sm:$0xff]
                %275 = vst [vmem:[%s199 + $0x1bc] sm:$0xff] %v274
                %v276 = vld [vmem:[%s198 + $0x390] sm:$0xff]
                %277 = vst [vmem:[%s199 + $0x1c8] sm:$0xff] %v276
                %v278 = vld [vmem:[%s198 + $0x3a8] sm:$0xff]
                %279 = vst [vmem:[%s199 + $0x1d4] sm:$0xff] %v278
                %v280 = vld [vmem:[%s198 + $0x3c0] sm:$0xff]
                %281 = vst [vmem:[%s199 + $0x1e0] sm:$0xff] %v280
                %v282 = vld [vmem:[%s198 + $0x3d8] sm:$0xff]
                %283 = vst [vmem:[%s199 + $0x1ec] sm:$0xff] %v282
                %v284 = vld [vmem:[%s198 + $0x3f0] sm:$0xff]
                %285 = vst [vmem:[%s199 + $0x1f8] sm:$0xff] %v284
                %v286 = vld [vmem:[%s198 + $0x408] sm:$0xff]
                %287 = vst [vmem:[%s199 + $0x204] sm:$0xff] %v286
                %v288 = vld [vmem:[%s198 + $0x420] sm:$0xff]
                %289 = vst [vmem:[%s199 + $0x210] sm:$0xff] %v288
                %v290 = vld [vmem:[%s198 + $0x438] sm:$0xff]
                %291 = vst [vmem:[%s199 + $0x21c] sm:$0xff] %v290
                %v292 = vld [vmem:[%s198 + $0x450] sm:$0xff]
                %293 = vst [vmem:[%s199 + $0x228] sm:$0xff] %v292
                %v294 = vld [vmem:[%s198 + $0x468] sm:$0xff]
                %295 = vst [vmem:[%s199 + $0x234] sm:$0xff] %v294
                %v296 = vld [vmem:[%s198 + $0x480] sm:$0xff]
                %297 = vst [vmem:[%s199 + $0x240] sm:$0xff] %v296
                %v298 = vld [vmem:[%s198 + $0x498] sm:$0xff]
                %299 = vst [vmem:[%s199 + $0x24c] sm:$0xff] %v298
                %v300 = vld [vmem:[%s198 + $0x4b0] sm:$0xff]
                %301 = vst [vmem:[%s199 + $0x258] sm:$0xff] %v300
                %v302 = vld [vmem:[%s198 + $0x4c8] sm:$0xff]
                %303 = vst [vmem:[%s199 + $0x264] sm:$0xff] %v302
                %v304 = vld [vmem:[%s198 + $0x4e0] sm:$0xff]
                %305 = vst [vmem:[%s199 + $0x270] sm:$0xff] %v304
                %v306 = vld [vmem:[%s198 + $0x4f8] sm:$0xff]
                %307 = vst [vmem:[%s199 + $0x27c] sm:$0xff] %v306
                %v308 = vld [vmem:[%s198 + $0x510] sm:$0xff]
                %309 = vst [vmem:[%s199 + $0x288] sm:$0xff] %v308
                %v310 = vld [vmem:[%s198 + $0x528] sm:$0xff]
                %311 = vst [vmem:[%s199 + $0x294] sm:$0xff] %v310
                %v312 = vld [vmem:[%s198 + $0x540] sm:$0xff]
                %313 = vst [vmem:[%s199 + $0x2a0] sm:$0xff] %v312
                %v314 = vld [vmem:[%s198 + $0x558] sm:$0xff]
                %315 = vst [vmem:[%s199 + $0x2ac] sm:$0xff] %v314
                %v316 = vld [vmem:[%s198 + $0x570] sm:$0xff]
                %317 = vst [vmem:[%s199 + $0x2b8] sm:$0xff] %v316
                %v318 = vld [vmem:[%s198 + $0x588] sm:$0xff]
                %319 = vst [vmem:[%s199 + $0x2c4] sm:$0xff] %v318
                %v320 = vld [vmem:[%s198 + $0x5a0] sm:$0xff]
                %321 = vst [vmem:[%s199 + $0x2d0] sm:$0xff] %v320
                %v322 = vld [vmem:[%s198 + $0x5b8] sm:$0xff]
                %323 = vst [vmem:[%s199 + $0x2dc] sm:$0xff] %v322
                %v324 = vld [vmem:[%s198 + $0x5d0] sm:$0xff]
                %325 = vst [vmem:[%s199 + $0x2e8] sm:$0xff] %v324
                %v326 = vld [vmem:[%s198 + $0x5e8] sm:$0xff]
                %327 = vst [vmem:[%s199 + $0x2f4] sm:$0xff] %v326
                %v328 = vld [vmem:[%s198 + $0x600] sm:$0xff]
                %329 = vst [vmem:[%s199 + $0x300] sm:$0xff] %v328
                %v330 = vld [vmem:[%s198 + $0x618] sm:$0xff]
                %331 = vst [vmem:[%s199 + $0x30c] sm:$0xff] %v330
                %v332 = vld [vmem:[%s198 + $0x630] sm:$0xff]
                %333 = vst [vmem:[%s199 + $0x318] sm:$0xff] %v332
                %v334 = vld [vmem:[%s198 + $0x648] sm:$0xff]
                %335 = vst [vmem:[%s199 + $0x324] sm:$0xff] %v334
                %v336 = vld [vmem:[%s198 + $0x660] sm:$0xff]
                %337 = vst [vmem:[%s199 + $0x330] sm:$0xff] %v336
                %v338 = vld [vmem:[%s198 + $0x678] sm:$0xff]
                %339 = vst [vmem:[%s199 + $0x33c] sm:$0xff] %v338
                %v340 = vld [vmem:[%s198 + $0x690] sm:$0xff]
                %341 = vst [vmem:[%s199 + $0x348] sm:$0xff] %v340
                %v342 = vld [vmem:[%s198 + $0x6a8] sm:$0xff]
                %343 = vst [vmem:[%s199 + $0x354] sm:$0xff] %v342
                %v344 = vld [vmem:[%s198 + $0x6c0] sm:$0xff]
                %345 = vst [vmem:[%s199 + $0x360] sm:$0xff] %v344
                %v346 = vld [vmem:[%s198 + $0x6d8] sm:$0xff]
                %347 = vst [vmem:[%s199 + $0x36c] sm:$0xff] %v346
                %v348 = vld [vmem:[%s198 + $0x6f0] sm:$0xff]
                %349 = vst [vmem:[%s199 + $0x378] sm:$0xff] %v348
                %v350 = vld [vmem:[%s198 + $0x708] sm:$0xff]
                %351 = vst [vmem:[%s199 + $0x384] sm:$0xff] %v350
                %v352 = vld [vmem:[%s198 + $0x720] sm:$0xff]
                %353 = vst [vmem:[%s199 + $0x390] sm:$0xff] %v352
                %v354 = vld [vmem:[%s198 + $0x738] sm:$0xff]
                %355 = vst [vmem:[%s199 + $0x39c] sm:$0xff] %v354
                %v356 = vld [vmem:[%s198 + $0x750] sm:$0xff]
                %357 = vst [vmem:[%s199 + $0x3a8] sm:$0xff] %v356
                %v358 = vld [vmem:[%s198 + $0x768] sm:$0xff]
                %359 = vst [vmem:[%s199 + $0x3b4] sm:$0xff] %v358
              $region45: #{speechrec_forward.1} parent=39 // loop_footer
                %s197 = sadd.s32 1, %s193
              $region46: #{speechrec_forward.1} parent=39 // loop_footer_branch
                %192 = sbr.rel target = $region42
              $region47: #{speechrec_forward.1} parent=39 // loop_exit
                _
              loop: start=0, step=1, limit=1
              $region48: #{speechrec_forward.1} parent=39 // loop_pre_header
                _
              $region49: #{speechrec_forward.1} parent=39 // loop_header
                %s362 = sphi 0, %s366
                %p363 = scmp.ge.s32.totalorder %s362, 1
                %s367 = sphi %s190, %s190
                %s368 = sphi %s191, %s191
              $region50: #{speechrec_forward.1} parent=39 // loop_header_branch
                %365 = sbr.rel (%p363) target = $region54
              $region51: #{speechrec_forward.1} parent=39 // loop_body
                %v369 = vld [vmem:[%s367] sm:$0xf]
                %370 = vst [vmem:[%s368] sm:$0xf] %v369
                %v371 = vld [vmem:[%s367 + $0x18] sm:$0xf]
                %372 = vst [vmem:[%s368 + $0xc] sm:$0xf] %v371
                %v373 = vld [vmem:[%s367 + $0x30] sm:$0xf]
                %374 = vst [vmem:[%s368 + $0x18] sm:$0xf] %v373
                %v375 = vld [vmem:[%s367 + $0x48] sm:$0xf]
                %376 = vst [vmem:[%s368 + $0x24] sm:$0xf] %v375
                %v377 = vld [vmem:[%s367 + $0x60] sm:$0xf]
                %378 = vst [vmem:[%s368 + $0x30] sm:$0xf] %v377
                %v379 = vld [vmem:[%s367 + $0x78] sm:$0xf]
                %380 = vst [vmem:[%s368 + $0x3c] sm:$0xf] %v379
                %v381 = vld [vmem:[%s367 + $0x90] sm:$0xf]
                %382 = vst [vmem:[%s368 + $0x48] sm:$0xf] %v381
                %v383 = vld [vmem:[%s367 + $0xa8] sm:$0xf]
                %384 = vst [vmem:[%s368 + $0x54] sm:$0xf] %v383
                %v385 = vld [vmem:[%s367 + $0xc0] sm:$0xf]
                %386 = vst [vmem:[%s368 + $0x60] sm:$0xf] %v385
                %v387 = vld [vmem:[%s367 + $0xd8] sm:$0xf]
                %388 = vst [vmem:[%s368 + $0x6c] sm:$0xf] %v387
                %v389 = vld [vmem:[%s367 + $0xf0] sm:$0xf]
                %390 = vst [vmem:[%s368 + $0x78] sm:$0xf] %v389
                %v391 = vld [vmem:[%s367 + $0x108] sm:$0xf]
                %392 = vst [vmem:[%s368 + $0x84] sm:$0xf] %v391
                %v393 = vld [vmem:[%s367 + $0x120] sm:$0xf]
                %394 = vst [vmem:[%s368 + $0x90] sm:$0xf] %v393
                %v395 = vld [vmem:[%s367 + $0x138] sm:$0xf]
                %396 = vst [vmem:[%s368 + $0x9c] sm:$0xf] %v395
                %v397 = vld [vmem:[%s367 + $0x150] sm:$0xf]
                %398 = vst [vmem:[%s368 + $0xa8] sm:$0xf] %v397
                %v399 = vld [vmem:[%s367 + $0x168] sm:$0xf]
                %400 = vst [vmem:[%s368 + $0xb4] sm:$0xf] %v399
                %v401 = vld [vmem:[%s367 + $0x180] sm:$0xf]
                %402 = vst [vmem:[%s368 + $0xc0] sm:$0xf] %v401
                %v403 = vld [vmem:[%s367 + $0x198] sm:$0xf]
                %404 = vst [vmem:[%s368 + $0xcc] sm:$0xf] %v403
                %v405 = vld [vmem:[%s367 + $0x1b0] sm:$0xf]
                %406 = vst [vmem:[%s368 + $0xd8] sm:$0xf] %v405
                %v407 = vld [vmem:[%s367 + $0x1c8] sm:$0xf]
                %408 = vst [vmem:[%s368 + $0xe4] sm:$0xf] %v407
                %v409 = vld [vmem:[%s367 + $0x1e0] sm:$0xf]
                %410 = vst [vmem:[%s368 + $0xf0] sm:$0xf] %v409
                %v411 = vld [vmem:[%s367 + $0x1f8] sm:$0xf]
                %412 = vst [vmem:[%s368 + $0xfc] sm:$0xf] %v411
                %v413 = vld [vmem:[%s367 + $0x210] sm:$0xf]
                %414 = vst [vmem:[%s368 + $0x108] sm:$0xf] %v413
                %v415 = vld [vmem:[%s367 + $0x228] sm:$0xf]
                %416 = vst [vmem:[%s368 + $0x114] sm:$0xf] %v415
                %v417 = vld [vmem:[%s367 + $0x240] sm:$0xf]
                %418 = vst [vmem:[%s368 + $0x120] sm:$0xf] %v417
                %v419 = vld [vmem:[%s367 + $0x258] sm:$0xf]
                %420 = vst [vmem:[%s368 + $0x12c] sm:$0xf] %v419
                %v421 = vld [vmem:[%s367 + $0x270] sm:$0xf]
                %422 = vst [vmem:[%s368 + $0x138] sm:$0xf] %v421
                %v423 = vld [vmem:[%s367 + $0x288] sm:$0xf]
                %424 = vst [vmem:[%s368 + $0x144] sm:$0xf] %v423
                %v425 = vld [vmem:[%s367 + $0x2a0] sm:$0xf]
                %426 = vst [vmem:[%s368 + $0x150] sm:$0xf] %v425
                %v427 = vld [vmem:[%s367 + $0x2b8] sm:$0xf]
                %428 = vst [vmem:[%s368 + $0x15c] sm:$0xf] %v427
                %v429 = vld [vmem:[%s367 + $0x2d0] sm:$0xf]
                %430 = vst [vmem:[%s368 + $0x168] sm:$0xf] %v429
                %v431 = vld [vmem:[%s367 + $0x2e8] sm:$0xf]
                %432 = vst [vmem:[%s368 + $0x174] sm:$0xf] %v431
                %v433 = vld [vmem:[%s367 + $0x300] sm:$0xf]
                %434 = vst [vmem:[%s368 + $0x180] sm:$0xf] %v433
                %v435 = vld [vmem:[%s367 + $0x318] sm:$0xf]
                %436 = vst [vmem:[%s368 + $0x18c] sm:$0xf] %v435
                %v437 = vld [vmem:[%s367 + $0x330] sm:$0xf]
                %438 = vst [vmem:[%s368 + $0x198] sm:$0xf] %v437
                %v439 = vld [vmem:[%s367 + $0x348] sm:$0xf]
                %440 = vst [vmem:[%s368 + $0x1a4] sm:$0xf] %v439
                %v441 = vld [vmem:[%s367 + $0x360] sm:$0xf]
                %442 = vst [vmem:[%s368 + $0x1b0] sm:$0xf] %v441
                %v443 = vld [vmem:[%s367 + $0x378] sm:$0xf]
                %444 = vst [vmem:[%s368 + $0x1bc] sm:$0xf] %v443
                %v445 = vld [vmem:[%s367 + $0x390] sm:$0xf]
                %446 = vst [vmem:[%s368 + $0x1c8] sm:$0xf] %v445
                %v447 = vld [vmem:[%s367 + $0x3a8] sm:$0xf]
                %448 = vst [vmem:[%s368 + $0x1d4] sm:$0xf] %v447
                %v449 = vld [vmem:[%s367 + $0x3c0] sm:$0xf]
                %450 = vst [vmem:[%s368 + $0x1e0] sm:$0xf] %v449
                %v451 = vld [vmem:[%s367 + $0x3d8] sm:$0xf]
                %452 = vst [vmem:[%s368 + $0x1ec] sm:$0xf] %v451
                %v453 = vld [vmem:[%s367 + $0x3f0] sm:$0xf]
                %454 = vst [vmem:[%s368 + $0x1f8] sm:$0xf] %v453
                %v455 = vld [vmem:[%s367 + $0x408] sm:$0xf]
                %456 = vst [vmem:[%s368 + $0x204] sm:$0xf] %v455
                %v457 = vld [vmem:[%s367 + $0x420] sm:$0xf]
                %458 = vst [vmem:[%s368 + $0x210] sm:$0xf] %v457
                %v459 = vld [vmem:[%s367 + $0x438] sm:$0xf]
                %460 = vst [vmem:[%s368 + $0x21c] sm:$0xf] %v459
                %v461 = vld [vmem:[%s367 + $0x450] sm:$0xf]
                %462 = vst [vmem:[%s368 + $0x228] sm:$0xf] %v461
                %v463 = vld [vmem:[%s367 + $0x468] sm:$0xf]
                %464 = vst [vmem:[%s368 + $0x234] sm:$0xf] %v463
                %v465 = vld [vmem:[%s367 + $0x480] sm:$0xf]
                %466 = vst [vmem:[%s368 + $0x240] sm:$0xf] %v465
                %v467 = vld [vmem:[%s367 + $0x498] sm:$0xf]
                %468 = vst [vmem:[%s368 + $0x24c] sm:$0xf] %v467
                %v469 = vld [vmem:[%s367 + $0x4b0] sm:$0xf]
                %470 = vst [vmem:[%s368 + $0x258] sm:$0xf] %v469
                %v471 = vld [vmem:[%s367 + $0x4c8] sm:$0xf]
                %472 = vst [vmem:[%s368 + $0x264] sm:$0xf] %v471
                %v473 = vld [vmem:[%s367 + $0x4e0] sm:$0xf]
                %474 = vst [vmem:[%s368 + $0x270] sm:$0xf] %v473
                %v475 = vld [vmem:[%s367 + $0x4f8] sm:$0xf]
                %476 = vst [vmem:[%s368 + $0x27c] sm:$0xf] %v475
                %v477 = vld [vmem:[%s367 + $0x510] sm:$0xf]
                %478 = vst [vmem:[%s368 + $0x288] sm:$0xf] %v477
                %v479 = vld [vmem:[%s367 + $0x528] sm:$0xf]
                %480 = vst [vmem:[%s368 + $0x294] sm:$0xf] %v479
                %v481 = vld [vmem:[%s367 + $0x540] sm:$0xf]
                %482 = vst [vmem:[%s368 + $0x2a0] sm:$0xf] %v481
                %v483 = vld [vmem:[%s367 + $0x558] sm:$0xf]
                %484 = vst [vmem:[%s368 + $0x2ac] sm:$0xf] %v483
                %v485 = vld [vmem:[%s367 + $0x570] sm:$0xf]
                %486 = vst [vmem:[%s368 + $0x2b8] sm:$0xf] %v485
                %v487 = vld [vmem:[%s367 + $0x588] sm:$0xf]
                %488 = vst [vmem:[%s368 + $0x2c4] sm:$0xf] %v487
                %v489 = vld [vmem:[%s367 + $0x5a0] sm:$0xf]
                %490 = vst [vmem:[%s368 + $0x2d0] sm:$0xf] %v489
                %v491 = vld [vmem:[%s367 + $0x5b8] sm:$0xf]
                %492 = vst [vmem:[%s368 + $0x2dc] sm:$0xf] %v491
                %v493 = vld [vmem:[%s367 + $0x5d0] sm:$0xf]
                %494 = vst [vmem:[%s368 + $0x2e8] sm:$0xf] %v493
                %v495 = vld [vmem:[%s367 + $0x5e8] sm:$0xf]
                %496 = vst [vmem:[%s368 + $0x2f4] sm:$0xf] %v495
                %v497 = vld [vmem:[%s367 + $0x600] sm:$0xf]
                %498 = vst [vmem:[%s368 + $0x300] sm:$0xf] %v497
                %v499 = vld [vmem:[%s367 + $0x618] sm:$0xf]
                %500 = vst [vmem:[%s368 + $0x30c] sm:$0xf] %v499
                %v501 = vld [vmem:[%s367 + $0x630] sm:$0xf]
                %502 = vst [vmem:[%s368 + $0x318] sm:$0xf] %v501
                %v503 = vld [vmem:[%s367 + $0x648] sm:$0xf]
                %504 = vst [vmem:[%s368 + $0x324] sm:$0xf] %v503
                %v505 = vld [vmem:[%s367 + $0x660] sm:$0xf]
                %506 = vst [vmem:[%s368 + $0x330] sm:$0xf] %v505
                %v507 = vld [vmem:[%s367 + $0x678] sm:$0xf]
                %508 = vst [vmem:[%s368 + $0x33c] sm:$0xf] %v507
                %v509 = vld [vmem:[%s367 + $0x690] sm:$0xf]
                %510 = vst [vmem:[%s368 + $0x348] sm:$0xf] %v509
                %v511 = vld [vmem:[%s367 + $0x6a8] sm:$0xf]
                %512 = vst [vmem:[%s368 + $0x354] sm:$0xf] %v511
                %v513 = vld [vmem:[%s367 + $0x6c0] sm:$0xf]
                %514 = vst [vmem:[%s368 + $0x360] sm:$0xf] %v513
                %v515 = vld [vmem:[%s367 + $0x6d8] sm:$0xf]
                %516 = vst [vmem:[%s368 + $0x36c] sm:$0xf] %v515
                %v517 = vld [vmem:[%s367 + $0x6f0] sm:$0xf]
                %518 = vst [vmem:[%s368 + $0x378] sm:$0xf] %v517
                %v519 = vld [vmem:[%s367 + $0x708] sm:$0xf]
                %520 = vst [vmem:[%s368 + $0x384] sm:$0xf] %v519
                %v521 = vld [vmem:[%s367 + $0x720] sm:$0xf]
                %522 = vst [vmem:[%s368 + $0x390] sm:$0xf] %v521
                %v523 = vld [vmem:[%s367 + $0x738] sm:$0xf]
                %524 = vst [vmem:[%s368 + $0x39c] sm:$0xf] %v523
                %v525 = vld [vmem:[%s367 + $0x750] sm:$0xf]
                %526 = vst [vmem:[%s368 + $0x3a8] sm:$0xf] %v525
                %v527 = vld [vmem:[%s367 + $0x768] sm:$0xf]
                %528 = vst [vmem:[%s368 + $0x3b4] sm:$0xf] %v527
              $region52: #{speechrec_forward.1} parent=39 // loop_footer
                %s366 = sadd.s32 1, %s362
              $region53: #{speechrec_forward.1} parent=39 // loop_footer_branch
                %361 = sbr.rel target = $region49
              $region54: #{speechrec_forward.1} parent=39 // loop_exit
                _
            $region40: #{speechrec_forward.1} parent=35 // pred_fallthru
              _
          $region36: #{speechrec_forward.1} parent=31 // pred_fallthru
            _
          %529 = vnop
        $region32: #{speechrec_forward.1} parent=27 // pred_fallthru
          _
        // Predicated region
        $region55: #{speechrec_forward.1} parent=27 // pred_check
          %p530 = pneg %p58
        $region56: #{speechrec_forward.1} parent=27 // pred_check_branch
          %532 = sbr.rel (%p530) target = $region58
        $region57: #{speechrec_forward.1} parent=27 // pred_region
          %s533 = smul.u32 48, %s12
          %p534 = scmp.lt.s32.totalorder %s533, 95
          %s535 = scalar_select %p534, %s533, 95
          %s536 = smul.addr %s535, 3
          %s537 = smul.addr %s536, 4
          %s538 = scalar_lea.vmem %s1, %s537
          %s539 = smul.u32 48, %s12
        $region58: #{speechrec_forward.1} parent=27 // pred_fallthru
          _
      $region28: #{speechrec_forward.1} parent=5 // pred_fallthru
        _
      %p540 = scmp.le.s32.totalorder 1, %s12
      %p541 = scmp.lt.s32.totalorder %s12, 3
      %p542 = pnand %p540, %p541
      %p543 = pneg %p542
      // Predicated region
      $region59: #{speechrec_forward.1} parent=5 // pred_check
        _
      $region60: #{speechrec_forward.1} parent=5 // pred_check_branch
        %545 = sbr.rel (%p542) target = $region62
      $region61: #{speechrec_forward.1} parent=5 // pred_region
        %s546 = ssub.s32 %s12, 1
        %s547 = sand.u32 %s25, 1
        %s548 = sand.u32 %s25, 1
        %s549 = smul.addr %s548, 960
        %s550 = scalar_lea.vmem [#allocation3], %s549
        // Predicated region
        $region63: #{speechrec_forward.1} parent=61 // pred_check
          %p551 = pneg %p38
        $region64: #{speechrec_forward.1} parent=61 // pred_check_branch
          %553 = sbr.rel (%p551) target = $region66
        $region65: #{speechrec_forward.1} parent=61 // pred_region
          _
        $region66: #{speechrec_forward.1} parent=61 // pred_fallthru
          _
        %s554 = sand.u32 %s25, 1
        %s555 = sand.u32 %s25, 1
        %s556 = smul.addr %s555, 960
        %s557 = scalar_lea.vmem [#allocation3], %s556
        %p558 = pneg %p38
        %p559 = pneg %p35
        %s560 = smul.u32 48, %s17
        %p561 = scmp.lt.s32.totalorder %s560, 95
        %s562 = scalar_select %p561, %s560, 95
        %s563 = smul.addr %s562, 3
        %s564 = smul.addr %s563, 4
        %s565 = scalar_lea.vmem %s1, %s564
        %p566 = pneg %p64
        %p567 = pneg %p61
        %p568 = pneg %p85
        %p569 = pneg %p82
        %p570 = pneg %p106
        %p571 = pneg %p103
        %p572 = pneg %p127
        %p573 = pneg %p124
        %p574 = pneg %p148
        %p575 = pneg %p145
        %s576 = smul.u32 3, %s17
        %s577 = smul.u32 48, %s17
        %p578 = scmp.lt.s32.totalorder %s577, 95
        %s579 = scalar_select %p578, %s577, 95
        %s580 = smul.addr %s579, 3
        %s581 = smul.addr %s580, 4
        %s582 = scalar_lea.vmem %s1, %s581
        %s583 = smul.u32 48, %s17
        %p585 = scmp.eq.s32.totalorder %s17, 0
        // Predicated region
        $region67: #{speechrec_forward.1} parent=61 // pred_check
          %p586 = pneg %p585
        $region68: #{speechrec_forward.1} parent=61 // pred_check_branch
          %588 = sbr.rel (%p586) target = $region70
        $region69: #{speechrec_forward.1} parent=61 // pred_region
          %589 = vst [vmem:[#allocation2] sm:$0xff] 0.0
          %590 = vst [vmem:[#allocation2 + $0x8] sm:$0xff] 0.0
          %591 = vst [vmem:[#allocation2 + $0x10] sm:$0xff] 0.0
          %592 = vst [vmem:[#allocation2 + $0x18] sm:$0xff] 0.0
          %593 = vst [vmem:[#allocation2 + $0x20] sm:$0xff] 0.0
          %594 = vst [vmem:[#allocation2 + $0x28] sm:$0xff] 0.0
          %595 = vst [vmem:[#allocation2 + $0x30] sm:$0xff] 0.0
          %596 = vst [vmem:[#allocation2 + $0x38] sm:$0xff] 0.0
          %597 = vst [vmem:[#allocation2 + $0x40] sm:$0xff] 0.0
          %598 = vst [vmem:[#allocation2 + $0x48] sm:$0xff] 0.0
          %599 = vst [vmem:[#allocation2 + $0x50] sm:$0xff] 0.0
          %600 = vst [vmem:[#allocation2 + $0x58] sm:$0xff] 0.0
          %601 = vst [vmem:[#allocation2 + $0x60] sm:$0xff] 0.0
          %602 = vst [vmem:[#allocation2 + $0x68] sm:$0xff] 0.0
          %603 = vst [vmem:[#allocation2 + $0x70] sm:$0xff] 0.0
          %604 = vst [vmem:[#allocation2 + $0x78] sm:$0xff] 0.0
          %605 = vst [vmem:[#allocation2 + $0x80] sm:$0xff] 0.0
          %606 = vst [vmem:[#allocation2 + $0x88] sm:$0xff] 0.0
          %607 = vst [vmem:[#allocation2 + $0x90] sm:$0xff] 0.0
          %608 = vst [vmem:[#allocation2 + $0x98] sm:$0xff] 0.0
          %609 = vst [vmem:[#allocation2 + $0xa0] sm:$0xff] 0.0
          %610 = vst [vmem:[#allocation2 + $0xa8] sm:$0xff] 0.0
          %611 = vst [vmem:[#allocation2 + $0xb0] sm:$0xff] 0.0
          %612 = vst [vmem:[#allocation2 + $0xb8] sm:$0xff] 0.0
          %613 = vst [vmem:[#allocation2 + $0xc0] sm:$0xff] 0.0
          %614 = vst [vmem:[#allocation2 + $0xc8] sm:$0xff] 0.0
          %615 = vst [vmem:[#allocation2 + $0xd0] sm:$0xff] 0.0
          %616 = vst [vmem:[#allocation2 + $0xd8] sm:$0xff] 0.0
          %617 = vst [vmem:[#allocation2 + $0xe0] sm:$0xff] 0.0
          %618 = vst [vmem:[#allocation2 + $0xe8] sm:$0xff] 0.0
          %619 = vst [vmem:[#allocation2 + $0xf0] sm:$0xff] 0.0
          %620 = vst [vmem:[#allocation2 + $0xf8] sm:$0xff] 0.0
          %621 = vst [vmem:[#allocation2 + $0x100] sm:$0xff] 0.0
          %622 = vst [vmem:[#allocation2 + $0x108] sm:$0xff] 0.0
          %623 = vst [vmem:[#allocation2 + $0x110] sm:$0xff] 0.0
          %624 = vst [vmem:[#allocation2 + $0x118] sm:$0xff] 0.0
          %625 = vst [vmem:[#allocation2 + $0x120] sm:$0xff] 0.0
          %626 = vst [vmem:[#allocation2 + $0x128] sm:$0xff] 0.0
          %627 = vst [vmem:[#allocation2 + $0x130] sm:$0xff] 0.0
          %628 = vst [vmem:[#allocation2 + $0x138] sm:$0xff] 0.0
          %629 = vst [vmem:[#allocation2 + $0x140] sm:$0xff] 0.0
          %630 = vst [vmem:[#allocation2 + $0x148] sm:$0xff] 0.0
          %631 = vst [vmem:[#allocation2 + $0x150] sm:$0xff] 0.0
          %632 = vst [vmem:[#allocation2 + $0x158] sm:$0xff] 0.0
          %633 = vst [vmem:[#allocation2 + $0x160] sm:$0xff] 0.0
          %634 = vst [vmem:[#allocation2 + $0x168] sm:$0xff] 0.0
          %635 = vst [vmem:[#allocation2 + $0x170] sm:$0xff] 0.0
          %636 = vst [vmem:[#allocation2 + $0x178] sm:$0xff] 0.0
          %637 = vst [vmem:[#allocation2 + $0x180] sm:$0xff] 0.0
          %638 = vst [vmem:[#allocation2 + $0x188] sm:$0xff] 0.0
          %639 = vst [vmem:[#allocation2 + $0x190] sm:$0xff] 0.0
          %640 = vst [vmem:[#allocation2 + $0x198] sm:$0xff] 0.0
          %641 = vst [vmem:[#allocation2 + $0x1a0] sm:$0xff] 0.0
          %642 = vst [vmem:[#allocation2 + $0x1a8] sm:$0xff] 0.0
          %643 = vst [vmem:[#allocation2 + $0x1b0] sm:$0xff] 0.0
          %644 = vst [vmem:[#allocation2 + $0x1b8] sm:$0xff] 0.0
          %645 = vst [vmem:[#allocation2 + $0x1c0] sm:$0xff] 0.0
          %646 = vst [vmem:[#allocation2 + $0x1c8] sm:$0xff] 0.0
          %647 = vst [vmem:[#allocation2 + $0x1d0] sm:$0xff] 0.0
          %648 = vst [vmem:[#allocation2 + $0x1d8] sm:$0xff] 0.0
          %649 = vst [vmem:[#allocation2 + $0x1e0] sm:$0xff] 0.0
          %650 = vst [vmem:[#allocation2 + $0x1e8] sm:$0xff] 0.0
          %651 = vst [vmem:[#allocation2 + $0x1f0] sm:$0xff] 0.0
          %652 = vst [vmem:[#allocation2 + $0x1f8] sm:$0xff] 0.0
          %653 = vst [vmem:[#allocation2 + $0x200] sm:$0xff] 0.0
          %654 = vst [vmem:[#allocation2 + $0x208] sm:$0xff] 0.0
          %655 = vst [vmem:[#allocation2 + $0x210] sm:$0xff] 0.0
          %656 = vst [vmem:[#allocation2 + $0x218] sm:$0xff] 0.0
          %657 = vst [vmem:[#allocation2 + $0x220] sm:$0xff] 0.0
          %658 = vst [vmem:[#allocation2 + $0x228] sm:$0xff] 0.0
          %659 = vst [vmem:[#allocation2 + $0x230] sm:$0xff] 0.0
          %660 = vst [vmem:[#allocation2 + $0x238] sm:$0xff] 0.0
          %661 = vst [vmem:[#allocation2 + $0x240] sm:$0xff] 0.0
          %662 = vst [vmem:[#allocation2 + $0x248] sm:$0xff] 0.0
          %663 = vst [vmem:[#allocation2 + $0x250] sm:$0xff] 0.0
          %664 = vst [vmem:[#allocation2 + $0x258] sm:$0xff] 0.0
          %665 = vst [vmem:[#allocation2 + $0x260] sm:$0xff] 0.0
          %666 = vst [vmem:[#allocation2 + $0x268] sm:$0xff] 0.0
          %667 = vst [vmem:[#allocation2 + $0x270] sm:$0xff] 0.0
          %668 = vst [vmem:[#allocation2 + $0x278] sm:$0xff] 0.0
          %669 = vst [vmem:[#allocation2 + $0x280] sm:$0xff] 0.0
          %670 = vst [vmem:[#allocation2 + $0x288] sm:$0xff] 0.0
          %671 = vst [vmem:[#allocation2 + $0x290] sm:$0xff] 0.0
          %672 = vst [vmem:[#allocation2 + $0x298] sm:$0xff] 0.0
          %673 = vst [vmem:[#allocation2 + $0x2a0] sm:$0xff] 0.0
          %674 = vst [vmem:[#allocation2 + $0x2a8] sm:$0xff] 0.0
          %675 = vst [vmem:[#allocation2 + $0x2b0] sm:$0xff] 0.0
          %676 = vst [vmem:[#allocation2 + $0x2b8] sm:$0xff] 0.0
          %677 = vst [vmem:[#allocation2 + $0x2c0] sm:$0xff] 0.0
          %678 = vst [vmem:[#allocation2 + $0x2c8] sm:$0xff] 0.0
          %679 = vst [vmem:[#allocation2 + $0x2d0] sm:$0xff] 0.0
          %680 = vst [vmem:[#allocation2 + $0x2d8] sm:$0xff] 0.0
          %681 = vst [vmem:[#allocation2 + $0x2e0] sm:$0xff] 0.0
          %682 = vst [vmem:[#allocation2 + $0x2e8] sm:$0xff] 0.0
          %683 = vst [vmem:[#allocation2 + $0x2f0] sm:$0xff] 0.0
          %684 = vst [vmem:[#allocation2 + $0x2f8] sm:$0xff] 0.0
          %685 = vst [vmem:[#allocation2 + $0x300] sm:$0xff] 0.0
          %686 = vst [vmem:[#allocation2 + $0x308] sm:$0xff] 0.0
          %687 = vst [vmem:[#allocation2 + $0x310] sm:$0xff] 0.0
          %688 = vst [vmem:[#allocation2 + $0x318] sm:$0xff] 0.0
          %689 = vst [vmem:[#allocation2 + $0x320] sm:$0xff] 0.0
          %690 = vst [vmem:[#allocation2 + $0x328] sm:$0xff] 0.0
          %691 = vst [vmem:[#allocation2 + $0x330] sm:$0xff] 0.0
          %692 = vst [vmem:[#allocation2 + $0x338] sm:$0xff] 0.0
          %693 = vst [vmem:[#allocation2 + $0x340] sm:$0xff] 0.0
          %694 = vst [vmem:[#allocation2 + $0x348] sm:$0xff] 0.0
          %695 = vst [vmem:[#allocation2 + $0x350] sm:$0xff] 0.0
          %696 = vst [vmem:[#allocation2 + $0x358] sm:$0xff] 0.0
          %697 = vst [vmem:[#allocation2 + $0x360] sm:$0xff] 0.0
          %698 = vst [vmem:[#allocation2 + $0x368] sm:$0xff] 0.0
          %699 = vst [vmem:[#allocation2 + $0x370] sm:$0xff] 0.0
          %700 = vst [vmem:[#allocation2 + $0x378] sm:$0xff] 0.0
          %701 = vst [vmem:[#allocation2 + $0x380] sm:$0xff] 0.0
          %702 = vst [vmem:[#allocation2 + $0x388] sm:$0xff] 0.0
          %703 = vst [vmem:[#allocation2 + $0x390] sm:$0xff] 0.0
          %704 = vst [vmem:[#allocation2 + $0x398] sm:$0xff] 0.0
          %705 = vst [vmem:[#allocation2 + $0x3a0] sm:$0xff] 0.0
          %706 = vst [vmem:[#allocation2 + $0x3a8] sm:$0xff] 0.0
          %707 = vst [vmem:[#allocation2 + $0x3b0] sm:$0xff] 0.0
          %708 = vst [vmem:[#allocation2 + $0x3b8] sm:$0xff] 0.0
          %709 = vst [vmem:[#allocation2 + $0x3c0] sm:$0xff] 0.0
          %710 = vst [vmem:[#allocation2 + $0x3c8] sm:$0xff] 0.0
          %711 = vst [vmem:[#allocation2 + $0x3d0] sm:$0xff] 0.0
          %712 = vst [vmem:[#allocation2 + $0x3d8] sm:$0xff] 0.0
          %713 = vst [vmem:[#allocation2 + $0x3e0] sm:$0xff] 0.0
          %714 = vst [vmem:[#allocation2 + $0x3e8] sm:$0xff] 0.0
          %715 = vst [vmem:[#allocation2 + $0x3f0] sm:$0xff] 0.0
          %716 = vst [vmem:[#allocation2 + $0x3f8] sm:$0xff] 0.0
          %717 = vst [vmem:[#allocation2 + $0x400] sm:$0xff] 0.0
          %718 = vst [vmem:[#allocation2 + $0x408] sm:$0xff] 0.0
          %719 = vst [vmem:[#allocation2 + $0x410] sm:$0xff] 0.0
          %720 = vst [vmem:[#allocation2 + $0x418] sm:$0xff] 0.0
          %721 = vst [vmem:[#allocation2 + $0x420] sm:$0xff] 0.0
          %722 = vst [vmem:[#allocation2 + $0x428] sm:$0xff] 0.0
          %723 = vst [vmem:[#allocation2 + $0x430] sm:$0xff] 0.0
          %724 = vst [vmem:[#allocation2 + $0x438] sm:$0xff] 0.0
          %725 = vst [vmem:[#allocation2 + $0x440] sm:$0xff] 0.0
          %726 = vst [vmem:[#allocation2 + $0x448] sm:$0xff] 0.0
          %727 = vst [vmem:[#allocation2 + $0x450] sm:$0xff] 0.0
          %728 = vst [vmem:[#allocation2 + $0x458] sm:$0xff] 0.0
          %729 = vst [vmem:[#allocation2 + $0x460] sm:$0xff] 0.0
          %730 = vst [vmem:[#allocation2 + $0x468] sm:$0xff] 0.0
          %731 = vst [vmem:[#allocation2 + $0x470] sm:$0xff] 0.0
          %732 = vst [vmem:[#allocation2 + $0x478] sm:$0xff] 0.0
          %733 = vst [vmem:[#allocation2 + $0x480] sm:$0xff] 0.0
          %734 = vst [vmem:[#allocation2 + $0x488] sm:$0xff] 0.0
          %735 = vst [vmem:[#allocation2 + $0x490] sm:$0xff] 0.0
          %736 = vst [vmem:[#allocation2 + $0x498] sm:$0xff] 0.0
          %737 = vst [vmem:[#allocation2 + $0x4a0] sm:$0xff] 0.0
          %738 = vst [vmem:[#allocation2 + $0x4a8] sm:$0xff] 0.0
          %739 = vst [vmem:[#allocation2 + $0x4b0] sm:$0xff] 0.0
          %740 = vst [vmem:[#allocation2 + $0x4b8] sm:$0xff] 0.0
          %741 = vst [vmem:[#allocation2 + $0x4c0] sm:$0xff] 0.0
          %742 = vst [vmem:[#allocation2 + $0x4c8] sm:$0xff] 0.0
          %743 = vst [vmem:[#allocation2 + $0x4d0] sm:$0xff] 0.0
          %744 = vst [vmem:[#allocation2 + $0x4d8] sm:$0xff] 0.0
          %745 = vst [vmem:[#allocation2 + $0x4e0] sm:$0xff] 0.0
          %746 = vst [vmem:[#allocation2 + $0x4e8] sm:$0xff] 0.0
          %747 = vst [vmem:[#allocation2 + $0x4f0] sm:$0xff] 0.0
          %748 = vst [vmem:[#allocation2 + $0x4f8] sm:$0xff] 0.0
          %749 = vst [vmem:[#allocation2 + $0x500] sm:$0xff] 0.0
          %750 = vst [vmem:[#allocation2 + $0x508] sm:$0xff] 0.0
          %751 = vst [vmem:[#allocation2 + $0x510] sm:$0xff] 0.0
          %752 = vst [vmem:[#allocation2 + $0x518] sm:$0xff] 0.0
          %753 = vst [vmem:[#allocation2 + $0x520] sm:$0xff] 0.0
          %754 = vst [vmem:[#allocation2 + $0x528] sm:$0xff] 0.0
          %755 = vst [vmem:[#allocation2 + $0x530] sm:$0xff] 0.0
          %756 = vst [vmem:[#allocation2 + $0x538] sm:$0xff] 0.0
          %757 = vst [vmem:[#allocation2 + $0x540] sm:$0xff] 0.0
          %758 = vst [vmem:[#allocation2 + $0x548] sm:$0xff] 0.0
          %759 = vst [vmem:[#allocation2 + $0x550] sm:$0xff] 0.0
          %760 = vst [vmem:[#allocation2 + $0x558] sm:$0xff] 0.0
          %761 = vst [vmem:[#allocation2 + $0x560] sm:$0xff] 0.0
          %762 = vst [vmem:[#allocation2 + $0x568] sm:$0xff] 0.0
          %763 = vst [vmem:[#allocation2 + $0x570] sm:$0xff] 0.0
          %764 = vst [vmem:[#allocation2 + $0x578] sm:$0xff] 0.0
          %765 = vst [vmem:[#allocation2 + $0x580] sm:$0xff] 0.0
          %766 = vst [vmem:[#allocation2 + $0x588] sm:$0xff] 0.0
          %767 = vst [vmem:[#allocation2 + $0x590] sm:$0xff] 0.0
          %768 = vst [vmem:[#allocation2 + $0x598] sm:$0xff] 0.0
          %769 = vst [vmem:[#allocation2 + $0x5a0] sm:$0xff] 0.0
          %770 = vst [vmem:[#allocation2 + $0x5a8] sm:$0xff] 0.0
          %771 = vst [vmem:[#allocation2 + $0x5b0] sm:$0xff] 0.0
          %772 = vst [vmem:[#allocation2 + $0x5b8] sm:$0xff] 0.0
          %773 = vst [vmem:[#allocation2 + $0x5c0] sm:$0xff] 0.0
          %774 = vst [vmem:[#allocation2 + $0x5c8] sm:$0xff] 0.0
          %775 = vst [vmem:[#allocation2 + $0x5d0] sm:$0xff] 0.0
          %776 = vst [vmem:[#allocation2 + $0x5d8] sm:$0xff] 0.0
          %777 = vst [vmem:[#allocation2 + $0x5e0] sm:$0xff] 0.0
          %778 = vst [vmem:[#allocation2 + $0x5e8] sm:$0xff] 0.0
          %779 = vst [vmem:[#allocation2 + $0x5f0] sm:$0xff] 0.0
          %780 = vst [vmem:[#allocation2 + $0x5f8] sm:$0xff] 0.0
          %781 = vst [vmem:[#allocation2 + $0x600] sm:$0xff] 0.0
          %782 = vst [vmem:[#allocation2 + $0x608] sm:$0xff] 0.0
          %783 = vst [vmem:[#allocation2 + $0x610] sm:$0xff] 0.0
          %784 = vst [vmem:[#allocation2 + $0x618] sm:$0xff] 0.0
          %785 = vst [vmem:[#allocation2 + $0x620] sm:$0xff] 0.0
          %786 = vst [vmem:[#allocation2 + $0x628] sm:$0xff] 0.0
          %787 = vst [vmem:[#allocation2 + $0x630] sm:$0xff] 0.0
          %788 = vst [vmem:[#allocation2 + $0x638] sm:$0xff] 0.0
          %789 = vst [vmem:[#allocation2 + $0x640] sm:$0xff] 0.0
          %790 = vst [vmem:[#allocation2 + $0x648] sm:$0xff] 0.0
          %791 = vst [vmem:[#allocation2 + $0x650] sm:$0xff] 0.0
          %792 = vst [vmem:[#allocation2 + $0x658] sm:$0xff] 0.0
          %793 = vst [vmem:[#allocation2 + $0x660] sm:$0xff] 0.0
          %794 = vst [vmem:[#allocation2 + $0x668] sm:$0xff] 0.0
          %795 = vst [vmem:[#allocation2 + $0x670] sm:$0xff] 0.0
          %796 = vst [vmem:[#allocation2 + $0x678] sm:$0xff] 0.0
          %797 = vst [vmem:[#allocation2 + $0x680] sm:$0xff] 0.0
          %798 = vst [vmem:[#allocation2 + $0x688] sm:$0xff] 0.0
          %799 = vst [vmem:[#allocation2 + $0x690] sm:$0xff] 0.0
          %800 = vst [vmem:[#allocation2 + $0x698] sm:$0xff] 0.0
          %801 = vst [vmem:[#allocation2 + $0x6a0] sm:$0xff] 0.0
          %802 = vst [vmem:[#allocation2 + $0x6a8] sm:$0xff] 0.0
          %803 = vst [vmem:[#allocation2 + $0x6b0] sm:$0xff] 0.0
          %804 = vst [vmem:[#allocation2 + $0x6b8] sm:$0xff] 0.0
          %805 = vst [vmem:[#allocation2 + $0x6c0] sm:$0xff] 0.0
          %806 = vst [vmem:[#allocation2 + $0x6c8] sm:$0xff] 0.0
          %807 = vst [vmem:[#allocation2 + $0x6d0] sm:$0xff] 0.0
          %808 = vst [vmem:[#allocation2 + $0x6d8] sm:$0xff] 0.0
          %809 = vst [vmem:[#allocation2 + $0x6e0] sm:$0xff] 0.0
          %810 = vst [vmem:[#allocation2 + $0x6e8] sm:$0xff] 0.0
          %811 = vst [vmem:[#allocation2 + $0x6f0] sm:$0xff] 0.0
          %812 = vst [vmem:[#allocation2 + $0x6f8] sm:$0xff] 0.0
          %813 = vst [vmem:[#allocation2 + $0x700] sm:$0xff] 0.0
          %814 = vst [vmem:[#allocation2 + $0x708] sm:$0xff] 0.0
          %815 = vst [vmem:[#allocation2 + $0x710] sm:$0xff] 0.0
          %816 = vst [vmem:[#allocation2 + $0x718] sm:$0xff] 0.0
          %817 = vst [vmem:[#allocation2 + $0x720] sm:$0xff] 0.0
          %818 = vst [vmem:[#allocation2 + $0x728] sm:$0xff] 0.0
          %819 = vst [vmem:[#allocation2 + $0x730] sm:$0xff] 0.0
          %820 = vst [vmem:[#allocation2 + $0x738] sm:$0xff] 0.0
          %821 = vst [vmem:[#allocation2 + $0x740] sm:$0xff] 0.0
          %822 = vst [vmem:[#allocation2 + $0x748] sm:$0xff] 0.0
          %823 = vst [vmem:[#allocation2 + $0x750] sm:$0xff] 0.0
          %824 = vst [vmem:[#allocation2 + $0x758] sm:$0xff] 0.0
          %825 = vst [vmem:[#allocation2 + $0x760] sm:$0xff] 0.0
          %826 = vst [vmem:[#allocation2 + $0x768] sm:$0xff] 0.0
          %827 = vst [vmem:[#allocation2 + $0x770] sm:$0xff] 0.0
          %828 = vst [vmem:[#allocation2 + $0x778] sm:$0xff] 0.0
        $region70: #{speechrec_forward.1} parent=61 // pred_fallthru
          _
        %v829 = vld [vmem:[#allocation2] sm:$0xff]
        %v830 = vld [vmem:[#allocation2 + $0x8] sm:$0xff]
        %v831 = vld [vmem:[#allocation2 + $0x10] sm:$0xff]
        %v832 = vld [vmem:[#allocation2 + $0x18] sm:$0xff]
        %v833 = vld [vmem:[#allocation2 + $0x20] sm:$0xff]
        %v834 = vld [vmem:[#allocation2 + $0x28] sm:$0xff]
        %v835 = vld [vmem:[#allocation2 + $0x30] sm:$0xff]
        %v836 = vld [vmem:[#allocation2 + $0x38] sm:$0xff]
        %v837 = vld [vmem:[#allocation2 + $0x40] sm:$0xff]
        %v838 = vld [vmem:[#allocation2 + $0x48] sm:$0xff]
        %v839 = vld [vmem:[#allocation2 + $0x50] sm:$0xff]
        %v840 = vld [vmem:[#allocation2 + $0x58] sm:$0xff]
        %v841 = vld [vmem:[#allocation2 + $0x60] sm:$0xff]
        %v842 = vld [vmem:[#allocation2 + $0x68] sm:$0xff]
        %v843 = vld [vmem:[#allocation2 + $0x70] sm:$0xff]
        %v844 = vld [vmem:[#allocation2 + $0x78] sm:$0xff]
        %v845 = vld [vmem:[#allocation2 + $0x80] sm:$0xff]
        %v846 = vld [vmem:[#allocation2 + $0x88] sm:$0xff]
        %v847 = vld [vmem:[#allocation2 + $0x90] sm:$0xff]
        %v848 = vld [vmem:[#allocation2 + $0x98] sm:$0xff]
        %v849 = vld [vmem:[#allocation2 + $0xa0] sm:$0xff]
        %v850 = vld [vmem:[#allocation2 + $0xa8] sm:$0xff]
        %v851 = vld [vmem:[#allocation2 + $0xb0] sm:$0xff]
        %v852 = vld [vmem:[#allocation2 + $0xb8] sm:$0xff]
        %v853 = vld [vmem:[#allocation2 + $0xc0] sm:$0xff]
        %v854 = vld [vmem:[#allocation2 + $0xc8] sm:$0xff]
        %v855 = vld [vmem:[#allocation2 + $0xd0] sm:$0xff]
        %v856 = vld [vmem:[#allocation2 + $0xd8] sm:$0xff]
        %v857 = vld [vmem:[#allocation2 + $0xe0] sm:$0xff]
        %v858 = vld [vmem:[#allocation2 + $0xe8] sm:$0xff]
        %v859 = vld [vmem:[#allocation2 + $0xf0] sm:$0xff]
        %v860 = vld [vmem:[#allocation2 + $0xf8] sm:$0xff]
        %v861 = vld [vmem:[#allocation2 + $0x100] sm:$0xff]
        %v862 = vld [vmem:[#allocation2 + $0x108] sm:$0xff]
        %v863 = vld [vmem:[#allocation2 + $0x110] sm:$0xff]
        %v864 = vld [vmem:[#allocation2 + $0x118] sm:$0xff]
        %v865 = vld [vmem:[#allocation2 + $0x120] sm:$0xff]
        %v866 = vld [vmem:[#allocation2 + $0x128] sm:$0xff]
        %v867 = vld [vmem:[#allocation2 + $0x130] sm:$0xff]
        %v868 = vld [vmem:[#allocation2 + $0x138] sm:$0xff]
        %v869 = vld [vmem:[#allocation2 + $0x140] sm:$0xff]
        %v870 = vld [vmem:[#allocation2 + $0x148] sm:$0xff]
        %v871 = vld [vmem:[#allocation2 + $0x150] sm:$0xff]
        %v872 = vld [vmem:[#allocation2 + $0x158] sm:$0xff]
        %v873 = vld [vmem:[#allocation2 + $0x160] sm:$0xff]
        %v874 = vld [vmem:[#allocation2 + $0x168] sm:$0xff]
        %v875 = vld [vmem:[#allocation2 + $0x170] sm:$0xff]
        %v876 = vld [vmem:[#allocation2 + $0x178] sm:$0xff]
        %v877 = vld [vmem:[#allocation2 + $0x180] sm:$0xff]
        %v878 = vld [vmem:[#allocation2 + $0x188] sm:$0xff]
        %v879 = vld [vmem:[#allocation2 + $0x190] sm:$0xff]
        %v880 = vld [vmem:[#allocation2 + $0x198] sm:$0xff]
        %v881 = vld [vmem:[#allocation2 + $0x1a0] sm:$0xff]
        %v882 = vld [vmem:[#allocation2 + $0x1a8] sm:$0xff]
        %v883 = vld [vmem:[#allocation2 + $0x1b0] sm:$0xff]
        %v884 = vld [vmem:[#allocation2 + $0x1b8] sm:$0xff]
        %v885 = vld [vmem:[#allocation2 + $0x1c0] sm:$0xff]
        %v886 = vld [vmem:[#allocation2 + $0x1c8] sm:$0xff]
        %v887 = vld [vmem:[#allocation2 + $0x1d0] sm:$0xff]
        %v888 = vld [vmem:[#allocation2 + $0x1d8] sm:$0xff]
        %v889 = vld [vmem:[#allocation2 + $0x1e0] sm:$0xff]
        %v890 = vld [vmem:[#allocation2 + $0x1e8] sm:$0xff]
        %v891 = vld [vmem:[#allocation2 + $0x1f0] sm:$0xff]
        %v892 = vld [vmem:[#allocation2 + $0x1f8] sm:$0xff]
        %v893 = vld [vmem:[#allocation2 + $0x200] sm:$0xff]
        %v894 = vld [vmem:[#allocation2 + $0x208] sm:$0xff]
        %v895 = vld [vmem:[#allocation2 + $0x210] sm:$0xff]
        %v896 = vld [vmem:[#allocation2 + $0x218] sm:$0xff]
        %v897 = vld [vmem:[#allocation2 + $0x220] sm:$0xff]
        %v898 = vld [vmem:[#allocation2 + $0x228] sm:$0xff]
        %v899 = vld [vmem:[#allocation2 + $0x230] sm:$0xff]
        %v900 = vld [vmem:[#allocation2 + $0x238] sm:$0xff]
        %v901 = vld [vmem:[#allocation2 + $0x240] sm:$0xff]
        %v902 = vld [vmem:[#allocation2 + $0x248] sm:$0xff]
        %v903 = vld [vmem:[#allocation2 + $0x250] sm:$0xff]
        %v904 = vld [vmem:[#allocation2 + $0x258] sm:$0xff]
        %v905 = vld [vmem:[#allocation2 + $0x260] sm:$0xff]
        %v906 = vld [vmem:[#allocation2 + $0x268] sm:$0xff]
        %v907 = vld [vmem:[#allocation2 + $0x270] sm:$0xff]
        %v908 = vld [vmem:[#allocation2 + $0x278] sm:$0xff]
        %v909 = vld [vmem:[#allocation2 + $0x280] sm:$0xff]
        %v910 = vld [vmem:[#allocation2 + $0x288] sm:$0xff]
        %v911 = vld [vmem:[#allocation2 + $0x290] sm:$0xff]
        %v912 = vld [vmem:[#allocation2 + $0x298] sm:$0xff]
        %v913 = vld [vmem:[#allocation2 + $0x2a0] sm:$0xff]
        %v914 = vld [vmem:[#allocation2 + $0x2a8] sm:$0xff]
        %v915 = vld [vmem:[#allocation2 + $0x2b0] sm:$0xff]
        %v916 = vld [vmem:[#allocation2 + $0x2b8] sm:$0xff]
        %v917 = vld [vmem:[#allocation2 + $0x2c0] sm:$0xff]
        %v918 = vld [vmem:[#allocation2 + $0x2c8] sm:$0xff]
        %v919 = vld [vmem:[#allocation2 + $0x2d0] sm:$0xff]
        %v920 = vld [vmem:[#allocation2 + $0x2d8] sm:$0xff]
        %v921 = vld [vmem:[#allocation2 + $0x2e0] sm:$0xff]
        %v922 = vld [vmem:[#allocation2 + $0x2e8] sm:$0xff]
        %v923 = vld [vmem:[#allocation2 + $0x2f0] sm:$0xff]
        %v924 = vld [vmem:[#allocation2 + $0x2f8] sm:$0xff]
        %v925 = vld [vmem:[#allocation2 + $0x300] sm:$0xff]
        %v926 = vld [vmem:[#allocation2 + $0x308] sm:$0xff]
        %v927 = vld [vmem:[#allocation2 + $0x310] sm:$0xff]
        %v928 = vld [vmem:[#allocation2 + $0x318] sm:$0xff]
        %v929 = vld [vmem:[#allocation2 + $0x320] sm:$0xff]
        %v930 = vld [vmem:[#allocation2 + $0x328] sm:$0xff]
        %v931 = vld [vmem:[#allocation2 + $0x330] sm:$0xff]
        %v932 = vld [vmem:[#allocation2 + $0x338] sm:$0xff]
        %v933 = vld [vmem:[#allocation2 + $0x340] sm:$0xff]
        %v934 = vld [vmem:[#allocation2 + $0x348] sm:$0xff]
        %v935 = vld [vmem:[#allocation2 + $0x350] sm:$0xff]
        %v936 = vld [vmem:[#allocation2 + $0x358] sm:$0xff]
        %v937 = vld [vmem:[#allocation2 + $0x360] sm:$0xff]
        %v938 = vld [vmem:[#allocation2 + $0x368] sm:$0xff]
        %v939 = vld [vmem:[#allocation2 + $0x370] sm:$0xff]
        %v940 = vld [vmem:[#allocation2 + $0x378] sm:$0xff]
        %v941 = vld [vmem:[#allocation2 + $0x380] sm:$0xff]
        %v942 = vld [vmem:[#allocation2 + $0x388] sm:$0xff]
        %v943 = vld [vmem:[#allocation2 + $0x390] sm:$0xff]
        %v944 = vld [vmem:[#allocation2 + $0x398] sm:$0xff]
        %v945 = vld [vmem:[#allocation2 + $0x3a0] sm:$0xff]
        %v946 = vld [vmem:[#allocation2 + $0x3a8] sm:$0xff]
        %v947 = vld [vmem:[#allocation2 + $0x3b0] sm:$0xff]
        %v948 = vld [vmem:[#allocation2 + $0x3b8] sm:$0xff]
        %v949 = vld [vmem:[#allocation2 + $0x3c0] sm:$0xff]
        %v950 = vld [vmem:[#allocation2 + $0x3c8] sm:$0xff]
        %v951 = vld [vmem:[#allocation2 + $0x3d0] sm:$0xff]
        %v952 = vld [vmem:[#allocation2 + $0x3d8] sm:$0xff]
        %v953 = vld [vmem:[#allocation2 + $0x3e0] sm:$0xff]
        %v954 = vld [vmem:[#allocation2 + $0x3e8] sm:$0xff]
        %v955 = vld [vmem:[#allocation2 + $0x3f0] sm:$0xff]
        %v956 = vld [vmem:[#allocation2 + $0x3f8] sm:$0xff]
        %v957 = vld [vmem:[#allocation2 + $0x400] sm:$0xff]
        %v958 = vld [vmem:[#allocation2 + $0x408] sm:$0xff]
        %v959 = vld [vmem:[#allocation2 + $0x410] sm:$0xff]
        %v960 = vld [vmem:[#allocation2 + $0x418] sm:$0xff]
        %v961 = vld [vmem:[#allocation2 + $0x420] sm:$0xff]
        %v962 = vld [vmem:[#allocation2 + $0x428] sm:$0xff]
        %v963 = vld [vmem:[#allocation2 + $0x430] sm:$0xff]
        %v964 = vld [vmem:[#allocation2 + $0x438] sm:$0xff]
        %v965 = vld [vmem:[#allocation2 + $0x440] sm:$0xff]
        %v966 = vld [vmem:[#allocation2 + $0x448] sm:$0xff]
        %v967 = vld [vmem:[#allocation2 + $0x450] sm:$0xff]
        %v968 = vld [vmem:[#allocation2 + $0x458] sm:$0xff]
        %v969 = vld [vmem:[#allocation2 + $0x460] sm:$0xff]
        %v970 = vld [vmem:[#allocation2 + $0x468] sm:$0xff]
        %v971 = vld [vmem:[#allocation2 + $0x470] sm:$0xff]
        %v972 = vld [vmem:[#allocation2 + $0x478] sm:$0xff]
        %v973 = vld [vmem:[#allocation2 + $0x480] sm:$0xff]
        %v974 = vld [vmem:[#allocation2 + $0x488] sm:$0xff]
        %v975 = vld [vmem:[#allocation2 + $0x490] sm:$0xff]
        %v976 = vld [vmem:[#allocation2 + $0x498] sm:$0xff]
        %v977 = vld [vmem:[#allocation2 + $0x4a0] sm:$0xff]
        %v978 = vld [vmem:[#allocation2 + $0x4a8] sm:$0xff]
        %v979 = vld [vmem:[#allocation2 + $0x4b0] sm:$0xff]
        %v980 = vld [vmem:[#allocation2 + $0x4b8] sm:$0xff]
        %v981 = vld [vmem:[#allocation2 + $0x4c0] sm:$0xff]
        %v982 = vld [vmem:[#allocation2 + $0x4c8] sm:$0xff]
        %v983 = vld [vmem:[#allocation2 + $0x4d0] sm:$0xff]
        %v984 = vld [vmem:[#allocation2 + $0x4d8] sm:$0xff]
        %v985 = vld [vmem:[#allocation2 + $0x4e0] sm:$0xff]
        %v986 = vld [vmem:[#allocation2 + $0x4e8] sm:$0xff]
        %v987 = vld [vmem:[#allocation2 + $0x4f0] sm:$0xff]
        %v988 = vld [vmem:[#allocation2 + $0x4f8] sm:$0xff]
        %v989 = vld [vmem:[#allocation2 + $0x500] sm:$0xff]
        %v990 = vld [vmem:[#allocation2 + $0x508] sm:$0xff]
        %v991 = vld [vmem:[#allocation2 + $0x510] sm:$0xff]
        %v992 = vld [vmem:[#allocation2 + $0x518] sm:$0xff]
        %v993 = vld [vmem:[#allocation2 + $0x520] sm:$0xff]
        %v994 = vld [vmem:[#allocation2 + $0x528] sm:$0xff]
        %v995 = vld [vmem:[#allocation2 + $0x530] sm:$0xff]
        %v996 = vld [vmem:[#allocation2 + $0x538] sm:$0xff]
        %v997 = vld [vmem:[#allocation2 + $0x540] sm:$0xff]
        %v998 = vld [vmem:[#allocation2 + $0x548] sm:$0xff]
        %v999 = vld [vmem:[#allocation2 + $0x550] sm:$0xff]
        %v1000 = vld [vmem:[#allocation2 + $0x558] sm:$0xff]
        %v1001 = vld [vmem:[#allocation2 + $0x560] sm:$0xff]
        %v1002 = vld [vmem:[#allocation2 + $0x568] sm:$0xff]
        %v1003 = vld [vmem:[#allocation2 + $0x570] sm:$0xff]
        %v1004 = vld [vmem:[#allocation2 + $0x578] sm:$0xff]
        %v1005 = vld [vmem:[#allocation2 + $0x580] sm:$0xff]
        %v1006 = vld [vmem:[#allocation2 + $0x588] sm:$0xff]
        %v1007 = vld [vmem:[#allocation2 + $0x590] sm:$0xff]
        %v1008 = vld [vmem:[#allocation2 + $0x598] sm:$0xff]
        %v1009 = vld [vmem:[#allocation2 + $0x5a0] sm:$0xff]
        %v1010 = vld [vmem:[#allocation2 + $0x5a8] sm:$0xff]
        %v1011 = vld [vmem:[#allocation2 + $0x5b0] sm:$0xff]
        %v1012 = vld [vmem:[#allocation2 + $0x5b8] sm:$0xff]
        %v1013 = vld [vmem:[#allocation2 + $0x5c0] sm:$0xff]
        %v1014 = vld [vmem:[#allocation2 + $0x5c8] sm:$0xff]
        %v1015 = vld [vmem:[#allocation2 + $0x5d0] sm:$0xff]
        %v1016 = vld [vmem:[#allocation2 + $0x5d8] sm:$0xff]
        %v1017 = vld [vmem:[#allocation2 + $0x5e0] sm:$0xff]
        %v1018 = vld [vmem:[#allocation2 + $0x5e8] sm:$0xff]
        %v1019 = vld [vmem:[#allocation2 + $0x5f0] sm:$0xff]
        %v1020 = vld [vmem:[#allocation2 + $0x5f8] sm:$0xff]
        %v1021 = vld [vmem:[#allocation2 + $0x600] sm:$0xff]
        %v1022 = vld [vmem:[#allocation2 + $0x608] sm:$0xff]
        %v1023 = vld [vmem:[#allocation2 + $0x610] sm:$0xff]
        %v1024 = vld [vmem:[#allocation2 + $0x618] sm:$0xff]
        %v1025 = vld [vmem:[#allocation2 + $0x620] sm:$0xff]
        %v1026 = vld [vmem:[#allocation2 + $0x628] sm:$0xff]
        %v1027 = vld [vmem:[#allocation2 + $0x630] sm:$0xff]
        %v1028 = vld [vmem:[#allocation2 + $0x638] sm:$0xff]
        %v1029 = vld [vmem:[#allocation2 + $0x640] sm:$0xff]
        %v1030 = vld [vmem:[#allocation2 + $0x648] sm:$0xff]
        %v1031 = vld [vmem:[#allocation2 + $0x650] sm:$0xff]
        %v1032 = vld [vmem:[#allocation2 + $0x658] sm:$0xff]
        %v1033 = vld [vmem:[#allocation2 + $0x660] sm:$0xff]
        %v1034 = vld [vmem:[#allocation2 + $0x668] sm:$0xff]
        %v1035 = vld [vmem:[#allocation2 + $0x670] sm:$0xff]
        %v1036 = vld [vmem:[#allocation2 + $0x678] sm:$0xff]
        %v1037 = vld [vmem:[#allocation2 + $0x680] sm:$0xff]
        %v1038 = vld [vmem:[#allocation2 + $0x688] sm:$0xff]
        %v1039 = vld [vmem:[#allocation2 + $0x690] sm:$0xff]
        %v1040 = vld [vmem:[#allocation2 + $0x698] sm:$0xff]
        %v1041 = vld [vmem:[#allocation2 + $0x6a0] sm:$0xff]
        %v1042 = vld [vmem:[#allocation2 + $0x6a8] sm:$0xff]
        %v1043 = vld [vmem:[#allocation2 + $0x6b0] sm:$0xff]
        %v1044 = vld [vmem:[#allocation2 + $0x6b8] sm:$0xff]
        %v1045 = vld [vmem:[#allocation2 + $0x6c0] sm:$0xff]
        %v1046 = vld [vmem:[#allocation2 + $0x6c8] sm:$0xff]
        %v1047 = vld [vmem:[#allocation2 + $0x6d0] sm:$0xff]
        %v1048 = vld [vmem:[#allocation2 + $0x6d8] sm:$0xff]
        %v1049 = vld [vmem:[#allocation2 + $0x6e0] sm:$0xff]
        %v1050 = vld [vmem:[#allocation2 + $0x6e8] sm:$0xff]
        %v1051 = vld [vmem:[#allocation2 + $0x6f0] sm:$0xff]
        %v1052 = vld [vmem:[#allocation2 + $0x6f8] sm:$0xff]
        %v1053 = vld [vmem:[#allocation2 + $0x700] sm:$0xff]
        %v1054 = vld [vmem:[#allocation2 + $0x708] sm:$0xff]
        %v1055 = vld [vmem:[#allocation2 + $0x710] sm:$0xff]
        %v1056 = vld [vmem:[#allocation2 + $0x718] sm:$0xff]
        %v1057 = vld [vmem:[#allocation2 + $0x720] sm:$0xff]
        %v1058 = vld [vmem:[#allocation2 + $0x728] sm:$0xff]
        %v1059 = vld [vmem:[#allocation2 + $0x730] sm:$0xff]
        %v1060 = vld [vmem:[#allocation2 + $0x738] sm:$0xff]
        %v1061 = vld [vmem:[#allocation2 + $0x740] sm:$0xff]
        %v1062 = vld [vmem:[#allocation2 + $0x748] sm:$0xff]
        %v1063 = vld [vmem:[#allocation2 + $0x750] sm:$0xff]
        %v1064 = vld [vmem:[#allocation2 + $0x758] sm:$0xff]
        %v1065 = vld [vmem:[#allocation2 + $0x760] sm:$0xff]
        %v1066 = vld [vmem:[#allocation2 + $0x768] sm:$0xff]
        %v1067 = vld [vmem:[#allocation2 + $0x770] sm:$0xff]
        %v1068 = vld [vmem:[#allocation2 + $0x778] sm:$0xff]
        %v1069 = vld [vmem:[%s550] sm:$0xff]
        %v1070 = vld [vmem:[%s550 + $0x8] sm:$0xf]
        %v1071 = vld [vmem:[%s550 + $0xc] sm:$0xff]
        %v1072 = vld [vmem:[%s550 + $0x14] sm:$0xf]
        %v1073 = vld [vmem:[%s550 + $0x18] sm:$0xff]
        %v1074 = vld [vmem:[%s550 + $0x20] sm:$0xf]
        %v1075 = vld [vmem:[%s550 + $0x24] sm:$0xff]
        %v1076 = vld [vmem:[%s550 + $0x2c] sm:$0xf]
        %v1077 = vld [vmem:[%s550 + $0x30] sm:$0xff]
        %v1078 = vld [vmem:[%s550 + $0x38] sm:$0xf]
        %v1079 = vld [vmem:[%s550 + $0x3c] sm:$0xff]
        %v1080 = vld [vmem:[%s550 + $0x44] sm:$0xf]
        %v1081 = vld [vmem:[%s550 + $0x48] sm:$0xff]
        %v1082 = vld [vmem:[%s550 + $0x50] sm:$0xf]
        %v1083 = vld [vmem:[%s550 + $0x54] sm:$0xff]
        %v1084 = vld [vmem:[%s550 + $0x5c] sm:$0xf]
        %v1085 = vld [vmem:[%s550 + $0x60] sm:$0xff]
        %v1086 = vld [vmem:[%s550 + $0x68] sm:$0xf]
        %v1087 = vld [vmem:[%s550 + $0x6c] sm:$0xff]
        %v1088 = vld [vmem:[%s550 + $0x74] sm:$0xf]
        %v1089 = vld [vmem:[%s550 + $0x78] sm:$0xff]
        %v1090 = vld [vmem:[%s550 + $0x80] sm:$0xf]
        %v1091 = vld [vmem:[%s550 + $0x84] sm:$0xff]
        %v1092 = vld [vmem:[%s550 + $0x8c] sm:$0xf]
        %v1093 = vld [vmem:[%s550 + $0x90] sm:$0xff]
        %v1094 = vld [vmem:[%s550 + $0x98] sm:$0xf]
        %v1095 = vld [vmem:[%s550 + $0x9c] sm:$0xff]
        %v1096 = vld [vmem:[%s550 + $0xa4] sm:$0xf]
        %v1097 = vld [vmem:[%s550 + $0xa8] sm:$0xff]
        %v1098 = vld [vmem:[%s550 + $0xb0] sm:$0xf]
        %v1099 = vld [vmem:[%s550 + $0xb4] sm:$0xff]
        %v1100 = vld [vmem:[%s550 + $0xbc] sm:$0xf]
        %v1101 = vld [vmem:[%s550 + $0xc0] sm:$0xff]
        %v1102 = vld [vmem:[%s550 + $0xc8] sm:$0xf]
        %v1103 = vld [vmem:[%s550 + $0xcc] sm:$0xff]
        %v1104 = vld [vmem:[%s550 + $0xd4] sm:$0xf]
        %v1105 = vld [vmem:[%s550 + $0xd8] sm:$0xff]
        %v1106 = vld [vmem:[%s550 + $0xe0] sm:$0xf]
        %v1107 = vld [vmem:[%s550 + $0xe4] sm:$0xff]
        %v1108 = vld [vmem:[%s550 + $0xec] sm:$0xf]
        %v1109 = vld [vmem:[%s550 + $0xf0] sm:$0xff]
        %v1110 = vld [vmem:[%s550 + $0xf8] sm:$0xf]
        %v1111 = vld [vmem:[%s550 + $0xfc] sm:$0xff]
        %v1112 = vld [vmem:[%s550 + $0x104] sm:$0xf]
        %v1113 = vld [vmem:[%s550 + $0x108] sm:$0xff]
        %v1114 = vld [vmem:[%s550 + $0x110] sm:$0xf]
        %v1115 = vld [vmem:[%s550 + $0x114] sm:$0xff]
        %v1116 = vld [vmem:[%s550 + $0x11c] sm:$0xf]
        %v1117 = vld [vmem:[%s550 + $0x120] sm:$0xff]
        %v1118 = vld [vmem:[%s550 + $0x128] sm:$0xf]
        %v1119 = vld [vmem:[%s550 + $0x12c] sm:$0xff]
        %v1120 = vld [vmem:[%s550 + $0x134] sm:$0xf]
        %v1121 = vld [vmem:[%s550 + $0x138] sm:$0xff]
        %v1122 = vld [vmem:[%s550 + $0x140] sm:$0xf]
        %v1123 = vld [vmem:[%s550 + $0x144] sm:$0xff]
        %v1124 = vld [vmem:[%s550 + $0x14c] sm:$0xf]
        %v1125 = vld [vmem:[%s550 + $0x150] sm:$0xff]
        %v1126 = vld [vmem:[%s550 + $0x158] sm:$0xf]
        %v1127 = vld [vmem:[%s550 + $0x15c] sm:$0xff]
        %v1128 = vld [vmem:[%s550 + $0x164] sm:$0xf]
        %v1129 = vld [vmem:[%s550 + $0x168] sm:$0xff]
        %v1130 = vld [vmem:[%s550 + $0x170] sm:$0xf]
        %v1131 = vld [vmem:[%s550 + $0x174] sm:$0xff]
        %v1132 = vld [vmem:[%s550 + $0x17c] sm:$0xf]
        %v1133 = vld [vmem:[%s550 + $0x180] sm:$0xff]
        %v1134 = vld [vmem:[%s550 + $0x188] sm:$0xf]
        %v1135 = vld [vmem:[%s550 + $0x18c] sm:$0xff]
        %v1136 = vld [vmem:[%s550 + $0x194] sm:$0xf]
        %v1137 = vld [vmem:[%s550 + $0x198] sm:$0xff]
        %v1138 = vld [vmem:[%s550 + $0x1a0] sm:$0xf]
        %v1139 = vld [vmem:[%s550 + $0x1a4] sm:$0xff]
        %v1140 = vld [vmem:[%s550 + $0x1ac] sm:$0xf]
        %v1141 = vld [vmem:[%s550 + $0x1b0] sm:$0xff]
        %v1142 = vld [vmem:[%s550 + $0x1b8] sm:$0xf]
        %v1143 = vld [vmem:[%s550 + $0x1bc] sm:$0xff]
        %v1144 = vld [vmem:[%s550 + $0x1c4] sm:$0xf]
        %v1145 = vld [vmem:[%s550 + $0x1c8] sm:$0xff]
        %v1146 = vld [vmem:[%s550 + $0x1d0] sm:$0xf]
        %v1147 = vld [vmem:[%s550 + $0x1d4] sm:$0xff]
        %v1148 = vld [vmem:[%s550 + $0x1dc] sm:$0xf]
        %v1149 = vld [vmem:[%s550 + $0x1e0] sm:$0xff]
        %v1150 = vld [vmem:[%s550 + $0x1e8] sm:$0xf]
        %v1151 = vld [vmem:[%s550 + $0x1ec] sm:$0xff]
        %v1152 = vld [vmem:[%s550 + $0x1f4] sm:$0xf]
        %v1153 = vld [vmem:[%s550 + $0x1f8] sm:$0xff]
        %v1154 = vld [vmem:[%s550 + $0x200] sm:$0xf]
        %v1155 = vld [vmem:[%s550 + $0x204] sm:$0xff]
        %v1156 = vld [vmem:[%s550 + $0x20c] sm:$0xf]
        %v1157 = vld [vmem:[%s550 + $0x210] sm:$0xff]
        %v1158 = vld [vmem:[%s550 + $0x218] sm:$0xf]
        %v1159 = vld [vmem:[%s550 + $0x21c] sm:$0xff]
        %v1160 = vld [vmem:[%s550 + $0x224] sm:$0xf]
        %v1161 = vld [vmem:[%s550 + $0x228] sm:$0xff]
        %v1162 = vld [vmem:[%s550 + $0x230] sm:$0xf]
        %v1163 = vld [vmem:[%s550 + $0x234] sm:$0xff]
        %v1164 = vld [vmem:[%s550 + $0x23c] sm:$0xf]
        %v1165 = vld [vmem:[%s550 + $0x240] sm:$0xff]
        %v1166 = vld [vmem:[%s550 + $0x248] sm:$0xf]
        %v1167 = vld [vmem:[%s550 + $0x24c] sm:$0xff]
        %v1168 = vld [vmem:[%s550 + $0x254] sm:$0xf]
        %v1169 = vld [vmem:[%s550 + $0x258] sm:$0xff]
        %v1170 = vld [vmem:[%s550 + $0x260] sm:$0xf]
        %v1171 = vld [vmem:[%s550 + $0x264] sm:$0xff]
        %v1172 = vld [vmem:[%s550 + $0x26c] sm:$0xf]
        %v1173 = vld [vmem:[%s550 + $0x270] sm:$0xff]
        %v1174 = vld [vmem:[%s550 + $0x278] sm:$0xf]
        %v1175 = vld [vmem:[%s550 + $0x27c] sm:$0xff]
        %v1176 = vld [vmem:[%s550 + $0x284] sm:$0xf]
        %v1177 = vld [vmem:[%s550 + $0x288] sm:$0xff]
        %v1178 = vld [vmem:[%s550 + $0x290] sm:$0xf]
        %v1179 = vld [vmem:[%s550 + $0x294] sm:$0xff]
        %v1180 = vld [vmem:[%s550 + $0x29c] sm:$0xf]
        %v1181 = vld [vmem:[%s550 + $0x2a0] sm:$0xff]
        %v1182 = vld [vmem:[%s550 + $0x2a8] sm:$0xf]
        %v1183 = vld [vmem:[%s550 + $0x2ac] sm:$0xff]
        %v1184 = vld [vmem:[%s550 + $0x2b4] sm:$0xf]
        %v1185 = vld [vmem:[%s550 + $0x2b8] sm:$0xff]
        %v1186 = vld [vmem:[%s550 + $0x2c0] sm:$0xf]
        %v1187 = vld [vmem:[%s550 + $0x2c4] sm:$0xff]
        %v1188 = vld [vmem:[%s550 + $0x2cc] sm:$0xf]
        %v1189 = vld [vmem:[%s550 + $0x2d0] sm:$0xff]
        %v1190 = vld [vmem:[%s550 + $0x2d8] sm:$0xf]
        %v1191 = vld [vmem:[%s550 + $0x2dc] sm:$0xff]
        %v1192 = vld [vmem:[%s550 + $0x2e4] sm:$0xf]
        %v1193 = vld [vmem:[%s550 + $0x2e8] sm:$0xff]
        %v1194 = vld [vmem:[%s550 + $0x2f0] sm:$0xf]
        %v1195 = vld [vmem:[%s550 + $0x2f4] sm:$0xff]
        %v1196 = vld [vmem:[%s550 + $0x2fc] sm:$0xf]
        %v1197 = vld [vmem:[%s550 + $0x300] sm:$0xff]
        %v1198 = vld [vmem:[%s550 + $0x308] sm:$0xf]
        %v1199 = vld [vmem:[%s550 + $0x30c] sm:$0xff]
        %v1200 = vld [vmem:[%s550 + $0x314] sm:$0xf]
        %v1201 = vld [vmem:[%s550 + $0x318] sm:$0xff]
        %v1202 = vld [vmem:[%s550 + $0x320] sm:$0xf]
        %v1203 = vld [vmem:[%s550 + $0x324] sm:$0xff]
        %v1204 = vld [vmem:[%s550 + $0x32c] sm:$0xf]
        %v1205 = vld [vmem:[%s550 + $0x330] sm:$0xff]
        %v1206 = vld [vmem:[%s550 + $0x338] sm:$0xf]
        %v1207 = vld [vmem:[%s550 + $0x33c] sm:$0xff]
        %v1208 = vld [vmem:[%s550 + $0x344] sm:$0xf]
        %v1209 = vld [vmem:[%s550 + $0x348] sm:$0xff]
        %v1210 = vld [vmem:[%s550 + $0x350] sm:$0xf]
        %v1211 = vld [vmem:[%s550 + $0x354] sm:$0xff]
        %v1212 = vld [vmem:[%s550 + $0x35c] sm:$0xf]
        %v1213 = vld [vmem:[%s550 + $0x360] sm:$0xff]
        %v1214 = vld [vmem:[%s550 + $0x368] sm:$0xf]
        %v1215 = vld [vmem:[%s550 + $0x36c] sm:$0xff]
        %v1216 = vld [vmem:[%s550 + $0x374] sm:$0xf]
        %v1217 = vld [vmem:[%s550 + $0x378] sm:$0xff]
        %v1218 = vld [vmem:[%s550 + $0x380] sm:$0xf]
        %v1219 = vld [vmem:[%s550 + $0x384] sm:$0xff]
        %v1220 = vld [vmem:[%s550 + $0x38c] sm:$0xf]
        %v1221 = vld [vmem:[%s550 + $0x390] sm:$0xff]
        %v1222 = vld [vmem:[%s550 + $0x398] sm:$0xf]
        %v1223 = vld [vmem:[%s550 + $0x39c] sm:$0xff]
        %v1224 = vld [vmem:[%s550 + $0x3a4] sm:$0xf]
        %v1225 = vld [vmem:[%s550 + $0x3a8] sm:$0xff]
        %v1226 = vld [vmem:[%s550 + $0x3b0] sm:$0xf]
        %v1227 = vld [vmem:[%s550 + $0x3b4] sm:$0xff]
        %v1228 = vld [vmem:[%s550 + $0x3bc] sm:$0xf]
        %v1229 = vld [vmem:[%s582] sm:$0xff]
        %v1230 = vld [vmem:[%s582 + $0x8] sm:$0xf]
        %v1231 = vld [vmem:[%s582 + $0xc] sm:$0xff]
        %v1232 = vld [vmem:[%s582 + $0x14] sm:$0xf]
        %v1233 = vld [vmem:[%s582 + $0x18] sm:$0xff]
        %v1234 = vld [vmem:[%s582 + $0x20] sm:$0xf]
        %v1235 = vld [vmem:[%s582 + $0x24] sm:$0xff]
        %v1236 = vld [vmem:[%s582 + $0x2c] sm:$0xf]
        %v1237 = vld [vmem:[%s582 + $0x30] sm:$0xff]
        %v1238 = vld [vmem:[%s582 + $0x38] sm:$0xf]
        %v1239 = vld [vmem:[%s582 + $0x3c] sm:$0xff]
        %v1240 = vld [vmem:[%s582 + $0x44] sm:$0xf]
        %v1241 = vld [vmem:[%s582 + $0x48] sm:$0xff]
        %v1242 = vld [vmem:[%s582 + $0x50] sm:$0xf]
        %v1243 = vld [vmem:[%s582 + $0x54] sm:$0xff]
        %v1244 = vld [vmem:[%s582 + $0x5c] sm:$0xf]
        %v1245 = vld [vmem:[%s582 + $0x60] sm:$0xff]
        %v1246 = vld [vmem:[%s582 + $0x68] sm:$0xf]
        %v1247 = vld [vmem:[%s582 + $0x6c] sm:$0xff]
        %v1248 = vld [vmem:[%s582 + $0x74] sm:$0xf]
        %v1249 = vld [vmem:[%s582 + $0x78] sm:$0xff]
        %v1250 = vld [vmem:[%s582 + $0x80] sm:$0xf]
        %v1251 = vld [vmem:[%s582 + $0x84] sm:$0xff]
        %v1252 = vld [vmem:[%s582 + $0x8c] sm:$0xf]
        %v1253 = vld [vmem:[%s582 + $0x90] sm:$0xff]
        %v1254 = vld [vmem:[%s582 + $0x98] sm:$0xf]
        %v1255 = vld [vmem:[%s582 + $0x9c] sm:$0xff]
        %v1256 = vld [vmem:[%s582 + $0xa4] sm:$0xf]
        %v1257 = vld [vmem:[%s582 + $0xa8] sm:$0xff]
        %v1258 = vld [vmem:[%s582 + $0xb0] sm:$0xf]
        %v1259 = vld [vmem:[%s582 + $0xb4] sm:$0xff]
        %v1260 = vld [vmem:[%s582 + $0xbc] sm:$0xf]
        %v1261 = vld [vmem:[%s582 + $0xc0] sm:$0xff]
        %v1262 = vld [vmem:[%s582 + $0xc8] sm:$0xf]
        %v1263 = vld [vmem:[%s582 + $0xcc] sm:$0xff]
        %v1264 = vld [vmem:[%s582 + $0xd4] sm:$0xf]
        %v1265 = vld [vmem:[%s582 + $0xd8] sm:$0xff]
        %v1266 = vld [vmem:[%s582 + $0xe0] sm:$0xf]
        %v1267 = vld [vmem:[%s582 + $0xe4] sm:$0xff]
        %v1268 = vld [vmem:[%s582 + $0xec] sm:$0xf]
        %v1269 = vld [vmem:[%s582 + $0xf0] sm:$0xff]
        %v1270 = vld [vmem:[%s582 + $0xf8] sm:$0xf]
        %v1271 = vld [vmem:[%s582 + $0xfc] sm:$0xff]
        %v1272 = vld [vmem:[%s582 + $0x104] sm:$0xf]
        %v1273 = vld [vmem:[%s582 + $0x108] sm:$0xff]
        %v1274 = vld [vmem:[%s582 + $0x110] sm:$0xf]
        %v1275 = vld [vmem:[%s582 + $0x114] sm:$0xff]
        %v1276 = vld [vmem:[%s582 + $0x11c] sm:$0xf]
        %v1277 = vld [vmem:[%s582 + $0x120] sm:$0xff]
        %v1278 = vld [vmem:[%s582 + $0x128] sm:$0xf]
        %v1279 = vld [vmem:[%s582 + $0x12c] sm:$0xff]
        %v1280 = vld [vmem:[%s582 + $0x134] sm:$0xf]
        %v1281 = vld [vmem:[%s582 + $0x138] sm:$0xff]
        %v1282 = vld [vmem:[%s582 + $0x140] sm:$0xf]
        %v1283 = vld [vmem:[%s582 + $0x144] sm:$0xff]
        %v1284 = vld [vmem:[%s582 + $0x14c] sm:$0xf]
        %v1285 = vld [vmem:[%s582 + $0x150] sm:$0xff]
        %v1286 = vld [vmem:[%s582 + $0x158] sm:$0xf]
        %v1287 = vld [vmem:[%s582 + $0x15c] sm:$0xff]
        %v1288 = vld [vmem:[%s582 + $0x164] sm:$0xf]
        %v1289 = vld [vmem:[%s582 + $0x168] sm:$0xff]
        %v1290 = vld [vmem:[%s582 + $0x170] sm:$0xf]
        %v1291 = vld [vmem:[%s582 + $0x174] sm:$0xff]
        %v1292 = vld [vmem:[%s582 + $0x17c] sm:$0xf]
        %v1293 = vld [vmem:[%s582 + $0x180] sm:$0xff]
        %v1294 = vld [vmem:[%s582 + $0x188] sm:$0xf]
        %v1295 = vld [vmem:[%s582 + $0x18c] sm:$0xff]
        %v1296 = vld [vmem:[%s582 + $0x194] sm:$0xf]
        %v1297 = vld [vmem:[%s582 + $0x198] sm:$0xff]
        %v1298 = vld [vmem:[%s582 + $0x1a0] sm:$0xf]
        %v1299 = vld [vmem:[%s582 + $0x1a4] sm:$0xff]
        %v1300 = vld [vmem:[%s582 + $0x1ac] sm:$0xf]
        %v1301 = vld [vmem:[%s582 + $0x1b0] sm:$0xff]
        %v1302 = vld [vmem:[%s582 + $0x1b8] sm:$0xf]
        %v1303 = vld [vmem:[%s582 + $0x1bc] sm:$0xff]
        %v1304 = vld [vmem:[%s582 + $0x1c4] sm:$0xf]
        %v1305 = vld [vmem:[%s582 + $0x1c8] sm:$0xff]
        %v1306 = vld [vmem:[%s582 + $0x1d0] sm:$0xf]
        %v1307 = vld [vmem:[%s582 + $0x1d4] sm:$0xff]
        %v1308 = vld [vmem:[%s582 + $0x1dc] sm:$0xf]
        %v1309 = vld [vmem:[%s582 + $0x1e0] sm:$0xff]
        %v1310 = vld [vmem:[%s582 + $0x1e8] sm:$0xf]
        %v1311 = vld [vmem:[%s582 + $0x1ec] sm:$0xff]
        %v1312 = vld [vmem:[%s582 + $0x1f4] sm:$0xf]
        %v1313 = vld [vmem:[%s582 + $0x1f8] sm:$0xff]
        %v1314 = vld [vmem:[%s582 + $0x200] sm:$0xf]
        %v1315 = vld [vmem:[%s582 + $0x204] sm:$0xff]
        %v1316 = vld [vmem:[%s582 + $0x20c] sm:$0xf]
        %v1317 = vld [vmem:[%s582 + $0x210] sm:$0xff]
        %v1318 = vld [vmem:[%s582 + $0x218] sm:$0xf]
        %v1319 = vld [vmem:[%s582 + $0x21c] sm:$0xff]
        %v1320 = vld [vmem:[%s582 + $0x224] sm:$0xf]
        %v1321 = vld [vmem:[%s582 + $0x228] sm:$0xff]
        %v1322 = vld [vmem:[%s582 + $0x230] sm:$0xf]
        %v1323 = vld [vmem:[%s582 + $0x234] sm:$0xff]
        %v1324 = vld [vmem:[%s582 + $0x23c] sm:$0xf]
        %v1485 = vunpack.c.l.b16 %v1069
        %v1486 = vunpack.c.h.b16 %v1069
        %v1487 = vunpack.c.l.b16 %v1070
        %v1488 = vunpack.c.l.b16 %v1071
        %v1489 = vunpack.c.h.b16 %v1071
        %v1490 = vunpack.c.l.b16 %v1072
        %v1491 = vunpack.c.l.b16 %v1073
        %v1492 = vunpack.c.h.b16 %v1073
        %v1493 = vunpack.c.l.b16 %v1074
        %v1494 = vunpack.c.l.b16 %v1075
        %v1495 = vunpack.c.h.b16 %v1075
        %v1496 = vunpack.c.l.b16 %v1076
        %v1497 = vunpack.c.l.b16 %v1077
        %v1498 = vunpack.c.h.b16 %v1077
        %v1499 = vunpack.c.l.b16 %v1078
        %v1500 = vunpack.c.l.b16 %v1079
        %v1501 = vunpack.c.h.b16 %v1079
        %v1502 = vunpack.c.l.b16 %v1080
        %v1503 = vunpack.c.l.b16 %v1081
        %v1504 = vunpack.c.h.b16 %v1081
        %v1505 = vunpack.c.l.b16 %v1082
        %v1506 = vunpack.c.l.b16 %v1083
        %v1507 = vunpack.c.h.b16 %v1083
        %v1508 = vunpack.c.l.b16 %v1084
        %v1509 = vunpack.c.l.b16 %v1085
        %v1510 = vunpack.c.h.b16 %v1085
        %v1511 = vunpack.c.l.b16 %v1086
        %v1512 = vunpack.c.l.b16 %v1087
        %v1513 = vunpack.c.h.b16 %v1087
        %v1514 = vunpack.c.l.b16 %v1088
        %v1515 = vunpack.c.l.b16 %v1089
        %v1516 = vunpack.c.h.b16 %v1089
        %v1517 = vunpack.c.l.b16 %v1090
        %v1518 = vunpack.c.l.b16 %v1091
        %v1519 = vunpack.c.h.b16 %v1091
        %v1520 = vunpack.c.l.b16 %v1092
        %v1521 = vunpack.c.l.b16 %v1093
        %v1522 = vunpack.c.h.b16 %v1093
        %v1523 = vunpack.c.l.b16 %v1094
        %v1524 = vunpack.c.l.b16 %v1095
        %v1525 = vunpack.c.h.b16 %v1095
        %v1526 = vunpack.c.l.b16 %v1096
        %v1527 = vunpack.c.l.b16 %v1097
        %v1528 = vunpack.c.h.b16 %v1097
        %v1529 = vunpack.c.l.b16 %v1098
        %v1530 = vunpack.c.l.b16 %v1099
        %v1531 = vunpack.c.h.b16 %v1099
        %v1532 = vunpack.c.l.b16 %v1100
        %v1533 = vunpack.c.l.b16 %v1101
        %v1534 = vunpack.c.h.b16 %v1101
        %v1535 = vunpack.c.l.b16 %v1102
        %v1536 = vunpack.c.l.b16 %v1103
        %v1537 = vunpack.c.h.b16 %v1103
        %v1538 = vunpack.c.l.b16 %v1104
        %v1539 = vunpack.c.l.b16 %v1105
        %v1540 = vunpack.c.h.b16 %v1105
        %v1541 = vunpack.c.l.b16 %v1106
        %v1542 = vunpack.c.l.b16 %v1107
        %v1543 = vunpack.c.h.b16 %v1107
        %v1544 = vunpack.c.l.b16 %v1108
        %v1545 = vunpack.c.l.b16 %v1109
        %v1546 = vunpack.c.h.b16 %v1109
        %v1547 = vunpack.c.l.b16 %v1110
        %v1548 = vunpack.c.l.b16 %v1111
        %v1549 = vunpack.c.h.b16 %v1111
        %v1550 = vunpack.c.l.b16 %v1112
        %v1551 = vunpack.c.l.b16 %v1113
        %v1552 = vunpack.c.h.b16 %v1113
        %v1553 = vunpack.c.l.b16 %v1114
        %v1554 = vunpack.c.l.b16 %v1115
        %v1555 = vunpack.c.h.b16 %v1115
        %v1556 = vunpack.c.l.b16 %v1116
        %v1557 = vunpack.c.l.b16 %v1117
        %v1558 = vunpack.c.h.b16 %v1117
        %v1559 = vunpack.c.l.b16 %v1118
        %v1560 = vunpack.c.l.b16 %v1119
        %v1561 = vunpack.c.h.b16 %v1119
        %v1562 = vunpack.c.l.b16 %v1120
        %v1563 = vunpack.c.l.b16 %v1121
        %v1564 = vunpack.c.h.b16 %v1121
        %v1565 = vunpack.c.l.b16 %v1122
        %v1566 = vunpack.c.l.b16 %v1123
        %v1567 = vunpack.c.h.b16 %v1123
        %v1568 = vunpack.c.l.b16 %v1124
        %v1569 = vunpack.c.l.b16 %v1125
        %v1570 = vunpack.c.h.b16 %v1125
        %v1571 = vunpack.c.l.b16 %v1126
        %v1572 = vunpack.c.l.b16 %v1127
        %v1573 = vunpack.c.h.b16 %v1127
        %v1574 = vunpack.c.l.b16 %v1128
        %v1575 = vunpack.c.l.b16 %v1129
        %v1576 = vunpack.c.h.b16 %v1129
        %v1577 = vunpack.c.l.b16 %v1130
        %v1578 = vunpack.c.l.b16 %v1131
        %v1579 = vunpack.c.h.b16 %v1131
        %v1580 = vunpack.c.l.b16 %v1132
        %v1581 = vunpack.c.l.b16 %v1133
        %v1582 = vunpack.c.h.b16 %v1133
        %v1583 = vunpack.c.l.b16 %v1134
        %v1584 = vunpack.c.l.b16 %v1135
        %v1585 = vunpack.c.h.b16 %v1135
        %v1586 = vunpack.c.l.b16 %v1136
        %v1587 = vunpack.c.l.b16 %v1137
        %v1588 = vunpack.c.h.b16 %v1137
        %v1589 = vunpack.c.l.b16 %v1138
        %v1590 = vunpack.c.l.b16 %v1139
        %v1591 = vunpack.c.h.b16 %v1139
        %v1592 = vunpack.c.l.b16 %v1140
        %v1593 = vunpack.c.l.b16 %v1141
        %v1594 = vunpack.c.h.b16 %v1141
        %v1595 = vunpack.c.l.b16 %v1142
        %v1596 = vunpack.c.l.b16 %v1143
        %v1597 = vunpack.c.h.b16 %v1143
        %v1598 = vunpack.c.l.b16 %v1144
        %v1599 = vunpack.c.l.b16 %v1145
        %v1600 = vunpack.c.h.b16 %v1145
        %v1601 = vunpack.c.l.b16 %v1146
        %v1602 = vunpack.c.l.b16 %v1147
        %v1603 = vunpack.c.h.b16 %v1147
        %v1604 = vunpack.c.l.b16 %v1148
        %v1605 = vunpack.c.l.b16 %v1149
        %v1606 = vunpack.c.h.b16 %v1149
        %v1607 = vunpack.c.l.b16 %v1150
        %v1608 = vunpack.c.l.b16 %v1151
        %v1609 = vunpack.c.h.b16 %v1151
        %v1610 = vunpack.c.l.b16 %v1152
        %v1611 = vunpack.c.l.b16 %v1153
        %v1612 = vunpack.c.h.b16 %v1153
        %v1613 = vunpack.c.l.b16 %v1154
        %v1614 = vunpack.c.l.b16 %v1155
        %v1615 = vunpack.c.h.b16 %v1155
        %v1616 = vunpack.c.l.b16 %v1156
        %v1617 = vunpack.c.l.b16 %v1157
        %v1618 = vunpack.c.h.b16 %v1157
        %v1619 = vunpack.c.l.b16 %v1158
        %v1620 = vunpack.c.l.b16 %v1159
        %v1621 = vunpack.c.h.b16 %v1159
        %v1622 = vunpack.c.l.b16 %v1160
        %v1623 = vunpack.c.l.b16 %v1161
        %v1624 = vunpack.c.h.b16 %v1161
        %v1625 = vunpack.c.l.b16 %v1162
        %v1626 = vunpack.c.l.b16 %v1163
        %v1627 = vunpack.c.h.b16 %v1163
        %v1628 = vunpack.c.l.b16 %v1164
        %v1629 = vunpack.c.l.b16 %v1165
        %v1630 = vunpack.c.h.b16 %v1165
        %v1631 = vunpack.c.l.b16 %v1166
        %v1632 = vunpack.c.l.b16 %v1167
        %v1633 = vunpack.c.h.b16 %v1167
        %v1634 = vunpack.c.l.b16 %v1168
        %v1635 = vunpack.c.l.b16 %v1169
        %v1636 = vunpack.c.h.b16 %v1169
        %v1637 = vunpack.c.l.b16 %v1170
        %v1638 = vunpack.c.l.b16 %v1171
        %v1639 = vunpack.c.h.b16 %v1171
        %v1640 = vunpack.c.l.b16 %v1172
        %v1641 = vunpack.c.l.b16 %v1173
        %v1642 = vunpack.c.h.b16 %v1173
        %v1643 = vunpack.c.l.b16 %v1174
        %v1644 = vunpack.c.l.b16 %v1175
        %v1645 = vunpack.c.h.b16 %v1175
        %v1646 = vunpack.c.l.b16 %v1176
        %v1647 = vunpack.c.l.b16 %v1177
        %v1648 = vunpack.c.h.b16 %v1177
        %v1649 = vunpack.c.l.b16 %v1178
        %v1650 = vunpack.c.l.b16 %v1179
        %v1651 = vunpack.c.h.b16 %v1179
        %v1652 = vunpack.c.l.b16 %v1180
        %v1653 = vunpack.c.l.b16 %v1181
        %v1654 = vunpack.c.h.b16 %v1181
        %v1655 = vunpack.c.l.b16 %v1182
        %v1656 = vunpack.c.l.b16 %v1183
        %v1657 = vunpack.c.h.b16 %v1183
        %v1658 = vunpack.c.l.b16 %v1184
        %v1659 = vunpack.c.l.b16 %v1185
        %v1660 = vunpack.c.h.b16 %v1185
        %v1661 = vunpack.c.l.b16 %v1186
        %v1662 = vunpack.c.l.b16 %v1187
        %v1663 = vunpack.c.h.b16 %v1187
        %v1664 = vunpack.c.l.b16 %v1188
        %v1665 = vunpack.c.l.b16 %v1189
        %v1666 = vunpack.c.h.b16 %v1189
        %v1667 = vunpack.c.l.b16 %v1190
        %v1668 = vunpack.c.l.b16 %v1191
        %v1669 = vunpack.c.h.b16 %v1191
        %v1670 = vunpack.c.l.b16 %v1192
        %v1671 = vunpack.c.l.b16 %v1193
        %v1672 = vunpack.c.h.b16 %v1193
        %v1673 = vunpack.c.l.b16 %v1194
        %v1674 = vunpack.c.l.b16 %v1195
        %v1675 = vunpack.c.h.b16 %v1195
        %v1676 = vunpack.c.l.b16 %v1196
        %v1677 = vunpack.c.l.b16 %v1197
        %v1678 = vunpack.c.h.b16 %v1197
        %v1679 = vunpack.c.l.b16 %v1198
        %v1680 = vunpack.c.l.b16 %v1199
        %v1681 = vunpack.c.h.b16 %v1199
        %v1682 = vunpack.c.l.b16 %v1200
        %v1683 = vunpack.c.l.b16 %v1201
        %v1684 = vunpack.c.h.b16 %v1201
        %v1685 = vunpack.c.l.b16 %v1202
        %v1686 = vunpack.c.l.b16 %v1203
        %v1687 = vunpack.c.h.b16 %v1203
        %v1688 = vunpack.c.l.b16 %v1204
        %v1689 = vunpack.c.l.b16 %v1205
        %v1690 = vunpack.c.h.b16 %v1205
        %v1691 = vunpack.c.l.b16 %v1206
        %v1692 = vunpack.c.l.b16 %v1207
        %v1693 = vunpack.c.h.b16 %v1207
        %v1694 = vunpack.c.l.b16 %v1208
        %v1695 = vunpack.c.l.b16 %v1209
        %v1696 = vunpack.c.h.b16 %v1209
        %v1697 = vunpack.c.l.b16 %v1210
        %v1698 = vunpack.c.l.b16 %v1211
        %v1699 = vunpack.c.h.b16 %v1211
        %v1700 = vunpack.c.l.b16 %v1212
        %v1701 = vunpack.c.l.b16 %v1213
        %v1702 = vunpack.c.h.b16 %v1213
        %v1703 = vunpack.c.l.b16 %v1214
        %v1704 = vunpack.c.l.b16 %v1215
        %v1705 = vunpack.c.h.b16 %v1215
        %v1706 = vunpack.c.l.b16 %v1216
        %v1707 = vunpack.c.l.b16 %v1217
        %v1708 = vunpack.c.h.b16 %v1217
        %v1709 = vunpack.c.l.b16 %v1218
        %v1710 = vunpack.c.l.b16 %v1219
        %v1711 = vunpack.c.h.b16 %v1219
        %v1712 = vunpack.c.l.b16 %v1220
        %v1713 = vunpack.c.l.b16 %v1221
        %v1714 = vunpack.c.h.b16 %v1221
        %v1715 = vunpack.c.l.b16 %v1222
        %v1716 = vunpack.c.l.b16 %v1223
        %v1717 = vunpack.c.h.b16 %v1223
        %v1718 = vunpack.c.l.b16 %v1224
        %v1719 = vunpack.c.l.b16 %v1225
        %v1720 = vunpack.c.h.b16 %v1225
        %v1721 = vunpack.c.l.b16 %v1226
        %v1722 = vunpack.c.l.b16 %v1227
        %v1723 = vunpack.c.h.b16 %v1227
        %v1724 = vunpack.c.l.b16 %v1228
        %v1725 = vpack.c.b16 %v1488, %v1485
        %v1726 = vpack.c.b16 %v1489, %v1486
        %v1727 = vpack.c.b16 %v1490, %v1487
        %v1728 = vpack.c.b16 %v1494, %v1491
        %v1729 = vpack.c.b16 %v1495, %v1492
        %v1730 = vpack.c.b16 %v1496, %v1493
        %v1731 = vpack.c.b16 %v1500, %v1497
        %v1732 = vpack.c.b16 %v1501, %v1498
        %v1733 = vpack.c.b16 %v1502, %v1499
        %v1734 = vpack.c.b16 %v1506, %v1503
        %v1735 = vpack.c.b16 %v1507, %v1504
        %v1736 = vpack.c.b16 %v1508, %v1505
        %v1737 = vpack.c.b16 %v1512, %v1509
        %v1738 = vpack.c.b16 %v1513, %v1510
        %v1739 = vpack.c.b16 %v1514, %v1511
        %v1740 = vpack.c.b16 %v1518, %v1515
        %v1741 = vpack.c.b16 %v1519, %v1516
        %v1742 = vpack.c.b16 %v1520, %v1517
        %v1743 = vpack.c.b16 %v1524, %v1521
        %v1744 = vpack.c.b16 %v1525, %v1522
        %v1745 = vpack.c.b16 %v1526, %v1523
        %v1746 = vpack.c.b16 %v1530, %v1527
        %v1747 = vpack.c.b16 %v1531, %v1528
        %v1748 = vpack.c.b16 %v1532, %v1529
        %v1749 = vpack.c.b16 %v1536, %v1533
        %v1750 = vpack.c.b16 %v1537, %v1534
        %v1751 = vpack.c.b16 %v1538, %v1535
        %v1752 = vpack.c.b16 %v1542, %v1539
        %v1753 = vpack.c.b16 %v1543, %v1540
        %v1754 = vpack.c.b16 %v1544, %v1541
        %v1755 = vpack.c.b16 %v1548, %v1545
        %v1756 = vpack.c.b16 %v1549, %v1546
        %v1757 = vpack.c.b16 %v1550, %v1547
        %v1758 = vpack.c.b16 %v1554, %v1551
        %v1759 = vpack.c.b16 %v1555, %v1552
        %v1760 = vpack.c.b16 %v1556, %v1553
        %v1761 = vpack.c.b16 %v1560, %v1557
        %v1762 = vpack.c.b16 %v1561, %v1558
        %v1763 = vpack.c.b16 %v1562, %v1559
        %v1764 = vpack.c.b16 %v1566, %v1563
        %v1765 = vpack.c.b16 %v1567, %v1564
        %v1766 = vpack.c.b16 %v1568, %v1565
        %v1767 = vpack.c.b16 %v1572, %v1569
        %v1768 = vpack.c.b16 %v1573, %v1570
        %v1769 = vpack.c.b16 %v1574, %v1571
        %v1770 = vpack.c.b16 %v1578, %v1575
        %v1771 = vpack.c.b16 %v1579, %v1576
        %v1772 = vpack.c.b16 %v1580, %v1577
        %v1773 = vpack.c.b16 %v1584, %v1581
        %v1774 = vpack.c.b16 %v1585, %v1582
        %v1775 = vpack.c.b16 %v1586, %v1583
        %v1776 = vpack.c.b16 %v1590, %v1587
        %v1777 = vpack.c.b16 %v1591, %v1588
        %v1778 = vpack.c.b16 %v1592, %v1589
        %v1779 = vpack.c.b16 %v1596, %v1593
        %v1780 = vpack.c.b16 %v1597, %v1594
        %v1781 = vpack.c.b16 %v1598, %v1595
        %v1782 = vpack.c.b16 %v1602, %v1599
        %v1783 = vpack.c.b16 %v1603, %v1600
        %v1784 = vpack.c.b16 %v1604, %v1601
        %v1785 = vpack.c.b16 %v1608, %v1605
        %v1786 = vpack.c.b16 %v1609, %v1606
        %v1787 = vpack.c.b16 %v1610, %v1607
        %v1788 = vpack.c.b16 %v1614, %v1611
        %v1789 = vpack.c.b16 %v1615, %v1612
        %v1790 = vpack.c.b16 %v1616, %v1613
        %v1791 = vpack.c.b16 %v1620, %v1617
        %v1792 = vpack.c.b16 %v1621, %v1618
        %v1793 = vpack.c.b16 %v1622, %v1619
        %v1794 = vpack.c.b16 %v1626, %v1623
        %v1795 = vpack.c.b16 %v1627, %v1624
        %v1796 = vpack.c.b16 %v1628, %v1625
        %v1797 = vpack.c.b16 %v1632, %v1629
        %v1798 = vpack.c.b16 %v1633, %v1630
        %v1799 = vpack.c.b16 %v1634, %v1631
        %v1800 = vpack.c.b16 %v1638, %v1635
        %v1801 = vpack.c.b16 %v1639, %v1636
        %v1802 = vpack.c.b16 %v1640, %v1637
        %v1803 = vpack.c.b16 %v1644, %v1641
        %v1804 = vpack.c.b16 %v1645, %v1642
        %v1805 = vpack.c.b16 %v1646, %v1643
        %v1806 = vpack.c.b16 %v1650, %v1647
        %v1807 = vpack.c.b16 %v1651, %v1648
        %v1808 = vpack.c.b16 %v1652, %v1649
        %v1809 = vpack.c.b16 %v1656, %v1653
        %v1810 = vpack.c.b16 %v1657, %v1654
        %v1811 = vpack.c.b16 %v1658, %v1655
        %v1812 = vpack.c.b16 %v1662, %v1659
        %v1813 = vpack.c.b16 %v1663, %v1660
        %v1814 = vpack.c.b16 %v1664, %v1661
        %v1815 = vpack.c.b16 %v1668, %v1665
        %v1816 = vpack.c.b16 %v1669, %v1666
        %v1817 = vpack.c.b16 %v1670, %v1667
        %v1818 = vpack.c.b16 %v1674, %v1671
        %v1819 = vpack.c.b16 %v1675, %v1672
        %v1820 = vpack.c.b16 %v1676, %v1673
        %v1821 = vpack.c.b16 %v1680, %v1677
        %v1822 = vpack.c.b16 %v1681, %v1678
        %v1823 = vpack.c.b16 %v1682, %v1679
        %v1824 = vpack.c.b16 %v1686, %v1683
        %v1825 = vpack.c.b16 %v1687, %v1684
        %v1826 = vpack.c.b16 %v1688, %v1685
        %v1827 = vpack.c.b16 %v1692, %v1689
        %v1828 = vpack.c.b16 %v1693, %v1690
        %v1829 = vpack.c.b16 %v1694, %v1691
        %v1830 = vpack.c.b16 %v1698, %v1695
        %v1831 = vpack.c.b16 %v1699, %v1696
        %v1832 = vpack.c.b16 %v1700, %v1697
        %v1833 = vpack.c.b16 %v1704, %v1701
        %v1834 = vpack.c.b16 %v1705, %v1702
        %v1835 = vpack.c.b16 %v1706, %v1703
        %v1836 = vpack.c.b16 %v1710, %v1707
        %v1837 = vpack.c.b16 %v1711, %v1708
        %v1838 = vpack.c.b16 %v1712, %v1709
        %v1839 = vpack.c.b16 %v1716, %v1713
        %v1840 = vpack.c.b16 %v1717, %v1714
        %v1841 = vpack.c.b16 %v1718, %v1715
        %v1842 = vpack.c.b16 %v1722, %v1719
        %v1843 = vpack.c.b16 %v1723, %v1720
        %v1844 = vpack.c.b16 %v1724, %v1721
        %v2061 = vunpack.c.l.b16 %v1229
        %v2062 = vunpack.c.h.b16 %v1229
        %v2063 = vunpack.c.l.b16 %v1230
        %v2064 = vunpack.c.l.b16 %v1231
        %v2065 = vunpack.c.h.b16 %v1231
        %v2066 = vunpack.c.l.b16 %v1232
        %v2067 = vunpack.c.l.b16 %v1233
        %v2068 = vunpack.c.h.b16 %v1233
        %v2069 = vunpack.c.l.b16 %v1234
        %v2070 = vunpack.c.l.b16 %v1235
        %v2071 = vunpack.c.h.b16 %v1235
        %v2072 = vunpack.c.l.b16 %v1236
        %v2073 = vunpack.c.l.b16 %v1237
        %v2074 = vunpack.c.h.b16 %v1237
        %v2075 = vunpack.c.l.b16 %v1238
        %v2076 = vunpack.c.l.b16 %v1239
        %v2077 = vunpack.c.h.b16 %v1239
        %v2078 = vunpack.c.l.b16 %v1240
        %v2079 = vunpack.c.l.b16 %v1241
        %v2080 = vunpack.c.h.b16 %v1241
        %v2081 = vunpack.c.l.b16 %v1242
        %v2082 = vunpack.c.l.b16 %v1243
        %v2083 = vunpack.c.h.b16 %v1243
        %v2084 = vunpack.c.l.b16 %v1244
        %v2085 = vunpack.c.l.b16 %v1245
        %v2086 = vunpack.c.h.b16 %v1245
        %v2087 = vunpack.c.l.b16 %v1246
        %v2088 = vunpack.c.l.b16 %v1247
        %v2089 = vunpack.c.h.b16 %v1247
        %v2090 = vunpack.c.l.b16 %v1248
        %v2091 = vunpack.c.l.b16 %v1249
        %v2092 = vunpack.c.h.b16 %v1249
        %v2093 = vunpack.c.l.b16 %v1250
        %v2094 = vunpack.c.l.b16 %v1251
        %v2095 = vunpack.c.h.b16 %v1251
        %v2096 = vunpack.c.l.b16 %v1252
        %v2097 = vunpack.c.l.b16 %v1253
        %v2098 = vunpack.c.h.b16 %v1253
        %v2099 = vunpack.c.l.b16 %v1254
        %v2100 = vunpack.c.l.b16 %v1255
        %v2101 = vunpack.c.h.b16 %v1255
        %v2102 = vunpack.c.l.b16 %v1256
        %v2103 = vunpack.c.l.b16 %v1257
        %v2104 = vunpack.c.h.b16 %v1257
        %v2105 = vunpack.c.l.b16 %v1258
        %v2106 = vunpack.c.l.b16 %v1259
        %v2107 = vunpack.c.h.b16 %v1259
        %v2108 = vunpack.c.l.b16 %v1260
        %v2109 = vunpack.c.l.b16 %v1261
        %v2110 = vunpack.c.h.b16 %v1261
        %v2111 = vunpack.c.l.b16 %v1262
        %v2112 = vunpack.c.l.b16 %v1263
        %v2113 = vunpack.c.h.b16 %v1263
        %v2114 = vunpack.c.l.b16 %v1264
        %v2115 = vunpack.c.l.b16 %v1265
        %v2116 = vunpack.c.h.b16 %v1265
        %v2117 = vunpack.c.l.b16 %v1266
        %v2118 = vunpack.c.l.b16 %v1267
        %v2119 = vunpack.c.h.b16 %v1267
        %v2120 = vunpack.c.l.b16 %v1268
        %v2121 = vunpack.c.l.b16 %v1269
        %v2122 = vunpack.c.h.b16 %v1269
        %v2123 = vunpack.c.l.b16 %v1270
        %v2124 = vunpack.c.l.b16 %v1271
        %v2125 = vunpack.c.h.b16 %v1271
        %v2126 = vunpack.c.l.b16 %v1272
        %v2127 = vunpack.c.l.b16 %v1273
        %v2128 = vunpack.c.h.b16 %v1273
        %v2129 = vunpack.c.l.b16 %v1274
        %v2130 = vunpack.c.l.b16 %v1275
        %v2131 = vunpack.c.h.b16 %v1275
        %v2132 = vunpack.c.l.b16 %v1276
        %v2133 = vunpack.c.l.b16 %v1277
        %v2134 = vunpack.c.h.b16 %v1277
        %v2135 = vunpack.c.l.b16 %v1278
        %v2136 = vunpack.c.l.b16 %v1279
        %v2137 = vunpack.c.h.b16 %v1279
        %v2138 = vunpack.c.l.b16 %v1280
        %v2139 = vunpack.c.l.b16 %v1281
        %v2140 = vunpack.c.h.b16 %v1281
        %v2141 = vunpack.c.l.b16 %v1282
        %v2142 = vunpack.c.l.b16 %v1283
        %v2143 = vunpack.c.h.b16 %v1283
        %v2144 = vunpack.c.l.b16 %v1284
        %v2145 = vunpack.c.l.b16 %v1285
        %v2146 = vunpack.c.h.b16 %v1285
        %v2147 = vunpack.c.l.b16 %v1286
        %v2148 = vunpack.c.l.b16 %v1287
        %v2149 = vunpack.c.h.b16 %v1287
        %v2150 = vunpack.c.l.b16 %v1288
        %v2151 = vunpack.c.l.b16 %v1289
        %v2152 = vunpack.c.h.b16 %v1289
        %v2153 = vunpack.c.l.b16 %v1290
        %v2154 = vunpack.c.l.b16 %v1291
        %v2155 = vunpack.c.h.b16 %v1291
        %v2156 = vunpack.c.l.b16 %v1292
        %v2157 = vunpack.c.l.b16 %v1293
        %v2158 = vunpack.c.h.b16 %v1293
        %v2159 = vunpack.c.l.b16 %v1294
        %v2160 = vunpack.c.l.b16 %v1295
        %v2161 = vunpack.c.h.b16 %v1295
        %v2162 = vunpack.c.l.b16 %v1296
        %v2163 = vunpack.c.l.b16 %v1297
        %v2164 = vunpack.c.h.b16 %v1297
        %v2165 = vunpack.c.l.b16 %v1298
        %v2166 = vunpack.c.l.b16 %v1299
        %v2167 = vunpack.c.h.b16 %v1299
        %v2168 = vunpack.c.l.b16 %v1300
        %v2169 = vunpack.c.l.b16 %v1301
        %v2170 = vunpack.c.h.b16 %v1301
        %v2171 = vunpack.c.l.b16 %v1302
        %v2172 = vunpack.c.l.b16 %v1303
        %v2173 = vunpack.c.h.b16 %v1303
        %v2174 = vunpack.c.l.b16 %v1304
        %v2175 = vunpack.c.l.b16 %v1305
        %v2176 = vunpack.c.h.b16 %v1305
        %v2177 = vunpack.c.l.b16 %v1306
        %v2178 = vunpack.c.l.b16 %v1307
        %v2179 = vunpack.c.h.b16 %v1307
        %v2180 = vunpack.c.l.b16 %v1308
        %v2181 = vunpack.c.l.b16 %v1309
        %v2182 = vunpack.c.h.b16 %v1309
        %v2183 = vunpack.c.l.b16 %v1310
        %v2184 = vunpack.c.l.b16 %v1311
        %v2185 = vunpack.c.h.b16 %v1311
        %v2186 = vunpack.c.l.b16 %v1312
        %v2187 = vunpack.c.l.b16 %v1313
        %v2188 = vunpack.c.h.b16 %v1313
        %v2189 = vunpack.c.l.b16 %v1314
        %v2190 = vunpack.c.l.b16 %v1315
        %v2191 = vunpack.c.h.b16 %v1315
        %v2192 = vunpack.c.l.b16 %v1316
        %v2193 = vunpack.c.l.b16 %v1317
        %v2194 = vunpack.c.h.b16 %v1317
        %v2195 = vunpack.c.l.b16 %v1318
        %v2196 = vunpack.c.l.b16 %v1319
        %v2197 = vunpack.c.h.b16 %v1319
        %v2198 = vunpack.c.l.b16 %v1320
        %v2199 = vunpack.c.l.b16 %v1321
        %v2200 = vunpack.c.h.b16 %v1321
        %v2201 = vunpack.c.l.b16 %v1322
        %v2202 = vunpack.c.l.b16 %v1323
        %v2203 = vunpack.c.h.b16 %v1323
        %v2204 = vunpack.c.l.b16 %v1324
        %v2205 = vpack.c.b16 %v2064, %v2061
        %v2206 = vpack.c.b16 %v2065, %v2062
        %v2207 = vpack.c.b16 %v2066, %v2063
        %v2208 = vpack.c.b16 %v2070, %v2067
        %v2209 = vpack.c.b16 %v2071, %v2068
        %v2210 = vpack.c.b16 %v2072, %v2069
        %v2211 = vpack.c.b16 %v2076, %v2073
        %v2212 = vpack.c.b16 %v2077, %v2074
        %v2213 = vpack.c.b16 %v2078, %v2075
        %v2214 = vpack.c.b16 %v2082, %v2079
        %v2215 = vpack.c.b16 %v2083, %v2080
        %v2216 = vpack.c.b16 %v2084, %v2081
        %v2217 = vpack.c.b16 %v2088, %v2085
        %v2218 = vpack.c.b16 %v2089, %v2086
        %v2219 = vpack.c.b16 %v2090, %v2087
        %v2220 = vpack.c.b16 %v2094, %v2091
        %v2221 = vpack.c.b16 %v2095, %v2092
        %v2222 = vpack.c.b16 %v2096, %v2093
        %v2223 = vpack.c.b16 %v2100, %v2097
        %v2224 = vpack.c.b16 %v2101, %v2098
        %v2225 = vpack.c.b16 %v2102, %v2099
        %v2226 = vpack.c.b16 %v2106, %v2103
        %v2227 = vpack.c.b16 %v2107, %v2104
        %v2228 = vpack.c.b16 %v2108, %v2105
        %v2229 = vpack.c.b16 %v2112, %v2109
        %v2230 = vpack.c.b16 %v2113, %v2110
        %v2231 = vpack.c.b16 %v2114, %v2111
        %v2232 = vpack.c.b16 %v2118, %v2115
        %v2233 = vpack.c.b16 %v2119, %v2116
        %v2234 = vpack.c.b16 %v2120, %v2117
        %v2235 = vpack.c.b16 %v2124, %v2121
        %v2236 = vpack.c.b16 %v2125, %v2122
        %v2237 = vpack.c.b16 %v2126, %v2123
        %v2238 = vpack.c.b16 %v2130, %v2127
        %v2239 = vpack.c.b16 %v2131, %v2128
        %v2240 = vpack.c.b16 %v2132, %v2129
        %v2241 = vpack.c.b16 %v2136, %v2133
        %v2242 = vpack.c.b16 %v2137, %v2134
        %v2243 = vpack.c.b16 %v2138, %v2135
        %v2244 = vpack.c.b16 %v2142, %v2139
        %v2245 = vpack.c.b16 %v2143, %v2140
        %v2246 = vpack.c.b16 %v2144, %v2141
        %v2247 = vpack.c.b16 %v2148, %v2145
        %v2248 = vpack.c.b16 %v2149, %v2146
        %v2249 = vpack.c.b16 %v2150, %v2147
        %v2250 = vpack.c.b16 %v2154, %v2151
        %v2251 = vpack.c.b16 %v2155, %v2152
        %v2252 = vpack.c.b16 %v2156, %v2153
        %v2253 = vpack.c.b16 %v2160, %v2157
        %v2254 = vpack.c.b16 %v2161, %v2158
        %v2255 = vpack.c.b16 %v2162, %v2159
        %v2256 = vpack.c.b16 %v2166, %v2163
        %v2257 = vpack.c.b16 %v2167, %v2164
        %v2258 = vpack.c.b16 %v2168, %v2165
        %v2259 = vpack.c.b16 %v2172, %v2169
        %v2260 = vpack.c.b16 %v2173, %v2170
        %v2261 = vpack.c.b16 %v2174, %v2171
        %v2262 = vpack.c.b16 %v2178, %v2175
        %v2263 = vpack.c.b16 %v2179, %v2176
        %v2264 = vpack.c.b16 %v2180, %v2177
        %v2265 = vpack.c.b16 %v2184, %v2181
        %v2266 = vpack.c.b16 %v2185, %v2182
        %v2267 = vpack.c.b16 %v2186, %v2183
        %v2268 = vpack.c.b16 %v2190, %v2187
        %v2269 = vpack.c.b16 %v2191, %v2188
        %v2270 = vpack.c.b16 %v2192, %v2189
        %v2271 = vpack.c.b16 %v2196, %v2193
        %v2272 = vpack.c.b16 %v2197, %v2194
        %v2273 = vpack.c.b16 %v2198, %v2195
        %v2274 = vpack.c.b16 %v2202, %v2199
        %v2275 = vpack.c.b16 %v2203, %v2200
        %v2276 = vpack.c.b16 %v2204, %v2201
        %2349 = vmatprep.subr.bf16.mxu0 %v2206
        %2350 = vmatpush1.bf16.msra.mxu0 %v2205
        %2351 = vmatprep.subr.bf16.mxu0 %v2209
        %2352 = vmatpush1.bf16.msra.mxu0 %v2208
        %2353 = vmatprep.subr.bf16.mxu0 %v2212
        %2354 = vmatpush1.bf16.msra.mxu0 %v2211
        %2355 = vmatprep.subr.bf16.mxu0 %v2215
        %2356 = vmatpush1.bf16.msra.mxu0 %v2214
        %2357 = vmatprep.subr.bf16.mxu0 %v2218
        %2358 = vmatpush1.bf16.msra.mxu0 %v2217
        %2359 = vmatprep.subr.bf16.mxu0 %v2221
        %2360 = vmatpush1.bf16.msra.mxu0 %v2220
        %2361 = vmatprep.subr.bf16.mxu0 %v2224
        %2362 = vmatpush1.bf16.msra.mxu0 %v2223
        %2363 = vmatprep.subr.bf16.mxu0 %v2227
        %2364 = vmatpush1.bf16.msra.mxu0 %v2226
        %2365 = vmatprep.subr.bf16.mxu0 %v2230
        %2366 = vmatpush1.bf16.msra.mxu0 %v2229
        %2367 = vmatprep.subr.bf16.mxu0 %v2233
        %2368 = vmatpush1.bf16.msra.mxu0 %v2232
        %2369 = vmatprep.subr.bf16.mxu0 %v2236
        %2370 = vmatpush1.bf16.msra.mxu0 %v2235
        %2371 = vmatprep.subr.bf16.mxu0 %v2239
        %2372 = vmatpush1.bf16.msra.mxu0 %v2238
        %2373 = vmatprep.subr.bf16.mxu0 %v2242
        %2374 = vmatpush1.bf16.msra.mxu0 %v2241
        %2375 = vmatprep.subr.bf16.mxu0 %v2245
        %2376 = vmatpush1.bf16.msra.mxu0 %v2244
        %2377 = vmatprep.subr.bf16.mxu0 %v2248
        %2378 = vmatpush1.bf16.msra.mxu0 %v2247
        %2379 = vmatprep.subr.bf16.mxu0 %v2251
        %2380 = vmatpush1.bf16.msra.mxu0 %v2250
        %2381 = vmatprep.mubr.bf16.mxu0 %v1726
        %2382 = vmatmul.mubr.bf16.gmra.mrb[0].mxu0 %v1725
        %v2383 = vpop.f32.mrb[0].mxu0
        %v2384 = vadd.f32 0.0, %v2383
        %v2385 = vpop.f32.mrb[0].mxu0
        %v2386 = vadd.f32 0.0, %v2385
        %v2387 = vpop.f32.mrb[0].mxu0
        %v2388 = vadd.f32 0.0, %v2387
        %v2389 = vpop.f32.mrb[0].mxu0
        %v2390 = vadd.f32 0.0, %v2389
        %2391 = vmatprep.mubr.bf16.mxu0 %v1729
        %2392 = vmatmul.mubr.bf16.gmra.mrb[0].mxu0 %v1728
        %v2393 = vpop.f32.mrb[0].mxu0
        %v2394 = vadd.f32 0.0, %v2393
        %v2395 = vpop.f32.mrb[0].mxu0
        %v2396 = vadd.f32 0.0, %v2395
        %v2397 = vpop.f32.mrb[0].mxu0
        %v2398 = vadd.f32 0.0, %v2397
        %v2399 = vpop.f32.mrb[0].mxu0
        %v2400 = vadd.f32 0.0, %v2399
        %2401 = vmatprep.mubr.bf16.mxu0 %v1732
        %2402 = vmatmul.mubr.bf16.gmra.mrb[0].mxu0 %v1731
        %v2403 = vpop.f32.mrb[0].mxu0
        %v2404 = vadd.f32 0.0, %v2403
        %v2405 = vpop.f32.mrb[0].mxu0
        %v2406 = vadd.f32 0.0, %v2405
        %v2407 = vpop.f32.mrb[0].mxu0
        %v2408 = vadd.f32 0.0, %v2407
        %v2409 = vpop.f32.mrb[0].mxu0
        %v2410 = vadd.f32 0.0, %v2409
        %2411 = vmatprep.mubr.bf16.mxu0 %v1735
        %2412 = vmatmul.mubr.bf16.gmra.mrb[0].mxu0 %v1734
        %v2413 = vpop.f32.mrb[0].mxu0
        %v2414 = vadd.f32 0.0, %v2413
        %v2415 = vpop.f32.mrb[0].mxu0
        %v2416 = vadd.f32 0.0, %v2415
        %v2417 = vpop.f32.mrb[0].mxu0
        %v2418 = vadd.f32 0.0, %v2417
        %v2419 = vpop.f32.mrb[0].mxu0
        %v2420 = vadd.f32 0.0, %v2419
        %2421 = vmatprep.mubr.bf16.mxu0 %v1738
        %2422 = vmatmul.mubr.bf16.gmra.mrb[0].mxu0 %v1737
        %v2423 = vpop.f32.mrb[0].mxu0
        %v2424 = vadd.f32 0.0, %v2423
        %v2425 = vpop.f32.mrb[0].mxu0
        %v2426 = vadd.f32 0.0, %v2425
        %v2427 = vpop.f32.mrb[0].mxu0
        %v2428 = vadd.f32 0.0, %v2427
        %v2429 = vpop.f32.mrb[0].mxu0
        %v2430 = vadd.f32 0.0, %v2429
        %2431 = vmatprep.mubr.bf16.mxu0 %v1741
        %2432 = vmatmul.mubr.bf16.gmra.mrb[0].mxu0 %v1740
        %v2433 = vpop.f32.mrb[0].mxu0
        %v2434 = vadd.f32 0.0, %v2433
        %v2435 = vpop.f32.mrb[0].mxu0
        %v2436 = vadd.f32 0.0, %v2435
        %v2437 = vpop.f32.mrb[0].mxu0
        %v2438 = vadd.f32 0.0, %v2437
        %v2439 = vpop.f32.mrb[0].mxu0
        %v2440 = vadd.f32 0.0, %v2439
        %2441 = vmatprep.mubr.bf16.mxu0 %v1744
        %2442 = vmatmul.mubr.bf16.gmra.mrb[0].mxu0 %v1743
        %v2443 = vpop.f32.mrb[0].mxu0
        %v2444 = vadd.f32 0.0, %v2443
        %v2445 = vpop.f32.mrb[0].mxu0
        %v2446 = vadd.f32 0.0, %v2445
        %v2447 = vpop.f32.mrb[0].mxu0
        %v2448 = vadd.f32 0.0, %v2447
        %v2449 = vpop.f32.mrb[0].mxu0
        %v2450 = vadd.f32 0.0, %v2449
        %2451 = vmatprep.mubr.bf16.mxu0 %v1747
        %2452 = vmatmul.mubr.bf16.gmra.mrb[0].mxu0 %v1746
        %v2453 = vpop.f32.mrb[0].mxu0
        %v2454 = vadd.f32 0.0, %v2453
        %v2455 = vpop.f32.mrb[0].mxu0
        %v2456 = vadd.f32 0.0, %v2455
        %v2457 = vpop.f32.mrb[0].mxu0
        %v2458 = vadd.f32 0.0, %v2457
        %v2459 = vpop.f32.mrb[0].mxu0
        %v2460 = vadd.f32 0.0, %v2459
        %2461 = vmatprep.mubr.bf16.mxu0 %v1750
        %2462 = vmatmul.mubr.bf16.gmra.mrb[0].mxu0 %v1749
        %v2463 = vpop.f32.mrb[0].mxu0
        %v2464 = vadd.f32 0.0, %v2463
        %v2465 = vpop.f32.mrb[0].mxu0
        %v2466 = vadd.f32 0.0, %v2465
        %v2467 = vpop.f32.mrb[0].mxu0
        %v2468 = vadd.f32 0.0, %v2467
        %v2469 = vpop.f32.mrb[0].mxu0
        %v2470 = vadd.f32 0.0, %v2469
        %2471 = vmatprep.mubr.bf16.mxu0 %v1753
        %2472 = vmatmul.mubr.bf16.gmra.mrb[0].mxu0 %v1752
        %v2473 = vpop.f32.mrb[0].mxu0
        %v2474 = vadd.f32 0.0, %v2473
        %v2475 = vpop.f32.mrb[0].mxu0
        %v2476 = vadd.f32 0.0, %v2475
        %v2477 = vpop.f32.mrb[0].mxu0
        %v2478 = vadd.f32 0.0, %v2477
        %v2479 = vpop.f32.mrb[0].mxu0
        %v2480 = vadd.f32 0.0, %v2479
        %2481 = vmatprep.mubr.bf16.mxu0 %v1756
        %2482 = vmatmul.mubr.bf16.gmra.mrb[0].mxu0 %v1755
        %v2483 = vpop.f32.mrb[0].mxu0
        %v2484 = vadd.f32 0.0, %v2483
        %v2485 = vpop.f32.mrb[0].mxu0
        %v2486 = vadd.f32 0.0, %v2485
        %v2487 = vpop.f32.mrb[0].mxu0
        %v2488 = vadd.f32 0.0, %v2487
        %v2489 = vpop.f32.mrb[0].mxu0
        %v2490 = vadd.f32 0.0, %v2489
        %2491 = vmatprep.mubr.bf16.mxu0 %v1759
        %2492 = vmatmul.mubr.bf16.gmra.mrb[0].mxu0 %v1758
        %v2493 = vpop.f32.mrb[0].mxu0
        %v2494 = vadd.f32 0.0, %v2493
        %v2495 = vpop.f32.mrb[0].mxu0
        %v2496 = vadd.f32 0.0, %v2495
        %v2497 = vpop.f32.mrb[0].mxu0
        %v2498 = vadd.f32 0.0, %v2497
        %v2499 = vpop.f32.mrb[0].mxu0
        %v2500 = vadd.f32 0.0, %v2499
        %2501 = vmatprep.mubr.bf16.mxu0 %v1762
        %2502 = vmatmul.mubr.bf16.gmra.mrb[0].mxu0 %v1761
        %v2503 = vpop.f32.mrb[0].mxu0
        %v2504 = vadd.f32 0.0, %v2503
        %v2505 = vpop.f32.mrb[0].mxu0
        %v2506 = vadd.f32 0.0, %v2505
        %v2507 = vpop.f32.mrb[0].mxu0
        %v2508 = vadd.f32 0.0, %v2507
        %v2509 = vpop.f32.mrb[0].mxu0
        %v2510 = vadd.f32 0.0, %v2509
        %2511 = vmatprep.mubr.bf16.mxu0 %v1765
        %2512 = vmatmul.mubr.bf16.gmra.mrb[0].mxu0 %v1764
        %v2513 = vpop.f32.mrb[0].mxu0
        %v2514 = vadd.f32 0.0, %v2513
        %v2515 = vpop.f32.mrb[0].mxu0
        %v2516 = vadd.f32 0.0, %v2515
        %v2517 = vpop.f32.mrb[0].mxu0
        %v2518 = vadd.f32 0.0, %v2517
        %v2519 = vpop.f32.mrb[0].mxu0
        %v2520 = vadd.f32 0.0, %v2519
        %2521 = vmatprep.mubr.bf16.mxu0 %v1768
        %2522 = vmatmul.mubr.bf16.gmra.mrb[0].mxu0 %v1767
        %v2523 = vpop.f32.mrb[0].mxu0
        %v2524 = vadd.f32 0.0, %v2523
        %v2525 = vpop.f32.mrb[0].mxu0
        %v2526 = vadd.f32 0.0, %v2525
        %v2527 = vpop.f32.mrb[0].mxu0
        %v2528 = vadd.f32 0.0, %v2527
        %v2529 = vpop.f32.mrb[0].mxu0
        %v2530 = vadd.f32 0.0, %v2529
        %2531 = vmatprep.mubr.bf16.mxu0 %v1771
        %2532 = vmatmul.mubr.bf16.gmra.mrb[0].mxu0 %v1770
        %v2533 = vpop.f32.mrb[0].mxu0
        %v2534 = vadd.f32 0.0, %v2533
        %v2535 = vpop.f32.mrb[0].mxu0
        %v2536 = vadd.f32 0.0, %v2535
        %v2537 = vpop.f32.mrb[0].mxu0
        %v2538 = vadd.f32 0.0, %v2537
        %v2539 = vpop.f32.mrb[0].mxu0
        %v2540 = vadd.f32 0.0, %v2539
        %2541 = vmatprep.mubr.bf16.mxu0 %v1774
        %2542 = vmatmul.mubr.bf16.gmra.mrb[0].mxu0 %v1773
        %v2543 = vpop.f32.mrb[0].mxu0
        %v2544 = vadd.f32 0.0, %v2543
        %v2545 = vpop.f32.mrb[0].mxu0
        %v2546 = vadd.f32 0.0, %v2545
        %v2547 = vpop.f32.mrb[0].mxu0
        %v2548 = vadd.f32 0.0, %v2547
        %v2549 = vpop.f32.mrb[0].mxu0
        %v2550 = vadd.f32 0.0, %v2549
        %2551 = vmatprep.mubr.bf16.mxu0 %v1777
        %2552 = vmatmul.mubr.bf16.gmra.mrb[0].mxu0 %v1776
        %v2553 = vpop.f32.mrb[0].mxu0
        %v2554 = vadd.f32 0.0, %v2553
        %v2555 = vpop.f32.mrb[0].mxu0
        %v2556 = vadd.f32 0.0, %v2555
        %v2557 = vpop.f32.mrb[0].mxu0
        %v2558 = vadd.f32 0.0, %v2557
        %v2559 = vpop.f32.mrb[0].mxu0
        %v2560 = vadd.f32 0.0, %v2559
        %2561 = vmatprep.mubr.bf16.mxu0 %v1780
        %2562 = vmatmul.mubr.bf16.gmra.mrb[0].mxu0 %v1779
        %v2563 = vpop.f32.mrb[0].mxu0
        %v2564 = vadd.f32 0.0, %v2563
        %v2565 = vpop.f32.mrb[0].mxu0
        %v2566 = vadd.f32 0.0, %v2565
        %v2567 = vpop.f32.mrb[0].mxu0
        %v2568 = vadd.f32 0.0, %v2567
        %v2569 = vpop.f32.mrb[0].mxu0
        %v2570 = vadd.f32 0.0, %v2569
        %2571 = vmatprep.mubr.bf16.mxu0 %v1783
        %2572 = vmatmul.mubr.bf16.gmra.mrb[0].mxu0 %v1782
        %v2573 = vpop.f32.mrb[0].mxu0
        %v2574 = vadd.f32 0.0, %v2573
        %v2575 = vpop.f32.mrb[0].mxu0
        %v2576 = vadd.f32 0.0, %v2575
        %v2577 = vpop.f32.mrb[0].mxu0
        %v2578 = vadd.f32 0.0, %v2577
        %v2579 = vpop.f32.mrb[0].mxu0
        %v2580 = vadd.f32 0.0, %v2579
        %2581 = vmatprep.mubr.bf16.mxu0 %v1786
        %2582 = vmatmul.mubr.bf16.gmra.mrb[0].mxu0 %v1785
        %v2583 = vpop.f32.mrb[0].mxu0
        %v2584 = vadd.f32 0.0, %v2583
        %v2585 = vpop.f32.mrb[0].mxu0
        %v2586 = vadd.f32 0.0, %v2585
        %v2587 = vpop.f32.mrb[0].mxu0
        %v2588 = vadd.f32 0.0, %v2587
        %v2589 = vpop.f32.mrb[0].mxu0
        %v2590 = vadd.f32 0.0, %v2589
        %2591 = vmatprep.mubr.bf16.mxu0 %v1789
        %2592 = vmatmul.mubr.bf16.gmra.mrb[0].mxu0 %v1788
        %v2593 = vpop.f32.mrb[0].mxu0
        %v2594 = vadd.f32 0.0, %v2593
        %v2595 = vpop.f32.mrb[0].mxu0
        %v2596 = vadd.f32 0.0, %v2595
        %v2597 = vpop.f32.mrb[0].mxu0
        %v2598 = vadd.f32 0.0, %v2597
        %v2599 = vpop.f32.mrb[0].mxu0
        %v2600 = vadd.f32 0.0, %v2599
        %2601 = vmatprep.mubr.bf16.mxu0 %v1792
        %2602 = vmatmul.mubr.bf16.gmra.mrb[0].mxu0 %v1791
        %v2603 = vpop.f32.mrb[0].mxu0
        %v2604 = vadd.f32 0.0, %v2603
        %v2605 = vpop.f32.mrb[0].mxu0
        %v2606 = vadd.f32 0.0, %v2605
        %v2607 = vpop.f32.mrb[0].mxu0
        %v2608 = vadd.f32 0.0, %v2607
        %v2609 = vpop.f32.mrb[0].mxu0
        %v2610 = vadd.f32 0.0, %v2609
        %2611 = vmatprep.mubr.bf16.mxu0 %v1795
        %2612 = vmatmul.mubr.bf16.gmra.mrb[0].mxu0 %v1794
        %v2613 = vpop.f32.mrb[0].mxu0
        %v2614 = vadd.f32 0.0, %v2613
        %v2615 = vpop.f32.mrb[0].mxu0
        %v2616 = vadd.f32 0.0, %v2615
        %v2617 = vpop.f32.mrb[0].mxu0
        %v2618 = vadd.f32 0.0, %v2617
        %v2619 = vpop.f32.mrb[0].mxu0
        %v2620 = vadd.f32 0.0, %v2619
        %2621 = vmatprep.mubr.bf16.mxu0 %v1798
        %2622 = vmatmul.mubr.bf16.gmra.mrb[0].mxu0 %v1797
        %v2623 = vpop.f32.mrb[0].mxu0
        %v2624 = vadd.f32 0.0, %v2623
        %v2625 = vpop.f32.mrb[0].mxu0
        %v2626 = vadd.f32 0.0, %v2625
        %v2627 = vpop.f32.mrb[0].mxu0
        %v2628 = vadd.f32 0.0, %v2627
        %v2629 = vpop.f32.mrb[0].mxu0
        %v2630 = vadd.f32 0.0, %v2629
        %2631 = vmatprep.mubr.bf16.mxu0 %v1801
        %2632 = vmatmul.mubr.bf16.gmra.mrb[0].mxu0 %v1800
        %v2633 = vpop.f32.mrb[0].mxu0
        %v2634 = vadd.f32 0.0, %v2633
        %v2635 = vpop.f32.mrb[0].mxu0
        %v2636 = vadd.f32 0.0, %v2635
        %v2637 = vpop.f32.mrb[0].mxu0
        %v2638 = vadd.f32 0.0, %v2637
        %v2639 = vpop.f32.mrb[0].mxu0
        %v2640 = vadd.f32 0.0, %v2639
        %2641 = vmatprep.mubr.bf16.mxu0 %v1804
        %2642 = vmatmul.mubr.bf16.gmra.mrb[0].mxu0 %v1803
        %v2643 = vpop.f32.mrb[0].mxu0
        %v2644 = vadd.f32 0.0, %v2643
        %v2645 = vpop.f32.mrb[0].mxu0
        %v2646 = vadd.f32 0.0, %v2645
        %v2647 = vpop.f32.mrb[0].mxu0
        %v2648 = vadd.f32 0.0, %v2647
        %v2649 = vpop.f32.mrb[0].mxu0
        %v2650 = vadd.f32 0.0, %v2649
        %2651 = vmatprep.mubr.bf16.mxu0 %v1807
        %2652 = vmatmul.mubr.bf16.gmra.mrb[0].mxu0 %v1806
        %v2653 = vpop.f32.mrb[0].mxu0
        %v2654 = vadd.f32 0.0, %v2653
        %v2655 = vpop.f32.mrb[0].mxu0
        %v2656 = vadd.f32 0.0, %v2655
        %v2657 = vpop.f32.mrb[0].mxu0
        %v2658 = vadd.f32 0.0, %v2657
        %v2659 = vpop.f32.mrb[0].mxu0
        %v2660 = vadd.f32 0.0, %v2659
        %2661 = vmatprep.mubr.bf16.mxu0 %v1810
        %2662 = vmatmul.mubr.bf16.gmra.mrb[0].mxu0 %v1809
        %v2663 = vpop.f32.mrb[0].mxu0
        %v2664 = vadd.f32 0.0, %v2663
        %v2665 = vpop.f32.mrb[0].mxu0
        %v2666 = vadd.f32 0.0, %v2665
        %v2667 = vpop.f32.mrb[0].mxu0
        %v2668 = vadd.f32 0.0, %v2667
        %v2669 = vpop.f32.mrb[0].mxu0
        %v2670 = vadd.f32 0.0, %v2669
        %2671 = vmatprep.mubr.bf16.mxu0 %v1813
        %2672 = vmatmul.mubr.bf16.gmra.mrb[0].mxu0 %v1812
        %v2673 = vpop.f32.mrb[0].mxu0
        %v2674 = vadd.f32 0.0, %v2673
        %v2675 = vpop.f32.mrb[0].mxu0
        %v2676 = vadd.f32 0.0, %v2675
        %v2677 = vpop.f32.mrb[0].mxu0
        %v2678 = vadd.f32 0.0, %v2677
        %v2679 = vpop.f32.mrb[0].mxu0
        %v2680 = vadd.f32 0.0, %v2679
        %2681 = vmatprep.mubr.bf16.mxu0 %v1816
        %2682 = vmatmul.mubr.bf16.gmra.mrb[0].mxu0 %v1815
        %v2683 = vpop.f32.mrb[0].mxu0
        %v2684 = vadd.f32 0.0, %v2683
        %v2685 = vpop.f32.mrb[0].mxu0
        %v2686 = vadd.f32 0.0, %v2685
        %v2687 = vpop.f32.mrb[0].mxu0
        %v2688 = vadd.f32 0.0, %v2687
        %v2689 = vpop.f32.mrb[0].mxu0
        %v2690 = vadd.f32 0.0, %v2689
        %2691 = vmatprep.mubr.bf16.mxu0 %v1819
        %2692 = vmatmul.mubr.bf16.gmra.mrb[0].mxu0 %v1818
        %v2693 = vpop.f32.mrb[0].mxu0
        %v2694 = vadd.f32 0.0, %v2693
        %v2695 = vpop.f32.mrb[0].mxu0
        %v2696 = vadd.f32 0.0, %v2695
        %v2697 = vpop.f32.mrb[0].mxu0
        %v2698 = vadd.f32 0.0, %v2697
        %v2699 = vpop.f32.mrb[0].mxu0
        %v2700 = vadd.f32 0.0, %v2699
        %2701 = vmatprep.mubr.bf16.mxu0 %v1822
        %2702 = vmatmul.mubr.bf16.gmra.mrb[0].mxu0 %v1821
        %v2703 = vpop.f32.mrb[0].mxu0
        %v2704 = vadd.f32 0.0, %v2703
        %v2705 = vpop.f32.mrb[0].mxu0
        %v2706 = vadd.f32 0.0, %v2705
        %v2707 = vpop.f32.mrb[0].mxu0
        %v2708 = vadd.f32 0.0, %v2707
        %v2709 = vpop.f32.mrb[0].mxu0
        %v2710 = vadd.f32 0.0, %v2709
        %2711 = vmatprep.mubr.bf16.mxu0 %v1825
        %2712 = vmatmul.mubr.bf16.gmra.mrb[0].mxu0 %v1824
        %v2713 = vpop.f32.mrb[0].mxu0
        %v2714 = vadd.f32 0.0, %v2713
        %v2715 = vpop.f32.mrb[0].mxu0
        %v2716 = vadd.f32 0.0, %v2715
        %v2717 = vpop.f32.mrb[0].mxu0
        %v2718 = vadd.f32 0.0, %v2717
        %v2719 = vpop.f32.mrb[0].mxu0
        %v2720 = vadd.f32 0.0, %v2719
        %2721 = vmatprep.mubr.bf16.mxu0 %v1828
        %2722 = vmatmul.mubr.bf16.gmra.mrb[0].mxu0 %v1827
        %v2723 = vpop.f32.mrb[0].mxu0
        %v2724 = vadd.f32 0.0, %v2723
        %v2725 = vpop.f32.mrb[0].mxu0
        %v2726 = vadd.f32 0.0, %v2725
        %v2727 = vpop.f32.mrb[0].mxu0
        %v2728 = vadd.f32 0.0, %v2727
        %v2729 = vpop.f32.mrb[0].mxu0
        %v2730 = vadd.f32 0.0, %v2729
        %2731 = vmatprep.mubr.bf16.mxu0 %v1831
        %2732 = vmatmul.mubr.bf16.gmra.mrb[0].mxu0 %v1830
        %v2733 = vpop.f32.mrb[0].mxu0
        %v2734 = vadd.f32 0.0, %v2733
        %v2735 = vpop.f32.mrb[0].mxu0
        %v2736 = vadd.f32 0.0, %v2735
        %v2737 = vpop.f32.mrb[0].mxu0
        %v2738 = vadd.f32 0.0, %v2737
        %v2739 = vpop.f32.mrb[0].mxu0
        %v2740 = vadd.f32 0.0, %v2739
        %2741 = vmatprep.mubr.bf16.mxu0 %v1834
        %2742 = vmatmul.mubr.bf16.gmra.mrb[0].mxu0 %v1833
        %v2743 = vpop.f32.mrb[0].mxu0
        %v2744 = vadd.f32 0.0, %v2743
        %v2745 = vpop.f32.mrb[0].mxu0
        %v2746 = vadd.f32 0.0, %v2745
        %v2747 = vpop.f32.mrb[0].mxu0
        %v2748 = vadd.f32 0.0, %v2747
        %v2749 = vpop.f32.mrb[0].mxu0
        %v2750 = vadd.f32 0.0, %v2749
        %2751 = vmatprep.mubr.bf16.mxu0 %v1837
        %2752 = vmatmul.mubr.bf16.gmra.mrb[0].mxu0 %v1836
        %v2753 = vpop.f32.mrb[0].mxu0
        %v2754 = vadd.f32 0.0, %v2753
        %v2755 = vpop.f32.mrb[0].mxu0
        %v2756 = vadd.f32 0.0, %v2755
        %v2757 = vpop.f32.mrb[0].mxu0
        %v2758 = vadd.f32 0.0, %v2757
        %v2759 = vpop.f32.mrb[0].mxu0
        %v2760 = vadd.f32 0.0, %v2759
        %2761 = vmatprep.mubr.bf16.mxu0 %v1840
        %2762 = vmatmul.mubr.bf16.gmra.mrb[0].mxu0 %v1839
        %v2763 = vpop.f32.mrb[0].mxu0
        %v2764 = vadd.f32 0.0, %v2763
        %v2765 = vpop.f32.mrb[0].mxu0
        %v2766 = vadd.f32 0.0, %v2765
        %v2767 = vpop.f32.mrb[0].mxu0
        %v2768 = vadd.f32 0.0, %v2767
        %v2769 = vpop.f32.mrb[0].mxu0
        %v2770 = vadd.f32 0.0, %v2769
        %2771 = vmatprep.mubr.bf16.mxu0 %v1843
        %2772 = vmatmul.mubr.bf16.gmra.mrb[0].mxu0 %v1842
        %v2773 = vpop.f32.mrb[0].mxu0
        %v2774 = vadd.f32 0.0, %v2773
        %v2775 = vpop.f32.mrb[0].mxu0
        %v2776 = vadd.f32 0.0, %v2775
        %v2777 = vpop.f32.mrb[0].mxu0
        %v2778 = vadd.f32 0.0, %v2777
        %v2779 = vpop.f32.mrb[0].mxu0
        %v2780 = vadd.f32 0.0, %v2779
        %2781 = vdwg.mxu0
        %2782 = vmatprep.subr.bf16.mxu0 %v2254
        %2783 = vmatpush1.bf16.msra.mxu0 %v2253
        %2784 = vmatprep.subr.bf16.mxu0 %v2257
        %2785 = vmatpush1.bf16.msra.mxu0 %v2256
        %2786 = vmatprep.subr.bf16.mxu0 %v2260
        %2787 = vmatpush1.bf16.msra.mxu0 %v2259
        %2788 = vmatprep.subr.bf16.mxu0 %v2263
        %2789 = vmatpush1.bf16.msra.mxu0 %v2262
        %2790 = vmatprep.subr.bf16.mxu0 %v2266
        %2791 = vmatpush1.bf16.msra.mxu0 %v2265
        %2792 = vmatprep.subr.bf16.mxu0 %v2269
        %2793 = vmatpush1.bf16.msra.mxu0 %v2268
        %2794 = vmatprep.subr.bf16.mxu0 %v2272
        %2795 = vmatpush1.bf16.msra.mxu0 %v2271
        %2796 = vmatprep.subr.bf16.mxu0 %v2275
        %2797 = vmatpush1.bf16.msra.mxu0 %v2274
        %2798 = vmatprep.subr.bf16.mxu0 0
        %2799 = vmatpush1.bf16.msra.mxu0 0
        %2800 = vmatprep.subr.bf16.mxu0 0
        %2801 = vmatpush1.bf16.msra.mxu0 0
        %2802 = vmatprep.subr.bf16.mxu0 0
        %2803 = vmatpush1.bf16.msra.mxu0 0
        %2804 = vmatprep.subr.bf16.mxu0 0
        %2805 = vmatpush1.bf16.msra.mxu0 0
        %2806 = vmatprep.subr.bf16.mxu0 0
        %2807 = vmatpush1.bf16.msra.mxu0 0
        %2808 = vmatprep.subr.bf16.mxu0 0
        %2809 = vmatpush1.bf16.msra.mxu0 0
        %2810 = vmatprep.subr.bf16.mxu0 0
        %2811 = vmatpush1.bf16.msra.mxu0 0
        %2812 = vmatprep.subr.bf16.mxu0 0
        %2813 = vmatpush1.bf16.msra.mxu0 0
        %2814 = vmatprep.mubr.bf16.mxu0 0
        %2815 = vmatmul.mubr.bf16.gmra.mrb[0].mxu0 %v1727
        %v2816 = vpop.f32.mrb[0].mxu0
        %v2817 = vadd.f32 %v2384, %v2816
        %v2818 = vpop.f32.mrb[0].mxu0
        %v2819 = vadd.f32 %v2386, %v2818
        %v2820 = vpop.f32.mrb[0].mxu0
        %v2821 = vadd.f32 %v2388, %v2820
        %v2822 = vpop.f32.mrb[0].mxu0
        %v2823 = vadd.f32 %v2390, %v2822
        %2824 = vmatprep.mubr.bf16.mxu0 0
        %2825 = vmatmul.mubr.bf16.gmra.mrb[0].mxu0 %v1730
        %v2826 = vpop.f32.mrb[0].mxu0
        %v2827 = vadd.f32 %v2394, %v2826
        %v2828 = vpop.f32.mrb[0].mxu0
        %v2829 = vadd.f32 %v2396, %v2828
        %v2830 = vpop.f32.mrb[0].mxu0
        %v2831 = vadd.f32 %v2398, %v2830
        %v2832 = vpop.f32.mrb[0].mxu0
        %v2833 = vadd.f32 %v2400, %v2832
        %2834 = vmatprep.mubr.bf16.mxu0 0
        %2835 = vmatmul.mubr.bf16.gmra.mrb[0].mxu0 %v1733
        %v2836 = vpop.f32.mrb[0].mxu0
        %v2837 = vadd.f32 %v2404, %v2836
        %v2838 = vpop.f32.mrb[0].mxu0
        %v2839 = vadd.f32 %v2406, %v2838
        %v2840 = vpop.f32.mrb[0].mxu0
        %v2841 = vadd.f32 %v2408, %v2840
        %v2842 = vpop.f32.mrb[0].mxu0
        %v2843 = vadd.f32 %v2410, %v2842
        %2844 = vmatprep.mubr.bf16.mxu0 0
        %2845 = vmatmul.mubr.bf16.gmra.mrb[0].mxu0 %v1736
        %v2846 = vpop.f32.mrb[0].mxu0
        %v2847 = vadd.f32 %v2414, %v2846
        %v2848 = vpop.f32.mrb[0].mxu0
        %v2849 = vadd.f32 %v2416, %v2848
        %v2850 = vpop.f32.mrb[0].mxu0
        %v2851 = vadd.f32 %v2418, %v2850
        %v2852 = vpop.f32.mrb[0].mxu0
        %v2853 = vadd.f32 %v2420, %v2852
        %2854 = vmatprep.mubr.bf16.mxu0 0
        %2855 = vmatmul.mubr.bf16.gmra.mrb[0].mxu0 %v1739
        %v2856 = vpop.f32.mrb[0].mxu0
        %v2857 = vadd.f32 %v2424, %v2856
        %v2858 = vpop.f32.mrb[0].mxu0
        %v2859 = vadd.f32 %v2426, %v2858
        %v2860 = vpop.f32.mrb[0].mxu0
        %v2861 = vadd.f32 %v2428, %v2860
        %v2862 = vpop.f32.mrb[0].mxu0
        %v2863 = vadd.f32 %v2430, %v2862
        %2864 = vmatprep.mubr.bf16.mxu0 0
        %2865 = vmatmul.mubr.bf16.gmra.mrb[0].mxu0 %v1742
        %v2866 = vpop.f32.mrb[0].mxu0
        %v2867 = vadd.f32 %v2434, %v2866
        %v2868 = vpop.f32.mrb[0].mxu0
        %v2869 = vadd.f32 %v2436, %v2868
        %v2870 = vpop.f32.mrb[0].mxu0
        %v2871 = vadd.f32 %v2438, %v2870
        %v2872 = vpop.f32.mrb[0].mxu0
        %v2873 = vadd.f32 %v2440, %v2872
        %2874 = vmatprep.mubr.bf16.mxu0 0
        %2875 = vmatmul.mubr.bf16.gmra.mrb[0].mxu0 %v1745
        %v2876 = vpop.f32.mrb[0].mxu0
        %v2877 = vadd.f32 %v2444, %v2876
        %v2878 = vpop.f32.mrb[0].mxu0
        %v2879 = vadd.f32 %v2446, %v2878
        %v2880 = vpop.f32.mrb[0].mxu0
        %v2881 = vadd.f32 %v2448, %v2880
        %v2882 = vpop.f32.mrb[0].mxu0
        %v2883 = vadd.f32 %v2450, %v2882
        %2884 = vmatprep.mubr.bf16.mxu0 0
        %2885 = vmatmul.mubr.bf16.gmra.mrb[0].mxu0 %v1748
        %v2886 = vpop.f32.mrb[0].mxu0
        %v2887 = vadd.f32 %v2454, %v2886
        %v2888 = vpop.f32.mrb[0].mxu0
        %v2889 = vadd.f32 %v2456, %v2888
        %v2890 = vpop.f32.mrb[0].mxu0
        %v2891 = vadd.f32 %v2458, %v2890
        %v2892 = vpop.f32.mrb[0].mxu0
        %v2893 = vadd.f32 %v2460, %v2892
        %2894 = vmatprep.mubr.bf16.mxu0 0
        %2895 = vmatmul.mubr.bf16.gmra.mrb[0].mxu0 %v1751
        %v2896 = vpop.f32.mrb[0].mxu0
        %v2897 = vadd.f32 %v2464, %v2896
        %v2898 = vpop.f32.mrb[0].mxu0
        %v2899 = vadd.f32 %v2466, %v2898
        %v2900 = vpop.f32.mrb[0].mxu0
        %v2901 = vadd.f32 %v2468, %v2900
        %v2902 = vpop.f32.mrb[0].mxu0
        %v2903 = vadd.f32 %v2470, %v2902
        %2904 = vmatprep.mubr.bf16.mxu0 0
        %2905 = vmatmul.mubr.bf16.gmra.mrb[0].mxu0 %v1754
        %v2906 = vpop.f32.mrb[0].mxu0
        %v2907 = vadd.f32 %v2474, %v2906
        %v2908 = vpop.f32.mrb[0].mxu0
        %v2909 = vadd.f32 %v2476, %v2908
        %v2910 = vpop.f32.mrb[0].mxu0
        %v2911 = vadd.f32 %v2478, %v2910
        %v2912 = vpop.f32.mrb[0].mxu0
        %v2913 = vadd.f32 %v2480, %v2912
        %2914 = vmatprep.mubr.bf16.mxu0 0
        %2915 = vmatmul.mubr.bf16.gmra.mrb[0].mxu0 %v1757
        %v2916 = vpop.f32.mrb[0].mxu0
        %v2917 = vadd.f32 %v2484, %v2916
        %v2918 = vpop.f32.mrb[0].mxu0
        %v2919 = vadd.f32 %v2486, %v2918
        %v2920 = vpop.f32.mrb[0].mxu0
        %v2921 = vadd.f32 %v2488, %v2920
        %v2922 = vpop.f32.mrb[0].mxu0
        %v2923 = vadd.f32 %v2490, %v2922
        %2924 = vmatprep.mubr.bf16.mxu0 0
        %2925 = vmatmul.mubr.bf16.gmra.mrb[0].mxu0 %v1760
        %v2926 = vpop.f32.mrb[0].mxu0
        %v2927 = vadd.f32 %v2494, %v2926
        %v2928 = vpop.f32.mrb[0].mxu0
        %v2929 = vadd.f32 %v2496, %v2928
        %v2930 = vpop.f32.mrb[0].mxu0
        %v2931 = vadd.f32 %v2498, %v2930
        %v2932 = vpop.f32.mrb[0].mxu0
        %v2933 = vadd.f32 %v2500, %v2932
        %2934 = vmatprep.mubr.bf16.mxu0 0
        %2935 = vmatmul.mubr.bf16.gmra.mrb[0].mxu0 %v1763
        %v2936 = vpop.f32.mrb[0].mxu0
        %v2937 = vadd.f32 %v2504, %v2936
        %v2938 = vpop.f32.mrb[0].mxu0
        %v2939 = vadd.f32 %v2506, %v2938
        %v2940 = vpop.f32.mrb[0].mxu0
        %v2941 = vadd.f32 %v2508, %v2940
        %v2942 = vpop.f32.mrb[0].mxu0
        %v2943 = vadd.f32 %v2510, %v2942
        %2944 = vmatprep.mubr.bf16.mxu0 0
        %2945 = vmatmul.mubr.bf16.gmra.mrb[0].mxu0 %v1766
        %v2946 = vpop.f32.mrb[0].mxu0
        %v2947 = vadd.f32 %v2514, %v2946
        %v2948 = vpop.f32.mrb[0].mxu0
        %v2949 = vadd.f32 %v2516, %v2948
        %v2950 = vpop.f32.mrb[0].mxu0
        %v2951 = vadd.f32 %v2518, %v2950
        %v2952 = vpop.f32.mrb[0].mxu0
        %v2953 = vadd.f32 %v2520, %v2952
        %2954 = vmatprep.mubr.bf16.mxu0 0
        %2955 = vmatmul.mubr.bf16.gmra.mrb[0].mxu0 %v1769
        %v2956 = vpop.f32.mrb[0].mxu0
        %v2957 = vadd.f32 %v2524, %v2956
        %v2958 = vpop.f32.mrb[0].mxu0
        %v2959 = vadd.f32 %v2526, %v2958
        %v2960 = vpop.f32.mrb[0].mxu0
        %v2961 = vadd.f32 %v2528, %v2960
        %v2962 = vpop.f32.mrb[0].mxu0
        %v2963 = vadd.f32 %v2530, %v2962
        %2964 = vmatprep.mubr.bf16.mxu0 0
        %2965 = vmatmul.mubr.bf16.gmra.mrb[0].mxu0 %v1772
        %v2966 = vpop.f32.mrb[0].mxu0
        %v2967 = vadd.f32 %v2534, %v2966
        %v2968 = vpop.f32.mrb[0].mxu0
        %v2969 = vadd.f32 %v2536, %v2968
        %v2970 = vpop.f32.mrb[0].mxu0
        %v2971 = vadd.f32 %v2538, %v2970
        %v2972 = vpop.f32.mrb[0].mxu0
        %v2973 = vadd.f32 %v2540, %v2972
        %2974 = vmatprep.mubr.bf16.mxu0 0
        %2975 = vmatmul.mubr.bf16.gmra.mrb[0].mxu0 %v1775
        %v2976 = vpop.f32.mrb[0].mxu0
        %v2977 = vadd.f32 %v2544, %v2976
        %v2978 = vpop.f32.mrb[0].mxu0
        %v2979 = vadd.f32 %v2546, %v2978
        %v2980 = vpop.f32.mrb[0].mxu0
        %v2981 = vadd.f32 %v2548, %v2980
        %v2982 = vpop.f32.mrb[0].mxu0
        %v2983 = vadd.f32 %v2550, %v2982
        %2984 = vmatprep.mubr.bf16.mxu0 0
        %2985 = vmatmul.mubr.bf16.gmra.mrb[0].mxu0 %v1778
        %v2986 = vpop.f32.mrb[0].mxu0
        %v2987 = vadd.f32 %v2554, %v2986
        %v2988 = vpop.f32.mrb[0].mxu0
        %v2989 = vadd.f32 %v2556, %v2988
        %v2990 = vpop.f32.mrb[0].mxu0
        %v2991 = vadd.f32 %v2558, %v2990
        %v2992 = vpop.f32.mrb[0].mxu0
        %v2993 = vadd.f32 %v2560, %v2992
        %2994 = vmatprep.mubr.bf16.mxu0 0
        %2995 = vmatmul.mubr.bf16.gmra.mrb[0].mxu0 %v1781
        %v2996 = vpop.f32.mrb[0].mxu0
        %v2997 = vadd.f32 %v2564, %v2996
        %v2998 = vpop.f32.mrb[0].mxu0
        %v2999 = vadd.f32 %v2566, %v2998
        %v3000 = vpop.f32.mrb[0].mxu0
        %v3001 = vadd.f32 %v2568, %v3000
        %v3002 = vpop.f32.mrb[0].mxu0
        %v3003 = vadd.f32 %v2570, %v3002
        %3004 = vmatprep.mubr.bf16.mxu0 0
        %3005 = vmatmul.mubr.bf16.gmra.mrb[0].mxu0 %v1784
        %v3006 = vpop.f32.mrb[0].mxu0
        %v3007 = vadd.f32 %v2574, %v3006
        %v3008 = vpop.f32.mrb[0].mxu0
        %v3009 = vadd.f32 %v2576, %v3008
        %v3010 = vpop.f32.mrb[0].mxu0
        %v3011 = vadd.f32 %v2578, %v3010
        %v3012 = vpop.f32.mrb[0].mxu0
        %v3013 = vadd.f32 %v2580, %v3012
        %3014 = vmatprep.mubr.bf16.mxu0 0
        %3015 = vmatmul.mubr.bf16.gmra.mrb[0].mxu0 %v1787
        %v3016 = vpop.f32.mrb[0].mxu0
        %v3017 = vadd.f32 %v2584, %v3016
        %v3018 = vpop.f32.mrb[0].mxu0
        %v3019 = vadd.f32 %v2586, %v3018
        %v3020 = vpop.f32.mrb[0].mxu0
        %v3021 = vadd.f32 %v2588, %v3020
        %v3022 = vpop.f32.mrb[0].mxu0
        %v3023 = vadd.f32 %v2590, %v3022
        %3024 = vmatprep.mubr.bf16.mxu0 0
        %3025 = vmatmul.mubr.bf16.gmra.mrb[0].mxu0 %v1790
        %v3026 = vpop.f32.mrb[0].mxu0
        %v3027 = vadd.f32 %v2594, %v3026
        %v3028 = vpop.f32.mrb[0].mxu0
        %v3029 = vadd.f32 %v2596, %v3028
        %v3030 = vpop.f32.mrb[0].mxu0
        %v3031 = vadd.f32 %v2598, %v3030
        %v3032 = vpop.f32.mrb[0].mxu0
        %v3033 = vadd.f32 %v2600, %v3032
        %3034 = vmatprep.mubr.bf16.mxu0 0
        %3035 = vmatmul.mubr.bf16.gmra.mrb[0].mxu0 %v1793
        %v3036 = vpop.f32.mrb[0].mxu0
        %v3037 = vadd.f32 %v2604, %v3036
        %v3038 = vpop.f32.mrb[0].mxu0
        %v3039 = vadd.f32 %v2606, %v3038
        %v3040 = vpop.f32.mrb[0].mxu0
        %v3041 = vadd.f32 %v2608, %v3040
        %v3042 = vpop.f32.mrb[0].mxu0
        %v3043 = vadd.f32 %v2610, %v3042
        %3044 = vmatprep.mubr.bf16.mxu0 0
        %3045 = vmatmul.mubr.bf16.gmra.mrb[0].mxu0 %v1796
        %v3046 = vpop.f32.mrb[0].mxu0
        %v3047 = vadd.f32 %v2614, %v3046
        %v3048 = vpop.f32.mrb[0].mxu0
        %v3049 = vadd.f32 %v2616, %v3048
        %v3050 = vpop.f32.mrb[0].mxu0
        %v3051 = vadd.f32 %v2618, %v3050
        %v3052 = vpop.f32.mrb[0].mxu0
        %v3053 = vadd.f32 %v2620, %v3052
        %3054 = vmatprep.mubr.bf16.mxu0 0
        %3055 = vmatmul.mubr.bf16.gmra.mrb[0].mxu0 %v1799
        %v3056 = vpop.f32.mrb[0].mxu0
        %v3057 = vadd.f32 %v2624, %v3056
        %v3058 = vpop.f32.mrb[0].mxu0
        %v3059 = vadd.f32 %v2626, %v3058
        %v3060 = vpop.f32.mrb[0].mxu0
        %v3061 = vadd.f32 %v2628, %v3060
        %v3062 = vpop.f32.mrb[0].mxu0
        %v3063 = vadd.f32 %v2630, %v3062
        %3064 = vmatprep.mubr.bf16.mxu0 0
        %3065 = vmatmul.mubr.bf16.gmra.mrb[0].mxu0 %v1802
        %v3066 = vpop.f32.mrb[0].mxu0
        %v3067 = vadd.f32 %v2634, %v3066
        %v3068 = vpop.f32.mrb[0].mxu0
        %v3069 = vadd.f32 %v2636, %v3068
        %v3070 = vpop.f32.mrb[0].mxu0
        %v3071 = vadd.f32 %v2638, %v3070
        %v3072 = vpop.f32.mrb[0].mxu0
        %v3073 = vadd.f32 %v2640, %v3072
        %3074 = vmatprep.mubr.bf16.mxu0 0
        %3075 = vmatmul.mubr.bf16.gmra.mrb[0].mxu0 %v1805
        %v3076 = vpop.f32.mrb[0].mxu0
        %v3077 = vadd.f32 %v2644, %v3076
        %v3078 = vpop.f32.mrb[0].mxu0
        %v3079 = vadd.f32 %v2646, %v3078
        %v3080 = vpop.f32.mrb[0].mxu0
        %v3081 = vadd.f32 %v2648, %v3080
        %v3082 = vpop.f32.mrb[0].mxu0
        %v3083 = vadd.f32 %v2650, %v3082
        %3084 = vmatprep.mubr.bf16.mxu0 0
        %3085 = vmatmul.mubr.bf16.gmra.mrb[0].mxu0 %v1808
        %v3086 = vpop.f32.mrb[0].mxu0
        %v3087 = vadd.f32 %v2654, %v3086
        %v3088 = vpop.f32.mrb[0].mxu0
        %v3089 = vadd.f32 %v2656, %v3088
        %v3090 = vpop.f32.mrb[0].mxu0
        %v3091 = vadd.f32 %v2658, %v3090
        %v3092 = vpop.f32.mrb[0].mxu0
        %v3093 = vadd.f32 %v2660, %v3092
        %3094 = vmatprep.mubr.bf16.mxu0 0
        %3095 = vmatmul.mubr.bf16.gmra.mrb[0].mxu0 %v1811
        %v3096 = vpop.f32.mrb[0].mxu0
        %v3097 = vadd.f32 %v2664, %v3096
        %v3098 = vpop.f32.mrb[0].mxu0
        %v3099 = vadd.f32 %v2666, %v3098
        %v3100 = vpop.f32.mrb[0].mxu0
        %v3101 = vadd.f32 %v2668, %v3100
        %v3102 = vpop.f32.mrb[0].mxu0
        %v3103 = vadd.f32 %v2670, %v3102
        %3104 = vmatprep.mubr.bf16.mxu0 0
        %3105 = vmatmul.mubr.bf16.gmra.mrb[0].mxu0 %v1814
        %v3106 = vpop.f32.mrb[0].mxu0
        %v3107 = vadd.f32 %v2674, %v3106
        %v3108 = vpop.f32.mrb[0].mxu0
        %v3109 = vadd.f32 %v2676, %v3108
        %v3110 = vpop.f32.mrb[0].mxu0
        %v3111 = vadd.f32 %v2678, %v3110
        %v3112 = vpop.f32.mrb[0].mxu0
        %v3113 = vadd.f32 %v2680, %v3112
        %3114 = vmatprep.mubr.bf16.mxu0 0
        %3115 = vmatmul.mubr.bf16.gmra.mrb[0].mxu0 %v1817
        %v3116 = vpop.f32.mrb[0].mxu0
        %v3117 = vadd.f32 %v2684, %v3116
        %v3118 = vpop.f32.mrb[0].mxu0
        %v3119 = vadd.f32 %v2686, %v3118
        %v3120 = vpop.f32.mrb[0].mxu0
        %v3121 = vadd.f32 %v2688, %v3120
        %v3122 = vpop.f32.mrb[0].mxu0
        %v3123 = vadd.f32 %v2690, %v3122
        %3124 = vmatprep.mubr.bf16.mxu0 0
        %3125 = vmatmul.mubr.bf16.gmra.mrb[0].mxu0 %v1820
        %v3126 = vpop.f32.mrb[0].mxu0
        %v3127 = vadd.f32 %v2694, %v3126
        %v3128 = vpop.f32.mrb[0].mxu0
        %v3129 = vadd.f32 %v2696, %v3128
        %v3130 = vpop.f32.mrb[0].mxu0
        %v3131 = vadd.f32 %v2698, %v3130
        %v3132 = vpop.f32.mrb[0].mxu0
        %v3133 = vadd.f32 %v2700, %v3132
        %3134 = vmatprep.mubr.bf16.mxu0 0
        %3135 = vmatmul.mubr.bf16.gmra.mrb[0].mxu0 %v1823
        %v3136 = vpop.f32.mrb[0].mxu0
        %v3137 = vadd.f32 %v2704, %v3136
        %v3138 = vpop.f32.mrb[0].mxu0
        %v3139 = vadd.f32 %v2706, %v3138
        %v3140 = vpop.f32.mrb[0].mxu0
        %v3141 = vadd.f32 %v2708, %v3140
        %v3142 = vpop.f32.mrb[0].mxu0
        %v3143 = vadd.f32 %v2710, %v3142
        %3144 = vmatprep.mubr.bf16.mxu0 0
        %3145 = vmatmul.mubr.bf16.gmra.mrb[0].mxu0 %v1826
        %v3146 = vpop.f32.mrb[0].mxu0
        %v3147 = vadd.f32 %v2714, %v3146
        %v3148 = vpop.f32.mrb[0].mxu0
        %v3149 = vadd.f32 %v2716, %v3148
        %v3150 = vpop.f32.mrb[0].mxu0
        %v3151 = vadd.f32 %v2718, %v3150
        %v3152 = vpop.f32.mrb[0].mxu0
        %v3153 = vadd.f32 %v2720, %v3152
        %3154 = vmatprep.mubr.bf16.mxu0 0
        %3155 = vmatmul.mubr.bf16.gmra.mrb[0].mxu0 %v1829
        %v3156 = vpop.f32.mrb[0].mxu0
        %v3157 = vadd.f32 %v2724, %v3156
        %v3158 = vpop.f32.mrb[0].mxu0
        %v3159 = vadd.f32 %v2726, %v3158
        %v3160 = vpop.f32.mrb[0].mxu0
        %v3161 = vadd.f32 %v2728, %v3160
        %v3162 = vpop.f32.mrb[0].mxu0
        %v3163 = vadd.f32 %v2730, %v3162
        %3164 = vmatprep.mubr.bf16.mxu0 0
        %3165 = vmatmul.mubr.bf16.gmra.mrb[0].mxu0 %v1832
        %v3166 = vpop.f32.mrb[0].mxu0
        %v3167 = vadd.f32 %v2734, %v3166
        %v3168 = vpop.f32.mrb[0].mxu0
        %v3169 = vadd.f32 %v2736, %v3168
        %v3170 = vpop.f32.mrb[0].mxu0
        %v3171 = vadd.f32 %v2738, %v3170
        %v3172 = vpop.f32.mrb[0].mxu0
        %v3173 = vadd.f32 %v2740, %v3172
        %3174 = vmatprep.mubr.bf16.mxu0 0
        %3175 = vmatmul.mubr.bf16.gmra.mrb[0].mxu0 %v1835
        %v3176 = vpop.f32.mrb[0].mxu0
        %v3177 = vadd.f32 %v2744, %v3176
        %v3178 = vpop.f32.mrb[0].mxu0
        %v3179 = vadd.f32 %v2746, %v3178
        %v3180 = vpop.f32.mrb[0].mxu0
        %v3181 = vadd.f32 %v2748, %v3180
        %v3182 = vpop.f32.mrb[0].mxu0
        %v3183 = vadd.f32 %v2750, %v3182
        %3184 = vmatprep.mubr.bf16.mxu0 0
        %3185 = vmatmul.mubr.bf16.gmra.mrb[0].mxu0 %v1838
        %v3186 = vpop.f32.mrb[0].mxu0
        %v3187 = vadd.f32 %v2754, %v3186
        %v3188 = vpop.f32.mrb[0].mxu0
        %v3189 = vadd.f32 %v2756, %v3188
        %v3190 = vpop.f32.mrb[0].mxu0
        %v3191 = vadd.f32 %v2758, %v3190
        %v3192 = vpop.f32.mrb[0].mxu0
        %v3193 = vadd.f32 %v2760, %v3192
        %3194 = vmatprep.mubr.bf16.mxu0 0
        %3195 = vmatmul.mubr.bf16.gmra.mrb[0].mxu0 %v1841
        %v3196 = vpop.f32.mrb[0].mxu0
        %v3197 = vadd.f32 %v2764, %v3196
        %v3198 = vpop.f32.mrb[0].mxu0
        %v3199 = vadd.f32 %v2766, %v3198
        %v3200 = vpop.f32.mrb[0].mxu0
        %v3201 = vadd.f32 %v2768, %v3200
        %v3202 = vpop.f32.mrb[0].mxu0
        %v3203 = vadd.f32 %v2770, %v3202
        %3204 = vmatprep.mubr.bf16.mxu0 0
        %3205 = vmatmul.mubr.bf16.gmra.mrb[0].mxu0 %v1844
        %v3206 = vpop.f32.mrb[0].mxu0
        %v3207 = vadd.f32 %v2774, %v3206
        %v3208 = vpop.f32.mrb[0].mxu0
        %v3209 = vadd.f32 %v2776, %v3208
        %v3210 = vpop.f32.mrb[0].mxu0
        %v3211 = vadd.f32 %v2778, %v3210
        %v3212 = vpop.f32.mrb[0].mxu0
        %v3213 = vadd.f32 %v2780, %v3212
        %3214 = vdwg.mxu0
        %3215 = vmatprep.subr.bf16.mxu0 0
        %3216 = vmatpush1.bf16.msra.mxu0 %v2207
        %3217 = vmatprep.subr.bf16.mxu0 0
        %3218 = vmatpush1.bf16.msra.mxu0 %v2210
        %3219 = vmatprep.subr.bf16.mxu0 0
        %3220 = vmatpush1.bf16.msra.mxu0 %v2213
        %3221 = vmatprep.subr.bf16.mxu0 0
        %3222 = vmatpush1.bf16.msra.mxu0 %v2216
        %3223 = vmatprep.subr.bf16.mxu0 0
        %3224 = vmatpush1.bf16.msra.mxu0 %v2219
        %3225 = vmatprep.subr.bf16.mxu0 0
        %3226 = vmatpush1.bf16.msra.mxu0 %v2222
        %3227 = vmatprep.subr.bf16.mxu0 0
        %3228 = vmatpush1.bf16.msra.mxu0 %v2225
        %3229 = vmatprep.subr.bf16.mxu0 0
        %3230 = vmatpush1.bf16.msra.mxu0 %v2228
        %3231 = vmatprep.subr.bf16.mxu0 0
        %3232 = vmatpush1.bf16.msra.mxu0 %v2231
        %3233 = vmatprep.subr.bf16.mxu0 0
        %3234 = vmatpush1.bf16.msra.mxu0 %v2234
        %3235 = vmatprep.subr.bf16.mxu0 0
        %3236 = vmatpush1.bf16.msra.mxu0 %v2237
        %3237 = vmatprep.subr.bf16.mxu0 0
        %3238 = vmatpush1.bf16.msra.mxu0 %v2240
        %3239 = vmatprep.subr.bf16.mxu0 0
        %3240 = vmatpush1.bf16.msra.mxu0 %v2243
        %3241 = vmatprep.subr.bf16.mxu0 0
        %3242 = vmatpush1.bf16.msra.mxu0 %v2246
        %3243 = vmatprep.subr.bf16.mxu0 0
        %3244 = vmatpush1.bf16.msra.mxu0 %v2249
        %3245 = vmatprep.subr.bf16.mxu0 0
        %3246 = vmatpush1.bf16.msra.mxu0 %v2252
        %3247 = vmatprep.mubr.bf16.mxu0 %v1726
        %3248 = vmatmul.mubr.bf16.gmra.mrb[0].mxu0 %v1725
        %v3249 = vpop.f32.mrb[0].mxu0
        %v3250 = vadd.f32 0.0, %v3249
        %v3251 = vpop.f32.mrb[0].mxu0
        %v3252 = vpop.f32.mrb[0].mxu0
        %v3253 = vadd.f32 0.0, %v3252
        %v3254 = vpop.f32.mrb[0].mxu0
        %3255 = vmatprep.mubr.bf16.mxu0 %v1729
        %3256 = vmatmul.mubr.bf16.gmra.mrb[0].mxu0 %v1728
        %v3257 = vpop.f32.mrb[0].mxu0
        %v3258 = vadd.f32 0.0, %v3257
        %v3259 = vpop.f32.mrb[0].mxu0
        %v3260 = vpop.f32.mrb[0].mxu0
        %v3261 = vadd.f32 0.0, %v3260
        %v3262 = vpop.f32.mrb[0].mxu0
        %3263 = vmatprep.mubr.bf16.mxu0 %v1732
        %3264 = vmatmul.mubr.bf16.gmra.mrb[0].mxu0 %v1731
        %v3265 = vpop.f32.mrb[0].mxu0
        %v3266 = vadd.f32 0.0, %v3265
        %v3267 = vpop.f32.mrb[0].mxu0
        %v3268 = vpop.f32.mrb[0].mxu0
        %v3269 = vadd.f32 0.0, %v3268
        %v3270 = vpop.f32.mrb[0].mxu0
        %3271 = vmatprep.mubr.bf16.mxu0 %v1735
        %3272 = vmatmul.mubr.bf16.gmra.mrb[0].mxu0 %v1734
        %v3273 = vpop.f32.mrb[0].mxu0
        %v3274 = vadd.f32 0.0, %v3273
        %v3275 = vpop.f32.mrb[0].mxu0
        %v3276 = vpop.f32.mrb[0].mxu0
        %v3277 = vadd.f32 0.0, %v3276
        %v3278 = vpop.f32.mrb[0].mxu0
        %3279 = vmatprep.mubr.bf16.mxu0 %v1738
        %3280 = vmatmul.mubr.bf16.gmra.mrb[0].mxu0 %v1737
        %v3281 = vpop.f32.mrb[0].mxu0
        %v3282 = vadd.f32 0.0, %v3281
        %v3283 = vpop.f32.mrb[0].mxu0
        %v3284 = vpop.f32.mrb[0].mxu0
        %v3285 = vadd.f32 0.0, %v3284
        %v3286 = vpop.f32.mrb[0].mxu0
        %3287 = vmatprep.mubr.bf16.mxu0 %v1741
        %3288 = vmatmul.mubr.bf16.gmra.mrb[0].mxu0 %v1740
        %v3289 = vpop.f32.mrb[0].mxu0
        %v3290 = vadd.f32 0.0, %v3289
        %v3291 = vpop.f32.mrb[0].mxu0
        %v3292 = vpop.f32.mrb[0].mxu0
        %v3293 = vadd.f32 0.0, %v3292
        %v3294 = vpop.f32.mrb[0].mxu0
        %3295 = vmatprep.mubr.bf16.mxu0 %v1744
        %3296 = vmatmul.mubr.bf16.gmra.mrb[0].mxu0 %v1743
        %v3297 = vpop.f32.mrb[0].mxu0
        %v3298 = vadd.f32 0.0, %v3297
        %v3299 = vpop.f32.mrb[0].mxu0
        %v3300 = vpop.f32.mrb[0].mxu0
        %v3301 = vadd.f32 0.0, %v3300
        %v3302 = vpop.f32.mrb[0].mxu0
        %3303 = vmatprep.mubr.bf16.mxu0 %v1747
        %3304 = vmatmul.mubr.bf16.gmra.mrb[0].mxu0 %v1746
        %v3305 = vpop.f32.mrb[0].mxu0
        %v3306 = vadd.f32 0.0, %v3305
        %v3307 = vpop.f32.mrb[0].mxu0
        %v3308 = vpop.f32.mrb[0].mxu0
        %v3309 = vadd.f32 0.0, %v3308
        %v3310 = vpop.f32.mrb[0].mxu0
        %3311 = vmatprep.mubr.bf16.mxu0 %v1750
        %3312 = vmatmul.mubr.bf16.gmra.mrb[0].mxu0 %v1749
        %v3313 = vpop.f32.mrb[0].mxu0
        %v3314 = vadd.f32 0.0, %v3313
        %v3315 = vpop.f32.mrb[0].mxu0
        %v3316 = vpop.f32.mrb[0].mxu0
        %v3317 = vadd.f32 0.0, %v3316
        %v3318 = vpop.f32.mrb[0].mxu0
        %3319 = vmatprep.mubr.bf16.mxu0 %v1753
        %3320 = vmatmul.mubr.bf16.gmra.mrb[0].mxu0 %v1752
        %v3321 = vpop.f32.mrb[0].mxu0
        %v3322 = vadd.f32 0.0, %v3321
        %v3323 = vpop.f32.mrb[0].mxu0
        %v3324 = vpop.f32.mrb[0].mxu0
        %v3325 = vadd.f32 0.0, %v3324
        %v3326 = vpop.f32.mrb[0].mxu0
        %3327 = vmatprep.mubr.bf16.mxu0 %v1756
        %3328 = vmatmul.mubr.bf16.gmra.mrb[0].mxu0 %v1755
        %v3329 = vpop.f32.mrb[0].mxu0
        %v3330 = vadd.f32 0.0, %v3329
        %v3331 = vpop.f32.mrb[0].mxu0
        %v3332 = vpop.f32.mrb[0].mxu0
        %v3333 = vadd.f32 0.0, %v3332
        %v3334 = vpop.f32.mrb[0].mxu0
        %3335 = vmatprep.mubr.bf16.mxu0 %v1759
        %3336 = vmatmul.mubr.bf16.gmra.mrb[0].mxu0 %v1758
        %v3337 = vpop.f32.mrb[0].mxu0
        %v3338 = vadd.f32 0.0, %v3337
        %v3339 = vpop.f32.mrb[0].mxu0
        %v3340 = vpop.f32.mrb[0].mxu0
        %v3341 = vadd.f32 0.0, %v3340
        %v3342 = vpop.f32.mrb[0].mxu0
        %3343 = vmatprep.mubr.bf16.mxu0 %v1762
        %3344 = vmatmul.mubr.bf16.gmra.mrb[0].mxu0 %v1761
        %v3345 = vpop.f32.mrb[0].mxu0
        %v3346 = vadd.f32 0.0, %v3345
        %v3347 = vpop.f32.mrb[0].mxu0
        %v3348 = vpop.f32.mrb[0].mxu0
        %v3349 = vadd.f32 0.0, %v3348
        %v3350 = vpop.f32.mrb[0].mxu0
        %3351 = vmatprep.mubr.bf16.mxu0 %v1765
        %3352 = vmatmul.mubr.bf16.gmra.mrb[0].mxu0 %v1764
        %v3353 = vpop.f32.mrb[0].mxu0
        %v3354 = vadd.f32 0.0, %v3353
        %v3355 = vpop.f32.mrb[0].mxu0
        %v3356 = vpop.f32.mrb[0].mxu0
        %v3357 = vadd.f32 0.0, %v3356
        %v3358 = vpop.f32.mrb[0].mxu0
        %3359 = vmatprep.mubr.bf16.mxu0 %v1768
        %3360 = vmatmul.mubr.bf16.gmra.mrb[0].mxu0 %v1767
        %v3361 = vpop.f32.mrb[0].mxu0
        %v3362 = vadd.f32 0.0, %v3361
        %v3363 = vpop.f32.mrb[0].mxu0
        %v3364 = vpop.f32.mrb[0].mxu0
        %v3365 = vadd.f32 0.0, %v3364
        %v3366 = vpop.f32.mrb[0].mxu0
        %3367 = vmatprep.mubr.bf16.mxu0 %v1771
        %3368 = vmatmul.mubr.bf16.gmra.mrb[0].mxu0 %v1770
        %v3369 = vpop.f32.mrb[0].mxu0
        %v3370 = vadd.f32 0.0, %v3369
        %v3371 = vpop.f32.mrb[0].mxu0
        %v3372 = vpop.f32.mrb[0].mxu0
        %v3373 = vadd.f32 0.0, %v3372
        %v3374 = vpop.f32.mrb[0].mxu0
        %3375 = vmatprep.mubr.bf16.mxu0 %v1774
        %3376 = vmatmul.mubr.bf16.gmra.mrb[0].mxu0 %v1773
        %v3377 = vpop.f32.mrb[0].mxu0
        %v3378 = vadd.f32 0.0, %v3377
        %v3379 = vpop.f32.mrb[0].mxu0
        %v3380 = vpop.f32.mrb[0].mxu0
        %v3381 = vadd.f32 0.0, %v3380
        %v3382 = vpop.f32.mrb[0].mxu0
        %3383 = vmatprep.mubr.bf16.mxu0 %v1777
        %3384 = vmatmul.mubr.bf16.gmra.mrb[0].mxu0 %v1776
        %v3385 = vpop.f32.mrb[0].mxu0
        %v3386 = vadd.f32 0.0, %v3385
        %v3387 = vpop.f32.mrb[0].mxu0
        %v3388 = vpop.f32.mrb[0].mxu0
        %v3389 = vadd.f32 0.0, %v3388
        %v3390 = vpop.f32.mrb[0].mxu0
        %3391 = vmatprep.mubr.bf16.mxu0 %v1780
        %3392 = vmatmul.mubr.bf16.gmra.mrb[0].mxu0 %v1779
        %v3393 = vpop.f32.mrb[0].mxu0
        %v3394 = vadd.f32 0.0, %v3393
        %v3395 = vpop.f32.mrb[0].mxu0
        %v3396 = vpop.f32.mrb[0].mxu0
        %v3397 = vadd.f32 0.0, %v3396
        %v3398 = vpop.f32.mrb[0].mxu0
        %3399 = vmatprep.mubr.bf16.mxu0 %v1783
        %3400 = vmatmul.mubr.bf16.gmra.mrb[0].mxu0 %v1782
        %v3401 = vpop.f32.mrb[0].mxu0
        %v3402 = vadd.f32 0.0, %v3401
        %v3403 = vpop.f32.mrb[0].mxu0
        %v3404 = vpop.f32.mrb[0].mxu0
        %v3405 = vadd.f32 0.0, %v3404
        %v3406 = vpop.f32.mrb[0].mxu0
        %3407 = vmatprep.mubr.bf16.mxu0 %v1786
        %3408 = vmatmul.mubr.bf16.gmra.mrb[0].mxu0 %v1785
        %v3409 = vpop.f32.mrb[0].mxu0
        %v3410 = vadd.f32 0.0, %v3409
        %v3411 = vpop.f32.mrb[0].mxu0
        %v3412 = vpop.f32.mrb[0].mxu0
        %v3413 = vadd.f32 0.0, %v3412
        %v3414 = vpop.f32.mrb[0].mxu0
        %3415 = vmatprep.mubr.bf16.mxu0 %v1789
        %3416 = vmatmul.mubr.bf16.gmra.mrb[0].mxu0 %v1788
        %v3417 = vpop.f32.mrb[0].mxu0
        %v3418 = vadd.f32 0.0, %v3417
        %v3419 = vpop.f32.mrb[0].mxu0
        %v3420 = vpop.f32.mrb[0].mxu0
        %v3421 = vadd.f32 0.0, %v3420
        %v3422 = vpop.f32.mrb[0].mxu0
        %3423 = vmatprep.mubr.bf16.mxu0 %v1792
        %3424 = vmatmul.mubr.bf16.gmra.mrb[0].mxu0 %v1791
        %v3425 = vpop.f32.mrb[0].mxu0
        %v3426 = vadd.f32 0.0, %v3425
        %v3427 = vpop.f32.mrb[0].mxu0
        %v3428 = vpop.f32.mrb[0].mxu0
        %v3429 = vadd.f32 0.0, %v3428
        %v3430 = vpop.f32.mrb[0].mxu0
        %3431 = vmatprep.mubr.bf16.mxu0 %v1795
        %3432 = vmatmul.mubr.bf16.gmra.mrb[0].mxu0 %v1794
        %v3433 = vpop.f32.mrb[0].mxu0
        %v3434 = vadd.f32 0.0, %v3433
        %v3435 = vpop.f32.mrb[0].mxu0
        %v3436 = vpop.f32.mrb[0].mxu0
        %v3437 = vadd.f32 0.0, %v3436
        %v3438 = vpop.f32.mrb[0].mxu0
        %3439 = vmatprep.mubr.bf16.mxu0 %v1798
        %3440 = vmatmul.mubr.bf16.gmra.mrb[0].mxu0 %v1797
        %v3441 = vpop.f32.mrb[0].mxu0
        %v3442 = vadd.f32 0.0, %v3441
        %v3443 = vpop.f32.mrb[0].mxu0
        %v3444 = vpop.f32.mrb[0].mxu0
        %v3445 = vadd.f32 0.0, %v3444
        %v3446 = vpop.f32.mrb[0].mxu0
        %3447 = vmatprep.mubr.bf16.mxu0 %v1801
        %3448 = vmatmul.mubr.bf16.gmra.mrb[0].mxu0 %v1800
        %v3449 = vpop.f32.mrb[0].mxu0
        %v3450 = vadd.f32 0.0, %v3449
        %v3451 = vpop.f32.mrb[0].mxu0
        %v3452 = vpop.f32.mrb[0].mxu0
        %v3453 = vadd.f32 0.0, %v3452
        %v3454 = vpop.f32.mrb[0].mxu0
        %3455 = vmatprep.mubr.bf16.mxu0 %v1804
        %3456 = vmatmul.mubr.bf16.gmra.mrb[0].mxu0 %v1803
        %v3457 = vpop.f32.mrb[0].mxu0
        %v3458 = vadd.f32 0.0, %v3457
        %v3459 = vpop.f32.mrb[0].mxu0
        %v3460 = vpop.f32.mrb[0].mxu0
        %v3461 = vadd.f32 0.0, %v3460
        %v3462 = vpop.f32.mrb[0].mxu0
        %3463 = vmatprep.mubr.bf16.mxu0 %v1807
        %3464 = vmatmul.mubr.bf16.gmra.mrb[0].mxu0 %v1806
        %v3465 = vpop.f32.mrb[0].mxu0
        %v3466 = vadd.f32 0.0, %v3465
        %v3467 = vpop.f32.mrb[0].mxu0
        %v3468 = vpop.f32.mrb[0].mxu0
        %v3469 = vadd.f32 0.0, %v3468
        %v3470 = vpop.f32.mrb[0].mxu0
        %3471 = vmatprep.mubr.bf16.mxu0 %v1810
        %3472 = vmatmul.mubr.bf16.gmra.mrb[0].mxu0 %v1809
        %v3473 = vpop.f32.mrb[0].mxu0
        %v3474 = vadd.f32 0.0, %v3473
        %v3475 = vpop.f32.mrb[0].mxu0
        %v3476 = vpop.f32.mrb[0].mxu0
        %v3477 = vadd.f32 0.0, %v3476
        %v3478 = vpop.f32.mrb[0].mxu0
        %3479 = vmatprep.mubr.bf16.mxu0 %v1813
        %3480 = vmatmul.mubr.bf16.gmra.mrb[0].mxu0 %v1812
        %v3481 = vpop.f32.mrb[0].mxu0
        %v3482 = vadd.f32 0.0, %v3481
        %v3483 = vpop.f32.mrb[0].mxu0
        %v3484 = vpop.f32.mrb[0].mxu0
        %v3485 = vadd.f32 0.0, %v3484
        %v3486 = vpop.f32.mrb[0].mxu0
        %3487 = vmatprep.mubr.bf16.mxu0 %v1816
        %3488 = vmatmul.mubr.bf16.gmra.mrb[0].mxu0 %v1815
        %v3489 = vpop.f32.mrb[0].mxu0
        %v3490 = vadd.f32 0.0, %v3489
        %v3491 = vpop.f32.mrb[0].mxu0
        %v3492 = vpop.f32.mrb[0].mxu0
        %v3493 = vadd.f32 0.0, %v3492
        %v3494 = vpop.f32.mrb[0].mxu0
        %3495 = vmatprep.mubr.bf16.mxu0 %v1819
        %3496 = vmatmul.mubr.bf16.gmra.mrb[0].mxu0 %v1818
        %v3497 = vpop.f32.mrb[0].mxu0
        %v3498 = vadd.f32 0.0, %v3497
        %v3499 = vpop.f32.mrb[0].mxu0
        %v3500 = vpop.f32.mrb[0].mxu0
        %v3501 = vadd.f32 0.0, %v3500
        %v3502 = vpop.f32.mrb[0].mxu0
        %3503 = vmatprep.mubr.bf16.mxu0 %v1822
        %3504 = vmatmul.mubr.bf16.gmra.mrb[0].mxu0 %v1821
        %v3505 = vpop.f32.mrb[0].mxu0
        %v3506 = vadd.f32 0.0, %v3505
        %v3507 = vpop.f32.mrb[0].mxu0
        %v3508 = vpop.f32.mrb[0].mxu0
        %v3509 = vadd.f32 0.0, %v3508
        %v3510 = vpop.f32.mrb[0].mxu0
        %3511 = vmatprep.mubr.bf16.mxu0 %v1825
        %3512 = vmatmul.mubr.bf16.gmra.mrb[0].mxu0 %v1824
        %v3513 = vpop.f32.mrb[0].mxu0
        %v3514 = vadd.f32 0.0, %v3513
        %v3515 = vpop.f32.mrb[0].mxu0
        %v3516 = vpop.f32.mrb[0].mxu0
        %v3517 = vadd.f32 0.0, %v3516
        %v3518 = vpop.f32.mrb[0].mxu0
        %3519 = vmatprep.mubr.bf16.mxu0 %v1828
        %3520 = vmatmul.mubr.bf16.gmra.mrb[0].mxu0 %v1827
        %v3521 = vpop.f32.mrb[0].mxu0
        %v3522 = vadd.f32 0.0, %v3521
        %v3523 = vpop.f32.mrb[0].mxu0
        %v3524 = vpop.f32.mrb[0].mxu0
        %v3525 = vadd.f32 0.0, %v3524
        %v3526 = vpop.f32.mrb[0].mxu0
        %3527 = vmatprep.mubr.bf16.mxu0 %v1831
        %3528 = vmatmul.mubr.bf16.gmra.mrb[0].mxu0 %v1830
        %v3529 = vpop.f32.mrb[0].mxu0
        %v3530 = vadd.f32 0.0, %v3529
        %v3531 = vpop.f32.mrb[0].mxu0
        %v3532 = vpop.f32.mrb[0].mxu0
        %v3533 = vadd.f32 0.0, %v3532
        %v3534 = vpop.f32.mrb[0].mxu0
        %3535 = vmatprep.mubr.bf16.mxu0 %v1834
        %3536 = vmatmul.mubr.bf16.gmra.mrb[0].mxu0 %v1833
        %v3537 = vpop.f32.mrb[0].mxu0
        %v3538 = vadd.f32 0.0, %v3537
        %v3539 = vpop.f32.mrb[0].mxu0
        %v3540 = vpop.f32.mrb[0].mxu0
        %v3541 = vadd.f32 0.0, %v3540
        %v3542 = vpop.f32.mrb[0].mxu0
        %3543 = vmatprep.mubr.bf16.mxu0 %v1837
        %3544 = vmatmul.mubr.bf16.gmra.mrb[0].mxu0 %v1836
        %v3545 = vpop.f32.mrb[0].mxu0
        %v3546 = vadd.f32 0.0, %v3545
        %v3547 = vpop.f32.mrb[0].mxu0
        %v3548 = vpop.f32.mrb[0].mxu0
        %v3549 = vadd.f32 0.0, %v3548
        %v3550 = vpop.f32.mrb[0].mxu0
        %3551 = vmatprep.mubr.bf16.mxu0 %v1840
        %3552 = vmatmul.mubr.bf16.gmra.mrb[0].mxu0 %v1839
        %v3553 = vpop.f32.mrb[0].mxu0
        %v3554 = vadd.f32 0.0, %v3553
        %v3555 = vpop.f32.mrb[0].mxu0
        %v3556 = vpop.f32.mrb[0].mxu0
        %v3557 = vadd.f32 0.0, %v3556
        %v3558 = vpop.f32.mrb[0].mxu0
        %3559 = vmatprep.mubr.bf16.mxu0 %v1843
        %3560 = vmatmul.mubr.bf16.gmra.mrb[0].mxu0 %v1842
        %v3561 = vpop.f32.mrb[0].mxu0
        %v3562 = vadd.f32 0.0, %v3561
        %v3563 = vpop.f32.mrb[0].mxu0
        %v3564 = vpop.f32.mrb[0].mxu0
        %v3565 = vadd.f32 0.0, %v3564
        %v3566 = vpop.f32.mrb[0].mxu0
        %3567 = vdwg.mxu0
        %3568 = vmatprep.subr.bf16.mxu0 0
        %3569 = vmatpush1.bf16.msra.mxu0 %v2255
        %3570 = vmatprep.subr.bf16.mxu0 0
        %3571 = vmatpush1.bf16.msra.mxu0 %v2258
        %3572 = vmatprep.subr.bf16.mxu0 0
        %3573 = vmatpush1.bf16.msra.mxu0 %v2261
        %3574 = vmatprep.subr.bf16.mxu0 0
        %3575 = vmatpush1.bf16.msra.mxu0 %v2264
        %3576 = vmatprep.subr.bf16.mxu0 0
        %3577 = vmatpush1.bf16.msra.mxu0 %v2267
        %3578 = vmatprep.subr.bf16.mxu0 0
        %3579 = vmatpush1.bf16.msra.mxu0 %v2270
        %3580 = vmatprep.subr.bf16.mxu0 0
        %3581 = vmatpush1.bf16.msra.mxu0 %v2273
        %3582 = vmatprep.subr.bf16.mxu0 0
        %3583 = vmatpush1.bf16.msra.mxu0 %v2276
        %3584 = vmatprep.subr.bf16.mxu0 0
        %3585 = vmatpush1.bf16.msra.mxu0 0
        %3586 = vmatprep.subr.bf16.mxu0 0
        %3587 = vmatpush1.bf16.msra.mxu0 0
        %3588 = vmatprep.subr.bf16.mxu0 0
        %3589 = vmatpush1.bf16.msra.mxu0 0
        %3590 = vmatprep.subr.bf16.mxu0 0
        %3591 = vmatpush1.bf16.msra.mxu0 0
        %3592 = vmatprep.subr.bf16.mxu0 0
        %3593 = vmatpush1.bf16.msra.mxu0 0
        %3594 = vmatprep.subr.bf16.mxu0 0
        %3595 = vmatpush1.bf16.msra.mxu0 0
        %3596 = vmatprep.subr.bf16.mxu0 0
        %3597 = vmatpush1.bf16.msra.mxu0 0
        %3598 = vmatprep.subr.bf16.mxu0 0
        %3599 = vmatpush1.bf16.msra.mxu0 0
        %3600 = vmatprep.mubr.bf16.mxu0 0
        %3601 = vmatmul.mubr.bf16.gmra.mrb[0].mxu0 %v1727
        %v3602 = vpop.f32.mrb[0].mxu0
        %v3603 = vadd.f32 %v3250, %v3602
        %v3604 = vpop.f32.mrb[0].mxu0
        %v3605 = vpop.f32.mrb[0].mxu0
        %v3606 = vadd.f32 %v3253, %v3605
        %v3607 = vpop.f32.mrb[0].mxu0
        %3608 = vmatprep.mubr.bf16.mxu0 0
        %3609 = vmatmul.mubr.bf16.gmra.mrb[0].mxu0 %v1730
        %v3610 = vpop.f32.mrb[0].mxu0
        %v3611 = vadd.f32 %v3258, %v3610
        %v3612 = vpop.f32.mrb[0].mxu0
        %v3613 = vpop.f32.mrb[0].mxu0
        %v3614 = vadd.f32 %v3261, %v3613
        %v3615 = vpop.f32.mrb[0].mxu0
        %3616 = vmatprep.mubr.bf16.mxu0 0
        %3617 = vmatmul.mubr.bf16.gmra.mrb[0].mxu0 %v1733
        %v3618 = vpop.f32.mrb[0].mxu0
        %v3619 = vadd.f32 %v3266, %v3618
        %v3620 = vpop.f32.mrb[0].mxu0
        %v3621 = vpop.f32.mrb[0].mxu0
        %v3622 = vadd.f32 %v3269, %v3621
        %v3623 = vpop.f32.mrb[0].mxu0
        %3624 = vmatprep.mubr.bf16.mxu0 0
        %3625 = vmatmul.mubr.bf16.gmra.mrb[0].mxu0 %v1736
        %v3626 = vpop.f32.mrb[0].mxu0
        %v3627 = vadd.f32 %v3274, %v3626
        %v3628 = vpop.f32.mrb[0].mxu0
        %v3629 = vpop.f32.mrb[0].mxu0
        %v3630 = vadd.f32 %v3277, %v3629
        %v3631 = vpop.f32.mrb[0].mxu0
        %3632 = vmatprep.mubr.bf16.mxu0 0
        %3633 = vmatmul.mubr.bf16.gmra.mrb[0].mxu0 %v1739
        %v3634 = vpop.f32.mrb[0].mxu0
        %v3635 = vadd.f32 %v3282, %v3634
        %v3636 = vpop.f32.mrb[0].mxu0
        %v3637 = vpop.f32.mrb[0].mxu0
        %v3638 = vadd.f32 %v3285, %v3637
        %v3639 = vpop.f32.mrb[0].mxu0
        %3640 = vmatprep.mubr.bf16.mxu0 0
        %3641 = vmatmul.mubr.bf16.gmra.mrb[0].mxu0 %v1742
        %v3642 = vpop.f32.mrb[0].mxu0
        %v3643 = vadd.f32 %v3290, %v3642
        %v3644 = vpop.f32.mrb[0].mxu0
        %v3645 = vpop.f32.mrb[0].mxu0
        %v3646 = vadd.f32 %v3293, %v3645
        %v3647 = vpop.f32.mrb[0].mxu0
        %3648 = vmatprep.mubr.bf16.mxu0 0
        %3649 = vmatmul.mubr.bf16.gmra.mrb[0].mxu0 %v1745
        %v3650 = vpop.f32.mrb[0].mxu0
        %v3651 = vadd.f32 %v3298, %v3650
        %v3652 = vpop.f32.mrb[0].mxu0
        %v3653 = vpop.f32.mrb[0].mxu0
        %v3654 = vadd.f32 %v3301, %v3653
        %v3655 = vpop.f32.mrb[0].mxu0
        %3656 = vmatprep.mubr.bf16.mxu0 0
        %3657 = vmatmul.mubr.bf16.gmra.mrb[0].mxu0 %v1748
        %v3658 = vpop.f32.mrb[0].mxu0
        %v3659 = vadd.f32 %v3306, %v3658
        %v3660 = vpop.f32.mrb[0].mxu0
        %v3661 = vpop.f32.mrb[0].mxu0
        %v3662 = vadd.f32 %v3309, %v3661
        %v3663 = vpop.f32.mrb[0].mxu0
        %3664 = vmatprep.mubr.bf16.mxu0 0
        %3665 = vmatmul.mubr.bf16.gmra.mrb[0].mxu0 %v1751
        %v3666 = vpop.f32.mrb[0].mxu0
        %v3667 = vadd.f32 %v3314, %v3666
        %v3668 = vpop.f32.mrb[0].mxu0
        %v3669 = vpop.f32.mrb[0].mxu0
        %v3670 = vadd.f32 %v3317, %v3669
        %v3671 = vpop.f32.mrb[0].mxu0
        %3672 = vmatprep.mubr.bf16.mxu0 0
        %3673 = vmatmul.mubr.bf16.gmra.mrb[0].mxu0 %v1754
        %v3674 = vpop.f32.mrb[0].mxu0
        %v3675 = vadd.f32 %v3322, %v3674
        %v3676 = vpop.f32.mrb[0].mxu0
        %v3677 = vpop.f32.mrb[0].mxu0
        %v3678 = vadd.f32 %v3325, %v3677
        %v3679 = vpop.f32.mrb[0].mxu0
        %3680 = vmatprep.mubr.bf16.mxu0 0
        %3681 = vmatmul.mubr.bf16.gmra.mrb[0].mxu0 %v1757
        %v3682 = vpop.f32.mrb[0].mxu0
        %v3683 = vadd.f32 %v3330, %v3682
        %v3684 = vpop.f32.mrb[0].mxu0
        %v3685 = vpop.f32.mrb[0].mxu0
        %v3686 = vadd.f32 %v3333, %v3685
        %v3687 = vpop.f32.mrb[0].mxu0
        %3688 = vmatprep.mubr.bf16.mxu0 0
        %3689 = vmatmul.mubr.bf16.gmra.mrb[0].mxu0 %v1760
        %v3690 = vpop.f32.mrb[0].mxu0
        %v3691 = vadd.f32 %v3338, %v3690
        %v3692 = vpop.f32.mrb[0].mxu0
        %v3693 = vpop.f32.mrb[0].mxu0
        %v3694 = vadd.f32 %v3341, %v3693
        %v3695 = vpop.f32.mrb[0].mxu0
        %3696 = vmatprep.mubr.bf16.mxu0 0
        %3697 = vmatmul.mubr.bf16.gmra.mrb[0].mxu0 %v1763
        %v3698 = vpop.f32.mrb[0].mxu0
        %v3699 = vadd.f32 %v3346, %v3698
        %v3700 = vpop.f32.mrb[0].mxu0
        %v3701 = vpop.f32.mrb[0].mxu0
        %v3702 = vadd.f32 %v3349, %v3701
        %v3703 = vpop.f32.mrb[0].mxu0
        %3704 = vmatprep.mubr.bf16.mxu0 0
        %3705 = vmatmul.mubr.bf16.gmra.mrb[0].mxu0 %v1766
        %v3706 = vpop.f32.mrb[0].mxu0
        %v3707 = vadd.f32 %v3354, %v3706
        %v3708 = vpop.f32.mrb[0].mxu0
        %v3709 = vpop.f32.mrb[0].mxu0
        %v3710 = vadd.f32 %v3357, %v3709
        %v3711 = vpop.f32.mrb[0].mxu0
        %3712 = vmatprep.mubr.bf16.mxu0 0
        %3713 = vmatmul.mubr.bf16.gmra.mrb[0].mxu0 %v1769
        %v3714 = vpop.f32.mrb[0].mxu0
        %v3715 = vadd.f32 %v3362, %v3714
        %v3716 = vpop.f32.mrb[0].mxu0
        %v3717 = vpop.f32.mrb[0].mxu0
        %v3718 = vadd.f32 %v3365, %v3717
        %v3719 = vpop.f32.mrb[0].mxu0
        %3720 = vmatprep.mubr.bf16.mxu0 0
        %3721 = vmatmul.mubr.bf16.gmra.mrb[0].mxu0 %v1772
        %v3722 = vpop.f32.mrb[0].mxu0
        %v3723 = vadd.f32 %v3370, %v3722
        %v3724 = vpop.f32.mrb[0].mxu0
        %v3725 = vpop.f32.mrb[0].mxu0
        %v3726 = vadd.f32 %v3373, %v3725
        %v3727 = vpop.f32.mrb[0].mxu0
        %3728 = vmatprep.mubr.bf16.mxu0 0
        %3729 = vmatmul.mubr.bf16.gmra.mrb[0].mxu0 %v1775
        %v3730 = vpop.f32.mrb[0].mxu0
        %v3731 = vadd.f32 %v3378, %v3730
        %v3732 = vpop.f32.mrb[0].mxu0
        %v3733 = vpop.f32.mrb[0].mxu0
        %v3734 = vadd.f32 %v3381, %v3733
        %v3735 = vpop.f32.mrb[0].mxu0
        %3736 = vmatprep.mubr.bf16.mxu0 0
        %3737 = vmatmul.mubr.bf16.gmra.mrb[0].mxu0 %v1778
        %v3738 = vpop.f32.mrb[0].mxu0
        %v3739 = vadd.f32 %v3386, %v3738
        %v3740 = vpop.f32.mrb[0].mxu0
        %v3741 = vpop.f32.mrb[0].mxu0
        %v3742 = vadd.f32 %v3389, %v3741
        %v3743 = vpop.f32.mrb[0].mxu0
        %3744 = vmatprep.mubr.bf16.mxu0 0
        %3745 = vmatmul.mubr.bf16.gmra.mrb[0].mxu0 %v1781
        %v3746 = vpop.f32.mrb[0].mxu0
        %v3747 = vadd.f32 %v3394, %v3746
        %v3748 = vpop.f32.mrb[0].mxu0
        %v3749 = vpop.f32.mrb[0].mxu0
        %v3750 = vadd.f32 %v3397, %v3749
        %v3751 = vpop.f32.mrb[0].mxu0
        %3752 = vmatprep.mubr.bf16.mxu0 0
        %3753 = vmatmul.mubr.bf16.gmra.mrb[0].mxu0 %v1784
        %v3754 = vpop.f32.mrb[0].mxu0
        %v3755 = vadd.f32 %v3402, %v3754
        %v3756 = vpop.f32.mrb[0].mxu0
        %v3757 = vpop.f32.mrb[0].mxu0
        %v3758 = vadd.f32 %v3405, %v3757
        %v3759 = vpop.f32.mrb[0].mxu0
        %3760 = vmatprep.mubr.bf16.mxu0 0
        %3761 = vmatmul.mubr.bf16.gmra.mrb[0].mxu0 %v1787
        %v3762 = vpop.f32.mrb[0].mxu0
        %v3763 = vadd.f32 %v3410, %v3762
        %v3764 = vpop.f32.mrb[0].mxu0
        %v3765 = vpop.f32.mrb[0].mxu0
        %v3766 = vadd.f32 %v3413, %v3765
        %v3767 = vpop.f32.mrb[0].mxu0
        %3768 = vmatprep.mubr.bf16.mxu0 0
        %3769 = vmatmul.mubr.bf16.gmra.mrb[0].mxu0 %v1790
        %v3770 = vpop.f32.mrb[0].mxu0
        %v3771 = vadd.f32 %v3418, %v3770
        %v3772 = vpop.f32.mrb[0].mxu0
        %v3773 = vpop.f32.mrb[0].mxu0
        %v3774 = vadd.f32 %v3421, %v3773
        %v3775 = vpop.f32.mrb[0].mxu0
        %3776 = vmatprep.mubr.bf16.mxu0 0
        %3777 = vmatmul.mubr.bf16.gmra.mrb[0].mxu0 %v1793
        %v3778 = vpop.f32.mrb[0].mxu0
        %v3779 = vadd.f32 %v3426, %v3778
        %v3780 = vpop.f32.mrb[0].mxu0
        %v3781 = vpop.f32.mrb[0].mxu0
        %v3782 = vadd.f32 %v3429, %v3781
        %v3783 = vpop.f32.mrb[0].mxu0
        %3784 = vmatprep.mubr.bf16.mxu0 0
        %3785 = vmatmul.mubr.bf16.gmra.mrb[0].mxu0 %v1796
        %v3786 = vpop.f32.mrb[0].mxu0
        %v3787 = vadd.f32 %v3434, %v3786
        %v3788 = vpop.f32.mrb[0].mxu0
        %v3789 = vpop.f32.mrb[0].mxu0
        %v3790 = vadd.f32 %v3437, %v3789
        %v3791 = vpop.f32.mrb[0].mxu0
        %3792 = vmatprep.mubr.bf16.mxu0 0
        %3793 = vmatmul.mubr.bf16.gmra.mrb[0].mxu0 %v1799
        %v3794 = vpop.f32.mrb[0].mxu0
        %v3795 = vadd.f32 %v3442, %v3794
        %v3796 = vpop.f32.mrb[0].mxu0
        %v3797 = vpop.f32.mrb[0].mxu0
        %v3798 = vadd.f32 %v3445, %v3797
        %v3799 = vpop.f32.mrb[0].mxu0
        %3800 = vmatprep.mubr.bf16.mxu0 0
        %3801 = vmatmul.mubr.bf16.gmra.mrb[0].mxu0 %v1802
        %v3802 = vpop.f32.mrb[0].mxu0
        %v3803 = vadd.f32 %v3450, %v3802
        %v3804 = vpop.f32.mrb[0].mxu0
        %v3805 = vpop.f32.mrb[0].mxu0
        %v3806 = vadd.f32 %v3453, %v3805
        %v3807 = vpop.f32.mrb[0].mxu0
        %3808 = vmatprep.mubr.bf16.mxu0 0
        %3809 = vmatmul.mubr.bf16.gmra.mrb[0].mxu0 %v1805
        %v3810 = vpop.f32.mrb[0].mxu0
        %v3811 = vadd.f32 %v3458, %v3810
        %v3812 = vpop.f32.mrb[0].mxu0
        %v3813 = vpop.f32.mrb[0].mxu0
        %v3814 = vadd.f32 %v3461, %v3813
        %v3815 = vpop.f32.mrb[0].mxu0
        %3816 = vmatprep.mubr.bf16.mxu0 0
        %3817 = vmatmul.mubr.bf16.gmra.mrb[0].mxu0 %v1808
        %v3818 = vpop.f32.mrb[0].mxu0
        %v3819 = vadd.f32 %v3466, %v3818
        %v3820 = vpop.f32.mrb[0].mxu0
        %v3821 = vpop.f32.mrb[0].mxu0
        %v3822 = vadd.f32 %v3469, %v3821
        %v3823 = vpop.f32.mrb[0].mxu0
        %3824 = vmatprep.mubr.bf16.mxu0 0
        %3825 = vmatmul.mubr.bf16.gmra.mrb[0].mxu0 %v1811
        %v3826 = vpop.f32.mrb[0].mxu0
        %v3827 = vadd.f32 %v3474, %v3826
        %v3828 = vpop.f32.mrb[0].mxu0
        %v3829 = vpop.f32.mrb[0].mxu0
        %v3830 = vadd.f32 %v3477, %v3829
        %v3831 = vpop.f32.mrb[0].mxu0
        %3832 = vmatprep.mubr.bf16.mxu0 0
        %3833 = vmatmul.mubr.bf16.gmra.mrb[0].mxu0 %v1814
        %v3834 = vpop.f32.mrb[0].mxu0
        %v3835 = vadd.f32 %v3482, %v3834
        %v3836 = vpop.f32.mrb[0].mxu0
        %v3837 = vpop.f32.mrb[0].mxu0
        %v3838 = vadd.f32 %v3485, %v3837
        %v3839 = vpop.f32.mrb[0].mxu0
        %3840 = vmatprep.mubr.bf16.mxu0 0
        %3841 = vmatmul.mubr.bf16.gmra.mrb[0].mxu0 %v1817
        %v3842 = vpop.f32.mrb[0].mxu0
        %v3843 = vadd.f32 %v3490, %v3842
        %v3844 = vpop.f32.mrb[0].mxu0
        %v3845 = vpop.f32.mrb[0].mxu0
        %v3846 = vadd.f32 %v3493, %v3845
        %v3847 = vpop.f32.mrb[0].mxu0
        %3848 = vmatprep.mubr.bf16.mxu0 0
        %3849 = vmatmul.mubr.bf16.gmra.mrb[0].mxu0 %v1820
        %v3850 = vpop.f32.mrb[0].mxu0
        %v3851 = vadd.f32 %v3498, %v3850
        %v3852 = vpop.f32.mrb[0].mxu0
        %v3853 = vpop.f32.mrb[0].mxu0
        %v3854 = vadd.f32 %v3501, %v3853
        %v3855 = vpop.f32.mrb[0].mxu0
        %3856 = vmatprep.mubr.bf16.mxu0 0
        %3857 = vmatmul.mubr.bf16.gmra.mrb[0].mxu0 %v1823
        %v3858 = vpop.f32.mrb[0].mxu0
        %v3859 = vadd.f32 %v3506, %v3858
        %v3860 = vpop.f32.mrb[0].mxu0
        %v3861 = vpop.f32.mrb[0].mxu0
        %v3862 = vadd.f32 %v3509, %v3861
        %v3863 = vpop.f32.mrb[0].mxu0
        %3864 = vmatprep.mubr.bf16.mxu0 0
        %3865 = vmatmul.mubr.bf16.gmra.mrb[0].mxu0 %v1826
        %v3866 = vpop.f32.mrb[0].mxu0
        %v3867 = vadd.f32 %v3514, %v3866
        %v3868 = vpop.f32.mrb[0].mxu0
        %v3869 = vpop.f32.mrb[0].mxu0
        %v3870 = vadd.f32 %v3517, %v3869
        %v3871 = vpop.f32.mrb[0].mxu0
        %3872 = vmatprep.mubr.bf16.mxu0 0
        %3873 = vmatmul.mubr.bf16.gmra.mrb[0].mxu0 %v1829
        %v3874 = vpop.f32.mrb[0].mxu0
        %v3875 = vadd.f32 %v3522, %v3874
        %v3876 = vpop.f32.mrb[0].mxu0
        %v3877 = vpop.f32.mrb[0].mxu0
        %v3878 = vadd.f32 %v3525, %v3877
        %v3879 = vpop.f32.mrb[0].mxu0
        %3880 = vmatprep.mubr.bf16.mxu0 0
        %3881 = vmatmul.mubr.bf16.gmra.mrb[0].mxu0 %v1832
        %v3882 = vpop.f32.mrb[0].mxu0
        %v3883 = vadd.f32 %v3530, %v3882
        %v3884 = vpop.f32.mrb[0].mxu0
        %v3885 = vpop.f32.mrb[0].mxu0
        %v3886 = vadd.f32 %v3533, %v3885
        %v3887 = vpop.f32.mrb[0].mxu0
        %3888 = vmatprep.mubr.bf16.mxu0 0
        %3889 = vmatmul.mubr.bf16.gmra.mrb[0].mxu0 %v1835
        %v3890 = vpop.f32.mrb[0].mxu0
        %v3891 = vadd.f32 %v3538, %v3890
        %v3892 = vpop.f32.mrb[0].mxu0
        %v3893 = vpop.f32.mrb[0].mxu0
        %v3894 = vadd.f32 %v3541, %v3893
        %v3895 = vpop.f32.mrb[0].mxu0
        %3896 = vmatprep.mubr.bf16.mxu0 0
        %3897 = vmatmul.mubr.bf16.gmra.mrb[0].mxu0 %v1838
        %v3898 = vpop.f32.mrb[0].mxu0
        %v3899 = vadd.f32 %v3546, %v3898
        %v3900 = vpop.f32.mrb[0].mxu0
        %v3901 = vpop.f32.mrb[0].mxu0
        %v3902 = vadd.f32 %v3549, %v3901
        %v3903 = vpop.f32.mrb[0].mxu0
        %3904 = vmatprep.mubr.bf16.mxu0 0
        %3905 = vmatmul.mubr.bf16.gmra.mrb[0].mxu0 %v1841
        %v3906 = vpop.f32.mrb[0].mxu0
        %v3907 = vadd.f32 %v3554, %v3906
        %v3908 = vpop.f32.mrb[0].mxu0
        %v3909 = vpop.f32.mrb[0].mxu0
        %v3910 = vadd.f32 %v3557, %v3909
        %v3911 = vpop.f32.mrb[0].mxu0
        %3912 = vmatprep.mubr.bf16.mxu0 0
        %3913 = vmatmul.mubr.bf16.gmra.mrb[0].mxu0 %v1844
        %v3914 = vpop.f32.mrb[0].mxu0
        %v3915 = vadd.f32 %v3562, %v3914
        %v3916 = vpop.f32.mrb[0].mxu0
        %v3917 = vpop.f32.mrb[0].mxu0
        %v3918 = vadd.f32 %v3565, %v3917
        %v3919 = vpop.f32.mrb[0].mxu0
        %3920 = vdwg.mxu0
        %v3921 = vadd.f32 %v829, %v2817
        %v3922 = vadd.f32 %v830, %v2819
        %v3923 = vadd.f32 %v831, %v3603
        %v3924 = vadd.f32 %v832, %v2821
        %v3925 = vadd.f32 %v833, %v2823
        %v3926 = vadd.f32 %v834, %v3606
        %v3927 = vadd.f32 %v835, %v2827
        %v3928 = vadd.f32 %v836, %v2829
        %v3929 = vadd.f32 %v837, %v3611
        %v3930 = vadd.f32 %v838, %v2831
        %v3931 = vadd.f32 %v839, %v2833
        %v3932 = vadd.f32 %v840, %v3614
        %v3933 = vadd.f32 %v841, %v2837
        %v3934 = vadd.f32 %v842, %v2839
        %v3935 = vadd.f32 %v843, %v3619
        %v3936 = vadd.f32 %v844, %v2841
        %v3937 = vadd.f32 %v845, %v2843
        %v3938 = vadd.f32 %v846, %v3622
        %v3939 = vadd.f32 %v847, %v2847
        %v3940 = vadd.f32 %v848, %v2849
        %v3941 = vadd.f32 %v849, %v3627
        %v3942 = vadd.f32 %v850, %v2851
        %v3943 = vadd.f32 %v851, %v2853
        %v3944 = vadd.f32 %v852, %v3630
        %v3945 = vadd.f32 %v853, %v2857
        %v3946 = vadd.f32 %v854, %v2859
        %v3947 = vadd.f32 %v855, %v3635
        %v3948 = vadd.f32 %v856, %v2861
        %v3949 = vadd.f32 %v857, %v2863
        %v3950 = vadd.f32 %v858, %v3638
        %v3951 = vadd.f32 %v859, %v2867
        %v3952 = vadd.f32 %v860, %v2869
        %v3953 = vadd.f32 %v861, %v3643
        %v3954 = vadd.f32 %v862, %v2871
        %v3955 = vadd.f32 %v863, %v2873
        %v3956 = vadd.f32 %v864, %v3646
        %v3957 = vadd.f32 %v865, %v2877
        %v3958 = vadd.f32 %v866, %v2879
        %v3959 = vadd.f32 %v867, %v3651
        %v3960 = vadd.f32 %v868, %v2881
        %v3961 = vadd.f32 %v869, %v2883
        %v3962 = vadd.f32 %v870, %v3654
        %v3963 = vadd.f32 %v871, %v2887
        %v3964 = vadd.f32 %v872, %v2889
        %v3965 = vadd.f32 %v873, %v3659
        %v3966 = vadd.f32 %v874, %v2891
        %v3967 = vadd.f32 %v875, %v2893
        %v3968 = vadd.f32 %v876, %v3662
        %v3969 = vadd.f32 %v877, %v2897
        %v3970 = vadd.f32 %v878, %v2899
        %v3971 = vadd.f32 %v879, %v3667
        %v3972 = vadd.f32 %v880, %v2901
        %v3973 = vadd.f32 %v881, %v2903
        %v3974 = vadd.f32 %v882, %v3670
        %v3975 = vadd.f32 %v883, %v2907
        %v3976 = vadd.f32 %v884, %v2909
        %v3977 = vadd.f32 %v885, %v3675
        %v3978 = vadd.f32 %v886, %v2911
        %v3979 = vadd.f32 %v887, %v2913
        %v3980 = vadd.f32 %v888, %v3678
        %v3981 = vadd.f32 %v889, %v2917
        %v3982 = vadd.f32 %v890, %v2919
        %v3983 = vadd.f32 %v891, %v3683
        %v3984 = vadd.f32 %v892, %v2921
        %v3985 = vadd.f32 %v893, %v2923
        %v3986 = vadd.f32 %v894, %v3686
        %v3987 = vadd.f32 %v895, %v2927
        %v3988 = vadd.f32 %v896, %v2929
        %v3989 = vadd.f32 %v897, %v3691
        %v3990 = vadd.f32 %v898, %v2931
        %v3991 = vadd.f32 %v899, %v2933
        %v3992 = vadd.f32 %v900, %v3694
        %v3993 = vadd.f32 %v901, %v2937
        %v3994 = vadd.f32 %v902, %v2939
        %v3995 = vadd.f32 %v903, %v3699
        %v3996 = vadd.f32 %v904, %v2941
        %v3997 = vadd.f32 %v905, %v2943
        %v3998 = vadd.f32 %v906, %v3702
        %v3999 = vadd.f32 %v907, %v2947
        %v4000 = vadd.f32 %v908, %v2949
        %v4001 = vadd.f32 %v909, %v3707
        %v4002 = vadd.f32 %v910, %v2951
        %v4003 = vadd.f32 %v911, %v2953
        %v4004 = vadd.f32 %v912, %v3710
        %v4005 = vadd.f32 %v913, %v2957
        %v4006 = vadd.f32 %v914, %v2959
        %v4007 = vadd.f32 %v915, %v3715
        %v4008 = vadd.f32 %v916, %v2961
        %v4009 = vadd.f32 %v917, %v2963
        %v4010 = vadd.f32 %v918, %v3718
        %v4011 = vadd.f32 %v919, %v2967
        %v4012 = vadd.f32 %v920, %v2969
        %v4013 = vadd.f32 %v921, %v3723
        %v4014 = vadd.f32 %v922, %v2971
        %v4015 = vadd.f32 %v923, %v2973
        %v4016 = vadd.f32 %v924, %v3726
        %v4017 = vadd.f32 %v925, %v2977
        %v4018 = vadd.f32 %v926, %v2979
        %v4019 = vadd.f32 %v927, %v3731
        %v4020 = vadd.f32 %v928, %v2981
        %v4021 = vadd.f32 %v929, %v2983
        %v4022 = vadd.f32 %v930, %v3734
        %v4023 = vadd.f32 %v931, %v2987
        %v4024 = vadd.f32 %v932, %v2989
        %v4025 = vadd.f32 %v933, %v3739
        %v4026 = vadd.f32 %v934, %v2991
        %v4027 = vadd.f32 %v935, %v2993
        %v4028 = vadd.f32 %v936, %v3742
        %v4029 = vadd.f32 %v937, %v2997
        %v4030 = vadd.f32 %v938, %v2999
        %v4031 = vadd.f32 %v939, %v3747
        %v4032 = vadd.f32 %v940, %v3001
        %v4033 = vadd.f32 %v941, %v3003
        %v4034 = vadd.f32 %v942, %v3750
        %v4035 = vadd.f32 %v943, %v3007
        %v4036 = vadd.f32 %v944, %v3009
        %v4037 = vadd.f32 %v945, %v3755
        %v4038 = vadd.f32 %v946, %v3011
        %v4039 = vadd.f32 %v947, %v3013
        %v4040 = vadd.f32 %v948, %v3758
        %v4041 = vadd.f32 %v949, %v3017
        %v4042 = vadd.f32 %v950, %v3019
        %v4043 = vadd.f32 %v951, %v3763
        %v4044 = vadd.f32 %v952, %v3021
        %v4045 = vadd.f32 %v953, %v3023
        %v4046 = vadd.f32 %v954, %v3766
        %v4047 = vadd.f32 %v955, %v3027
        %v4048 = vadd.f32 %v956, %v3029
        %v4049 = vadd.f32 %v957, %v3771
        %v4050 = vadd.f32 %v958, %v3031
        %v4051 = vadd.f32 %v959, %v3033
        %v4052 = vadd.f32 %v960, %v3774
        %v4053 = vadd.f32 %v961, %v3037
        %v4054 = vadd.f32 %v962, %v3039
        %v4055 = vadd.f32 %v963, %v3779
        %v4056 = vadd.f32 %v964, %v3041
        %v4057 = vadd.f32 %v965, %v3043
        %v4058 = vadd.f32 %v966, %v3782
        %v4059 = vadd.f32 %v967, %v3047
        %v4060 = vadd.f32 %v968, %v3049
        %v4061 = vadd.f32 %v969, %v3787
        %v4062 = vadd.f32 %v970, %v3051
        %v4063 = vadd.f32 %v971, %v3053
        %v4064 = vadd.f32 %v972, %v3790
        %v4065 = vadd.f32 %v973, %v3057
        %v4066 = vadd.f32 %v974, %v3059
        %v4067 = vadd.f32 %v975, %v3795
        %v4068 = vadd.f32 %v976, %v3061
        %v4069 = vadd.f32 %v977, %v3063
        %v4070 = vadd.f32 %v978, %v3798
        %v4071 = vadd.f32 %v979, %v3067
        %v4072 = vadd.f32 %v980, %v3069
        %v4073 = vadd.f32 %v981, %v3803
        %v4074 = vadd.f32 %v982, %v3071
        %v4075 = vadd.f32 %v983, %v3073
        %v4076 = vadd.f32 %v984, %v3806
        %v4077 = vadd.f32 %v985, %v3077
        %v4078 = vadd.f32 %v986, %v3079
        %v4079 = vadd.f32 %v987, %v3811
        %v4080 = vadd.f32 %v988, %v3081
        %v4081 = vadd.f32 %v989, %v3083
        %v4082 = vadd.f32 %v990, %v3814
        %v4083 = vadd.f32 %v991, %v3087
        %v4084 = vadd.f32 %v992, %v3089
        %v4085 = vadd.f32 %v993, %v3819
        %v4086 = vadd.f32 %v994, %v3091
        %v4087 = vadd.f32 %v995, %v3093
        %v4088 = vadd.f32 %v996, %v3822
        %v4089 = vadd.f32 %v997, %v3097
        %v4090 = vadd.f32 %v998, %v3099
        %v4091 = vadd.f32 %v999, %v3827
        %v4092 = vadd.f32 %v1000, %v3101
        %v4093 = vadd.f32 %v1001, %v3103
        %v4094 = vadd.f32 %v1002, %v3830
        %v4095 = vadd.f32 %v1003, %v3107
        %v4096 = vadd.f32 %v1004, %v3109
        %v4097 = vadd.f32 %v1005, %v3835
        %v4098 = vadd.f32 %v1006, %v3111
        %v4099 = vadd.f32 %v1007, %v3113
        %v4100 = vadd.f32 %v1008, %v3838
        %v4101 = vadd.f32 %v1009, %v3117
        %v4102 = vadd.f32 %v1010, %v3119
        %v4103 = vadd.f32 %v1011, %v3843
        %v4104 = vadd.f32 %v1012, %v3121
        %v4105 = vadd.f32 %v1013, %v3123
        %v4106 = vadd.f32 %v1014, %v3846
        %v4107 = vadd.f32 %v1015, %v3127
        %v4108 = vadd.f32 %v1016, %v3129
        %v4109 = vadd.f32 %v1017, %v3851
        %v4110 = vadd.f32 %v1018, %v3131
        %v4111 = vadd.f32 %v1019, %v3133
        %v4112 = vadd.f32 %v1020, %v3854
        %v4113 = vadd.f32 %v1021, %v3137
        %v4114 = vadd.f32 %v1022, %v3139
        %v4115 = vadd.f32 %v1023, %v3859
        %v4116 = vadd.f32 %v1024, %v3141
        %v4117 = vadd.f32 %v1025, %v3143
        %v4118 = vadd.f32 %v1026, %v3862
        %v4119 = vadd.f32 %v1027, %v3147
        %v4120 = vadd.f32 %v1028, %v3149
        %v4121 = vadd.f32 %v1029, %v3867
        %v4122 = vadd.f32 %v1030, %v3151
        %v4123 = vadd.f32 %v1031, %v3153
        %v4124 = vadd.f32 %v1032, %v3870
        %v4125 = vadd.f32 %v1033, %v3157
        %v4126 = vadd.f32 %v1034, %v3159
        %v4127 = vadd.f32 %v1035, %v3875
        %v4128 = vadd.f32 %v1036, %v3161
        %v4129 = vadd.f32 %v1037, %v3163
        %v4130 = vadd.f32 %v1038, %v3878
        %v4131 = vadd.f32 %v1039, %v3167
        %v4132 = vadd.f32 %v1040, %v3169
        %v4133 = vadd.f32 %v1041, %v3883
        %v4134 = vadd.f32 %v1042, %v3171
        %v4135 = vadd.f32 %v1043, %v3173
        %v4136 = vadd.f32 %v1044, %v3886
        %v4137 = vadd.f32 %v1045, %v3177
        %v4138 = vadd.f32 %v1046, %v3179
        %v4139 = vadd.f32 %v1047, %v3891
        %v4140 = vadd.f32 %v1048, %v3181
        %v4141 = vadd.f32 %v1049, %v3183
        %v4142 = vadd.f32 %v1050, %v3894
        %v4143 = vadd.f32 %v1051, %v3187
        %v4144 = vadd.f32 %v1052, %v3189
        %v4145 = vadd.f32 %v1053, %v3899
        %v4146 = vadd.f32 %v1054, %v3191
        %v4147 = vadd.f32 %v1055, %v3193
        %v4148 = vadd.f32 %v1056, %v3902
        %v4149 = vadd.f32 %v1057, %v3197
        %v4150 = vadd.f32 %v1058, %v3199
        %v4151 = vadd.f32 %v1059, %v3907
        %v4152 = vadd.f32 %v1060, %v3201
        %v4153 = vadd.f32 %v1061, %v3203
        %v4154 = vadd.f32 %v1062, %v3910
        %v4155 = vadd.f32 %v1063, %v3207
        %v4156 = vadd.f32 %v1064, %v3209
        %v4157 = vadd.f32 %v1065, %v3915
        %v4158 = vadd.f32 %v1066, %v3211
        %v4159 = vadd.f32 %v1067, %v3213
        %v4160 = vadd.f32 %v1068, %v3918
        %4161 = vst [vmem:[#allocation2] sm:$0xff] %v3921
        %4162 = vst [vmem:[#allocation2 + $0x8] sm:$0xff] %v3922
        %4163 = vst [vmem:[#allocation2 + $0x10] sm:$0xff] %v3923
        %4164 = vst [vmem:[#allocation2 + $0x18] sm:$0xff] %v3924
        %4165 = vst [vmem:[#allocation2 + $0x20] sm:$0xff] %v3925
        %4166 = vst [vmem:[#allocation2 + $0x28] sm:$0xff] %v3926
        %4167 = vst [vmem:[#allocation2 + $0x30] sm:$0xff] %v3927
        %4168 = vst [vmem:[#allocation2 + $0x38] sm:$0xff] %v3928
        %4169 = vst [vmem:[#allocation2 + $0x40] sm:$0xff] %v3929
        %4170 = vst [vmem:[#allocation2 + $0x48] sm:$0xff] %v3930
        %4171 = vst [vmem:[#allocation2 + $0x50] sm:$0xff] %v3931
        %4172 = vst [vmem:[#allocation2 + $0x58] sm:$0xff] %v3932
        %4173 = vst [vmem:[#allocation2 + $0x60] sm:$0xff] %v3933
        %4174 = vst [vmem:[#allocation2 + $0x68] sm:$0xff] %v3934
        %4175 = vst [vmem:[#allocation2 + $0x70] sm:$0xff] %v3935
        %4176 = vst [vmem:[#allocation2 + $0x78] sm:$0xff] %v3936
        %4177 = vst [vmem:[#allocation2 + $0x80] sm:$0xff] %v3937
        %4178 = vst [vmem:[#allocation2 + $0x88] sm:$0xff] %v3938
        %4179 = vst [vmem:[#allocation2 + $0x90] sm:$0xff] %v3939
        %4180 = vst [vmem:[#allocation2 + $0x98] sm:$0xff] %v3940
        %4181 = vst [vmem:[#allocation2 + $0xa0] sm:$0xff] %v3941
        %4182 = vst [vmem:[#allocation2 + $0xa8] sm:$0xff] %v3942
        %4183 = vst [vmem:[#allocation2 + $0xb0] sm:$0xff] %v3943
        %4184 = vst [vmem:[#allocation2 + $0xb8] sm:$0xff] %v3944
        %4185 = vst [vmem:[#allocation2 + $0xc0] sm:$0xff] %v3945
        %4186 = vst [vmem:[#allocation2 + $0xc8] sm:$0xff] %v3946
        %4187 = vst [vmem:[#allocation2 + $0xd0] sm:$0xff] %v3947
        %4188 = vst [vmem:[#allocation2 + $0xd8] sm:$0xff] %v3948
        %4189 = vst [vmem:[#allocation2 + $0xe0] sm:$0xff] %v3949
        %4190 = vst [vmem:[#allocation2 + $0xe8] sm:$0xff] %v3950
        %4191 = vst [vmem:[#allocation2 + $0xf0] sm:$0xff] %v3951
        %4192 = vst [vmem:[#allocation2 + $0xf8] sm:$0xff] %v3952
        %4193 = vst [vmem:[#allocation2 + $0x100] sm:$0xff] %v3953
        %4194 = vst [vmem:[#allocation2 + $0x108] sm:$0xff] %v3954
        %4195 = vst [vmem:[#allocation2 + $0x110] sm:$0xff] %v3955
        %4196 = vst [vmem:[#allocation2 + $0x118] sm:$0xff] %v3956
        %4197 = vst [vmem:[#allocation2 + $0x120] sm:$0xff] %v3957
        %4198 = vst [vmem:[#allocation2 + $0x128] sm:$0xff] %v3958
        %4199 = vst [vmem:[#allocation2 + $0x130] sm:$0xff] %v3959
        %4200 = vst [vmem:[#allocation2 + $0x138] sm:$0xff] %v3960
        %4201 = vst [vmem:[#allocation2 + $0x140] sm:$0xff] %v3961
        %4202 = vst [vmem:[#allocation2 + $0x148] sm:$0xff] %v3962
        %4203 = vst [vmem:[#allocation2 + $0x150] sm:$0xff] %v3963
        %4204 = vst [vmem:[#allocation2 + $0x158] sm:$0xff] %v3964
        %4205 = vst [vmem:[#allocation2 + $0x160] sm:$0xff] %v3965
        %4206 = vst [vmem:[#allocation2 + $0x168] sm:$0xff] %v3966
        %4207 = vst [vmem:[#allocation2 + $0x170] sm:$0xff] %v3967
        %4208 = vst [vmem:[#allocation2 + $0x178] sm:$0xff] %v3968
        %4209 = vst [vmem:[#allocation2 + $0x180] sm:$0xff] %v3969
        %4210 = vst [vmem:[#allocation2 + $0x188] sm:$0xff] %v3970
        %4211 = vst [vmem:[#allocation2 + $0x190] sm:$0xff] %v3971
        %4212 = vst [vmem:[#allocation2 + $0x198] sm:$0xff] %v3972
        %4213 = vst [vmem:[#allocation2 + $0x1a0] sm:$0xff] %v3973
        %4214 = vst [vmem:[#allocation2 + $0x1a8] sm:$0xff] %v3974
        %4215 = vst [vmem:[#allocation2 + $0x1b0] sm:$0xff] %v3975
        %4216 = vst [vmem:[#allocation2 + $0x1b8] sm:$0xff] %v3976
        %4217 = vst [vmem:[#allocation2 + $0x1c0] sm:$0xff] %v3977
        %4218 = vst [vmem:[#allocation2 + $0x1c8] sm:$0xff] %v3978
        %4219 = vst [vmem:[#allocation2 + $0x1d0] sm:$0xff] %v3979
        %4220 = vst [vmem:[#allocation2 + $0x1d8] sm:$0xff] %v3980
        %4221 = vst [vmem:[#allocation2 + $0x1e0] sm:$0xff] %v3981
        %4222 = vst [vmem:[#allocation2 + $0x1e8] sm:$0xff] %v3982
        %4223 = vst [vmem:[#allocation2 + $0x1f0] sm:$0xff] %v3983
        %4224 = vst [vmem:[#allocation2 + $0x1f8] sm:$0xff] %v3984
        %4225 = vst [vmem:[#allocation2 + $0x200] sm:$0xff] %v3985
        %4226 = vst [vmem:[#allocation2 + $0x208] sm:$0xff] %v3986
        %4227 = vst [vmem:[#allocation2 + $0x210] sm:$0xff] %v3987
        %4228 = vst [vmem:[#allocation2 + $0x218] sm:$0xff] %v3988
        %4229 = vst [vmem:[#allocation2 + $0x220] sm:$0xff] %v3989
        %4230 = vst [vmem:[#allocation2 + $0x228] sm:$0xff] %v3990
        %4231 = vst [vmem:[#allocation2 + $0x230] sm:$0xff] %v3991
        %4232 = vst [vmem:[#allocation2 + $0x238] sm:$0xff] %v3992
        %4233 = vst [vmem:[#allocation2 + $0x240] sm:$0xff] %v3993
        %4234 = vst [vmem:[#allocation2 + $0x248] sm:$0xff] %v3994
        %4235 = vst [vmem:[#allocation2 + $0x250] sm:$0xff] %v3995
        %4236 = vst [vmem:[#allocation2 + $0x258] sm:$0xff] %v3996
        %4237 = vst [vmem:[#allocation2 + $0x260] sm:$0xff] %v3997
        %4238 = vst [vmem:[#allocation2 + $0x268] sm:$0xff] %v3998
        %4239 = vst [vmem:[#allocation2 + $0x270] sm:$0xff] %v3999
        %4240 = vst [vmem:[#allocation2 + $0x278] sm:$0xff] %v4000
        %4241 = vst [vmem:[#allocation2 + $0x280] sm:$0xff] %v4001
        %4242 = vst [vmem:[#allocation2 + $0x288] sm:$0xff] %v4002
        %4243 = vst [vmem:[#allocation2 + $0x290] sm:$0xff] %v4003
        %4244 = vst [vmem:[#allocation2 + $0x298] sm:$0xff] %v4004
        %4245 = vst [vmem:[#allocation2 + $0x2a0] sm:$0xff] %v4005
        %4246 = vst [vmem:[#allocation2 + $0x2a8] sm:$0xff] %v4006
        %4247 = vst [vmem:[#allocation2 + $0x2b0] sm:$0xff] %v4007
        %4248 = vst [vmem:[#allocation2 + $0x2b8] sm:$0xff] %v4008
        %4249 = vst [vmem:[#allocation2 + $0x2c0] sm:$0xff] %v4009
        %4250 = vst [vmem:[#allocation2 + $0x2c8] sm:$0xff] %v4010
        %4251 = vst [vmem:[#allocation2 + $0x2d0] sm:$0xff] %v4011
        %4252 = vst [vmem:[#allocation2 + $0x2d8] sm:$0xff] %v4012
        %4253 = vst [vmem:[#allocation2 + $0x2e0] sm:$0xff] %v4013
        %4254 = vst [vmem:[#allocation2 + $0x2e8] sm:$0xff] %v4014
        %4255 = vst [vmem:[#allocation2 + $0x2f0] sm:$0xff] %v4015
        %4256 = vst [vmem:[#allocation2 + $0x2f8] sm:$0xff] %v4016
        %4257 = vst [vmem:[#allocation2 + $0x300] sm:$0xff] %v4017
        %4258 = vst [vmem:[#allocation2 + $0x308] sm:$0xff] %v4018
        %4259 = vst [vmem:[#allocation2 + $0x310] sm:$0xff] %v4019
        %4260 = vst [vmem:[#allocation2 + $0x318] sm:$0xff] %v4020
        %4261 = vst [vmem:[#allocation2 + $0x320] sm:$0xff] %v4021
        %4262 = vst [vmem:[#allocation2 + $0x328] sm:$0xff] %v4022
        %4263 = vst [vmem:[#allocation2 + $0x330] sm:$0xff] %v4023
        %4264 = vst [vmem:[#allocation2 + $0x338] sm:$0xff] %v4024
        %4265 = vst [vmem:[#allocation2 + $0x340] sm:$0xff] %v4025
        %4266 = vst [vmem:[#allocation2 + $0x348] sm:$0xff] %v4026
        %4267 = vst [vmem:[#allocation2 + $0x350] sm:$0xff] %v4027
        %4268 = vst [vmem:[#allocation2 + $0x358] sm:$0xff] %v4028
        %4269 = vst [vmem:[#allocation2 + $0x360] sm:$0xff] %v4029
        %4270 = vst [vmem:[#allocation2 + $0x368] sm:$0xff] %v4030
        %4271 = vst [vmem:[#allocation2 + $0x370] sm:$0xff] %v4031
        %4272 = vst [vmem:[#allocation2 + $0x378] sm:$0xff] %v4032
        %4273 = vst [vmem:[#allocation2 + $0x380] sm:$0xff] %v4033
        %4274 = vst [vmem:[#allocation2 + $0x388] sm:$0xff] %v4034
        %4275 = vst [vmem:[#allocation2 + $0x390] sm:$0xff] %v4035
        %4276 = vst [vmem:[#allocation2 + $0x398] sm:$0xff] %v4036
        %4277 = vst [vmem:[#allocation2 + $0x3a0] sm:$0xff] %v4037
        %4278 = vst [vmem:[#allocation2 + $0x3a8] sm:$0xff] %v4038
        %4279 = vst [vmem:[#allocation2 + $0x3b0] sm:$0xff] %v4039
        %4280 = vst [vmem:[#allocation2 + $0x3b8] sm:$0xff] %v4040
        %4281 = vst [vmem:[#allocation2 + $0x3c0] sm:$0xff] %v4041
        %4282 = vst [vmem:[#allocation2 + $0x3c8] sm:$0xff] %v4042
        %4283 = vst [vmem:[#allocation2 + $0x3d0] sm:$0xff] %v4043
        %4284 = vst [vmem:[#allocation2 + $0x3d8] sm:$0xff] %v4044
        %4285 = vst [vmem:[#allocation2 + $0x3e0] sm:$0xff] %v4045
        %4286 = vst [vmem:[#allocation2 + $0x3e8] sm:$0xff] %v4046
        %4287 = vst [vmem:[#allocation2 + $0x3f0] sm:$0xff] %v4047
        %4288 = vst [vmem:[#allocation2 + $0x3f8] sm:$0xff] %v4048
        %4289 = vst [vmem:[#allocation2 + $0x400] sm:$0xff] %v4049
        %4290 = vst [vmem:[#allocation2 + $0x408] sm:$0xff] %v4050
        %4291 = vst [vmem:[#allocation2 + $0x410] sm:$0xff] %v4051
        %4292 = vst [vmem:[#allocation2 + $0x418] sm:$0xff] %v4052
        %4293 = vst [vmem:[#allocation2 + $0x420] sm:$0xff] %v4053
        %4294 = vst [vmem:[#allocation2 + $0x428] sm:$0xff] %v4054
        %4295 = vst [vmem:[#allocation2 + $0x430] sm:$0xff] %v4055
        %4296 = vst [vmem:[#allocation2 + $0x438] sm:$0xff] %v4056
        %4297 = vst [vmem:[#allocation2 + $0x440] sm:$0xff] %v4057
        %4298 = vst [vmem:[#allocation2 + $0x448] sm:$0xff] %v4058
        %4299 = vst [vmem:[#allocation2 + $0x450] sm:$0xff] %v4059
        %4300 = vst [vmem:[#allocation2 + $0x458] sm:$0xff] %v4060
        %4301 = vst [vmem:[#allocation2 + $0x460] sm:$0xff] %v4061
        %4302 = vst [vmem:[#allocation2 + $0x468] sm:$0xff] %v4062
        %4303 = vst [vmem:[#allocation2 + $0x470] sm:$0xff] %v4063
        %4304 = vst [vmem:[#allocation2 + $0x478] sm:$0xff] %v4064
        %4305 = vst [vmem:[#allocation2 + $0x480] sm:$0xff] %v4065
        %4306 = vst [vmem:[#allocation2 + $0x488] sm:$0xff] %v4066
        %4307 = vst [vmem:[#allocation2 + $0x490] sm:$0xff] %v4067
        %4308 = vst [vmem:[#allocation2 + $0x498] sm:$0xff] %v4068
        %4309 = vst [vmem:[#allocation2 + $0x4a0] sm:$0xff] %v4069
        %4310 = vst [vmem:[#allocation2 + $0x4a8] sm:$0xff] %v4070
        %4311 = vst [vmem:[#allocation2 + $0x4b0] sm:$0xff] %v4071
        %4312 = vst [vmem:[#allocation2 + $0x4b8] sm:$0xff] %v4072
        %4313 = vst [vmem:[#allocation2 + $0x4c0] sm:$0xff] %v4073
        %4314 = vst [vmem:[#allocation2 + $0x4c8] sm:$0xff] %v4074
        %4315 = vst [vmem:[#allocation2 + $0x4d0] sm:$0xff] %v4075
        %4316 = vst [vmem:[#allocation2 + $0x4d8] sm:$0xff] %v4076
        %4317 = vst [vmem:[#allocation2 + $0x4e0] sm:$0xff] %v4077
        %4318 = vst [vmem:[#allocation2 + $0x4e8] sm:$0xff] %v4078
        %4319 = vst [vmem:[#allocation2 + $0x4f0] sm:$0xff] %v4079
        %4320 = vst [vmem:[#allocation2 + $0x4f8] sm:$0xff] %v4080
        %4321 = vst [vmem:[#allocation2 + $0x500] sm:$0xff] %v4081
        %4322 = vst [vmem:[#allocation2 + $0x508] sm:$0xff] %v4082
        %4323 = vst [vmem:[#allocation2 + $0x510] sm:$0xff] %v4083
        %4324 = vst [vmem:[#allocation2 + $0x518] sm:$0xff] %v4084
        %4325 = vst [vmem:[#allocation2 + $0x520] sm:$0xff] %v4085
        %4326 = vst [vmem:[#allocation2 + $0x528] sm:$0xff] %v4086
        %4327 = vst [vmem:[#allocation2 + $0x530] sm:$0xff] %v4087
        %4328 = vst [vmem:[#allocation2 + $0x538] sm:$0xff] %v4088
        %4329 = vst [vmem:[#allocation2 + $0x540] sm:$0xff] %v4089
        %4330 = vst [vmem:[#allocation2 + $0x548] sm:$0xff] %v4090
        %4331 = vst [vmem:[#allocation2 + $0x550] sm:$0xff] %v4091
        %4332 = vst [vmem:[#allocation2 + $0x558] sm:$0xff] %v4092
        %4333 = vst [vmem:[#allocation2 + $0x560] sm:$0xff] %v4093
        %4334 = vst [vmem:[#allocation2 + $0x568] sm:$0xff] %v4094
        %4335 = vst [vmem:[#allocation2 + $0x570] sm:$0xff] %v4095
        %4336 = vst [vmem:[#allocation2 + $0x578] sm:$0xff] %v4096
        %4337 = vst [vmem:[#allocation2 + $0x580] sm:$0xff] %v4097
        %4338 = vst [vmem:[#allocation2 + $0x588] sm:$0xff] %v4098
        %4339 = vst [vmem:[#allocation2 + $0x590] sm:$0xff] %v4099
        %4340 = vst [vmem:[#allocation2 + $0x598] sm:$0xff] %v4100
        %4341 = vst [vmem:[#allocation2 + $0x5a0] sm:$0xff] %v4101
        %4342 = vst [vmem:[#allocation2 + $0x5a8] sm:$0xff] %v4102
        %4343 = vst [vmem:[#allocation2 + $0x5b0] sm:$0xff] %v4103
        %4344 = vst [vmem:[#allocation2 + $0x5b8] sm:$0xff] %v4104
        %4345 = vst [vmem:[#allocation2 + $0x5c0] sm:$0xff] %v4105
        %4346 = vst [vmem:[#allocation2 + $0x5c8] sm:$0xff] %v4106
        %4347 = vst [vmem:[#allocation2 + $0x5d0] sm:$0xff] %v4107
        %4348 = vst [vmem:[#allocation2 + $0x5d8] sm:$0xff] %v4108
        %4349 = vst [vmem:[#allocation2 + $0x5e0] sm:$0xff] %v4109
        %4350 = vst [vmem:[#allocation2 + $0x5e8] sm:$0xff] %v4110
        %4351 = vst [vmem:[#allocation2 + $0x5f0] sm:$0xff] %v4111
        %4352 = vst [vmem:[#allocation2 + $0x5f8] sm:$0xff] %v4112
        %4353 = vst [vmem:[#allocation2 + $0x600] sm:$0xff] %v4113
        %4354 = vst [vmem:[#allocation2 + $0x608] sm:$0xff] %v4114
        %4355 = vst [vmem:[#allocation2 + $0x610] sm:$0xff] %v4115
        %4356 = vst [vmem:[#allocation2 + $0x618] sm:$0xff] %v4116
        %4357 = vst [vmem:[#allocation2 + $0x620] sm:$0xff] %v4117
        %4358 = vst [vmem:[#allocation2 + $0x628] sm:$0xff] %v4118
        %4359 = vst [vmem:[#allocation2 + $0x630] sm:$0xff] %v4119
        %4360 = vst [vmem:[#allocation2 + $0x638] sm:$0xff] %v4120
        %4361 = vst [vmem:[#allocation2 + $0x640] sm:$0xff] %v4121
        %4362 = vst [vmem:[#allocation2 + $0x648] sm:$0xff] %v4122
        %4363 = vst [vmem:[#allocation2 + $0x650] sm:$0xff] %v4123
        %4364 = vst [vmem:[#allocation2 + $0x658] sm:$0xff] %v4124
        %4365 = vst [vmem:[#allocation2 + $0x660] sm:$0xff] %v4125
        %4366 = vst [vmem:[#allocation2 + $0x668] sm:$0xff] %v4126
        %4367 = vst [vmem:[#allocation2 + $0x670] sm:$0xff] %v4127
        %4368 = vst [vmem:[#allocation2 + $0x678] sm:$0xff] %v4128
        %4369 = vst [vmem:[#allocation2 + $0x680] sm:$0xff] %v4129
        %4370 = vst [vmem:[#allocation2 + $0x688] sm:$0xff] %v4130
        %4371 = vst [vmem:[#allocation2 + $0x690] sm:$0xff] %v4131
        %4372 = vst [vmem:[#allocation2 + $0x698] sm:$0xff] %v4132
        %4373 = vst [vmem:[#allocation2 + $0x6a0] sm:$0xff] %v4133
        %4374 = vst [vmem:[#allocation2 + $0x6a8] sm:$0xff] %v4134
        %4375 = vst [vmem:[#allocation2 + $0x6b0] sm:$0xff] %v4135
        %4376 = vst [vmem:[#allocation2 + $0x6b8] sm:$0xff] %v4136
        %4377 = vst [vmem:[#allocation2 + $0x6c0] sm:$0xff] %v4137
        %4378 = vst [vmem:[#allocation2 + $0x6c8] sm:$0xff] %v4138
        %4379 = vst [vmem:[#allocation2 + $0x6d0] sm:$0xff] %v4139
        %4380 = vst [vmem:[#allocation2 + $0x6d8] sm:$0xff] %v4140
        %4381 = vst [vmem:[#allocation2 + $0x6e0] sm:$0xff] %v4141
        %4382 = vst [vmem:[#allocation2 + $0x6e8] sm:$0xff] %v4142
        %4383 = vst [vmem:[#allocation2 + $0x6f0] sm:$0xff] %v4143
        %4384 = vst [vmem:[#allocation2 + $0x6f8] sm:$0xff] %v4144
        %4385 = vst [vmem:[#allocation2 + $0x700] sm:$0xff] %v4145
        %4386 = vst [vmem:[#allocation2 + $0x708] sm:$0xff] %v4146
        %4387 = vst [vmem:[#allocation2 + $0x710] sm:$0xff] %v4147
        %4388 = vst [vmem:[#allocation2 + $0x718] sm:$0xff] %v4148
        %4389 = vst [vmem:[#allocation2 + $0x720] sm:$0xff] %v4149
        %4390 = vst [vmem:[#allocation2 + $0x728] sm:$0xff] %v4150
        %4391 = vst [vmem:[#allocation2 + $0x730] sm:$0xff] %v4151
        %4392 = vst [vmem:[#allocation2 + $0x738] sm:$0xff] %v4152
        %4393 = vst [vmem:[#allocation2 + $0x740] sm:$0xff] %v4153
        %4394 = vst [vmem:[#allocation2 + $0x748] sm:$0xff] %v4154
        %4395 = vst [vmem:[#allocation2 + $0x750] sm:$0xff] %v4155
        %4396 = vst [vmem:[#allocation2 + $0x758] sm:$0xff] %v4156
        %4397 = vst [vmem:[#allocation2 + $0x760] sm:$0xff] %v4157
        %4398 = vst [vmem:[#allocation2 + $0x768] sm:$0xff] %v4158
        %4399 = vst [vmem:[#allocation2 + $0x770] sm:$0xff] %v4159
        %4400 = vst [vmem:[#allocation2 + $0x778] sm:$0xff] %v4160
        %p4401 = scmp.eq.s32.totalorder %s17, 1
        // Predicated region
        $region71: #{speechrec_forward.1} parent=61 // pred_check
          %p4402 = pneg %p4401
        $region72: #{speechrec_forward.1} parent=61 // pred_check_branch
          %4404 = sbr.rel (%p4402) target = $region74
        $region73: #{speechrec_forward.1} parent=61 // pred_region
          %v4405 = vld [vmem:[%s4] sm:$0xff]
          %v4406 = vld [vmem:[%s4 + $0x8] sm:$0xff]
          %v4407 = vld [vmem:[%s4 + $0x10] sm:$0xff]
          %v4408 = vld [vmem:[#allocation2] sm:$0xff]
          %v4409 = vld [vmem:[#allocation2 + $0x8] sm:$0xff]
          %v4410 = vld [vmem:[#allocation2 + $0x10] sm:$0xff]
          %v4411 = vld [vmem:[#allocation2 + $0x18] sm:$0xff]
          %v4412 = vld [vmem:[#allocation2 + $0x20] sm:$0xff]
          %v4413 = vld [vmem:[#allocation2 + $0x28] sm:$0xff]
          %v4414 = vld [vmem:[#allocation2 + $0x30] sm:$0xff]
          %v4415 = vld [vmem:[#allocation2 + $0x38] sm:$0xff]
          %v4416 = vld [vmem:[#allocation2 + $0x40] sm:$0xff]
          %v4417 = vld [vmem:[#allocation2 + $0x48] sm:$0xff]
          %v4418 = vld [vmem:[#allocation2 + $0x50] sm:$0xff]
          %v4419 = vld [vmem:[#allocation2 + $0x58] sm:$0xff]
          %v4420 = vld [vmem:[#allocation2 + $0x60] sm:$0xff]
          %v4421 = vld [vmem:[#allocation2 + $0x68] sm:$0xff]
          %v4422 = vld [vmem:[#allocation2 + $0x70] sm:$0xff]
          %v4423 = vld [vmem:[#allocation2 + $0x78] sm:$0xff]
          %v4424 = vld [vmem:[#allocation2 + $0x80] sm:$0xff]
          %v4425 = vld [vmem:[#allocation2 + $0x88] sm:$0xff]
          %v4426 = vld [vmem:[#allocation2 + $0x90] sm:$0xff]
          %v4427 = vld [vmem:[#allocation2 + $0x98] sm:$0xff]
          %v4428 = vld [vmem:[#allocation2 + $0xa0] sm:$0xff]
          %v4429 = vld [vmem:[#allocation2 + $0xa8] sm:$0xff]
          %v4430 = vld [vmem:[#allocation2 + $0xb0] sm:$0xff]
          %v4431 = vld [vmem:[#allocation2 + $0xb8] sm:$0xff]
          %v4432 = vld [vmem:[#allocation2 + $0xc0] sm:$0xff]
          %v4433 = vld [vmem:[#allocation2 + $0xc8] sm:$0xff]
          %v4434 = vld [vmem:[#allocation2 + $0xd0] sm:$0xff]
          %v4435 = vld [vmem:[#allocation2 + $0xd8] sm:$0xff]
          %v4436 = vld [vmem:[#allocation2 + $0xe0] sm:$0xff]
          %v4437 = vld [vmem:[#allocation2 + $0xe8] sm:$0xff]
          %v4438 = vld [vmem:[#allocation2 + $0xf0] sm:$0xff]
          %v4439 = vld [vmem:[#allocation2 + $0xf8] sm:$0xff]
          %v4440 = vld [vmem:[#allocation2 + $0x100] sm:$0xff]
          %v4441 = vld [vmem:[#allocation2 + $0x108] sm:$0xff]
          %v4442 = vld [vmem:[#allocation2 + $0x110] sm:$0xff]
          %v4443 = vld [vmem:[#allocation2 + $0x118] sm:$0xff]
          %v4444 = vld [vmem:[#allocation2 + $0x120] sm:$0xff]
          %v4445 = vld [vmem:[#allocation2 + $0x128] sm:$0xff]
          %v4446 = vld [vmem:[#allocation2 + $0x130] sm:$0xff]
          %v4447 = vld [vmem:[#allocation2 + $0x138] sm:$0xff]
          %v4448 = vld [vmem:[#allocation2 + $0x140] sm:$0xff]
          %v4449 = vld [vmem:[#allocation2 + $0x148] sm:$0xff]
          %v4450 = vld [vmem:[#allocation2 + $0x150] sm:$0xff]
          %v4451 = vld [vmem:[#allocation2 + $0x158] sm:$0xff]
          %v4452 = vld [vmem:[#allocation2 + $0x160] sm:$0xff]
          %v4453 = vld [vmem:[#allocation2 + $0x168] sm:$0xff]
          %v4454 = vld [vmem:[#allocation2 + $0x170] sm:$0xff]
          %v4455 = vld [vmem:[#allocation2 + $0x178] sm:$0xff]
          %v4456 = vld [vmem:[#allocation2 + $0x180] sm:$0xff]
          %v4457 = vld [vmem:[#allocation2 + $0x188] sm:$0xff]
          %v4458 = vld [vmem:[#allocation2 + $0x190] sm:$0xff]
          %v4459 = vld [vmem:[#allocation2 + $0x198] sm:$0xff]
          %v4460 = vld [vmem:[#allocation2 + $0x1a0] sm:$0xff]
          %v4461 = vld [vmem:[#allocation2 + $0x1a8] sm:$0xff]
          %v4462 = vld [vmem:[#allocation2 + $0x1b0] sm:$0xff]
          %v4463 = vld [vmem:[#allocation2 + $0x1b8] sm:$0xff]
          %v4464 = vld [vmem:[#allocation2 + $0x1c0] sm:$0xff]
          %v4465 = vld [vmem:[#allocation2 + $0x1c8] sm:$0xff]
          %v4466 = vld [vmem:[#allocation2 + $0x1d0] sm:$0xff]
          %v4467 = vld [vmem:[#allocation2 + $0x1d8] sm:$0xff]
          %v4468 = vld [vmem:[#allocation2 + $0x1e0] sm:$0xff]
          %v4469 = vld [vmem:[#allocation2 + $0x1e8] sm:$0xff]
          %v4470 = vld [vmem:[#allocation2 + $0x1f0] sm:$0xff]
          %v4471 = vld [vmem:[#allocation2 + $0x1f8] sm:$0xff]
          %v4472 = vld [vmem:[#allocation2 + $0x200] sm:$0xff]
          %v4473 = vld [vmem:[#allocation2 + $0x208] sm:$0xff]
          %v4474 = vld [vmem:[#allocation2 + $0x210] sm:$0xff]
          %v4475 = vld [vmem:[#allocation2 + $0x218] sm:$0xff]
          %v4476 = vld [vmem:[#allocation2 + $0x220] sm:$0xff]
          %v4477 = vld [vmem:[#allocation2 + $0x228] sm:$0xff]
          %v4478 = vld [vmem:[#allocation2 + $0x230] sm:$0xff]
          %v4479 = vld [vmem:[#allocation2 + $0x238] sm:$0xff]
          %v4480 = vld [vmem:[#allocation2 + $0x240] sm:$0xff]
          %v4481 = vld [vmem:[#allocation2 + $0x248] sm:$0xff]
          %v4482 = vld [vmem:[#allocation2 + $0x250] sm:$0xff]
          %v4483 = vld [vmem:[#allocation2 + $0x258] sm:$0xff]
          %v4484 = vld [vmem:[#allocation2 + $0x260] sm:$0xff]
          %v4485 = vld [vmem:[#allocation2 + $0x268] sm:$0xff]
          %v4486 = vld [vmem:[#allocation2 + $0x270] sm:$0xff]
          %v4487 = vld [vmem:[#allocation2 + $0x278] sm:$0xff]
          %v4488 = vld [vmem:[#allocation2 + $0x280] sm:$0xff]
          %v4489 = vld [vmem:[#allocation2 + $0x288] sm:$0xff]
          %v4490 = vld [vmem:[#allocation2 + $0x290] sm:$0xff]
          %v4491 = vld [vmem:[#allocation2 + $0x298] sm:$0xff]
          %v4492 = vld [vmem:[#allocation2 + $0x2a0] sm:$0xff]
          %v4493 = vld [vmem:[#allocation2 + $0x2a8] sm:$0xff]
          %v4494 = vld [vmem:[#allocation2 + $0x2b0] sm:$0xff]
          %v4495 = vld [vmem:[#allocation2 + $0x2b8] sm:$0xff]
          %v4496 = vld [vmem:[#allocation2 + $0x2c0] sm:$0xff]
          %v4497 = vld [vmem:[#allocation2 + $0x2c8] sm:$0xff]
          %v4498 = vld [vmem:[#allocation2 + $0x2d0] sm:$0xff]
          %v4499 = vld [vmem:[#allocation2 + $0x2d8] sm:$0xff]
          %v4500 = vld [vmem:[#allocation2 + $0x2e0] sm:$0xff]
          %v4501 = vld [vmem:[#allocation2 + $0x2e8] sm:$0xff]
          %v4502 = vld [vmem:[#allocation2 + $0x2f0] sm:$0xff]
          %v4503 = vld [vmem:[#allocation2 + $0x2f8] sm:$0xff]
          %v4504 = vld [vmem:[#allocation2 + $0x300] sm:$0xff]
          %v4505 = vld [vmem:[#allocation2 + $0x308] sm:$0xff]
          %v4506 = vld [vmem:[#allocation2 + $0x310] sm:$0xff]
          %v4507 = vld [vmem:[#allocation2 + $0x318] sm:$0xff]
          %v4508 = vld [vmem:[#allocation2 + $0x320] sm:$0xff]
          %v4509 = vld [vmem:[#allocation2 + $0x328] sm:$0xff]
          %v4510 = vld [vmem:[#allocation2 + $0x330] sm:$0xff]
          %v4511 = vld [vmem:[#allocation2 + $0x338] sm:$0xff]
          %v4512 = vld [vmem:[#allocation2 + $0x340] sm:$0xff]
          %v4513 = vld [vmem:[#allocation2 + $0x348] sm:$0xff]
          %v4514 = vld [vmem:[#allocation2 + $0x350] sm:$0xff]
          %v4515 = vld [vmem:[#allocation2 + $0x358] sm:$0xff]
          %v4516 = vld [vmem:[#allocation2 + $0x360] sm:$0xff]
          %v4517 = vld [vmem:[#allocation2 + $0x368] sm:$0xff]
          %v4518 = vld [vmem:[#allocation2 + $0x370] sm:$0xff]
          %v4519 = vld [vmem:[#allocation2 + $0x378] sm:$0xff]
          %v4520 = vld [vmem:[#allocation2 + $0x380] sm:$0xff]
          %v4521 = vld [vmem:[#allocation2 + $0x388] sm:$0xff]
          %v4522 = vld [vmem:[#allocation2 + $0x390] sm:$0xff]
          %v4523 = vld [vmem:[#allocation2 + $0x398] sm:$0xff]
          %v4524 = vld [vmem:[#allocation2 + $0x3a0] sm:$0xff]
          %v4525 = vld [vmem:[#allocation2 + $0x3a8] sm:$0xff]
          %v4526 = vld [vmem:[#allocation2 + $0x3b0] sm:$0xff]
          %v4527 = vld [vmem:[#allocation2 + $0x3b8] sm:$0xff]
          %v4528 = vld [vmem:[#allocation2 + $0x3c0] sm:$0xff]
          %v4529 = vld [vmem:[#allocation2 + $0x3c8] sm:$0xff]
          %v4530 = vld [vmem:[#allocation2 + $0x3d0] sm:$0xff]
          %v4531 = vld [vmem:[#allocation2 + $0x3d8] sm:$0xff]
          %v4532 = vld [vmem:[#allocation2 + $0x3e0] sm:$0xff]
          %v4533 = vld [vmem:[#allocation2 + $0x3e8] sm:$0xff]
          %v4534 = vld [vmem:[#allocation2 + $0x3f0] sm:$0xff]
          %v4535 = vld [vmem:[#allocation2 + $0x3f8] sm:$0xff]
          %v4536 = vld [vmem:[#allocation2 + $0x400] sm:$0xff]
          %v4537 = vld [vmem:[#allocation2 + $0x408] sm:$0xff]
          %v4538 = vld [vmem:[#allocation2 + $0x410] sm:$0xff]
          %v4539 = vld [vmem:[#allocation2 + $0x418] sm:$0xff]
          %v4540 = vld [vmem:[#allocation2 + $0x420] sm:$0xff]
          %v4541 = vld [vmem:[#allocation2 + $0x428] sm:$0xff]
          %v4542 = vld [vmem:[#allocation2 + $0x430] sm:$0xff]
          %v4543 = vld [vmem:[#allocation2 + $0x438] sm:$0xff]
          %v4544 = vld [vmem:[#allocation2 + $0x440] sm:$0xff]
          %v4545 = vld [vmem:[#allocation2 + $0x448] sm:$0xff]
          %v4546 = vld [vmem:[#allocation2 + $0x450] sm:$0xff]
          %v4547 = vld [vmem:[#allocation2 + $0x458] sm:$0xff]
          %v4548 = vld [vmem:[#allocation2 + $0x460] sm:$0xff]
          %v4549 = vld [vmem:[#allocation2 + $0x468] sm:$0xff]
          %v4550 = vld [vmem:[#allocation2 + $0x470] sm:$0xff]
          %v4551 = vld [vmem:[#allocation2 + $0x478] sm:$0xff]
          %v4552 = vld [vmem:[#allocation2 + $0x480] sm:$0xff]
          %v4553 = vld [vmem:[#allocation2 + $0x488] sm:$0xff]
          %v4554 = vld [vmem:[#allocation2 + $0x490] sm:$0xff]
          %v4555 = vld [vmem:[#allocation2 + $0x498] sm:$0xff]
          %v4556 = vld [vmem:[#allocation2 + $0x4a0] sm:$0xff]
          %v4557 = vld [vmem:[#allocation2 + $0x4a8] sm:$0xff]
          %v4558 = vld [vmem:[#allocation2 + $0x4b0] sm:$0xff]
          %v4559 = vld [vmem:[#allocation2 + $0x4b8] sm:$0xff]
          %v4560 = vld [vmem:[#allocation2 + $0x4c0] sm:$0xff]
          %v4561 = vld [vmem:[#allocation2 + $0x4c8] sm:$0xff]
          %v4562 = vld [vmem:[#allocation2 + $0x4d0] sm:$0xff]
          %v4563 = vld [vmem:[#allocation2 + $0x4d8] sm:$0xff]
          %v4564 = vld [vmem:[#allocation2 + $0x4e0] sm:$0xff]
          %v4565 = vld [vmem:[#allocation2 + $0x4e8] sm:$0xff]
          %v4566 = vld [vmem:[#allocation2 + $0x4f0] sm:$0xff]
          %v4567 = vld [vmem:[#allocation2 + $0x4f8] sm:$0xff]
          %v4568 = vld [vmem:[#allocation2 + $0x500] sm:$0xff]
          %v4569 = vld [vmem:[#allocation2 + $0x508] sm:$0xff]
          %v4570 = vld [vmem:[#allocation2 + $0x510] sm:$0xff]
          %v4571 = vld [vmem:[#allocation2 + $0x518] sm:$0xff]
          %v4572 = vld [vmem:[#allocation2 + $0x520] sm:$0xff]
          %v4573 = vld [vmem:[#allocation2 + $0x528] sm:$0xff]
          %v4574 = vld [vmem:[#allocation2 + $0x530] sm:$0xff]
          %v4575 = vld [vmem:[#allocation2 + $0x538] sm:$0xff]
          %v4576 = vld [vmem:[#allocation2 + $0x540] sm:$0xff]
          %v4577 = vld [vmem:[#allocation2 + $0x548] sm:$0xff]
          %v4578 = vld [vmem:[#allocation2 + $0x550] sm:$0xff]
          %v4579 = vld [vmem:[#allocation2 + $0x558] sm:$0xff]
          %v4580 = vld [vmem:[#allocation2 + $0x560] sm:$0xff]
          %v4581 = vld [vmem:[#allocation2 + $0x568] sm:$0xff]
          %v4582 = vld [vmem:[#allocation2 + $0x570] sm:$0xff]
          %v4583 = vld [vmem:[#allocation2 + $0x578] sm:$0xff]
          %v4584 = vld [vmem:[#allocation2 + $0x580] sm:$0xff]
          %v4585 = vld [vmem:[#allocation2 + $0x588] sm:$0xff]
          %v4586 = vld [vmem:[#allocation2 + $0x590] sm:$0xff]
          %v4587 = vld [vmem:[#allocation2 + $0x598] sm:$0xff]
          %v4588 = vld [vmem:[#allocation2 + $0x5a0] sm:$0xff]
          %v4589 = vld [vmem:[#allocation2 + $0x5a8] sm:$0xff]
          %v4590 = vld [vmem:[#allocation2 + $0x5b0] sm:$0xff]
          %v4591 = vld [vmem:[#allocation2 + $0x5b8] sm:$0xff]
          %v4592 = vld [vmem:[#allocation2 + $0x5c0] sm:$0xff]
          %v4593 = vld [vmem:[#allocation2 + $0x5c8] sm:$0xff]
          %v4594 = vld [vmem:[#allocation2 + $0x5d0] sm:$0xff]
          %v4595 = vld [vmem:[#allocation2 + $0x5d8] sm:$0xff]
          %v4596 = vld [vmem:[#allocation2 + $0x5e0] sm:$0xff]
          %v4597 = vld [vmem:[#allocation2 + $0x5e8] sm:$0xff]
          %v4598 = vld [vmem:[#allocation2 + $0x5f0] sm:$0xff]
          %v4599 = vld [vmem:[#allocation2 + $0x5f8] sm:$0xff]
          %v4600 = vld [vmem:[#allocation2 + $0x600] sm:$0xff]
          %v4601 = vld [vmem:[#allocation2 + $0x608] sm:$0xff]
          %v4602 = vld [vmem:[#allocation2 + $0x610] sm:$0xff]
          %v4603 = vld [vmem:[#allocation2 + $0x618] sm:$0xff]
          %v4604 = vld [vmem:[#allocation2 + $0x620] sm:$0xff]
          %v4605 = vld [vmem:[#allocation2 + $0x628] sm:$0xff]
          %v4606 = vld [vmem:[#allocation2 + $0x630] sm:$0xff]
          %v4607 = vld [vmem:[#allocation2 + $0x638] sm:$0xff]
          %v4608 = vld [vmem:[#allocation2 + $0x640] sm:$0xff]
          %v4609 = vld [vmem:[#allocation2 + $0x648] sm:$0xff]
          %v4610 = vld [vmem:[#allocation2 + $0x650] sm:$0xff]
          %v4611 = vld [vmem:[#allocation2 + $0x658] sm:$0xff]
          %v4612 = vld [vmem:[#allocation2 + $0x660] sm:$0xff]
          %v4613 = vld [vmem:[#allocation2 + $0x668] sm:$0xff]
          %v4614 = vld [vmem:[#allocation2 + $0x670] sm:$0xff]
          %v4615 = vld [vmem:[#allocation2 + $0x678] sm:$0xff]
          %v4616 = vld [vmem:[#allocation2 + $0x680] sm:$0xff]
          %v4617 = vld [vmem:[#allocation2 + $0x688] sm:$0xff]
          %v4618 = vld [vmem:[#allocation2 + $0x690] sm:$0xff]
          %v4619 = vld [vmem:[#allocation2 + $0x698] sm:$0xff]
          %v4620 = vld [vmem:[#allocation2 + $0x6a0] sm:$0xff]
          %v4621 = vld [vmem:[#allocation2 + $0x6a8] sm:$0xff]
          %v4622 = vld [vmem:[#allocation2 + $0x6b0] sm:$0xff]
          %v4623 = vld [vmem:[#allocation2 + $0x6b8] sm:$0xff]
          %v4624 = vld [vmem:[#allocation2 + $0x6c0] sm:$0xff]
          %v4625 = vld [vmem:[#allocation2 + $0x6c8] sm:$0xff]
          %v4626 = vld [vmem:[#allocation2 + $0x6d0] sm:$0xff]
          %v4627 = vld [vmem:[#allocation2 + $0x6d8] sm:$0xff]
          %v4628 = vld [vmem:[#allocation2 + $0x6e0] sm:$0xff]
          %v4629 = vld [vmem:[#allocation2 + $0x6e8] sm:$0xff]
          %v4630 = vld [vmem:[#allocation2 + $0x6f0] sm:$0xff]
          %v4631 = vld [vmem:[#allocation2 + $0x6f8] sm:$0xff]
          %v4632 = vld [vmem:[#allocation2 + $0x700] sm:$0xff]
          %v4633 = vld [vmem:[#allocation2 + $0x708] sm:$0xff]
          %v4634 = vld [vmem:[#allocation2 + $0x710] sm:$0xff]
          %v4635 = vld [vmem:[#allocation2 + $0x718] sm:$0xff]
          %v4636 = vld [vmem:[#allocation2 + $0x720] sm:$0xff]
          %v4637 = vld [vmem:[#allocation2 + $0x728] sm:$0xff]
          %v4638 = vld [vmem:[#allocation2 + $0x730] sm:$0xff]
          %v4639 = vld [vmem:[#allocation2 + $0x738] sm:$0xff]
          %v4640 = vld [vmem:[#allocation2 + $0x740] sm:$0xff]
          %v4641 = vld [vmem:[#allocation2 + $0x748] sm:$0xff]
          %v4642 = vld [vmem:[#allocation2 + $0x750] sm:$0xff]
          %v4643 = vld [vmem:[#allocation2 + $0x758] sm:$0xff]
          %v4644 = vld [vmem:[#allocation2 + $0x760] sm:$0xff]
          %v4645 = vld [vmem:[#allocation2 + $0x768] sm:$0xff]
          %v4646 = vld [vmem:[#allocation2 + $0x770] sm:$0xff]
          %v4647 = vld [vmem:[#allocation2 + $0x778] sm:$0xff]
          %v4648 = vlaneseq
          %v4649 = vshrl.u32 %v4648, 7
          %v4650 = vsub.s32 0, %v4649
          %v4651 = vrot.slane %v4405, %v4650
          %v4652 = vlaneseq
          %v4653 = vshrl.u32 %v4652, 7
          %v4654 = vsub.s32 0, %v4653
          %v4655 = vrot.slane %v4406, %v4654
          %v4656 = vlaneseq
          %v4657 = vshrl.u32 %v4656, 7
          %v4658 = vsub.s32 0, %v4657
          %v4659 = vrot.slane %v4407, %v4658
          %v4660 = vadd.f32 %v4408, %v4651
          %v4661 = vadd.f32 %v4409, %v4655
          %v4662 = vadd.f32 %v4410, %v4659
          %v4663 = vadd.f32 %v4411, %v4651
          %v4664 = vadd.f32 %v4412, %v4655
          %v4665 = vadd.f32 %v4413, %v4659
          %v4666 = vadd.f32 %v4414, %v4651
          %v4667 = vadd.f32 %v4415, %v4655
          %v4668 = vadd.f32 %v4416, %v4659
          %v4669 = vadd.f32 %v4417, %v4651
          %v4670 = vadd.f32 %v4418, %v4655
          %v4671 = vadd.f32 %v4419, %v4659
          %v4672 = vadd.f32 %v4420, %v4651
          %v4673 = vadd.f32 %v4421, %v4655
          %v4674 = vadd.f32 %v4422, %v4659
          %v4675 = vadd.f32 %v4423, %v4651
          %v4676 = vadd.f32 %v4424, %v4655
          %v4677 = vadd.f32 %v4425, %v4659
          %v4678 = vadd.f32 %v4426, %v4651
          %v4679 = vadd.f32 %v4427, %v4655
          %v4680 = vadd.f32 %v4428, %v4659
          %v4681 = vadd.f32 %v4429, %v4651
          %v4682 = vadd.f32 %v4430, %v4655
          %v4683 = vadd.f32 %v4431, %v4659
          %v4684 = vadd.f32 %v4432, %v4651
          %v4685 = vadd.f32 %v4433, %v4655
          %v4686 = vadd.f32 %v4434, %v4659
          %v4687 = vadd.f32 %v4435, %v4651
          %v4688 = vadd.f32 %v4436, %v4655
          %v4689 = vadd.f32 %v4437, %v4659
          %v4690 = vadd.f32 %v4438, %v4651
          %v4691 = vadd.f32 %v4439, %v4655
          %v4692 = vadd.f32 %v4440, %v4659
          %v4693 = vadd.f32 %v4441, %v4651
          %v4694 = vadd.f32 %v4442, %v4655
          %v4695 = vadd.f32 %v4443, %v4659
          %v4696 = vadd.f32 %v4444, %v4651
          %v4697 = vadd.f32 %v4445, %v4655
          %v4698 = vadd.f32 %v4446, %v4659
          %v4699 = vadd.f32 %v4447, %v4651
          %v4700 = vadd.f32 %v4448, %v4655
          %v4701 = vadd.f32 %v4449, %v4659
          %v4702 = vadd.f32 %v4450, %v4651
          %v4703 = vadd.f32 %v4451, %v4655
          %v4704 = vadd.f32 %v4452, %v4659
          %v4705 = vadd.f32 %v4453, %v4651
          %v4706 = vadd.f32 %v4454, %v4655
          %v4707 = vadd.f32 %v4455, %v4659
          %v4708 = vadd.f32 %v4456, %v4651
          %v4709 = vadd.f32 %v4457, %v4655
          %v4710 = vadd.f32 %v4458, %v4659
          %v4711 = vadd.f32 %v4459, %v4651
          %v4712 = vadd.f32 %v4460, %v4655
          %v4713 = vadd.f32 %v4461, %v4659
          %v4714 = vadd.f32 %v4462, %v4651
          %v4715 = vadd.f32 %v4463, %v4655
          %v4716 = vadd.f32 %v4464, %v4659
          %v4717 = vadd.f32 %v4465, %v4651
          %v4718 = vadd.f32 %v4466, %v4655
          %v4719 = vadd.f32 %v4467, %v4659
          %v4720 = vadd.f32 %v4468, %v4651
          %v4721 = vadd.f32 %v4469, %v4655
          %v4722 = vadd.f32 %v4470, %v4659
          %v4723 = vadd.f32 %v4471, %v4651
          %v4724 = vadd.f32 %v4472, %v4655
          %v4725 = vadd.f32 %v4473, %v4659
          %v4726 = vadd.f32 %v4474, %v4651
          %v4727 = vadd.f32 %v4475, %v4655
          %v4728 = vadd.f32 %v4476, %v4659
          %v4729 = vadd.f32 %v4477, %v4651
          %v4730 = vadd.f32 %v4478, %v4655
          %v4731 = vadd.f32 %v4479, %v4659
          %v4732 = vadd.f32 %v4480, %v4651
          %v4733 = vadd.f32 %v4481, %v4655
          %v4734 = vadd.f32 %v4482, %v4659
          %v4735 = vadd.f32 %v4483, %v4651
          %v4736 = vadd.f32 %v4484, %v4655
          %v4737 = vadd.f32 %v4485, %v4659
          %v4738 = vadd.f32 %v4486, %v4651
          %v4739 = vadd.f32 %v4487, %v4655
          %v4740 = vadd.f32 %v4488, %v4659
          %v4741 = vadd.f32 %v4489, %v4651
          %v4742 = vadd.f32 %v4490, %v4655
          %v4743 = vadd.f32 %v4491, %v4659
          %v4744 = vadd.f32 %v4492, %v4651
          %v4745 = vadd.f32 %v4493, %v4655
          %v4746 = vadd.f32 %v4494, %v4659
          %v4747 = vadd.f32 %v4495, %v4651
          %v4748 = vadd.f32 %v4496, %v4655
          %v4749 = vadd.f32 %v4497, %v4659
          %v4750 = vadd.f32 %v4498, %v4651
          %v4751 = vadd.f32 %v4499, %v4655
          %v4752 = vadd.f32 %v4500, %v4659
          %v4753 = vadd.f32 %v4501, %v4651
          %v4754 = vadd.f32 %v4502, %v4655
          %v4755 = vadd.f32 %v4503, %v4659
          %v4756 = vadd.f32 %v4504, %v4651
          %v4757 = vadd.f32 %v4505, %v4655
          %v4758 = vadd.f32 %v4506, %v4659
          %v4759 = vadd.f32 %v4507, %v4651
          %v4760 = vadd.f32 %v4508, %v4655
          %v4761 = vadd.f32 %v4509, %v4659
          %v4762 = vadd.f32 %v4510, %v4651
          %v4763 = vadd.f32 %v4511, %v4655
          %v4764 = vadd.f32 %v4512, %v4659
          %v4765 = vadd.f32 %v4513, %v4651
          %v4766 = vadd.f32 %v4514, %v4655
          %v4767 = vadd.f32 %v4515, %v4659
          %v4768 = vadd.f32 %v4516, %v4651
          %v4769 = vadd.f32 %v4517, %v4655
          %v4770 = vadd.f32 %v4518, %v4659
          %v4771 = vadd.f32 %v4519, %v4651
          %v4772 = vadd.f32 %v4520, %v4655
          %v4773 = vadd.f32 %v4521, %v4659
          %v4774 = vadd.f32 %v4522, %v4651
          %v4775 = vadd.f32 %v4523, %v4655
          %v4776 = vadd.f32 %v4524, %v4659
          %v4777 = vadd.f32 %v4525, %v4651
          %v4778 = vadd.f32 %v4526, %v4655
          %v4779 = vadd.f32 %v4527, %v4659
          %v4780 = vadd.f32 %v4528, %v4651
          %v4781 = vadd.f32 %v4529, %v4655
          %v4782 = vadd.f32 %v4530, %v4659
          %v4783 = vadd.f32 %v4531, %v4651
          %v4784 = vadd.f32 %v4532, %v4655
          %v4785 = vadd.f32 %v4533, %v4659
          %v4786 = vadd.f32 %v4534, %v4651
          %v4787 = vadd.f32 %v4535, %v4655
          %v4788 = vadd.f32 %v4536, %v4659
          %v4789 = vadd.f32 %v4537, %v4651
          %v4790 = vadd.f32 %v4538, %v4655
          %v4791 = vadd.f32 %v4539, %v4659
          %v4792 = vadd.f32 %v4540, %v4651
          %v4793 = vadd.f32 %v4541, %v4655
          %v4794 = vadd.f32 %v4542, %v4659
          %v4795 = vadd.f32 %v4543, %v4651
          %v4796 = vadd.f32 %v4544, %v4655
          %v4797 = vadd.f32 %v4545, %v4659
          %v4798 = vadd.f32 %v4546, %v4651
          %v4799 = vadd.f32 %v4547, %v4655
          %v4800 = vadd.f32 %v4548, %v4659
          %v4801 = vadd.f32 %v4549, %v4651
          %v4802 = vadd.f32 %v4550, %v4655
          %v4803 = vadd.f32 %v4551, %v4659
          %v4804 = vadd.f32 %v4552, %v4651
          %v4805 = vadd.f32 %v4553, %v4655
          %v4806 = vadd.f32 %v4554, %v4659
          %v4807 = vadd.f32 %v4555, %v4651
          %v4808 = vadd.f32 %v4556, %v4655
          %v4809 = vadd.f32 %v4557, %v4659
          %v4810 = vadd.f32 %v4558, %v4651
          %v4811 = vadd.f32 %v4559, %v4655
          %v4812 = vadd.f32 %v4560, %v4659
          %v4813 = vadd.f32 %v4561, %v4651
          %v4814 = vadd.f32 %v4562, %v4655
          %v4815 = vadd.f32 %v4563, %v4659
          %v4816 = vadd.f32 %v4564, %v4651
          %v4817 = vadd.f32 %v4565, %v4655
          %v4818 = vadd.f32 %v4566, %v4659
          %v4819 = vadd.f32 %v4567, %v4651
          %v4820 = vadd.f32 %v4568, %v4655
          %v4821 = vadd.f32 %v4569, %v4659
          %v4822 = vadd.f32 %v4570, %v4651
          %v4823 = vadd.f32 %v4571, %v4655
          %v4824 = vadd.f32 %v4572, %v4659
          %v4825 = vadd.f32 %v4573, %v4651
          %v4826 = vadd.f32 %v4574, %v4655
          %v4827 = vadd.f32 %v4575, %v4659
          %v4828 = vadd.f32 %v4576, %v4651
          %v4829 = vadd.f32 %v4577, %v4655
          %v4830 = vadd.f32 %v4578, %v4659
          %v4831 = vadd.f32 %v4579, %v4651
          %v4832 = vadd.f32 %v4580, %v4655
          %v4833 = vadd.f32 %v4581, %v4659
          %v4834 = vadd.f32 %v4582, %v4651
          %v4835 = vadd.f32 %v4583, %v4655
          %v4836 = vadd.f32 %v4584, %v4659
          %v4837 = vadd.f32 %v4585, %v4651
          %v4838 = vadd.f32 %v4586, %v4655
          %v4839 = vadd.f32 %v4587, %v4659
          %v4840 = vadd.f32 %v4588, %v4651
          %v4841 = vadd.f32 %v4589, %v4655
          %v4842 = vadd.f32 %v4590, %v4659
          %v4843 = vadd.f32 %v4591, %v4651
          %v4844 = vadd.f32 %v4592, %v4655
          %v4845 = vadd.f32 %v4593, %v4659
          %v4846 = vadd.f32 %v4594, %v4651
          %v4847 = vadd.f32 %v4595, %v4655
          %v4848 = vadd.f32 %v4596, %v4659
          %v4849 = vadd.f32 %v4597, %v4651
          %v4850 = vadd.f32 %v4598, %v4655
          %v4851 = vadd.f32 %v4599, %v4659
          %v4852 = vadd.f32 %v4600, %v4651
          %v4853 = vadd.f32 %v4601, %v4655
          %v4854 = vadd.f32 %v4602, %v4659
          %v4855 = vadd.f32 %v4603, %v4651
          %v4856 = vadd.f32 %v4604, %v4655
          %v4857 = vadd.f32 %v4605, %v4659
          %v4858 = vadd.f32 %v4606, %v4651
          %v4859 = vadd.f32 %v4607, %v4655
          %v4860 = vadd.f32 %v4608, %v4659
          %v4861 = vadd.f32 %v4609, %v4651
          %v4862 = vadd.f32 %v4610, %v4655
          %v4863 = vadd.f32 %v4611, %v4659
          %v4864 = vadd.f32 %v4612, %v4651
          %v4865 = vadd.f32 %v4613, %v4655
          %v4866 = vadd.f32 %v4614, %v4659
          %v4867 = vadd.f32 %v4615, %v4651
          %v4868 = vadd.f32 %v4616, %v4655
          %v4869 = vadd.f32 %v4617, %v4659
          %v4870 = vadd.f32 %v4618, %v4651
          %v4871 = vadd.f32 %v4619, %v4655
          %v4872 = vadd.f32 %v4620, %v4659
          %v4873 = vadd.f32 %v4621, %v4651
          %v4874 = vadd.f32 %v4622, %v4655
          %v4875 = vadd.f32 %v4623, %v4659
          %v4876 = vadd.f32 %v4624, %v4651
          %v4877 = vadd.f32 %v4625, %v4655
          %v4878 = vadd.f32 %v4626, %v4659
          %v4879 = vadd.f32 %v4627, %v4651
          %v4880 = vadd.f32 %v4628, %v4655
          %v4881 = vadd.f32 %v4629, %v4659
          %v4882 = vadd.f32 %v4630, %v4651
          %v4883 = vadd.f32 %v4631, %v4655
          %v4884 = vadd.f32 %v4632, %v4659
          %v4885 = vadd.f32 %v4633, %v4651
          %v4886 = vadd.f32 %v4634, %v4655
          %v4887 = vadd.f32 %v4635, %v4659
          %v4888 = vadd.f32 %v4636, %v4651
          %v4889 = vadd.f32 %v4637, %v4655
          %v4890 = vadd.f32 %v4638, %v4659
          %v4891 = vadd.f32 %v4639, %v4651
          %v4892 = vadd.f32 %v4640, %v4655
          %v4893 = vadd.f32 %v4641, %v4659
          %v4894 = vadd.f32 %v4642, %v4651
          %v4895 = vadd.f32 %v4643, %v4655
          %v4896 = vadd.f32 %v4644, %v4659
          %v4897 = vadd.f32 %v4645, %v4651
          %v4898 = vadd.f32 %v4646, %v4655
          %v4899 = vadd.f32 %v4647, %v4659
          %v4900 = vmax.f32 %v4660, 0.0
          %v4901 = vmax.f32 %v4661, 0.0
          %v4902 = vmax.f32 %v4662, 0.0
          %v4903 = vmax.f32 %v4663, 0.0
          %v4904 = vmax.f32 %v4664, 0.0
          %v4905 = vmax.f32 %v4665, 0.0
          %v4906 = vmax.f32 %v4666, 0.0
          %v4907 = vmax.f32 %v4667, 0.0
          %v4908 = vmax.f32 %v4668, 0.0
          %v4909 = vmax.f32 %v4669, 0.0
          %v4910 = vmax.f32 %v4670, 0.0
          %v4911 = vmax.f32 %v4671, 0.0
          %v4912 = vmax.f32 %v4672, 0.0
          %v4913 = vmax.f32 %v4673, 0.0
          %v4914 = vmax.f32 %v4674, 0.0
          %v4915 = vmax.f32 %v4675, 0.0
          %v4916 = vmax.f32 %v4676, 0.0
          %v4917 = vmax.f32 %v4677, 0.0
          %v4918 = vmax.f32 %v4678, 0.0
          %v4919 = vmax.f32 %v4679, 0.0
          %v4920 = vmax.f32 %v4680, 0.0
          %v4921 = vmax.f32 %v4681, 0.0
          %v4922 = vmax.f32 %v4682, 0.0
          %v4923 = vmax.f32 %v4683, 0.0
          %v4924 = vmax.f32 %v4684, 0.0
          %v4925 = vmax.f32 %v4685, 0.0
          %v4926 = vmax.f32 %v4686, 0.0
          %v4927 = vmax.f32 %v4687, 0.0
          %v4928 = vmax.f32 %v4688, 0.0
          %v4929 = vmax.f32 %v4689, 0.0
          %v4930 = vmax.f32 %v4690, 0.0
          %v4931 = vmax.f32 %v4691, 0.0
          %v4932 = vmax.f32 %v4692, 0.0
          %v4933 = vmax.f32 %v4693, 0.0
          %v4934 = vmax.f32 %v4694, 0.0
          %v4935 = vmax.f32 %v4695, 0.0
          %v4936 = vmax.f32 %v4696, 0.0
          %v4937 = vmax.f32 %v4697, 0.0
          %v4938 = vmax.f32 %v4698, 0.0
          %v4939 = vmax.f32 %v4699, 0.0
          %v4940 = vmax.f32 %v4700, 0.0
          %v4941 = vmax.f32 %v4701, 0.0
          %v4942 = vmax.f32 %v4702, 0.0
          %v4943 = vmax.f32 %v4703, 0.0
          %v4944 = vmax.f32 %v4704, 0.0
          %v4945 = vmax.f32 %v4705, 0.0
          %v4946 = vmax.f32 %v4706, 0.0
          %v4947 = vmax.f32 %v4707, 0.0
          %v4948 = vmax.f32 %v4708, 0.0
          %v4949 = vmax.f32 %v4709, 0.0
          %v4950 = vmax.f32 %v4710, 0.0
          %v4951 = vmax.f32 %v4711, 0.0
          %v4952 = vmax.f32 %v4712, 0.0
          %v4953 = vmax.f32 %v4713, 0.0
          %v4954 = vmax.f32 %v4714, 0.0
          %v4955 = vmax.f32 %v4715, 0.0
          %v4956 = vmax.f32 %v4716, 0.0
          %v4957 = vmax.f32 %v4717, 0.0
          %v4958 = vmax.f32 %v4718, 0.0
          %v4959 = vmax.f32 %v4719, 0.0
          %v4960 = vmax.f32 %v4720, 0.0
          %v4961 = vmax.f32 %v4721, 0.0
          %v4962 = vmax.f32 %v4722, 0.0
          %v4963 = vmax.f32 %v4723, 0.0
          %v4964 = vmax.f32 %v4724, 0.0
          %v4965 = vmax.f32 %v4725, 0.0
          %v4966 = vmax.f32 %v4726, 0.0
          %v4967 = vmax.f32 %v4727, 0.0
          %v4968 = vmax.f32 %v4728, 0.0
          %v4969 = vmax.f32 %v4729, 0.0
          %v4970 = vmax.f32 %v4730, 0.0
          %v4971 = vmax.f32 %v4731, 0.0
          %v4972 = vmax.f32 %v4732, 0.0
          %v4973 = vmax.f32 %v4733, 0.0
          %v4974 = vmax.f32 %v4734, 0.0
          %v4975 = vmax.f32 %v4735, 0.0
          %v4976 = vmax.f32 %v4736, 0.0
          %v4977 = vmax.f32 %v4737, 0.0
          %v4978 = vmax.f32 %v4738, 0.0
          %v4979 = vmax.f32 %v4739, 0.0
          %v4980 = vmax.f32 %v4740, 0.0
          %v4981 = vmax.f32 %v4741, 0.0
          %v4982 = vmax.f32 %v4742, 0.0
          %v4983 = vmax.f32 %v4743, 0.0
          %v4984 = vmax.f32 %v4744, 0.0
          %v4985 = vmax.f32 %v4745, 0.0
          %v4986 = vmax.f32 %v4746, 0.0
          %v4987 = vmax.f32 %v4747, 0.0
          %v4988 = vmax.f32 %v4748, 0.0
          %v4989 = vmax.f32 %v4749, 0.0
          %v4990 = vmax.f32 %v4750, 0.0
          %v4991 = vmax.f32 %v4751, 0.0
          %v4992 = vmax.f32 %v4752, 0.0
          %v4993 = vmax.f32 %v4753, 0.0
          %v4994 = vmax.f32 %v4754, 0.0
          %v4995 = vmax.f32 %v4755, 0.0
          %v4996 = vmax.f32 %v4756, 0.0
          %v4997 = vmax.f32 %v4757, 0.0
          %v4998 = vmax.f32 %v4758, 0.0
          %v4999 = vmax.f32 %v4759, 0.0
          %v5000 = vmax.f32 %v4760, 0.0
          %v5001 = vmax.f32 %v4761, 0.0
          %v5002 = vmax.f32 %v4762, 0.0
          %v5003 = vmax.f32 %v4763, 0.0
          %v5004 = vmax.f32 %v4764, 0.0
          %v5005 = vmax.f32 %v4765, 0.0
          %v5006 = vmax.f32 %v4766, 0.0
          %v5007 = vmax.f32 %v4767, 0.0
          %v5008 = vmax.f32 %v4768, 0.0
          %v5009 = vmax.f32 %v4769, 0.0
          %v5010 = vmax.f32 %v4770, 0.0
          %v5011 = vmax.f32 %v4771, 0.0
          %v5012 = vmax.f32 %v4772, 0.0
          %v5013 = vmax.f32 %v4773, 0.0
          %v5014 = vmax.f32 %v4774, 0.0
          %v5015 = vmax.f32 %v4775, 0.0
          %v5016 = vmax.f32 %v4776, 0.0
          %v5017 = vmax.f32 %v4777, 0.0
          %v5018 = vmax.f32 %v4778, 0.0
          %v5019 = vmax.f32 %v4779, 0.0
          %v5020 = vmax.f32 %v4780, 0.0
          %v5021 = vmax.f32 %v4781, 0.0
          %v5022 = vmax.f32 %v4782, 0.0
          %v5023 = vmax.f32 %v4783, 0.0
          %v5024 = vmax.f32 %v4784, 0.0
          %v5025 = vmax.f32 %v4785, 0.0
          %v5026 = vmax.f32 %v4786, 0.0
          %v5027 = vmax.f32 %v4787, 0.0
          %v5028 = vmax.f32 %v4788, 0.0
          %v5029 = vmax.f32 %v4789, 0.0
          %v5030 = vmax.f32 %v4790, 0.0
          %v5031 = vmax.f32 %v4791, 0.0
          %v5032 = vmax.f32 %v4792, 0.0
          %v5033 = vmax.f32 %v4793, 0.0
          %v5034 = vmax.f32 %v4794, 0.0
          %v5035 = vmax.f32 %v4795, 0.0
          %v5036 = vmax.f32 %v4796, 0.0
          %v5037 = vmax.f32 %v4797, 0.0
          %v5038 = vmax.f32 %v4798, 0.0
          %v5039 = vmax.f32 %v4799, 0.0
          %v5040 = vmax.f32 %v4800, 0.0
          %v5041 = vmax.f32 %v4801, 0.0
          %v5042 = vmax.f32 %v4802, 0.0
          %v5043 = vmax.f32 %v4803, 0.0
          %v5044 = vmax.f32 %v4804, 0.0
          %v5045 = vmax.f32 %v4805, 0.0
          %v5046 = vmax.f32 %v4806, 0.0
          %v5047 = vmax.f32 %v4807, 0.0
          %v5048 = vmax.f32 %v4808, 0.0
          %v5049 = vmax.f32 %v4809, 0.0
          %v5050 = vmax.f32 %v4810, 0.0
          %v5051 = vmax.f32 %v4811, 0.0
          %v5052 = vmax.f32 %v4812, 0.0
          %v5053 = vmax.f32 %v4813, 0.0
          %v5054 = vmax.f32 %v4814, 0.0
          %v5055 = vmax.f32 %v4815, 0.0
          %v5056 = vmax.f32 %v4816, 0.0
          %v5057 = vmax.f32 %v4817, 0.0
          %v5058 = vmax.f32 %v4818, 0.0
          %v5059 = vmax.f32 %v4819, 0.0
          %v5060 = vmax.f32 %v4820, 0.0
          %v5061 = vmax.f32 %v4821, 0.0
          %v5062 = vmax.f32 %v4822, 0.0
          %v5063 = vmax.f32 %v4823, 0.0
          %v5064 = vmax.f32 %v4824, 0.0
          %v5065 = vmax.f32 %v4825, 0.0
          %v5066 = vmax.f32 %v4826, 0.0
          %v5067 = vmax.f32 %v4827, 0.0
          %v5068 = vmax.f32 %v4828, 0.0
          %v5069 = vmax.f32 %v4829, 0.0
          %v5070 = vmax.f32 %v4830, 0.0
          %v5071 = vmax.f32 %v4831, 0.0
          %v5072 = vmax.f32 %v4832, 0.0
          %v5073 = vmax.f32 %v4833, 0.0
          %v5074 = vmax.f32 %v4834, 0.0
          %v5075 = vmax.f32 %v4835, 0.0
          %v5076 = vmax.f32 %v4836, 0.0
          %v5077 = vmax.f32 %v4837, 0.0
          %v5078 = vmax.f32 %v4838, 0.0
          %v5079 = vmax.f32 %v4839, 0.0
          %v5080 = vmax.f32 %v4840, 0.0
          %v5081 = vmax.f32 %v4841, 0.0
          %v5082 = vmax.f32 %v4842, 0.0
          %v5083 = vmax.f32 %v4843, 0.0
          %v5084 = vmax.f32 %v4844, 0.0
          %v5085 = vmax.f32 %v4845, 0.0
          %v5086 = vmax.f32 %v4846, 0.0
          %v5087 = vmax.f32 %v4847, 0.0
          %v5088 = vmax.f32 %v4848, 0.0
          %v5089 = vmax.f32 %v4849, 0.0
          %v5090 = vmax.f32 %v4850, 0.0
          %v5091 = vmax.f32 %v4851, 0.0
          %v5092 = vmax.f32 %v4852, 0.0
          %v5093 = vmax.f32 %v4853, 0.0
          %v5094 = vmax.f32 %v4854, 0.0
          %v5095 = vmax.f32 %v4855, 0.0
          %v5096 = vmax.f32 %v4856, 0.0
          %v5097 = vmax.f32 %v4857, 0.0
          %v5098 = vmax.f32 %v4858, 0.0
          %v5099 = vmax.f32 %v4859, 0.0
          %v5100 = vmax.f32 %v4860, 0.0
          %v5101 = vmax.f32 %v4861, 0.0
          %v5102 = vmax.f32 %v4862, 0.0
          %v5103 = vmax.f32 %v4863, 0.0
          %v5104 = vmax.f32 %v4864, 0.0
          %v5105 = vmax.f32 %v4865, 0.0
          %v5106 = vmax.f32 %v4866, 0.0
          %v5107 = vmax.f32 %v4867, 0.0
          %v5108 = vmax.f32 %v4868, 0.0
          %v5109 = vmax.f32 %v4869, 0.0
          %v5110 = vmax.f32 %v4870, 0.0
          %v5111 = vmax.f32 %v4871, 0.0
          %v5112 = vmax.f32 %v4872, 0.0
          %v5113 = vmax.f32 %v4873, 0.0
          %v5114 = vmax.f32 %v4874, 0.0
          %v5115 = vmax.f32 %v4875, 0.0
          %v5116 = vmax.f32 %v4876, 0.0
          %v5117 = vmax.f32 %v4877, 0.0
          %v5118 = vmax.f32 %v4878, 0.0
          %v5119 = vmax.f32 %v4879, 0.0
          %v5120 = vmax.f32 %v4880, 0.0
          %v5121 = vmax.f32 %v4881, 0.0
          %v5122 = vmax.f32 %v4882, 0.0
          %v5123 = vmax.f32 %v4883, 0.0
          %v5124 = vmax.f32 %v4884, 0.0
          %v5125 = vmax.f32 %v4885, 0.0
          %v5126 = vmax.f32 %v4886, 0.0
          %v5127 = vmax.f32 %v4887, 0.0
          %v5128 = vmax.f32 %v4888, 0.0
          %v5129 = vmax.f32 %v4889, 0.0
          %v5130 = vmax.f32 %v4890, 0.0
          %v5131 = vmax.f32 %v4891, 0.0
          %v5132 = vmax.f32 %v4892, 0.0
          %v5133 = vmax.f32 %v4893, 0.0
          %v5134 = vmax.f32 %v4894, 0.0
          %v5135 = vmax.f32 %v4895, 0.0
          %v5136 = vmax.f32 %v4896, 0.0
          %v5137 = vmax.f32 %v4897, 0.0
          %v5138 = vmax.f32 %v4898, 0.0
          %v5139 = vmax.f32 %v4899, 0.0
          %v5140 = vlaneseq
          %v5141 = vshrl.u32 %v5140, 7
          %v5142 = vsub.s32 1, %v5141
          %v5143 = vrot.slane %v4405, %v5142
          %v5144 = vlaneseq
          %v5145 = vshrl.u32 %v5144, 7
          %v5146 = vsub.s32 1, %v5145
          %v5147 = vrot.slane %v4406, %v5146
          %v5148 = vlaneseq
          %v5149 = vshrl.u32 %v5148, 7
          %v5150 = vsub.s32 1, %v5149
          %v5151 = vrot.slane %v4407, %v5150
          %v5152 = vmul.f32 %v4900, %v5143
          %v5153 = vmul.f32 %v4901, %v5147
          %v5154 = vmul.f32 %v4902, %v5151
          %v5155 = vmul.f32 %v4903, %v5143
          %v5156 = vmul.f32 %v4904, %v5147
          %v5157 = vmul.f32 %v4905, %v5151
          %v5158 = vmul.f32 %v4906, %v5143
          %v5159 = vmul.f32 %v4907, %v5147
          %v5160 = vmul.f32 %v4908, %v5151
          %v5161 = vmul.f32 %v4909, %v5143
          %v5162 = vmul.f32 %v4910, %v5147
          %v5163 = vmul.f32 %v4911, %v5151
          %v5164 = vmul.f32 %v4912, %v5143
          %v5165 = vmul.f32 %v4913, %v5147
          %v5166 = vmul.f32 %v4914, %v5151
          %v5167 = vmul.f32 %v4915, %v5143
          %v5168 = vmul.f32 %v4916, %v5147
          %v5169 = vmul.f32 %v4917, %v5151
          %v5170 = vmul.f32 %v4918, %v5143
          %v5171 = vmul.f32 %v4919, %v5147
          %v5172 = vmul.f32 %v4920, %v5151
          %v5173 = vmul.f32 %v4921, %v5143
          %v5174 = vmul.f32 %v4922, %v5147
          %v5175 = vmul.f32 %v4923, %v5151
          %v5176 = vmul.f32 %v4924, %v5143
          %v5177 = vmul.f32 %v4925, %v5147
          %v5178 = vmul.f32 %v4926, %v5151
          %v5179 = vmul.f32 %v4927, %v5143
          %v5180 = vmul.f32 %v4928, %v5147
          %v5181 = vmul.f32 %v4929, %v5151
          %v5182 = vmul.f32 %v4930, %v5143
          %v5183 = vmul.f32 %v4931, %v5147
          %v5184 = vmul.f32 %v4932, %v5151
          %v5185 = vmul.f32 %v4933, %v5143
          %v5186 = vmul.f32 %v4934, %v5147
          %v5187 = vmul.f32 %v4935, %v5151
          %v5188 = vmul.f32 %v4936, %v5143
          %v5189 = vmul.f32 %v4937, %v5147
          %v5190 = vmul.f32 %v4938, %v5151
          %v5191 = vmul.f32 %v4939, %v5143
          %v5192 = vmul.f32 %v4940, %v5147
          %v5193 = vmul.f32 %v4941, %v5151
          %v5194 = vmul.f32 %v4942, %v5143
          %v5195 = vmul.f32 %v4943, %v5147
          %v5196 = vmul.f32 %v4944, %v5151
          %v5197 = vmul.f32 %v4945, %v5143
          %v5198 = vmul.f32 %v4946, %v5147
          %v5199 = vmul.f32 %v4947, %v5151
          %v5200 = vmul.f32 %v4948, %v5143
          %v5201 = vmul.f32 %v4949, %v5147
          %v5202 = vmul.f32 %v4950, %v5151
          %v5203 = vmul.f32 %v4951, %v5143
          %v5204 = vmul.f32 %v4952, %v5147
          %v5205 = vmul.f32 %v4953, %v5151
          %v5206 = vmul.f32 %v4954, %v5143
          %v5207 = vmul.f32 %v4955, %v5147
          %v5208 = vmul.f32 %v4956, %v5151
          %v5209 = vmul.f32 %v4957, %v5143
          %v5210 = vmul.f32 %v4958, %v5147
          %v5211 = vmul.f32 %v4959, %v5151
          %v5212 = vmul.f32 %v4960, %v5143
          %v5213 = vmul.f32 %v4961, %v5147
          %v5214 = vmul.f32 %v4962, %v5151
          %v5215 = vmul.f32 %v4963, %v5143
          %v5216 = vmul.f32 %v4964, %v5147
          %v5217 = vmul.f32 %v4965, %v5151
          %v5218 = vmul.f32 %v4966, %v5143
          %v5219 = vmul.f32 %v4967, %v5147
          %v5220 = vmul.f32 %v4968, %v5151
          %v5221 = vmul.f32 %v4969, %v5143
          %v5222 = vmul.f32 %v4970, %v5147
          %v5223 = vmul.f32 %v4971, %v5151
          %v5224 = vmul.f32 %v4972, %v5143
          %v5225 = vmul.f32 %v4973, %v5147
          %v5226 = vmul.f32 %v4974, %v5151
          %v5227 = vmul.f32 %v4975, %v5143
          %v5228 = vmul.f32 %v4976, %v5147
          %v5229 = vmul.f32 %v4977, %v5151
          %v5230 = vmul.f32 %v4978, %v5143
          %v5231 = vmul.f32 %v4979, %v5147
          %v5232 = vmul.f32 %v4980, %v5151
          %v5233 = vmul.f32 %v4981, %v5143
          %v5234 = vmul.f32 %v4982, %v5147
          %v5235 = vmul.f32 %v4983, %v5151
          %v5236 = vmul.f32 %v4984, %v5143
          %v5237 = vmul.f32 %v4985, %v5147
          %v5238 = vmul.f32 %v4986, %v5151
          %v5239 = vmul.f32 %v4987, %v5143
          %v5240 = vmul.f32 %v4988, %v5147
          %v5241 = vmul.f32 %v4989, %v5151
          %v5242 = vmul.f32 %v4990, %v5143
          %v5243 = vmul.f32 %v4991, %v5147
          %v5244 = vmul.f32 %v4992, %v5151
          %v5245 = vmul.f32 %v4993, %v5143
          %v5246 = vmul.f32 %v4994, %v5147
          %v5247 = vmul.f32 %v4995, %v5151
          %v5248 = vmul.f32 %v4996, %v5143
          %v5249 = vmul.f32 %v4997, %v5147
          %v5250 = vmul.f32 %v4998, %v5151
          %v5251 = vmul.f32 %v4999, %v5143
          %v5252 = vmul.f32 %v5000, %v5147
          %v5253 = vmul.f32 %v5001, %v5151
          %v5254 = vmul.f32 %v5002, %v5143
          %v5255 = vmul.f32 %v5003, %v5147
          %v5256 = vmul.f32 %v5004, %v5151
          %v5257 = vmul.f32 %v5005, %v5143
          %v5258 = vmul.f32 %v5006, %v5147
          %v5259 = vmul.f32 %v5007, %v5151
          %v5260 = vmul.f32 %v5008, %v5143
          %v5261 = vmul.f32 %v5009, %v5147
          %v5262 = vmul.f32 %v5010, %v5151
          %v5263 = vmul.f32 %v5011, %v5143
          %v5264 = vmul.f32 %v5012, %v5147
          %v5265 = vmul.f32 %v5013, %v5151
          %v5266 = vmul.f32 %v5014, %v5143
          %v5267 = vmul.f32 %v5015, %v5147
          %v5268 = vmul.f32 %v5016, %v5151
          %v5269 = vmul.f32 %v5017, %v5143
          %v5270 = vmul.f32 %v5018, %v5147
          %v5271 = vmul.f32 %v5019, %v5151
          %v5272 = vmul.f32 %v5020, %v5143
          %v5273 = vmul.f32 %v5021, %v5147
          %v5274 = vmul.f32 %v5022, %v5151
          %v5275 = vmul.f32 %v5023, %v5143
          %v5276 = vmul.f32 %v5024, %v5147
          %v5277 = vmul.f32 %v5025, %v5151
          %v5278 = vmul.f32 %v5026, %v5143
          %v5279 = vmul.f32 %v5027, %v5147
          %v5280 = vmul.f32 %v5028, %v5151
          %v5281 = vmul.f32 %v5029, %v5143
          %v5282 = vmul.f32 %v5030, %v5147
          %v5283 = vmul.f32 %v5031, %v5151
          %v5284 = vmul.f32 %v5032, %v5143
          %v5285 = vmul.f32 %v5033, %v5147
          %v5286 = vmul.f32 %v5034, %v5151
          %v5287 = vmul.f32 %v5035, %v5143
          %v5288 = vmul.f32 %v5036, %v5147
          %v5289 = vmul.f32 %v5037, %v5151
          %v5290 = vmul.f32 %v5038, %v5143
          %v5291 = vmul.f32 %v5039, %v5147
          %v5292 = vmul.f32 %v5040, %v5151
          %v5293 = vmul.f32 %v5041, %v5143
          %v5294 = vmul.f32 %v5042, %v5147
          %v5295 = vmul.f32 %v5043, %v5151
          %v5296 = vmul.f32 %v5044, %v5143
          %v5297 = vmul.f32 %v5045, %v5147
          %v5298 = vmul.f32 %v5046, %v5151
          %v5299 = vmul.f32 %v5047, %v5143
          %v5300 = vmul.f32 %v5048, %v5147
          %v5301 = vmul.f32 %v5049, %v5151
          %v5302 = vmul.f32 %v5050, %v5143
          %v5303 = vmul.f32 %v5051, %v5147
          %v5304 = vmul.f32 %v5052, %v5151
          %v5305 = vmul.f32 %v5053, %v5143
          %v5306 = vmul.f32 %v5054, %v5147
          %v5307 = vmul.f32 %v5055, %v5151
          %v5308 = vmul.f32 %v5056, %v5143
          %v5309 = vmul.f32 %v5057, %v5147
          %v5310 = vmul.f32 %v5058, %v5151
          %v5311 = vmul.f32 %v5059, %v5143
          %v5312 = vmul.f32 %v5060, %v5147
          %v5313 = vmul.f32 %v5061, %v5151
          %v5314 = vmul.f32 %v5062, %v5143
          %v5315 = vmul.f32 %v5063, %v5147
          %v5316 = vmul.f32 %v5064, %v5151
          %v5317 = vmul.f32 %v5065, %v5143
          %v5318 = vmul.f32 %v5066, %v5147
          %v5319 = vmul.f32 %v5067, %v5151
          %v5320 = vmul.f32 %v5068, %v5143
          %v5321 = vmul.f32 %v5069, %v5147
          %v5322 = vmul.f32 %v5070, %v5151
          %v5323 = vmul.f32 %v5071, %v5143
          %v5324 = vmul.f32 %v5072, %v5147
          %v5325 = vmul.f32 %v5073, %v5151
          %v5326 = vmul.f32 %v5074, %v5143
          %v5327 = vmul.f32 %v5075, %v5147
          %v5328 = vmul.f32 %v5076, %v5151
          %v5329 = vmul.f32 %v5077, %v5143
          %v5330 = vmul.f32 %v5078, %v5147
          %v5331 = vmul.f32 %v5079, %v5151
          %v5332 = vmul.f32 %v5080, %v5143
          %v5333 = vmul.f32 %v5081, %v5147
          %v5334 = vmul.f32 %v5082, %v5151
          %v5335 = vmul.f32 %v5083, %v5143
          %v5336 = vmul.f32 %v5084, %v5147
          %v5337 = vmul.f32 %v5085, %v5151
          %v5338 = vmul.f32 %v5086, %v5143
          %v5339 = vmul.f32 %v5087, %v5147
          %v5340 = vmul.f32 %v5088, %v5151
          %v5341 = vmul.f32 %v5089, %v5143
          %v5342 = vmul.f32 %v5090, %v5147
          %v5343 = vmul.f32 %v5091, %v5151
          %v5344 = vmul.f32 %v5092, %v5143
          %v5345 = vmul.f32 %v5093, %v5147
          %v5346 = vmul.f32 %v5094, %v5151
          %v5347 = vmul.f32 %v5095, %v5143
          %v5348 = vmul.f32 %v5096, %v5147
          %v5349 = vmul.f32 %v5097, %v5151
          %v5350 = vmul.f32 %v5098, %v5143
          %v5351 = vmul.f32 %v5099, %v5147
          %v5352 = vmul.f32 %v5100, %v5151
          %v5353 = vmul.f32 %v5101, %v5143
          %v5354 = vmul.f32 %v5102, %v5147
          %v5355 = vmul.f32 %v5103, %v5151
          %v5356 = vmul.f32 %v5104, %v5143
          %v5357 = vmul.f32 %v5105, %v5147
          %v5358 = vmul.f32 %v5106, %v5151
          %v5359 = vmul.f32 %v5107, %v5143
          %v5360 = vmul.f32 %v5108, %v5147
          %v5361 = vmul.f32 %v5109, %v5151
          %v5362 = vmul.f32 %v5110, %v5143
          %v5363 = vmul.f32 %v5111, %v5147
          %v5364 = vmul.f32 %v5112, %v5151
          %v5365 = vmul.f32 %v5113, %v5143
          %v5366 = vmul.f32 %v5114, %v5147
          %v5367 = vmul.f32 %v5115, %v5151
          %v5368 = vmul.f32 %v5116, %v5143
          %v5369 = vmul.f32 %v5117, %v5147
          %v5370 = vmul.f32 %v5118, %v5151
          %v5371 = vmul.f32 %v5119, %v5143
          %v5372 = vmul.f32 %v5120, %v5147
          %v5373 = vmul.f32 %v5121, %v5151
          %v5374 = vmul.f32 %v5122, %v5143
          %v5375 = vmul.f32 %v5123, %v5147
          %v5376 = vmul.f32 %v5124, %v5151
          %v5377 = vmul.f32 %v5125, %v5143
          %v5378 = vmul.f32 %v5126, %v5147
          %v5379 = vmul.f32 %v5127, %v5151
          %v5380 = vmul.f32 %v5128, %v5143
          %v5381 = vmul.f32 %v5129, %v5147
          %v5382 = vmul.f32 %v5130, %v5151
          %v5383 = vmul.f32 %v5131, %v5143
          %v5384 = vmul.f32 %v5132, %v5147
          %v5385 = vmul.f32 %v5133, %v5151
          %v5386 = vmul.f32 %v5134, %v5143
          %v5387 = vmul.f32 %v5135, %v5147
          %v5388 = vmul.f32 %v5136, %v5151
          %v5389 = vmul.f32 %v5137, %v5143
          %v5390 = vmul.f32 %v5138, %v5147
          %v5391 = vmul.f32 %v5139, %v5151
          %v5392 = vadd.f32 %v5152, %v5153
          %v5393 = vadd.f32 %v5392, %v5154
          %5394 = vadd.xlane.f32.xlu0 %v5393
          %v5395 = vpop.xlane.xlu0 %5394
          %v5396 = vadd.f32 %v5155, %v5156
          %v5397 = vadd.f32 %v5396, %v5157
          %5398 = vadd.xlane.f32.xlu0 %v5397
          %v5399 = vpop.xlane.xlu0 %5398
          %v5400 = vadd.f32 %v5158, %v5159
          %v5401 = vadd.f32 %v5400, %v5160
          %5402 = vadd.xlane.f32.xlu0 %v5401
          %v5403 = vpop.xlane.xlu0 %5402
          %v5404 = vadd.f32 %v5161, %v5162
          %v5405 = vadd.f32 %v5404, %v5163
          %5406 = vadd.xlane.f32.xlu0 %v5405
          %v5407 = vpop.xlane.xlu0 %5406
          %v5408 = vadd.f32 %v5164, %v5165
          %v5409 = vadd.f32 %v5408, %v5166
          %5410 = vadd.xlane.f32.xlu0 %v5409
          %v5411 = vpop.xlane.xlu0 %5410
          %v5412 = vadd.f32 %v5167, %v5168
          %v5413 = vadd.f32 %v5412, %v5169
          %5414 = vadd.xlane.f32.xlu0 %v5413
          %v5415 = vpop.xlane.xlu0 %5414
          %v5416 = vadd.f32 %v5170, %v5171
          %v5417 = vadd.f32 %v5416, %v5172
          %5418 = vadd.xlane.f32.xlu0 %v5417
          %v5419 = vpop.xlane.xlu0 %5418
          %v5420 = vadd.f32 %v5173, %v5174
          %v5421 = vadd.f32 %v5420, %v5175
          %5422 = vadd.xlane.f32.xlu0 %v5421
          %v5423 = vpop.xlane.xlu0 %5422
          %v5424 = vadd.f32 %v5176, %v5177
          %v5425 = vadd.f32 %v5424, %v5178
          %5426 = vadd.xlane.f32.xlu0 %v5425
          %v5427 = vpop.xlane.xlu0 %5426
          %v5428 = vadd.f32 %v5179, %v5180
          %v5429 = vadd.f32 %v5428, %v5181
          %5430 = vadd.xlane.f32.xlu0 %v5429
          %v5431 = vpop.xlane.xlu0 %5430
          %v5432 = vadd.f32 %v5182, %v5183
          %v5433 = vadd.f32 %v5432, %v5184
          %5434 = vadd.xlane.f32.xlu0 %v5433
          %v5435 = vpop.xlane.xlu0 %5434
          %v5436 = vadd.f32 %v5185, %v5186
          %v5437 = vadd.f32 %v5436, %v5187
          %5438 = vadd.xlane.f32.xlu0 %v5437
          %v5439 = vpop.xlane.xlu0 %5438
          %v5440 = vadd.f32 %v5188, %v5189
          %v5441 = vadd.f32 %v5440, %v5190
          %5442 = vadd.xlane.f32.xlu0 %v5441
          %v5443 = vpop.xlane.xlu0 %5442
          %v5444 = vadd.f32 %v5191, %v5192
          %v5445 = vadd.f32 %v5444, %v5193
          %5446 = vadd.xlane.f32.xlu0 %v5445
          %v5447 = vpop.xlane.xlu0 %5446
          %v5448 = vadd.f32 %v5194, %v5195
          %v5449 = vadd.f32 %v5448, %v5196
          %5450 = vadd.xlane.f32.xlu0 %v5449
          %v5451 = vpop.xlane.xlu0 %5450
          %v5452 = vadd.f32 %v5197, %v5198
          %v5453 = vadd.f32 %v5452, %v5199
          %5454 = vadd.xlane.f32.xlu0 %v5453
          %v5455 = vpop.xlane.xlu0 %5454
          %v5456 = vadd.f32 %v5200, %v5201
          %v5457 = vadd.f32 %v5456, %v5202
          %5458 = vadd.xlane.f32.xlu0 %v5457
          %v5459 = vpop.xlane.xlu0 %5458
          %v5460 = vadd.f32 %v5203, %v5204
          %v5461 = vadd.f32 %v5460, %v5205
          %5462 = vadd.xlane.f32.xlu0 %v5461
          %v5463 = vpop.xlane.xlu0 %5462
          %v5464 = vadd.f32 %v5206, %v5207
          %v5465 = vadd.f32 %v5464, %v5208
          %5466 = vadd.xlane.f32.xlu0 %v5465
          %v5467 = vpop.xlane.xlu0 %5466
          %v5468 = vadd.f32 %v5209, %v5210
          %v5469 = vadd.f32 %v5468, %v5211
          %5470 = vadd.xlane.f32.xlu0 %v5469
          %v5471 = vpop.xlane.xlu0 %5470
          %v5472 = vadd.f32 %v5212, %v5213
          %v5473 = vadd.f32 %v5472, %v5214
          %5474 = vadd.xlane.f32.xlu0 %v5473
          %v5475 = vpop.xlane.xlu0 %5474
          %v5476 = vadd.f32 %v5215, %v5216
          %v5477 = vadd.f32 %v5476, %v5217
          %5478 = vadd.xlane.f32.xlu0 %v5477
          %v5479 = vpop.xlane.xlu0 %5478
          %v5480 = vadd.f32 %v5218, %v5219
          %v5481 = vadd.f32 %v5480, %v5220
          %5482 = vadd.xlane.f32.xlu0 %v5481
          %v5483 = vpop.xlane.xlu0 %5482
          %v5484 = vadd.f32 %v5221, %v5222
          %v5485 = vadd.f32 %v5484, %v5223
          %5486 = vadd.xlane.f32.xlu0 %v5485
          %v5487 = vpop.xlane.xlu0 %5486
          %v5488 = vadd.f32 %v5224, %v5225
          %v5489 = vadd.f32 %v5488, %v5226
          %5490 = vadd.xlane.f32.xlu0 %v5489
          %v5491 = vpop.xlane.xlu0 %5490
          %v5492 = vadd.f32 %v5227, %v5228
          %v5493 = vadd.f32 %v5492, %v5229
          %5494 = vadd.xlane.f32.xlu0 %v5493
          %v5495 = vpop.xlane.xlu0 %5494
          %v5496 = vadd.f32 %v5230, %v5231
          %v5497 = vadd.f32 %v5496, %v5232
          %5498 = vadd.xlane.f32.xlu0 %v5497
          %v5499 = vpop.xlane.xlu0 %5498
          %v5500 = vadd.f32 %v5233, %v5234
          %v5501 = vadd.f32 %v5500, %v5235
          %5502 = vadd.xlane.f32.xlu0 %v5501
          %v5503 = vpop.xlane.xlu0 %5502
          %v5504 = vadd.f32 %v5236, %v5237
          %v5505 = vadd.f32 %v5504, %v5238
          %5506 = vadd.xlane.f32.xlu0 %v5505
          %v5507 = vpop.xlane.xlu0 %5506
          %v5508 = vadd.f32 %v5239, %v5240
          %v5509 = vadd.f32 %v5508, %v5241
          %5510 = vadd.xlane.f32.xlu0 %v5509
          %v5511 = vpop.xlane.xlu0 %5510
          %v5512 = vadd.f32 %v5242, %v5243
          %v5513 = vadd.f32 %v5512, %v5244
          %5514 = vadd.xlane.f32.xlu0 %v5513
          %v5515 = vpop.xlane.xlu0 %5514
          %v5516 = vadd.f32 %v5245, %v5246
          %v5517 = vadd.f32 %v5516, %v5247
          %5518 = vadd.xlane.f32.xlu0 %v5517
          %v5519 = vpop.xlane.xlu0 %5518
          %v5520 = vadd.f32 %v5248, %v5249
          %v5521 = vadd.f32 %v5520, %v5250
          %5522 = vadd.xlane.f32.xlu0 %v5521
          %v5523 = vpop.xlane.xlu0 %5522
          %v5524 = vadd.f32 %v5251, %v5252
          %v5525 = vadd.f32 %v5524, %v5253
          %5526 = vadd.xlane.f32.xlu0 %v5525
          %v5527 = vpop.xlane.xlu0 %5526
          %v5528 = vadd.f32 %v5254, %v5255
          %v5529 = vadd.f32 %v5528, %v5256
          %5530 = vadd.xlane.f32.xlu0 %v5529
          %v5531 = vpop.xlane.xlu0 %5530
          %v5532 = vadd.f32 %v5257, %v5258
          %v5533 = vadd.f32 %v5532, %v5259
          %5534 = vadd.xlane.f32.xlu0 %v5533
          %v5535 = vpop.xlane.xlu0 %5534
          %v5536 = vadd.f32 %v5260, %v5261
          %v5537 = vadd.f32 %v5536, %v5262
          %5538 = vadd.xlane.f32.xlu0 %v5537
          %v5539 = vpop.xlane.xlu0 %5538
          %v5540 = vadd.f32 %v5263, %v5264
          %v5541 = vadd.f32 %v5540, %v5265
          %5542 = vadd.xlane.f32.xlu0 %v5541
          %v5543 = vpop.xlane.xlu0 %5542
          %v5544 = vadd.f32 %v5266, %v5267
          %v5545 = vadd.f32 %v5544, %v5268
          %5546 = vadd.xlane.f32.xlu0 %v5545
          %v5547 = vpop.xlane.xlu0 %5546
          %v5548 = vadd.f32 %v5269, %v5270
          %v5549 = vadd.f32 %v5548, %v5271
          %5550 = vadd.xlane.f32.xlu0 %v5549
          %v5551 = vpop.xlane.xlu0 %5550
          %v5552 = vadd.f32 %v5272, %v5273
          %v5553 = vadd.f32 %v5552, %v5274
          %5554 = vadd.xlane.f32.xlu0 %v5553
          %v5555 = vpop.xlane.xlu0 %5554
          %v5556 = vadd.f32 %v5275, %v5276
          %v5557 = vadd.f32 %v5556, %v5277
          %5558 = vadd.xlane.f32.xlu0 %v5557
          %v5559 = vpop.xlane.xlu0 %5558
          %v5560 = vadd.f32 %v5278, %v5279
          %v5561 = vadd.f32 %v5560, %v5280
          %5562 = vadd.xlane.f32.xlu0 %v5561
          %v5563 = vpop.xlane.xlu0 %5562
          %v5564 = vadd.f32 %v5281, %v5282
          %v5565 = vadd.f32 %v5564, %v5283
          %5566 = vadd.xlane.f32.xlu0 %v5565
          %v5567 = vpop.xlane.xlu0 %5566
          %v5568 = vadd.f32 %v5284, %v5285
          %v5569 = vadd.f32 %v5568, %v5286
          %5570 = vadd.xlane.f32.xlu0 %v5569
          %v5571 = vpop.xlane.xlu0 %5570
          %v5572 = vadd.f32 %v5287, %v5288
          %v5573 = vadd.f32 %v5572, %v5289
          %5574 = vadd.xlane.f32.xlu0 %v5573
          %v5575 = vpop.xlane.xlu0 %5574
          %v5576 = vadd.f32 %v5290, %v5291
          %v5577 = vadd.f32 %v5576, %v5292
          %5578 = vadd.xlane.f32.xlu0 %v5577
          %v5579 = vpop.xlane.xlu0 %5578
          %v5580 = vadd.f32 %v5293, %v5294
          %v5581 = vadd.f32 %v5580, %v5295
          %5582 = vadd.xlane.f32.xlu0 %v5581
          %v5583 = vpop.xlane.xlu0 %5582
          %v5584 = vadd.f32 %v5296, %v5297
          %v5585 = vadd.f32 %v5584, %v5298
          %5586 = vadd.xlane.f32.xlu0 %v5585
          %v5587 = vpop.xlane.xlu0 %5586
          %v5588 = vadd.f32 %v5299, %v5300
          %v5589 = vadd.f32 %v5588, %v5301
          %5590 = vadd.xlane.f32.xlu0 %v5589
          %v5591 = vpop.xlane.xlu0 %5590
          %v5592 = vadd.f32 %v5302, %v5303
          %v5593 = vadd.f32 %v5592, %v5304
          %5594 = vadd.xlane.f32.xlu0 %v5593
          %v5595 = vpop.xlane.xlu0 %5594
          %v5596 = vadd.f32 %v5305, %v5306
          %v5597 = vadd.f32 %v5596, %v5307
          %5598 = vadd.xlane.f32.xlu0 %v5597
          %v5599 = vpop.xlane.xlu0 %5598
          %v5600 = vadd.f32 %v5308, %v5309
          %v5601 = vadd.f32 %v5600, %v5310
          %5602 = vadd.xlane.f32.xlu0 %v5601
          %v5603 = vpop.xlane.xlu0 %5602
          %v5604 = vadd.f32 %v5311, %v5312
          %v5605 = vadd.f32 %v5604, %v5313
          %5606 = vadd.xlane.f32.xlu0 %v5605
          %v5607 = vpop.xlane.xlu0 %5606
          %v5608 = vadd.f32 %v5314, %v5315
          %v5609 = vadd.f32 %v5608, %v5316
          %5610 = vadd.xlane.f32.xlu0 %v5609
          %v5611 = vpop.xlane.xlu0 %5610
          %v5612 = vadd.f32 %v5317, %v5318
          %v5613 = vadd.f32 %v5612, %v5319
          %5614 = vadd.xlane.f32.xlu0 %v5613
          %v5615 = vpop.xlane.xlu0 %5614
          %v5616 = vadd.f32 %v5320, %v5321
          %v5617 = vadd.f32 %v5616, %v5322
          %5618 = vadd.xlane.f32.xlu0 %v5617
          %v5619 = vpop.xlane.xlu0 %5618
          %v5620 = vadd.f32 %v5323, %v5324
          %v5621 = vadd.f32 %v5620, %v5325
          %5622 = vadd.xlane.f32.xlu0 %v5621
          %v5623 = vpop.xlane.xlu0 %5622
          %v5624 = vadd.f32 %v5326, %v5327
          %v5625 = vadd.f32 %v5624, %v5328
          %5626 = vadd.xlane.f32.xlu0 %v5625
          %v5627 = vpop.xlane.xlu0 %5626
          %v5628 = vadd.f32 %v5329, %v5330
          %v5629 = vadd.f32 %v5628, %v5331
          %5630 = vadd.xlane.f32.xlu0 %v5629
          %v5631 = vpop.xlane.xlu0 %5630
          %v5632 = vadd.f32 %v5332, %v5333
          %v5633 = vadd.f32 %v5632, %v5334
          %5634 = vadd.xlane.f32.xlu0 %v5633
          %v5635 = vpop.xlane.xlu0 %5634
          %v5636 = vadd.f32 %v5335, %v5336
          %v5637 = vadd.f32 %v5636, %v5337
          %5638 = vadd.xlane.f32.xlu0 %v5637
          %v5639 = vpop.xlane.xlu0 %5638
          %v5640 = vadd.f32 %v5338, %v5339
          %v5641 = vadd.f32 %v5640, %v5340
          %5642 = vadd.xlane.f32.xlu0 %v5641
          %v5643 = vpop.xlane.xlu0 %5642
          %v5644 = vadd.f32 %v5341, %v5342
          %v5645 = vadd.f32 %v5644, %v5343
          %5646 = vadd.xlane.f32.xlu0 %v5645
          %v5647 = vpop.xlane.xlu0 %5646
          %v5648 = vadd.f32 %v5344, %v5345
          %v5649 = vadd.f32 %v5648, %v5346
          %5650 = vadd.xlane.f32.xlu0 %v5649
          %v5651 = vpop.xlane.xlu0 %5650
          %v5652 = vadd.f32 %v5347, %v5348
          %v5653 = vadd.f32 %v5652, %v5349
          %5654 = vadd.xlane.f32.xlu0 %v5653
          %v5655 = vpop.xlane.xlu0 %5654
          %v5656 = vadd.f32 %v5350, %v5351
          %v5657 = vadd.f32 %v5656, %v5352
          %5658 = vadd.xlane.f32.xlu0 %v5657
          %v5659 = vpop.xlane.xlu0 %5658
          %v5660 = vadd.f32 %v5353, %v5354
          %v5661 = vadd.f32 %v5660, %v5355
          %5662 = vadd.xlane.f32.xlu0 %v5661
          %v5663 = vpop.xlane.xlu0 %5662
          %v5664 = vadd.f32 %v5356, %v5357
          %v5665 = vadd.f32 %v5664, %v5358
          %5666 = vadd.xlane.f32.xlu0 %v5665
          %v5667 = vpop.xlane.xlu0 %5666
          %v5668 = vadd.f32 %v5359, %v5360
          %v5669 = vadd.f32 %v5668, %v5361
          %5670 = vadd.xlane.f32.xlu0 %v5669
          %v5671 = vpop.xlane.xlu0 %5670
          %v5672 = vadd.f32 %v5362, %v5363
          %v5673 = vadd.f32 %v5672, %v5364
          %5674 = vadd.xlane.f32.xlu0 %v5673
          %v5675 = vpop.xlane.xlu0 %5674
          %v5676 = vadd.f32 %v5365, %v5366
          %v5677 = vadd.f32 %v5676, %v5367
          %5678 = vadd.xlane.f32.xlu0 %v5677
          %v5679 = vpop.xlane.xlu0 %5678
          %v5680 = vadd.f32 %v5368, %v5369
          %v5681 = vadd.f32 %v5680, %v5370
          %5682 = vadd.xlane.f32.xlu0 %v5681
          %v5683 = vpop.xlane.xlu0 %5682
          %v5684 = vadd.f32 %v5371, %v5372
          %v5685 = vadd.f32 %v5684, %v5373
          %5686 = vadd.xlane.f32.xlu0 %v5685
          %v5687 = vpop.xlane.xlu0 %5686
          %v5688 = vadd.f32 %v5374, %v5375
          %v5689 = vadd.f32 %v5688, %v5376
          %5690 = vadd.xlane.f32.xlu0 %v5689
          %v5691 = vpop.xlane.xlu0 %5690
          %v5692 = vadd.f32 %v5377, %v5378
          %v5693 = vadd.f32 %v5692, %v5379
          %5694 = vadd.xlane.f32.xlu0 %v5693
          %v5695 = vpop.xlane.xlu0 %5694
          %v5696 = vadd.f32 %v5380, %v5381
          %v5697 = vadd.f32 %v5696, %v5382
          %5698 = vadd.xlane.f32.xlu0 %v5697
          %v5699 = vpop.xlane.xlu0 %5698
          %v5700 = vadd.f32 %v5383, %v5384
          %v5701 = vadd.f32 %v5700, %v5385
          %5702 = vadd.xlane.f32.xlu0 %v5701
          %v5703 = vpop.xlane.xlu0 %5702
          %v5704 = vadd.f32 %v5386, %v5387
          %v5705 = vadd.f32 %v5704, %v5388
          %5706 = vadd.xlane.f32.xlu0 %v5705
          %v5707 = vpop.xlane.xlu0 %5706
          %v5708 = vadd.f32 %v5389, %v5390
          %v5709 = vadd.f32 %v5708, %v5391
          %5710 = vadd.xlane.f32.xlu0 %v5709
          %v5711 = vpop.xlane.xlu0 %5710
          %v5712 = vlaneseq
          %v5713 = vshrl.u32 %v5712, 7
          %v5714 = vsub.s32 4, %v5713
          %v5715 = vrot.slane %v4405, %v5714
          %v5716 = vadd.f32 %v5395, %v5715
          %v5717 = vadd.f32 %v5399, %v5715
          %v5718 = vadd.f32 %v5403, %v5715
          %v5719 = vadd.f32 %v5407, %v5715
          %v5720 = vadd.f32 %v5411, %v5715
          %v5721 = vadd.f32 %v5415, %v5715
          %v5722 = vadd.f32 %v5419, %v5715
          %v5723 = vadd.f32 %v5423, %v5715
          %v5724 = vadd.f32 %v5427, %v5715
          %v5725 = vadd.f32 %v5431, %v5715
          %v5726 = vadd.f32 %v5435, %v5715
          %v5727 = vadd.f32 %v5439, %v5715
          %v5728 = vadd.f32 %v5443, %v5715
          %v5729 = vadd.f32 %v5447, %v5715
          %v5730 = vadd.f32 %v5451, %v5715
          %v5731 = vadd.f32 %v5455, %v5715
          %v5732 = vadd.f32 %v5459, %v5715
          %v5733 = vadd.f32 %v5463, %v5715
          %v5734 = vadd.f32 %v5467, %v5715
          %v5735 = vadd.f32 %v5471, %v5715
          %v5736 = vadd.f32 %v5475, %v5715
          %v5737 = vadd.f32 %v5479, %v5715
          %v5738 = vadd.f32 %v5483, %v5715
          %v5739 = vadd.f32 %v5487, %v5715
          %v5740 = vadd.f32 %v5491, %v5715
          %v5741 = vadd.f32 %v5495, %v5715
          %v5742 = vadd.f32 %v5499, %v5715
          %v5743 = vadd.f32 %v5503, %v5715
          %v5744 = vadd.f32 %v5507, %v5715
          %v5745 = vadd.f32 %v5511, %v5715
          %v5746 = vadd.f32 %v5515, %v5715
          %v5747 = vadd.f32 %v5519, %v5715
          %v5748 = vadd.f32 %v5523, %v5715
          %v5749 = vadd.f32 %v5527, %v5715
          %v5750 = vadd.f32 %v5531, %v5715
          %v5751 = vadd.f32 %v5535, %v5715
          %v5752 = vadd.f32 %v5539, %v5715
          %v5753 = vadd.f32 %v5543, %v5715
          %v5754 = vadd.f32 %v5547, %v5715
          %v5755 = vadd.f32 %v5551, %v5715
          %v5756 = vadd.f32 %v5555, %v5715
          %v5757 = vadd.f32 %v5559, %v5715
          %v5758 = vadd.f32 %v5563, %v5715
          %v5759 = vadd.f32 %v5567, %v5715
          %v5760 = vadd.f32 %v5571, %v5715
          %v5761 = vadd.f32 %v5575, %v5715
          %v5762 = vadd.f32 %v5579, %v5715
          %v5763 = vadd.f32 %v5583, %v5715
          %v5764 = vadd.f32 %v5587, %v5715
          %v5765 = vadd.f32 %v5591, %v5715
          %v5766 = vadd.f32 %v5595, %v5715
          %v5767 = vadd.f32 %v5599, %v5715
          %v5768 = vadd.f32 %v5603, %v5715
          %v5769 = vadd.f32 %v5607, %v5715
          %v5770 = vadd.f32 %v5611, %v5715
          %v5771 = vadd.f32 %v5615, %v5715
          %v5772 = vadd.f32 %v5619, %v5715
          %v5773 = vadd.f32 %v5623, %v5715
          %v5774 = vadd.f32 %v5627, %v5715
          %v5775 = vadd.f32 %v5631, %v5715
          %v5776 = vadd.f32 %v5635, %v5715
          %v5777 = vadd.f32 %v5639, %v5715
          %v5778 = vadd.f32 %v5643, %v5715
          %v5779 = vadd.f32 %v5647, %v5715
          %v5780 = vadd.f32 %v5651, %v5715
          %v5781 = vadd.f32 %v5655, %v5715
          %v5782 = vadd.f32 %v5659, %v5715
          %v5783 = vadd.f32 %v5663, %v5715
          %v5784 = vadd.f32 %v5667, %v5715
          %v5785 = vadd.f32 %v5671, %v5715
          %v5786 = vadd.f32 %v5675, %v5715
          %v5787 = vadd.f32 %v5679, %v5715
          %v5788 = vadd.f32 %v5683, %v5715
          %v5789 = vadd.f32 %v5687, %v5715
          %v5790 = vadd.f32 %v5691, %v5715
          %v5791 = vadd.f32 %v5695, %v5715
          %v5792 = vadd.f32 %v5699, %v5715
          %v5793 = vadd.f32 %v5703, %v5715
          %v5794 = vadd.f32 %v5707, %v5715
          %v5795 = vadd.f32 %v5711, %v5715
          %v5796 = vmax.f32 %v5716, 0.0
          %v5797 = vmax.f32 %v5717, 0.0
          %v5798 = vmax.f32 %v5718, 0.0
          %v5799 = vmax.f32 %v5719, 0.0
          %v5800 = vmax.f32 %v5720, 0.0
          %v5801 = vmax.f32 %v5721, 0.0
          %v5802 = vmax.f32 %v5722, 0.0
          %v5803 = vmax.f32 %v5723, 0.0
          %v5804 = vmax.f32 %v5724, 0.0
          %v5805 = vmax.f32 %v5725, 0.0
          %v5806 = vmax.f32 %v5726, 0.0
          %v5807 = vmax.f32 %v5727, 0.0
          %v5808 = vmax.f32 %v5728, 0.0
          %v5809 = vmax.f32 %v5729, 0.0
          %v5810 = vmax.f32 %v5730, 0.0
          %v5811 = vmax.f32 %v5731, 0.0
          %v5812 = vmax.f32 %v5732, 0.0
          %v5813 = vmax.f32 %v5733, 0.0
          %v5814 = vmax.f32 %v5734, 0.0
          %v5815 = vmax.f32 %v5735, 0.0
          %v5816 = vmax.f32 %v5736, 0.0
          %v5817 = vmax.f32 %v5737, 0.0
          %v5818 = vmax.f32 %v5738, 0.0
          %v5819 = vmax.f32 %v5739, 0.0
          %v5820 = vmax.f32 %v5740, 0.0
          %v5821 = vmax.f32 %v5741, 0.0
          %v5822 = vmax.f32 %v5742, 0.0
          %v5823 = vmax.f32 %v5743, 0.0
          %v5824 = vmax.f32 %v5744, 0.0
          %v5825 = vmax.f32 %v5745, 0.0
          %v5826 = vmax.f32 %v5746, 0.0
          %v5827 = vmax.f32 %v5747, 0.0
          %v5828 = vmax.f32 %v5748, 0.0
          %v5829 = vmax.f32 %v5749, 0.0
          %v5830 = vmax.f32 %v5750, 0.0
          %v5831 = vmax.f32 %v5751, 0.0
          %v5832 = vmax.f32 %v5752, 0.0
          %v5833 = vmax.f32 %v5753, 0.0
          %v5834 = vmax.f32 %v5754, 0.0
          %v5835 = vmax.f32 %v5755, 0.0
          %v5836 = vmax.f32 %v5756, 0.0
          %v5837 = vmax.f32 %v5757, 0.0
          %v5838 = vmax.f32 %v5758, 0.0
          %v5839 = vmax.f32 %v5759, 0.0
          %v5840 = vmax.f32 %v5760, 0.0
          %v5841 = vmax.f32 %v5761, 0.0
          %v5842 = vmax.f32 %v5762, 0.0
          %v5843 = vmax.f32 %v5763, 0.0
          %v5844 = vmax.f32 %v5764, 0.0
          %v5845 = vmax.f32 %v5765, 0.0
          %v5846 = vmax.f32 %v5766, 0.0
          %v5847 = vmax.f32 %v5767, 0.0
          %v5848 = vmax.f32 %v5768, 0.0
          %v5849 = vmax.f32 %v5769, 0.0
          %v5850 = vmax.f32 %v5770, 0.0
          %v5851 = vmax.f32 %v5771, 0.0
          %v5852 = vmax.f32 %v5772, 0.0
          %v5853 = vmax.f32 %v5773, 0.0
          %v5854 = vmax.f32 %v5774, 0.0
          %v5855 = vmax.f32 %v5775, 0.0
          %v5856 = vmax.f32 %v5776, 0.0
          %v5857 = vmax.f32 %v5777, 0.0
          %v5858 = vmax.f32 %v5778, 0.0
          %v5859 = vmax.f32 %v5779, 0.0
          %v5860 = vmax.f32 %v5780, 0.0
          %v5861 = vmax.f32 %v5781, 0.0
          %v5862 = vmax.f32 %v5782, 0.0
          %v5863 = vmax.f32 %v5783, 0.0
          %v5864 = vmax.f32 %v5784, 0.0
          %v5865 = vmax.f32 %v5785, 0.0
          %v5866 = vmax.f32 %v5786, 0.0
          %v5867 = vmax.f32 %v5787, 0.0
          %v5868 = vmax.f32 %v5788, 0.0
          %v5869 = vmax.f32 %v5789, 0.0
          %v5870 = vmax.f32 %v5790, 0.0
          %v5871 = vmax.f32 %v5791, 0.0
          %v5872 = vmax.f32 %v5792, 0.0
          %v5873 = vmax.f32 %v5793, 0.0
          %v5874 = vmax.f32 %v5794, 0.0
          %v5875 = vmax.f32 %v5795, 0.0
          %v5876 = vld [vmem:[%s2] sm:$0xff]
          %v5877 = vld [vmem:[%s2 + $0x8] sm:$0xff]
          %v5878 = vld [vmem:[%s2 + $0x10] sm:$0xff]
          %v5879 = vld [vmem:[%s2 + $0x18] sm:$0xff]
          %v5880 = vld [vmem:[%s2 + $0x20] sm:$0xff]
          %v5881 = vld [vmem:[%s2 + $0x28] sm:$0xff]
          %v5882 = vld [vmem:[%s2 + $0x30] sm:$0xff]
          %v5883 = vld [vmem:[%s2 + $0x38] sm:$0xff]
          %v5884 = vld [vmem:[%s2 + $0x40] sm:$0xff]
          %v5885 = vld [vmem:[%s2 + $0x48] sm:$0xff]
          %v5886 = vld [vmem:[%s2 + $0x50] sm:$0xff]
          %v5887 = vld [vmem:[%s2 + $0x58] sm:$0xff]
          %v5888 = vld [vmem:[%s2 + $0x60] sm:$0xff]
          %v5889 = vld [vmem:[%s2 + $0x68] sm:$0xff]
          %v5890 = vld [vmem:[%s2 + $0x70] sm:$0xff]
          %v5891 = vld [vmem:[%s2 + $0x78] sm:$0xff]
          %v5892 = vld [vmem:[%s2 + $0x80] sm:$0xff]
          %v5893 = vld [vmem:[%s2 + $0x88] sm:$0xff]
          %v5894 = vld [vmem:[%s2 + $0x90] sm:$0xff]
          %v5895 = vld [vmem:[%s2 + $0x98] sm:$0xff]
          %v5896 = vld [vmem:[%s2 + $0xa0] sm:$0xff]
          %v5897 = vld [vmem:[%s2 + $0xa8] sm:$0xff]
          %v5898 = vld [vmem:[%s2 + $0xb0] sm:$0xff]
          %v5899 = vld [vmem:[%s2 + $0xb8] sm:$0xff]
          %v5900 = vld [vmem:[%s2 + $0xc0] sm:$0xff]
          %v5901 = vld [vmem:[%s2 + $0xc8] sm:$0xff]
          %v5902 = vld [vmem:[%s2 + $0xd0] sm:$0xff]
          %v5903 = vld [vmem:[%s2 + $0xd8] sm:$0xff]
          %v5904 = vld [vmem:[%s2 + $0xe0] sm:$0xff]
          %v5905 = vld [vmem:[%s2 + $0xe8] sm:$0xff]
          %v5906 = vld [vmem:[%s2 + $0xf0] sm:$0xff]
          %v5907 = vld [vmem:[%s2 + $0xf8] sm:$0xff]
          %v5908 = vld [vmem:[%s2 + $0x100] sm:$0xff]
          %v5909 = vld [vmem:[%s2 + $0x108] sm:$0xff]
          %v5910 = vld [vmem:[%s2 + $0x110] sm:$0xff]
          %v5911 = vld [vmem:[%s2 + $0x118] sm:$0xff]
          %v5912 = vld [vmem:[%s2 + $0x120] sm:$0xff]
          %v5913 = vld [vmem:[%s2 + $0x128] sm:$0xff]
          %v5914 = vld [vmem:[%s2 + $0x130] sm:$0xff]
          %v5915 = vld [vmem:[%s2 + $0x138] sm:$0xff]
          %v5916 = vld [vmem:[%s2 + $0x140] sm:$0xff]
          %v5917 = vld [vmem:[%s2 + $0x148] sm:$0xff]
          %v5918 = vld [vmem:[%s2 + $0x150] sm:$0xff]
          %v5919 = vld [vmem:[%s2 + $0x158] sm:$0xff]
          %v5920 = vld [vmem:[%s2 + $0x160] sm:$0xff]
          %v5921 = vld [vmem:[%s2 + $0x168] sm:$0xff]
          %v5922 = vld [vmem:[%s2 + $0x170] sm:$0xff]
          %v5923 = vld [vmem:[%s2 + $0x178] sm:$0xff]
          %v5924 = vld [vmem:[%s2 + $0x180] sm:$0xff]
          %v5925 = vld [vmem:[%s2 + $0x188] sm:$0xff]
          %v5926 = vld [vmem:[%s2 + $0x190] sm:$0xff]
          %v5927 = vld [vmem:[%s2 + $0x198] sm:$0xff]
          %v5928 = vld [vmem:[%s2 + $0x1a0] sm:$0xff]
          %v5929 = vld [vmem:[%s2 + $0x1a8] sm:$0xff]
          %v5930 = vld [vmem:[%s2 + $0x1b0] sm:$0xff]
          %v5931 = vld [vmem:[%s2 + $0x1b8] sm:$0xff]
          %v5932 = vld [vmem:[%s2 + $0x1c0] sm:$0xff]
          %v5933 = vld [vmem:[%s2 + $0x1c8] sm:$0xff]
          %v5934 = vld [vmem:[%s2 + $0x1d0] sm:$0xff]
          %v5935 = vld [vmem:[%s2 + $0x1d8] sm:$0xff]
          %v5936 = vld [vmem:[%s2 + $0x1e0] sm:$0xff]
          %v5937 = vld [vmem:[%s2 + $0x1e8] sm:$0xff]
          %v5938 = vld [vmem:[%s2 + $0x1f0] sm:$0xff]
          %v5939 = vld [vmem:[%s2 + $0x1f8] sm:$0xff]
          %v5940 = vld [vmem:[%s2 + $0x200] sm:$0xff]
          %v5941 = vld [vmem:[%s2 + $0x208] sm:$0xff]
          %v5942 = vld [vmem:[%s2 + $0x210] sm:$0xff]
          %v5943 = vld [vmem:[%s2 + $0x218] sm:$0xff]
          %v5944 = vld [vmem:[%s2 + $0x220] sm:$0xff]
          %v5945 = vld [vmem:[%s2 + $0x228] sm:$0xff]
          %v5946 = vld [vmem:[%s2 + $0x230] sm:$0xff]
          %v5947 = vld [vmem:[%s2 + $0x238] sm:$0xff]
          %v5948 = vld [vmem:[%s2 + $0x240] sm:$0xff]
          %v5949 = vld [vmem:[%s2 + $0x248] sm:$0xff]
          %v5950 = vld [vmem:[%s2 + $0x250] sm:$0xff]
          %v5951 = vld [vmem:[%s2 + $0x258] sm:$0xff]
          %v5952 = vld [vmem:[%s2 + $0x260] sm:$0xff]
          %v5953 = vld [vmem:[%s2 + $0x268] sm:$0xff]
          %v5954 = vld [vmem:[%s2 + $0x270] sm:$0xff]
          %v5955 = vld [vmem:[%s2 + $0x278] sm:$0xff]
          %v5956 = vunpack.c.l.bf16 %v5876
          %v5957 = vunpack.c.h.bf16 %v5876
          %v5958 = vunpack.c.l.bf16 %v5877
          %v5959 = vunpack.c.h.bf16 %v5877
          %v5960 = vunpack.c.l.bf16 %v5878
          %v5961 = vunpack.c.h.bf16 %v5878
          %v5962 = vunpack.c.l.bf16 %v5879
          %v5963 = vunpack.c.h.bf16 %v5879
          %v5964 = vunpack.c.l.bf16 %v5880
          %v5965 = vunpack.c.h.bf16 %v5880
          %v5966 = vunpack.c.l.bf16 %v5881
          %v5967 = vunpack.c.h.bf16 %v5881
          %v5968 = vunpack.c.l.bf16 %v5882
          %v5969 = vunpack.c.h.bf16 %v5882
          %v5970 = vunpack.c.l.bf16 %v5883
          %v5971 = vunpack.c.h.bf16 %v5883
          %v5972 = vunpack.c.l.bf16 %v5884
          %v5973 = vunpack.c.h.bf16 %v5884
          %v5974 = vunpack.c.l.bf16 %v5885
          %v5975 = vunpack.c.h.bf16 %v5885
          %v5976 = vunpack.c.l.bf16 %v5886
          %v5977 = vunpack.c.h.bf16 %v5886
          %v5978 = vunpack.c.l.bf16 %v5887
          %v5979 = vunpack.c.h.bf16 %v5887
          %v5980 = vunpack.c.l.bf16 %v5888
          %v5981 = vunpack.c.h.bf16 %v5888
          %v5982 = vunpack.c.l.bf16 %v5889
          %v5983 = vunpack.c.h.bf16 %v5889
          %v5984 = vunpack.c.l.bf16 %v5890
          %v5985 = vunpack.c.h.bf16 %v5890
          %v5986 = vunpack.c.l.bf16 %v5891
          %v5987 = vunpack.c.h.bf16 %v5891
          %v5988 = vunpack.c.l.bf16 %v5892
          %v5989 = vunpack.c.h.bf16 %v5892
          %v5990 = vunpack.c.l.bf16 %v5893
          %v5991 = vunpack.c.h.bf16 %v5893
          %v5992 = vunpack.c.l.bf16 %v5894
          %v5993 = vunpack.c.h.bf16 %v5894
          %v5994 = vunpack.c.l.bf16 %v5895
          %v5995 = vunpack.c.h.bf16 %v5895
          %v5996 = vunpack.c.l.bf16 %v5896
          %v5997 = vunpack.c.h.bf16 %v5896
          %v5998 = vunpack.c.l.bf16 %v5897
          %v5999 = vunpack.c.h.bf16 %v5897
          %v6000 = vunpack.c.l.bf16 %v5898
          %v6001 = vunpack.c.h.bf16 %v5898
          %v6002 = vunpack.c.l.bf16 %v5899
          %v6003 = vunpack.c.h.bf16 %v5899
          %v6004 = vunpack.c.l.bf16 %v5900
          %v6005 = vunpack.c.h.bf16 %v5900
          %v6006 = vunpack.c.l.bf16 %v5901
          %v6007 = vunpack.c.h.bf16 %v5901
          %v6008 = vunpack.c.l.bf16 %v5902
          %v6009 = vunpack.c.h.bf16 %v5902
          %v6010 = vunpack.c.l.bf16 %v5903
          %v6011 = vunpack.c.h.bf16 %v5903
          %v6012 = vunpack.c.l.bf16 %v5904
          %v6013 = vunpack.c.h.bf16 %v5904
          %v6014 = vunpack.c.l.bf16 %v5905
          %v6015 = vunpack.c.h.bf16 %v5905
          %v6016 = vunpack.c.l.bf16 %v5906
          %v6017 = vunpack.c.h.bf16 %v5906
          %v6018 = vunpack.c.l.bf16 %v5907
          %v6019 = vunpack.c.h.bf16 %v5907
          %v6020 = vunpack.c.l.bf16 %v5908
          %v6021 = vunpack.c.h.bf16 %v5908
          %v6022 = vunpack.c.l.bf16 %v5909
          %v6023 = vunpack.c.h.bf16 %v5909
          %v6024 = vunpack.c.l.bf16 %v5910
          %v6025 = vunpack.c.h.bf16 %v5910
          %v6026 = vunpack.c.l.bf16 %v5911
          %v6027 = vunpack.c.h.bf16 %v5911
          %v6028 = vunpack.c.l.bf16 %v5912
          %v6029 = vunpack.c.h.bf16 %v5912
          %v6030 = vunpack.c.l.bf16 %v5913
          %v6031 = vunpack.c.h.bf16 %v5913
          %v6032 = vunpack.c.l.bf16 %v5914
          %v6033 = vunpack.c.h.bf16 %v5914
          %v6034 = vunpack.c.l.bf16 %v5915
          %v6035 = vunpack.c.h.bf16 %v5915
          %v6036 = vunpack.c.l.bf16 %v5916
          %v6037 = vunpack.c.h.bf16 %v5916
          %v6038 = vunpack.c.l.bf16 %v5917
          %v6039 = vunpack.c.h.bf16 %v5917
          %v6040 = vunpack.c.l.bf16 %v5918
          %v6041 = vunpack.c.h.bf16 %v5918
          %v6042 = vunpack.c.l.bf16 %v5919
          %v6043 = vunpack.c.h.bf16 %v5919
          %v6044 = vunpack.c.l.bf16 %v5920
          %v6045 = vunpack.c.h.bf16 %v5920
          %v6046 = vunpack.c.l.bf16 %v5921
          %v6047 = vunpack.c.h.bf16 %v5921
          %v6048 = vunpack.c.l.bf16 %v5922
          %v6049 = vunpack.c.h.bf16 %v5922
          %v6050 = vunpack.c.l.bf16 %v5923
          %v6051 = vunpack.c.h.bf16 %v5923
          %v6052 = vunpack.c.l.bf16 %v5924
          %v6053 = vunpack.c.h.bf16 %v5924
          %v6054 = vunpack.c.l.bf16 %v5925
          %v6055 = vunpack.c.h.bf16 %v5925
          %v6056 = vunpack.c.l.bf16 %v5926
          %v6057 = vunpack.c.h.bf16 %v5926
          %v6058 = vunpack.c.l.bf16 %v5927
          %v6059 = vunpack.c.h.bf16 %v5927
          %v6060 = vunpack.c.l.bf16 %v5928
          %v6061 = vunpack.c.h.bf16 %v5928
          %v6062 = vunpack.c.l.bf16 %v5929
          %v6063 = vunpack.c.h.bf16 %v5929
          %v6064 = vunpack.c.l.bf16 %v5930
          %v6065 = vunpack.c.h.bf16 %v5930
          %v6066 = vunpack.c.l.bf16 %v5931
          %v6067 = vunpack.c.h.bf16 %v5931
          %v6068 = vunpack.c.l.bf16 %v5932
          %v6069 = vunpack.c.h.bf16 %v5932
          %v6070 = vunpack.c.l.bf16 %v5933
          %v6071 = vunpack.c.h.bf16 %v5933
          %v6072 = vunpack.c.l.bf16 %v5934
          %v6073 = vunpack.c.h.bf16 %v5934
          %v6074 = vunpack.c.l.bf16 %v5935
          %v6075 = vunpack.c.h.bf16 %v5935
          %v6076 = vunpack.c.l.bf16 %v5936
          %v6077 = vunpack.c.h.bf16 %v5936
          %v6078 = vunpack.c.l.bf16 %v5937
          %v6079 = vunpack.c.h.bf16 %v5937
          %v6080 = vunpack.c.l.bf16 %v5938
          %v6081 = vunpack.c.h.bf16 %v5938
          %v6082 = vunpack.c.l.bf16 %v5939
          %v6083 = vunpack.c.h.bf16 %v5939
          %v6084 = vunpack.c.l.bf16 %v5940
          %v6085 = vunpack.c.h.bf16 %v5940
          %v6086 = vunpack.c.l.bf16 %v5941
          %v6087 = vunpack.c.h.bf16 %v5941
          %v6088 = vunpack.c.l.bf16 %v5942
          %v6089 = vunpack.c.h.bf16 %v5942
          %v6090 = vunpack.c.l.bf16 %v5943
          %v6091 = vunpack.c.h.bf16 %v5943
          %v6092 = vunpack.c.l.bf16 %v5944
          %v6093 = vunpack.c.h.bf16 %v5944
          %v6094 = vunpack.c.l.bf16 %v5945
          %v6095 = vunpack.c.h.bf16 %v5945
          %v6096 = vunpack.c.l.bf16 %v5946
          %v6097 = vunpack.c.h.bf16 %v5946
          %v6098 = vunpack.c.l.bf16 %v5947
          %v6099 = vunpack.c.h.bf16 %v5947
          %v6100 = vunpack.c.l.bf16 %v5948
          %v6101 = vunpack.c.h.bf16 %v5948
          %v6102 = vunpack.c.l.bf16 %v5949
          %v6103 = vunpack.c.h.bf16 %v5949
          %v6104 = vunpack.c.l.bf16 %v5950
          %v6105 = vunpack.c.h.bf16 %v5950
          %v6106 = vunpack.c.l.bf16 %v5951
          %v6107 = vunpack.c.h.bf16 %v5951
          %v6108 = vunpack.c.l.bf16 %v5952
          %v6109 = vunpack.c.h.bf16 %v5952
          %v6110 = vunpack.c.l.bf16 %v5953
          %v6111 = vunpack.c.h.bf16 %v5953
          %v6112 = vunpack.c.l.bf16 %v5954
          %v6113 = vunpack.c.h.bf16 %v5954
          %v6114 = vunpack.c.l.bf16 %v5955
          %v6115 = vunpack.c.h.bf16 %v5955
          %6117 = vset.pattern.permute.xlu0 0
          %6118 = vperm.xlu0 %6117, %v5796
          %v6119 = vpop.permute.xlu0 %6118
          %6122 = vset.pattern.permute.xlu0 0
          %6123 = vperm.xlu0 %6122, %v5797
          %v6124 = vpop.permute.xlu0 %6123
          %6127 = vset.pattern.permute.xlu0 0
          %6128 = vperm.xlu0 %6127, %v5798
          %v6129 = vpop.permute.xlu0 %6128
          %6132 = vset.pattern.permute.xlu0 0
          %6133 = vperm.xlu0 %6132, %v5799
          %v6134 = vpop.permute.xlu0 %6133
          %6137 = vset.pattern.permute.xlu0 0
          %6138 = vperm.xlu0 %6137, %v5800
          %v6139 = vpop.permute.xlu0 %6138
          %6142 = vset.pattern.permute.xlu0 0
          %6143 = vperm.xlu0 %6142, %v5801
          %v6144 = vpop.permute.xlu0 %6143
          %6147 = vset.pattern.permute.xlu0 0
          %6148 = vperm.xlu0 %6147, %v5802
          %v6149 = vpop.permute.xlu0 %6148
          %6152 = vset.pattern.permute.xlu0 0
          %6153 = vperm.xlu0 %6152, %v5803
          %v6154 = vpop.permute.xlu0 %6153
          %6157 = vset.pattern.permute.xlu0 0
          %6158 = vperm.xlu0 %6157, %v5804
          %v6159 = vpop.permute.xlu0 %6158
          %6162 = vset.pattern.permute.xlu0 0
          %6163 = vperm.xlu0 %6162, %v5805
          %v6164 = vpop.permute.xlu0 %6163
          %6167 = vset.pattern.permute.xlu0 0
          %6168 = vperm.xlu0 %6167, %v5806
          %v6169 = vpop.permute.xlu0 %6168
          %6172 = vset.pattern.permute.xlu0 0
          %6173 = vperm.xlu0 %6172, %v5807
          %v6174 = vpop.permute.xlu0 %6173
          %6177 = vset.pattern.permute.xlu0 0
          %6178 = vperm.xlu0 %6177, %v5808
          %v6179 = vpop.permute.xlu0 %6178
          %6182 = vset.pattern.permute.xlu0 0
          %6183 = vperm.xlu0 %6182, %v5809
          %v6184 = vpop.permute.xlu0 %6183
          %6187 = vset.pattern.permute.xlu0 0
          %6188 = vperm.xlu0 %6187, %v5810
          %v6189 = vpop.permute.xlu0 %6188
          %6192 = vset.pattern.permute.xlu0 0
          %6193 = vperm.xlu0 %6192, %v5811
          %v6194 = vpop.permute.xlu0 %6193
          %6197 = vset.pattern.permute.xlu0 0
          %6198 = vperm.xlu0 %6197, %v5812
          %v6199 = vpop.permute.xlu0 %6198
          %6202 = vset.pattern.permute.xlu0 0
          %6203 = vperm.xlu0 %6202, %v5813
          %v6204 = vpop.permute.xlu0 %6203
          %6207 = vset.pattern.permute.xlu0 0
          %6208 = vperm.xlu0 %6207, %v5814
          %v6209 = vpop.permute.xlu0 %6208
          %6212 = vset.pattern.permute.xlu0 0
          %6213 = vperm.xlu0 %6212, %v5815
          %v6214 = vpop.permute.xlu0 %6213
          %6217 = vset.pattern.permute.xlu0 0
          %6218 = vperm.xlu0 %6217, %v5816
          %v6219 = vpop.permute.xlu0 %6218
          %6222 = vset.pattern.permute.xlu0 0
          %6223 = vperm.xlu0 %6222, %v5817
          %v6224 = vpop.permute.xlu0 %6223
          %6227 = vset.pattern.permute.xlu0 0
          %6228 = vperm.xlu0 %6227, %v5818
          %v6229 = vpop.permute.xlu0 %6228
          %6232 = vset.pattern.permute.xlu0 0
          %6233 = vperm.xlu0 %6232, %v5819
          %v6234 = vpop.permute.xlu0 %6233
          %6237 = vset.pattern.permute.xlu0 0
          %6238 = vperm.xlu0 %6237, %v5820
          %v6239 = vpop.permute.xlu0 %6238
          %6242 = vset.pattern.permute.xlu0 0
          %6243 = vperm.xlu0 %6242, %v5821
          %v6244 = vpop.permute.xlu0 %6243
          %6247 = vset.pattern.permute.xlu0 0
          %6248 = vperm.xlu0 %6247, %v5822
          %v6249 = vpop.permute.xlu0 %6248
          %6252 = vset.pattern.permute.xlu0 0
          %6253 = vperm.xlu0 %6252, %v5823
          %v6254 = vpop.permute.xlu0 %6253
          %6257 = vset.pattern.permute.xlu0 0
          %6258 = vperm.xlu0 %6257, %v5824
          %v6259 = vpop.permute.xlu0 %6258
          %6262 = vset.pattern.permute.xlu0 0
          %6263 = vperm.xlu0 %6262, %v5825
          %v6264 = vpop.permute.xlu0 %6263
          %6267 = vset.pattern.permute.xlu0 0
          %6268 = vperm.xlu0 %6267, %v5826
          %v6269 = vpop.permute.xlu0 %6268
          %6272 = vset.pattern.permute.xlu0 0
          %6273 = vperm.xlu0 %6272, %v5827
          %v6274 = vpop.permute.xlu0 %6273
          %6277 = vset.pattern.permute.xlu0 0
          %6278 = vperm.xlu0 %6277, %v5828
          %v6279 = vpop.permute.xlu0 %6278
          %6282 = vset.pattern.permute.xlu0 0
          %6283 = vperm.xlu0 %6282, %v5829
          %v6284 = vpop.permute.xlu0 %6283
          %6287 = vset.pattern.permute.xlu0 0
          %6288 = vperm.xlu0 %6287, %v5830
          %v6289 = vpop.permute.xlu0 %6288
          %6292 = vset.pattern.permute.xlu0 0
          %6293 = vperm.xlu0 %6292, %v5831
          %v6294 = vpop.permute.xlu0 %6293
          %6297 = vset.pattern.permute.xlu0 0
          %6298 = vperm.xlu0 %6297, %v5832
          %v6299 = vpop.permute.xlu0 %6298
          %6302 = vset.pattern.permute.xlu0 0
          %6303 = vperm.xlu0 %6302, %v5833
          %v6304 = vpop.permute.xlu0 %6303
          %6307 = vset.pattern.permute.xlu0 0
          %6308 = vperm.xlu0 %6307, %v5834
          %v6309 = vpop.permute.xlu0 %6308
          %6312 = vset.pattern.permute.xlu0 0
          %6313 = vperm.xlu0 %6312, %v5835
          %v6314 = vpop.permute.xlu0 %6313
          %6317 = vset.pattern.permute.xlu0 0
          %6318 = vperm.xlu0 %6317, %v5836
          %v6319 = vpop.permute.xlu0 %6318
          %6322 = vset.pattern.permute.xlu0 0
          %6323 = vperm.xlu0 %6322, %v5837
          %v6324 = vpop.permute.xlu0 %6323
          %6327 = vset.pattern.permute.xlu0 0
          %6328 = vperm.xlu0 %6327, %v5838
          %v6329 = vpop.permute.xlu0 %6328
          %6332 = vset.pattern.permute.xlu0 0
          %6333 = vperm.xlu0 %6332, %v5839
          %v6334 = vpop.permute.xlu0 %6333
          %6337 = vset.pattern.permute.xlu0 0
          %6338 = vperm.xlu0 %6337, %v5840
          %v6339 = vpop.permute.xlu0 %6338
          %6342 = vset.pattern.permute.xlu0 0
          %6343 = vperm.xlu0 %6342, %v5841
          %v6344 = vpop.permute.xlu0 %6343
          %6347 = vset.pattern.permute.xlu0 0
          %6348 = vperm.xlu0 %6347, %v5842
          %v6349 = vpop.permute.xlu0 %6348
          %6352 = vset.pattern.permute.xlu0 0
          %6353 = vperm.xlu0 %6352, %v5843
          %v6354 = vpop.permute.xlu0 %6353
          %6357 = vset.pattern.permute.xlu0 0
          %6358 = vperm.xlu0 %6357, %v5844
          %v6359 = vpop.permute.xlu0 %6358
          %6362 = vset.pattern.permute.xlu0 0
          %6363 = vperm.xlu0 %6362, %v5845
          %v6364 = vpop.permute.xlu0 %6363
          %6367 = vset.pattern.permute.xlu0 0
          %6368 = vperm.xlu0 %6367, %v5846
          %v6369 = vpop.permute.xlu0 %6368
          %6372 = vset.pattern.permute.xlu0 0
          %6373 = vperm.xlu0 %6372, %v5847
          %v6374 = vpop.permute.xlu0 %6373
          %6377 = vset.pattern.permute.xlu0 0
          %6378 = vperm.xlu0 %6377, %v5848
          %v6379 = vpop.permute.xlu0 %6378
          %6382 = vset.pattern.permute.xlu0 0
          %6383 = vperm.xlu0 %6382, %v5849
          %v6384 = vpop.permute.xlu0 %6383
          %6387 = vset.pattern.permute.xlu0 0
          %6388 = vperm.xlu0 %6387, %v5850
          %v6389 = vpop.permute.xlu0 %6388
          %6392 = vset.pattern.permute.xlu0 0
          %6393 = vperm.xlu0 %6392, %v5851
          %v6394 = vpop.permute.xlu0 %6393
          %6397 = vset.pattern.permute.xlu0 0
          %6398 = vperm.xlu0 %6397, %v5852
          %v6399 = vpop.permute.xlu0 %6398
          %6402 = vset.pattern.permute.xlu0 0
          %6403 = vperm.xlu0 %6402, %v5853
          %v6404 = vpop.permute.xlu0 %6403
          %6407 = vset.pattern.permute.xlu0 0
          %6408 = vperm.xlu0 %6407, %v5854
          %v6409 = vpop.permute.xlu0 %6408
          %6412 = vset.pattern.permute.xlu0 0
          %6413 = vperm.xlu0 %6412, %v5855
          %v6414 = vpop.permute.xlu0 %6413
          %6417 = vset.pattern.permute.xlu0 0
          %6418 = vperm.xlu0 %6417, %v5856
          %v6419 = vpop.permute.xlu0 %6418
          %6422 = vset.pattern.permute.xlu0 0
          %6423 = vperm.xlu0 %6422, %v5857
          %v6424 = vpop.permute.xlu0 %6423
          %6427 = vset.pattern.permute.xlu0 0
          %6428 = vperm.xlu0 %6427, %v5858
          %v6429 = vpop.permute.xlu0 %6428
          %6432 = vset.pattern.permute.xlu0 0
          %6433 = vperm.xlu0 %6432, %v5859
          %v6434 = vpop.permute.xlu0 %6433
          %6437 = vset.pattern.permute.xlu0 0
          %6438 = vperm.xlu0 %6437, %v5860
          %v6439 = vpop.permute.xlu0 %6438
          %6442 = vset.pattern.permute.xlu0 0
          %6443 = vperm.xlu0 %6442, %v5861
          %v6444 = vpop.permute.xlu0 %6443
          %6447 = vset.pattern.permute.xlu0 0
          %6448 = vperm.xlu0 %6447, %v5862
          %v6449 = vpop.permute.xlu0 %6448
          %6452 = vset.pattern.permute.xlu0 0
          %6453 = vperm.xlu0 %6452, %v5863
          %v6454 = vpop.permute.xlu0 %6453
          %6457 = vset.pattern.permute.xlu0 0
          %6458 = vperm.xlu0 %6457, %v5864
          %v6459 = vpop.permute.xlu0 %6458
          %6462 = vset.pattern.permute.xlu0 0
          %6463 = vperm.xlu0 %6462, %v5865
          %v6464 = vpop.permute.xlu0 %6463
          %6467 = vset.pattern.permute.xlu0 0
          %6468 = vperm.xlu0 %6467, %v5866
          %v6469 = vpop.permute.xlu0 %6468
          %6472 = vset.pattern.permute.xlu0 0
          %6473 = vperm.xlu0 %6472, %v5867
          %v6474 = vpop.permute.xlu0 %6473
          %6477 = vset.pattern.permute.xlu0 0
          %6478 = vperm.xlu0 %6477, %v5868
          %v6479 = vpop.permute.xlu0 %6478
          %6482 = vset.pattern.permute.xlu0 0
          %6483 = vperm.xlu0 %6482, %v5869
          %v6484 = vpop.permute.xlu0 %6483
          %6487 = vset.pattern.permute.xlu0 0
          %6488 = vperm.xlu0 %6487, %v5870
          %v6489 = vpop.permute.xlu0 %6488
          %6492 = vset.pattern.permute.xlu0 0
          %6493 = vperm.xlu0 %6492, %v5871
          %v6494 = vpop.permute.xlu0 %6493
          %6497 = vset.pattern.permute.xlu0 0
          %6498 = vperm.xlu0 %6497, %v5872
          %v6499 = vpop.permute.xlu0 %6498
          %6502 = vset.pattern.permute.xlu0 0
          %6503 = vperm.xlu0 %6502, %v5873
          %v6504 = vpop.permute.xlu0 %6503
          %6507 = vset.pattern.permute.xlu0 0
          %6508 = vperm.xlu0 %6507, %v5874
          %v6509 = vpop.permute.xlu0 %6508
          %6512 = vset.pattern.permute.xlu0 0
          %6513 = vperm.xlu0 %6512, %v5875
          %v6514 = vpop.permute.xlu0 %6513
          %v6516 = vmul.f32 %v6119, %v5956
          %v6517 = vmul.f32 %v6119, %v5957
          %v6518 = vmul.f32 %v6124, %v5958
          %v6519 = vmul.f32 %v6124, %v5959
          %v6520 = vmul.f32 %v6129, %v5960
          %v6521 = vmul.f32 %v6129, %v5961
          %v6522 = vmul.f32 %v6134, %v5962
          %v6523 = vmul.f32 %v6134, %v5963
          %v6524 = vmul.f32 %v6139, %v5964
          %v6525 = vmul.f32 %v6139, %v5965
          %v6526 = vmul.f32 %v6144, %v5966
          %v6527 = vmul.f32 %v6144, %v5967
          %v6528 = vmul.f32 %v6149, %v5968
          %v6529 = vmul.f32 %v6149, %v5969
          %v6530 = vmul.f32 %v6154, %v5970
          %v6531 = vmul.f32 %v6154, %v5971
          %v6532 = vmul.f32 %v6159, %v5972
          %v6533 = vmul.f32 %v6159, %v5973
          %v6534 = vmul.f32 %v6164, %v5974
          %v6535 = vmul.f32 %v6164, %v5975
          %v6536 = vmul.f32 %v6169, %v5976
          %v6537 = vmul.f32 %v6169, %v5977
          %v6538 = vmul.f32 %v6174, %v5978
          %v6539 = vmul.f32 %v6174, %v5979
          %v6540 = vmul.f32 %v6179, %v5980
          %v6541 = vmul.f32 %v6179, %v5981
          %v6542 = vmul.f32 %v6184, %v5982
          %v6543 = vmul.f32 %v6184, %v5983
          %v6544 = vmul.f32 %v6189, %v5984
          %v6545 = vmul.f32 %v6189, %v5985
          %v6546 = vmul.f32 %v6194, %v5986
          %v6547 = vmul.f32 %v6194, %v5987
          %v6548 = vmul.f32 %v6199, %v5988
          %v6549 = vmul.f32 %v6199, %v5989
          %v6550 = vmul.f32 %v6204, %v5990
          %v6551 = vmul.f32 %v6204, %v5991
          %v6552 = vmul.f32 %v6209, %v5992
          %v6553 = vmul.f32 %v6209, %v5993
          %v6554 = vmul.f32 %v6214, %v5994
          %v6555 = vmul.f32 %v6214, %v5995
          %v6556 = vmul.f32 %v6219, %v5996
          %v6557 = vmul.f32 %v6219, %v5997
          %v6558 = vmul.f32 %v6224, %v5998
          %v6559 = vmul.f32 %v6224, %v5999
          %v6560 = vmul.f32 %v6229, %v6000
          %v6561 = vmul.f32 %v6229, %v6001
          %v6562 = vmul.f32 %v6234, %v6002
          %v6563 = vmul.f32 %v6234, %v6003
          %v6564 = vmul.f32 %v6239, %v6004
          %v6565 = vmul.f32 %v6239, %v6005
          %v6566 = vmul.f32 %v6244, %v6006
          %v6567 = vmul.f32 %v6244, %v6007
          %v6568 = vmul.f32 %v6249, %v6008
          %v6569 = vmul.f32 %v6249, %v6009
          %v6570 = vmul.f32 %v6254, %v6010
          %v6571 = vmul.f32 %v6254, %v6011
          %v6572 = vmul.f32 %v6259, %v6012
          %v6573 = vmul.f32 %v6259, %v6013
          %v6574 = vmul.f32 %v6264, %v6014
          %v6575 = vmul.f32 %v6264, %v6015
          %v6576 = vmul.f32 %v6269, %v6016
          %v6577 = vmul.f32 %v6269, %v6017
          %v6578 = vmul.f32 %v6274, %v6018
          %v6579 = vmul.f32 %v6274, %v6019
          %v6580 = vmul.f32 %v6279, %v6020
          %v6581 = vmul.f32 %v6279, %v6021
          %v6582 = vmul.f32 %v6284, %v6022
          %v6583 = vmul.f32 %v6284, %v6023
          %v6584 = vmul.f32 %v6289, %v6024
          %v6585 = vmul.f32 %v6289, %v6025
          %v6586 = vmul.f32 %v6294, %v6026
          %v6587 = vmul.f32 %v6294, %v6027
          %v6588 = vmul.f32 %v6299, %v6028
          %v6589 = vmul.f32 %v6299, %v6029
          %v6590 = vmul.f32 %v6304, %v6030
          %v6591 = vmul.f32 %v6304, %v6031
          %v6592 = vmul.f32 %v6309, %v6032
          %v6593 = vmul.f32 %v6309, %v6033
          %v6594 = vmul.f32 %v6314, %v6034
          %v6595 = vmul.f32 %v6314, %v6035
          %v6596 = vmul.f32 %v6319, %v6036
          %v6597 = vmul.f32 %v6319, %v6037
          %v6598 = vmul.f32 %v6324, %v6038
          %v6599 = vmul.f32 %v6324, %v6039
          %v6600 = vmul.f32 %v6329, %v6040
          %v6601 = vmul.f32 %v6329, %v6041
          %v6602 = vmul.f32 %v6334, %v6042
          %v6603 = vmul.f32 %v6334, %v6043
          %v6604 = vmul.f32 %v6339, %v6044
          %v6605 = vmul.f32 %v6339, %v6045
          %v6606 = vmul.f32 %v6344, %v6046
          %v6607 = vmul.f32 %v6344, %v6047
          %v6608 = vmul.f32 %v6349, %v6048
          %v6609 = vmul.f32 %v6349, %v6049
          %v6610 = vmul.f32 %v6354, %v6050
          %v6611 = vmul.f32 %v6354, %v6051
          %v6612 = vmul.f32 %v6359, %v6052
          %v6613 = vmul.f32 %v6359, %v6053
          %v6614 = vmul.f32 %v6364, %v6054
          %v6615 = vmul.f32 %v6364, %v6055
          %v6616 = vmul.f32 %v6369, %v6056
          %v6617 = vmul.f32 %v6369, %v6057
          %v6618 = vmul.f32 %v6374, %v6058
          %v6619 = vmul.f32 %v6374, %v6059
          %v6620 = vmul.f32 %v6379, %v6060
          %v6621 = vmul.f32 %v6379, %v6061
          %v6622 = vmul.f32 %v6384, %v6062
          %v6623 = vmul.f32 %v6384, %v6063
          %v6624 = vmul.f32 %v6389, %v6064
          %v6625 = vmul.f32 %v6389, %v6065
          %v6626 = vmul.f32 %v6394, %v6066
          %v6627 = vmul.f32 %v6394, %v6067
          %v6628 = vmul.f32 %v6399, %v6068
          %v6629 = vmul.f32 %v6399, %v6069
          %v6630 = vmul.f32 %v6404, %v6070
          %v6631 = vmul.f32 %v6404, %v6071
          %v6632 = vmul.f32 %v6409, %v6072
          %v6633 = vmul.f32 %v6409, %v6073
          %v6634 = vmul.f32 %v6414, %v6074
          %v6635 = vmul.f32 %v6414, %v6075
          %v6636 = vmul.f32 %v6419, %v6076
          %v6637 = vmul.f32 %v6419, %v6077
          %v6638 = vmul.f32 %v6424, %v6078
          %v6639 = vmul.f32 %v6424, %v6079
          %v6640 = vmul.f32 %v6429, %v6080
          %v6641 = vmul.f32 %v6429, %v6081
          %v6642 = vmul.f32 %v6434, %v6082
          %v6643 = vmul.f32 %v6434, %v6083
          %v6644 = vmul.f32 %v6439, %v6084
          %v6645 = vmul.f32 %v6439, %v6085
          %v6646 = vmul.f32 %v6444, %v6086
          %v6647 = vmul.f32 %v6444, %v6087
          %v6648 = vmul.f32 %v6449, %v6088
          %v6649 = vmul.f32 %v6449, %v6089
          %v6650 = vmul.f32 %v6454, %v6090
          %v6651 = vmul.f32 %v6454, %v6091
          %v6652 = vmul.f32 %v6459, %v6092
          %v6653 = vmul.f32 %v6459, %v6093
          %v6654 = vmul.f32 %v6464, %v6094
          %v6655 = vmul.f32 %v6464, %v6095
          %v6656 = vmul.f32 %v6469, %v6096
          %v6657 = vmul.f32 %v6469, %v6097
          %v6658 = vmul.f32 %v6474, %v6098
          %v6659 = vmul.f32 %v6474, %v6099
          %v6660 = vmul.f32 %v6479, %v6100
          %v6661 = vmul.f32 %v6479, %v6101
          %v6662 = vmul.f32 %v6484, %v6102
          %v6663 = vmul.f32 %v6484, %v6103
          %v6664 = vmul.f32 %v6489, %v6104
          %v6665 = vmul.f32 %v6489, %v6105
          %v6666 = vmul.f32 %v6494, %v6106
          %v6667 = vmul.f32 %v6494, %v6107
          %v6668 = vmul.f32 %v6499, %v6108
          %v6669 = vmul.f32 %v6499, %v6109
          %v6670 = vmul.f32 %v6504, %v6110
          %v6671 = vmul.f32 %v6504, %v6111
          %v6672 = vmul.f32 %v6509, %v6112
          %v6673 = vmul.f32 %v6509, %v6113
          %v6674 = vmul.f32 %v6514, %v6114
          %v6675 = vmul.f32 %v6514, %v6115
          %v6676 = vadd.f32 %v6516, %v6518
          %v6677 = vadd.f32 %v6676, %v6520
          %v6678 = vadd.f32 %v6677, %v6522
          %v6679 = vadd.f32 %v6678, %v6524
          %v6680 = vadd.f32 %v6679, %v6526
          %v6681 = vadd.f32 %v6680, %v6528
          %v6682 = vadd.f32 %v6681, %v6530
          %v6683 = vadd.f32 %v6682, %v6532
          %v6684 = vadd.f32 %v6683, %v6534
          %v6685 = vadd.f32 %v6684, %v6536
          %v6686 = vadd.f32 %v6685, %v6538
          %v6687 = vadd.f32 %v6686, %v6540
          %v6688 = vadd.f32 %v6687, %v6542
          %v6689 = vadd.f32 %v6688, %v6544
          %v6690 = vadd.f32 %v6689, %v6546
          %v6691 = vadd.f32 %v6690, %v6548
          %v6692 = vadd.f32 %v6691, %v6550
          %v6693 = vadd.f32 %v6692, %v6552
          %v6694 = vadd.f32 %v6693, %v6554
          %v6695 = vadd.f32 %v6694, %v6556
          %v6696 = vadd.f32 %v6695, %v6558
          %v6697 = vadd.f32 %v6696, %v6560
          %v6698 = vadd.f32 %v6697, %v6562
          %v6699 = vadd.f32 %v6698, %v6564
          %v6700 = vadd.f32 %v6699, %v6566
          %v6701 = vadd.f32 %v6700, %v6568
          %v6702 = vadd.f32 %v6701, %v6570
          %v6703 = vadd.f32 %v6702, %v6572
          %v6704 = vadd.f32 %v6703, %v6574
          %v6705 = vadd.f32 %v6704, %v6576
          %v6706 = vadd.f32 %v6705, %v6578
          %v6707 = vadd.f32 %v6706, %v6580
          %v6708 = vadd.f32 %v6707, %v6582
          %v6709 = vadd.f32 %v6708, %v6584
          %v6710 = vadd.f32 %v6709, %v6586
          %v6711 = vadd.f32 %v6710, %v6588
          %v6712 = vadd.f32 %v6711, %v6590
          %v6713 = vadd.f32 %v6712, %v6592
          %v6714 = vadd.f32 %v6713, %v6594
          %v6715 = vadd.f32 %v6714, %v6596
          %v6716 = vadd.f32 %v6715, %v6598
          %v6717 = vadd.f32 %v6716, %v6600
          %v6718 = vadd.f32 %v6717, %v6602
          %v6719 = vadd.f32 %v6718, %v6604
          %v6720 = vadd.f32 %v6719, %v6606
          %v6721 = vadd.f32 %v6720, %v6608
          %v6722 = vadd.f32 %v6721, %v6610
          %v6723 = vadd.f32 %v6722, %v6612
          %v6724 = vadd.f32 %v6723, %v6614
          %v6725 = vadd.f32 %v6724, %v6616
          %v6726 = vadd.f32 %v6725, %v6618
          %v6727 = vadd.f32 %v6726, %v6620
          %v6728 = vadd.f32 %v6727, %v6622
          %v6729 = vadd.f32 %v6728, %v6624
          %v6730 = vadd.f32 %v6729, %v6626
          %v6731 = vadd.f32 %v6730, %v6628
          %v6732 = vadd.f32 %v6731, %v6630
          %v6733 = vadd.f32 %v6732, %v6632
          %v6734 = vadd.f32 %v6733, %v6634
          %v6735 = vadd.f32 %v6734, %v6636
          %v6736 = vadd.f32 %v6735, %v6638
          %v6737 = vadd.f32 %v6736, %v6640
          %v6738 = vadd.f32 %v6737, %v6642
          %v6739 = vadd.f32 %v6738, %v6644
          %v6740 = vadd.f32 %v6739, %v6646
          %v6741 = vadd.f32 %v6740, %v6648
          %v6742 = vadd.f32 %v6741, %v6650
          %v6743 = vadd.f32 %v6742, %v6652
          %v6744 = vadd.f32 %v6743, %v6654
          %v6745 = vadd.f32 %v6744, %v6656
          %v6746 = vadd.f32 %v6745, %v6658
          %v6747 = vadd.f32 %v6746, %v6660
          %v6748 = vadd.f32 %v6747, %v6662
          %v6749 = vadd.f32 %v6748, %v6664
          %v6750 = vadd.f32 %v6749, %v6666
          %v6751 = vadd.f32 %v6750, %v6668
          %v6752 = vadd.f32 %v6751, %v6670
          %v6753 = vadd.f32 %v6752, %v6672
          %v6754 = vadd.f32 %v6753, %v6674
          %v6755 = vrot.slane %v6754, 4
          %v6756 = vadd.f32 %v6754, %v6755
          %v6757 = vrot.slane %v6756, 2
          %v6758 = vadd.f32 %v6756, %v6757
          %v6759 = vrot.slane %v6758, 1
          %v6760 = vadd.f32 %v6758, %v6759
          %vm6761 = vcmask 588800
          %v6762 = vsel %vm6761, %v6517, 0.0
          %v6763 = vsel %vm6761, %v6519, 0.0
          %v6764 = vadd.f32 %v6762, %v6763
          %v6765 = vsel %vm6761, %v6521, 0.0
          %v6766 = vadd.f32 %v6764, %v6765
          %v6767 = vsel %vm6761, %v6523, 0.0
          %v6768 = vadd.f32 %v6766, %v6767
          %v6769 = vsel %vm6761, %v6525, 0.0
          %v6770 = vadd.f32 %v6768, %v6769
          %v6771 = vsel %vm6761, %v6527, 0.0
          %v6772 = vadd.f32 %v6770, %v6771
          %v6773 = vsel %vm6761, %v6529, 0.0
          %v6774 = vadd.f32 %v6772, %v6773
          %v6775 = vsel %vm6761, %v6531, 0.0
          %v6776 = vadd.f32 %v6774, %v6775
          %v6777 = vsel %vm6761, %v6533, 0.0
          %v6778 = vadd.f32 %v6776, %v6777
          %v6779 = vsel %vm6761, %v6535, 0.0
          %v6780 = vadd.f32 %v6778, %v6779
          %v6781 = vsel %vm6761, %v6537, 0.0
          %v6782 = vadd.f32 %v6780, %v6781
          %v6783 = vsel %vm6761, %v6539, 0.0
          %v6784 = vadd.f32 %v6782, %v6783
          %v6785 = vsel %vm6761, %v6541, 0.0
          %v6786 = vadd.f32 %v6784, %v6785
          %v6787 = vsel %vm6761, %v6543, 0.0
          %v6788 = vadd.f32 %v6786, %v6787
          %v6789 = vsel %vm6761, %v6545, 0.0
          %v6790 = vadd.f32 %v6788, %v6789
          %v6791 = vsel %vm6761, %v6547, 0.0
          %v6792 = vadd.f32 %v6790, %v6791
          %v6793 = vsel %vm6761, %v6549, 0.0
          %v6794 = vadd.f32 %v6792, %v6793
          %v6795 = vsel %vm6761, %v6551, 0.0
          %v6796 = vadd.f32 %v6794, %v6795
          %v6797 = vsel %vm6761, %v6553, 0.0
          %v6798 = vadd.f32 %v6796, %v6797
          %v6799 = vsel %vm6761, %v6555, 0.0
          %v6800 = vadd.f32 %v6798, %v6799
          %v6801 = vsel %vm6761, %v6557, 0.0
          %v6802 = vadd.f32 %v6800, %v6801
          %v6803 = vsel %vm6761, %v6559, 0.0
          %v6804 = vadd.f32 %v6802, %v6803
          %v6805 = vsel %vm6761, %v6561, 0.0
          %v6806 = vadd.f32 %v6804, %v6805
          %v6807 = vsel %vm6761, %v6563, 0.0
          %v6808 = vadd.f32 %v6806, %v6807
          %v6809 = vsel %vm6761, %v6565, 0.0
          %v6810 = vadd.f32 %v6808, %v6809
          %v6811 = vsel %vm6761, %v6567, 0.0
          %v6812 = vadd.f32 %v6810, %v6811
          %v6813 = vsel %vm6761, %v6569, 0.0
          %v6814 = vadd.f32 %v6812, %v6813
          %v6815 = vsel %vm6761, %v6571, 0.0
          %v6816 = vadd.f32 %v6814, %v6815
          %v6817 = vsel %vm6761, %v6573, 0.0
          %v6818 = vadd.f32 %v6816, %v6817
          %v6819 = vsel %vm6761, %v6575, 0.0
          %v6820 = vadd.f32 %v6818, %v6819
          %v6821 = vsel %vm6761, %v6577, 0.0
          %v6822 = vadd.f32 %v6820, %v6821
          %v6823 = vsel %vm6761, %v6579, 0.0
          %v6824 = vadd.f32 %v6822, %v6823
          %v6825 = vsel %vm6761, %v6581, 0.0
          %v6826 = vadd.f32 %v6824, %v6825
          %v6827 = vsel %vm6761, %v6583, 0.0
          %v6828 = vadd.f32 %v6826, %v6827
          %v6829 = vsel %vm6761, %v6585, 0.0
          %v6830 = vadd.f32 %v6828, %v6829
          %v6831 = vsel %vm6761, %v6587, 0.0
          %v6832 = vadd.f32 %v6830, %v6831
          %v6833 = vsel %vm6761, %v6589, 0.0
          %v6834 = vadd.f32 %v6832, %v6833
          %v6835 = vsel %vm6761, %v6591, 0.0
          %v6836 = vadd.f32 %v6834, %v6835
          %v6837 = vsel %vm6761, %v6593, 0.0
          %v6838 = vadd.f32 %v6836, %v6837
          %v6839 = vsel %vm6761, %v6595, 0.0
          %v6840 = vadd.f32 %v6838, %v6839
          %v6841 = vsel %vm6761, %v6597, 0.0
          %v6842 = vadd.f32 %v6840, %v6841
          %v6843 = vsel %vm6761, %v6599, 0.0
          %v6844 = vadd.f32 %v6842, %v6843
          %v6845 = vsel %vm6761, %v6601, 0.0
          %v6846 = vadd.f32 %v6844, %v6845
          %v6847 = vsel %vm6761, %v6603, 0.0
          %v6848 = vadd.f32 %v6846, %v6847
          %v6849 = vsel %vm6761, %v6605, 0.0
          %v6850 = vadd.f32 %v6848, %v6849
          %v6851 = vsel %vm6761, %v6607, 0.0
          %v6852 = vadd.f32 %v6850, %v6851
          %v6853 = vsel %vm6761, %v6609, 0.0
          %v6854 = vadd.f32 %v6852, %v6853
          %v6855 = vsel %vm6761, %v6611, 0.0
          %v6856 = vadd.f32 %v6854, %v6855
          %v6857 = vsel %vm6761, %v6613, 0.0
          %v6858 = vadd.f32 %v6856, %v6857
          %v6859 = vsel %vm6761, %v6615, 0.0
          %v6860 = vadd.f32 %v6858, %v6859
          %v6861 = vsel %vm6761, %v6617, 0.0
          %v6862 = vadd.f32 %v6860, %v6861
          %v6863 = vsel %vm6761, %v6619, 0.0
          %v6864 = vadd.f32 %v6862, %v6863
          %v6865 = vsel %vm6761, %v6621, 0.0
          %v6866 = vadd.f32 %v6864, %v6865
          %v6867 = vsel %vm6761, %v6623, 0.0
          %v6868 = vadd.f32 %v6866, %v6867
          %v6869 = vsel %vm6761, %v6625, 0.0
          %v6870 = vadd.f32 %v6868, %v6869
          %v6871 = vsel %vm6761, %v6627, 0.0
          %v6872 = vadd.f32 %v6870, %v6871
          %v6873 = vsel %vm6761, %v6629, 0.0
          %v6874 = vadd.f32 %v6872, %v6873
          %v6875 = vsel %vm6761, %v6631, 0.0
          %v6876 = vadd.f32 %v6874, %v6875
          %v6877 = vsel %vm6761, %v6633, 0.0
          %v6878 = vadd.f32 %v6876, %v6877
          %v6879 = vsel %vm6761, %v6635, 0.0
          %v6880 = vadd.f32 %v6878, %v6879
          %v6881 = vsel %vm6761, %v6637, 0.0
          %v6882 = vadd.f32 %v6880, %v6881
          %v6883 = vsel %vm6761, %v6639, 0.0
          %v6884 = vadd.f32 %v6882, %v6883
          %v6885 = vsel %vm6761, %v6641, 0.0
          %v6886 = vadd.f32 %v6884, %v6885
          %v6887 = vsel %vm6761, %v6643, 0.0
          %v6888 = vadd.f32 %v6886, %v6887
          %v6889 = vsel %vm6761, %v6645, 0.0
          %v6890 = vadd.f32 %v6888, %v6889
          %v6891 = vsel %vm6761, %v6647, 0.0
          %v6892 = vadd.f32 %v6890, %v6891
          %v6893 = vsel %vm6761, %v6649, 0.0
          %v6894 = vadd.f32 %v6892, %v6893
          %v6895 = vsel %vm6761, %v6651, 0.0
          %v6896 = vadd.f32 %v6894, %v6895
          %v6897 = vsel %vm6761, %v6653, 0.0
          %v6898 = vadd.f32 %v6896, %v6897
          %v6899 = vsel %vm6761, %v6655, 0.0
          %v6900 = vadd.f32 %v6898, %v6899
          %v6901 = vsel %vm6761, %v6657, 0.0
          %v6902 = vadd.f32 %v6900, %v6901
          %v6903 = vsel %vm6761, %v6659, 0.0
          %v6904 = vadd.f32 %v6902, %v6903
          %v6905 = vsel %vm6761, %v6661, 0.0
          %v6906 = vadd.f32 %v6904, %v6905
          %v6907 = vsel %vm6761, %v6663, 0.0
          %v6908 = vadd.f32 %v6906, %v6907
          %v6909 = vsel %vm6761, %v6665, 0.0
          %v6910 = vadd.f32 %v6908, %v6909
          %v6911 = vsel %vm6761, %v6667, 0.0
          %v6912 = vadd.f32 %v6910, %v6911
          %v6913 = vsel %vm6761, %v6669, 0.0
          %v6914 = vadd.f32 %v6912, %v6913
          %v6915 = vsel %vm6761, %v6671, 0.0
          %v6916 = vadd.f32 %v6914, %v6915
          %v6917 = vsel %vm6761, %v6673, 0.0
          %v6918 = vadd.f32 %v6916, %v6917
          %v6919 = vsel %vm6761, %v6675, 0.0
          %v6920 = vadd.f32 %v6918, %v6919
          %v6921 = vrot.slane %v6920, 4
          %v6922 = vadd.f32 %v6920, %v6921
          %v6923 = vrot.slane %v6922, 2
          %v6924 = vadd.f32 %v6922, %v6923
          %v6925 = vrot.slane %v6924, 1
          %v6926 = vadd.f32 %v6924, %v6925
          %v6927 = vadd.f32 %v6760, %v4405
          %v6928 = vadd.f32 %v6926, %v4406
          %v6929 = vmax.f32 %v6927, 0.0
          %v6930 = vmax.f32 %v6928, 0.0
          %v6931 = vpack.c.bf16 %v6929, %v6929
          %v6932 = vpack.c.bf16 %v6930, %v6930
          %v6933 = vld [vmem:[%s3] sm:$0xf]
          %v6934 = vld [vmem:[%s3 + $0x4] sm:$0xf]
          %v6935 = vld [vmem:[%s3 + $0x8] sm:$0xf]
          %v6936 = vld [vmem:[%s3 + $0xc] sm:$0xf]
          %v6937 = vld [vmem:[%s3 + $0x10] sm:$0xf]
          %v6938 = vld [vmem:[%s3 + $0x14] sm:$0xf]
          %v6939 = vld [vmem:[%s3 + $0x18] sm:$0xf]
          %v6940 = vld [vmem:[%s3 + $0x1c] sm:$0xf]
          %v6941 = vld [vmem:[%s3 + $0x20] sm:$0xf]
          %v6942 = vld [vmem:[%s3 + $0x24] sm:$0xf]
          %v6943 = vld [vmem:[%s3 + $0x28] sm:$0xf]
          %v6944 = vld [vmem:[%s3 + $0x2c] sm:$0xf]
          %v6945 = vld [vmem:[%s3 + $0x30] sm:$0xf]
          %v6946 = vld [vmem:[%s3 + $0x34] sm:$0xf]
          %v6947 = vld [vmem:[%s3 + $0x38] sm:$0xf]
          %v6948 = vld [vmem:[%s3 + $0x3c] sm:$0xf]
          %v6949 = vld [vmem:[%s3 + $0x40] sm:$0xf]
          %v6950 = vld [vmem:[%s3 + $0x44] sm:$0xf]
          %v6951 = vld [vmem:[%s3 + $0x48] sm:$0xf]
          %v6952 = vld [vmem:[%s3 + $0x4c] sm:$0xf]
          %v6953 = vld [vmem:[%s3 + $0x50] sm:$0xf]
          %v6954 = vld [vmem:[%s3 + $0x54] sm:$0xf]
          %v6955 = vld [vmem:[%s3 + $0x58] sm:$0xf]
          %v6956 = vld [vmem:[%s3 + $0x5c] sm:$0xf]
          %v6957 = vld [vmem:[%s3 + $0x60] sm:$0xf]
          %v6960 = vrot.slane %v6931, 1
          %v6961 = vrot.slane %v6932, 1
          %v6988 = vunpack.c.l.b16 %v6933
          %v6989 = vunpack.c.l.b16 %v6934
          %v6990 = vunpack.c.l.b16 %v6935
          %v6991 = vunpack.c.l.b16 %v6936
          %v6992 = vunpack.c.l.b16 %v6937
          %v6993 = vunpack.c.l.b16 %v6938
          %v6994 = vunpack.c.l.b16 %v6939
          %v6995 = vunpack.c.l.b16 %v6940
          %v6996 = vunpack.c.l.b16 %v6941
          %v6997 = vunpack.c.l.b16 %v6942
          %v6998 = vunpack.c.l.b16 %v6943
          %v6999 = vunpack.c.l.b16 %v6944
          %v7000 = vunpack.c.l.b16 %v6945
          %v7001 = vunpack.c.l.b16 %v6946
          %v7002 = vunpack.c.l.b16 %v6947
          %v7003 = vunpack.c.l.b16 %v6948
          %v7004 = vunpack.c.l.b16 %v6949
          %v7005 = vunpack.c.l.b16 %v6950
          %v7006 = vunpack.c.l.b16 %v6951
          %v7007 = vunpack.c.l.b16 %v6952
          %v7008 = vunpack.c.l.b16 %v6953
          %v7009 = vunpack.c.l.b16 %v6954
          %v7010 = vunpack.c.l.b16 %v6955
          %v7011 = vunpack.c.l.b16 %v6956
          %v7012 = vunpack.c.l.b16 %v6957
          %v7013 = vpack.c.b16 %v6989, %v6988
          %v7014 = vpack.c.b16 %v6991, %v6990
          %v7015 = vpack.c.b16 %v6993, %v6992
          %v7016 = vpack.c.b16 %v6995, %v6994
          %v7017 = vpack.c.b16 %v6997, %v6996
          %v7018 = vpack.c.b16 %v6999, %v6998
          %v7019 = vpack.c.b16 %v7001, %v7000
          %v7020 = vpack.c.b16 %v7003, %v7002
          %v7021 = vpack.c.b16 %v7005, %v7004
          %v7022 = vpack.c.b16 %v7007, %v7006
          %v7023 = vpack.c.b16 %v7009, %v7008
          %v7024 = vpack.c.b16 %v7011, %v7010
          %v7025 = vpack.c.b16 %v7012, %v7012
          %v7039 = vrot.slane %v4405, 3
          %v7042 = vsel %vm6761, %v6961, 0
          %vm7044 = vcmask 1043456
          %v7046 = vsel %vm7044, %v7025, 0
          %7048 = vmatprep.subr.bf16.mxu0 0
          %7049 = vmatpush1.bf16.msra.mxu0 %v7013
          %7050 = vmatprep.subr.bf16.mxu0 0
          %7051 = vmatpush1.bf16.msra.mxu0 %v7014
          %7052 = vmatprep.subr.bf16.mxu0 0
          %7053 = vmatpush1.bf16.msra.mxu0 %v7015
          %7054 = vmatprep.subr.bf16.mxu0 0
          %7055 = vmatpush1.bf16.msra.mxu0 %v7016
          %7056 = vmatprep.subr.bf16.mxu0 0
          %7057 = vmatpush1.bf16.msra.mxu0 %v7017
          %7058 = vmatprep.subr.bf16.mxu0 0
          %7059 = vmatpush1.bf16.msra.mxu0 %v7018
          %7060 = vmatprep.subr.bf16.mxu0 0
          %7061 = vmatpush1.bf16.msra.mxu0 %v7019
          %7062 = vmatprep.subr.bf16.mxu0 0
          %7063 = vmatpush1.bf16.msra.mxu0 %v7020
          %7064 = vmatprep.subr.bf16.mxu0 0
          %7065 = vmatpush1.bf16.msra.mxu0 %v7021
          %7066 = vmatprep.subr.bf16.mxu0 0
          %7067 = vmatpush1.bf16.msra.mxu0 %v7022
          %7068 = vmatprep.subr.bf16.mxu0 0
          %7069 = vmatpush1.bf16.msra.mxu0 %v7023
          %7070 = vmatprep.subr.bf16.mxu0 0
          %7071 = vmatpush1.bf16.msra.mxu0 %v7024
          %7072 = vmatprep.subr.bf16.mxu0 0
          %7073 = vmatpush1.bf16.msra.mxu0 %v7046
          %7074 = vmatprep.subr.bf16.mxu0 0
          %7075 = vmatpush1.bf16.msra.mxu0 0
          %7076 = vmatprep.subr.bf16.mxu0 0
          %7077 = vmatpush1.bf16.msra.mxu0 0
          %7078 = vmatprep.subr.bf16.mxu0 0
          %7079 = vmatpush1.bf16.msra.mxu0 0
          %7080 = vmatprep.mubr.bf16.mxu0 %v7042
          %7081 = vmatmul.mubr.bf16.gmra.mrb[0].mxu0 %v6960
          %v7082 = vpop.f32.mrb[0].mxu0
          %v7083 = vadd.f32 %v7039, %v7082
          %v7084 = vpop.f32.mrb[0].mxu0
          %v7085 = vpop.f32.mrb[0].mxu0
          %v7086 = vpop.f32.mrb[0].mxu0
          %7087 = vdwg.mxu0
          %vm7088 = vcmask 57344
          %v7089 = vsel %vm7088, %v7083, -inf
          %7090 = vmax.xlane.f32.xlu0 %v7089
          %v7091 = vpop.xlane.xlu0 %7090
          %v7092 = vsub.f32 %v7083, %v7091
          %v7093 = vmul.f32 %v7092, 1.442695
          %v7094 = vpow.pop %v7093
          %v7095 = vsel %vm7088, %v7094, 0.0
          %7096 = vadd.xlane.f32.xlu0 %v7095
          %v7097 = vpop.xlane.xlu0 %7096
          %v7098 = vlog2.pop %v7097
          %v7099 = vmul.f32 %v7098, 0.6931472
          %v7100 = vadd.f32 %v7099, %v7091
          %v7101 = vsub.f32 %v7083, %v7100
          %7102 = vst.msk [vmem:[#allocation4] sm:$0x1] %vm7088, %v7101
        $region74: #{speechrec_forward.1} parent=61 // pred_fallthru
          _
        // Predicated region
        $region75: #{speechrec_forward.1} parent=61 // pred_check
          %p7103 = pneg %p145
        $region76: #{speechrec_forward.1} parent=61 // pred_check_branch
          %7105 = sbr.rel (%p7103) target = $region78
        $region77: #{speechrec_forward.1} parent=61 // pred_region
          %s7107 = ssub.s32 16, 16
          %7108 = vsyncadd [#allocation5], %s7107
          %s7110 = sshll.u32 [#allocation4], 4
          %s7111 = int_to_ptr.vmem [resolvable:$true] %s7110
          %7113 = dma.vmem_to_hbm [thread:$0]  %s7111, 16, %s5, [#allocation5]
        $region78: #{speechrec_forward.1} parent=61 // pred_fallthru
          _
        // Predicated region
        $region79: #{speechrec_forward.1} parent=61 // pred_check
          %p7114 = pneg %p145
        $region80: #{speechrec_forward.1} parent=61 // pred_check_branch
          %7116 = sbr.rel (%p7114) target = $region82
        $region81: #{speechrec_forward.1} parent=61 // pred_region
          %7117 = dma.done [#allocation5], 16
        $region82: #{speechrec_forward.1} parent=61 // pred_fallthru
          _
      $region62: #{speechrec_forward.1} parent=5 // pred_fallthru
        _
      %p7118 = scmp.le.s32.totalorder 2, %s12
      // Predicated region
      $region83: #{speechrec_forward.1} parent=5 // pred_check
        %p7119 = pneg %p7118
      $region84: #{speechrec_forward.1} parent=5 // pred_check_branch
        %7121 = sbr.rel (%p7119) target = $region86
      $region85: #{speechrec_forward.1} parent=5 // pred_region
        %s7122 = ssub.s32 %s12, 2
      $region86: #{speechrec_forward.1} parent=5 // pred_fallthru
        _
    $region6: #{speechrec_forward.1} parent=1 // loop_footer
      %s16 = sadd.s32 1, %s12
    $region7: #{speechrec_forward.1} parent=1 // loop_footer_branch
      %11 = sbr.rel target = $region3
    $region8: #{speechrec_forward.1} parent=1 // loop_exit
      _
    %7123 = vsyncpa [#allocation5], 1
    %s7124 = scalar_lea.sflag [#allocation5], 1
    %7125 = vsyncpa %s7124, 1

</llo_original>
